<compile_context>
chip_gen: v7x
topology: tpu7x:2x2x1
jax: 0.10.0
libtpu: 0.0.40
codegen_flags: <defaults>
</compile_context>

<pallas_src>
import math

import jax
import jax.numpy as jnp
from jax import lax
from jax.experimental import pallas as pl
from jax.experimental.pallas import tpu as pltpu

NUM_GROUPS = 32   # detectron2 get_norm('GN', C) -> nn.GroupNorm(32, C)
GN_EPS = 1e-5


def _round_up(x, m):
    return ((x + m - 1) // m) * m


def _bands(H, TH):
    """Static (row_start, rows) band list, including a remainder band."""
    nfull = H // TH
    bands = [(i * TH, TH) for i in range(nfull)]
    rem = H - nfull * TH
    if rem:
        bands.append((nfull * TH, rem))
    return bands


def _pick_row_tile(H, W, Cmax, Cd, budget_bytes=6 << 20, cap=None):
    """Largest row-band height whose per-band working set fits the budget.
    Prefers TH*W % 128 == 0 (lane-dense projection stores), then % 8 (sublanes);
    prefers TH | H but accepts a remainder band."""
    hi = H if cap is None else max(1, min(int(cap), H))
    per_row = W * (2 * Cd * 4 + Cmax * 2 + Cd * 2)   # f32 acc + f32 conv tile + bf16 slabs
    best = 1
    for th in range(1, hi + 1):
        if th * per_row > budget_bytes:
            break
        best = th
    for align in (128, 8):
        cands = [t for t in range(best, 0, -1) if (t * W) % align == 0]
        if cands:
            for t in cands:
                if H % t == 0:
                    return t
            return cands[0]
    return best


def _vmem_limit_bytes(need):
    try:
        cap = int(pltpu.get_tpu_info().vmem_capacity_bytes)
    except Exception:
        cap = 64 << 20
    # never clamp below what the kernel actually needs
    return int(min(max(need, 32 << 20), max(need, int(cap * 0.9))))


# ---------------------------------------------------------------------------
# Fused kernel: [conv3x3 -> GN -> ReLU] x num_convs  ->  1x1 projection (+bias)
# One grid step = one batch image.  All activations stay in VMEM.
# ---------------------------------------------------------------------------
def _make_fused_kernel(H, W, Cin, Cin_p, Cd, Cmax, Kp, TH, num_convs):
    HW = H * W
    nfull = H // TH
    rem = H - nfull * TH
    M = TH * W
    inv_hw = 1.0 / float(HW)
    bf = jnp.bfloat16

    def kernel(*refs):
        x_ref, a_ref, wp_ref, bp_ref = refs[:4]
        layer_refs = refs[4:4 + 3 * num_convs]
        o_ref = refs[4 + 3 * num_convs]
        halo = refs[4 + 3 * num_convs + 1]     # (H+2, W+2, Cmax) bf16
        conv_s = refs[4 + 3 * num_convs + 2]   # (H, W, Cd) f32 pre-GN conv output

        # ---- zero ONLY the halo border strips (interior is overwritten each layer) ----
        zrow = jnp.zeros((1, W + 2, Cmax), bf)
        halo[0:1, :, :] = zrow
        halo[H + 1:H + 2, :, :] = zrow
        zcol = jnp.zeros((H + 2, 1, Cmax), bf)
        halo[:, 0:1, :] = zcol
        halo[:, W + 1:W + 2, :] = zcol

        # ---- stage the (channel-unpadded) input into the halo interior ----
        if Cin_p > Cin:
            halo[1:H + 1, 1:W + 1, :Cin_p] = jnp.zeros((H, W, Cin_p), bf)
        halo[1:H + 1, 1:W + 1, :Cin] = x_ref[0]

        wp_v = wp_ref[...]            # (Kp, Cd) bf16 (pre-transposed)
        bp_v = bp_ref[...]            # (Kp, 1)  f32

        for li in range(num_convs):
            w_ref = layer_refs[3 * li]        # (9, Cl, Cd) bf16
            g_ref = layer_refs[3 * li + 1]    # (1, Cd) f32
            b_ref = layer_refs[3 * li + 2]    # (1, Cd) f32
            Cl = Cin_p if li == 0 else Cd
            is_last = li == num_convs - 1

            # ---- pass 1: 3x3 conv as 9 accumulating K=Cl MXU dots per row band ----
            def conv_band(r0, th, _w=w_ref, _cl=Cl):
                m = th * W
                acc = jnp.zeros((m, Cd), jnp.float32)
                for kh in range(3):
                    for kw in range(3):
                        slab = halo[pl.ds(r0 + kh, th), kw:kw + W, :_cl]
                        acc = acc + jnp.dot(slab.reshape(m, _cl), _w[kh * 3 + kw],
                                            preferred_element_type=jnp.float32)
                conv_s[pl.ds(r0, th), :, :] = acc.reshape(th, W, Cd)
                return jnp.sum(acc, axis=0, keepdims=True)       # (1, Cd) f32

            sum_c = lax.fori_loop(0, nfull,
                                  lambda ch, s: s + conv_band(ch * TH, TH),
                                  jnp.zeros((1, Cd), jnp.float32))
            if rem:
                sum_c = sum_c + conv_band(nfull * TH, rem)

            # per-group mean broadcast to channels: one tiny (1,Cd)x(Cd,Cd) f32 dot
            mean_b = jnp.dot(sum_c * inv_hw, a_ref[...],
                             preferred_element_type=jnp.float32)

            # ---- pass 2: centered two-pass variance (f32) ----
            def var_band(r0, th):
                xb = conv_s[pl.ds(r0, th), :, :].reshape(th * W, Cd)
                d = xb - mean_b
                return jnp.sum(d * d, axis=0, keepdims=True)

            ss_c = lax.fori_loop(0, nfull,
                                 lambda ch, s: s + var_band(ch * TH, TH),
                                 jnp.zeros((1, Cd), jnp.float32))
            if rem:
                ss_c = ss_c + var_band(nfull * TH, rem)

            var_b = jnp.dot(ss_c * inv_hw, a_ref[...],
                            preferred_element_type=jnp.float32)
            scale = g_ref[...] * lax.rsqrt(var_b + GN_EPS)       # (1, Cd)
            shift = b_ref[...] - mean_b * scale                  # (1, Cd)

            # ---- pass 3 ----
            if not is_last:
                # normalize + ReLU -> next layer's input (halo interior, bf16)
                def gn_band(ch, c):
                    r0 = ch * TH
                    xb = conv_s[pl.ds(r0, TH), :, :].reshape(M, Cd)
                    y = jnp.maximum(xb * scale + shift, 0.0)
                    halo[pl.ds(r0 + 1, TH), 1:W + 1, :Cd] = (
                        y.reshape(TH, W, Cd).astype(bf))
                    return c
                lax.fori_loop(0, nfull, gn_band, 0)
                if rem:
                    r0 = nfull * TH
                    xb = conv_s[r0:H, :, :].reshape(rem * W, Cd)
                    y = jnp.maximum(xb * scale + shift, 0.0)
                    halo[r0 + 1:H + 1, 1:W + 1, :Cd] = (
                        y.reshape(rem, W, Cd).astype(bf))
            else:
                # normalize + ReLU fused with the 1x1 projection, emitted directly in
                # (Kp, H*W) layout.  Static band loop -> static, 128-aligned lane
                # offsets for the output stores (no dynamic lane indexing).
                for (r0, th) in _bands(H, TH):
                    m = th * W
                    xb = conv_s[r0:r0 + th, :, :].reshape(m, Cd)
                    y = jnp.maximum(xb * scale + shift, 0.0).astype(bf)
                    zt = lax.dot_general(wp_v, y, (((1,), (1,)), ((), ())),
                                         preferred_element_type=jnp.float32)
                    o_ref[0, :, r0 * W:r0 * W + m] = zt + bp_v

    return kernel


# ---------------------------------------------------------------------------
# Wrapper: parameter layout plumbing + pallas_call
# ---------------------------------------------------------------------------
def embedding_branch_forward(x_nchw, params, *, max_band_rows=None):
    """NCHW in, NCHW out (matches the PyTorch module)."""
    N, Cin, H, W = x_nchw.shape
    convs = params["mask_convs"]
    num_convs = len(convs)
    assert num_convs >= 1
    dim = convs[0][0].shape[3]
    assert dim % NUM_GROUPS == 0
    cg = dim // NUM_GROUPS
    wp, bp = params["proj"]
    kdim = wp.shape[1]

    Cin_p = _round_up(Cin, 128)            # lane-dense layer-0 contraction
    Cd = _round_up(dim, 128)               # lane-dense conv channels (padded GN groups)
    Cmax = max(Cin_p, Cd)
    Kp = _round_up(kdim, 8)                # sublane-padded projection rows
    HW = H * W

    # only wrapper-side layout op: NCHW -> NHWC, bf16 MXU operands
    x = jnp.transpose(x_nchw, (0, 2, 3, 1)).astype(jnp.bfloat16)

    # group-averaging matrix over the (zero-padded) channel axis; padded channels form
    # extra all-zero groups which normalize to 0 and are killed by zero-padded weights.
    gid = jnp.arange(Cd) // cg
    a_mat = (gid[:, None] == gid[None, :]).astype(jnp.float32) / float(cg)

    layer_args, layer_specs = [], []
    flops = 0
    for li, (w, gamma, beta) in enumerate(convs):
        Cl = Cin_p if li == 0 else Cd
        cin_real = w.shape[2]
        w_pad = jnp.zeros((3, 3, Cl, Cd), jnp.float32).at[:, :, :cin_real, :dim].set(w)
        w9 = w_pad.reshape(9, Cl, Cd).astype(jnp.bfloat16)
        g = jnp.zeros((1, Cd), jnp.float32).at[0, :dim].set(gamma)
        b = jnp.zeros((1, Cd), jnp.float32).at[0, :dim].set(beta)
        layer_args += [w9, g, b]
        layer_specs += [
            pl.BlockSpec((9, Cl, Cd), lambda n: (0, 0, 0)),
            pl.BlockSpec((1, Cd), lambda n: (0, 0)),
            pl.BlockSpec((1, Cd), lambda n: (0, 0)),
        ]
        flops += 2 * HW * 9 * Cl * Cd

    wp_t = (jnp.zeros((Kp, Cd), jnp.float32)
            .at[:kdim, :dim].set(wp.T).astype(jnp.bfloat16))
    bp_p = jnp.zeros((Kp, 1), jnp.float32).at[:kdim, 0].set(bp)
    flops += 2 * HW * Cd * Kp
    flops *= N

    TH = _pick_row_tile(H, W, Cmax, Cd, cap=max_band_rows)
    kernel = _make_fused_kernel(H, W, Cin, Cin_p, Cd, Cmax, Kp, TH, num_convs)

    in_specs = [
        pl.BlockSpec((1, H, W, Cin), lambda n: (n, 0, 0, 0)),
        pl.BlockSpec((Cd, Cd), lambda n: (0, 0)),
        pl.BlockSpec((Kp, Cd), lambda n: (0, 0)),
        pl.BlockSpec((Kp, 1), lambda n: (0, 0)),
    ] + layer_specs
    out_specs = pl.BlockSpec((1, Kp, HW), lambda n: (n, 0, 0))
    out_shape = jax.ShapeDtypeStruct((N, Kp, HW), jnp.float32)

    scratch_shapes = [
        pltpu.VMEM((H + 2, W + 2, Cmax), jnp.bfloat16),   # single halo buffer (all layers)
        pltpu.VMEM((H, W, Cd), jnp.float32),              # pre-GN conv output
    ]

    # --- VMEM budget from the actual footprint (never clamp below need) ---
    w_bytes = sum(int(a.size) * a.dtype.itemsize for a in layer_args)
    w_bytes += Cd * Cd * 4 + Kp * Cd * 2 + Kp * 4
    scratch_bytes = (H + 2) * (W + 2) * Cmax * 2 + H * W * Cd * 4
    io_bytes = 2 * (H * W * Cin * 2 + Kp * HW * 4)        # double-buffered in/out blocks
    need = scratch_bytes + io_bytes + 2 * w_bytes + (4 << 20)
    vmem_limit = _vmem_limit_bytes(need)

    bytes_accessed = (N * H * W * Cin * 2) + w_bytes + (N * Kp * HW * 4)
    cost = pl.CostEstimate(flops=int(flops),
                           transcendentals=int(N * num_convs * Cd),
                           bytes_accessed=int(bytes_accessed))

    out = pl.pallas_call(
        kernel,
        out_shape=out_shape,
        grid=(N,),
        in_specs=in_specs,
        out_specs=out_specs,
        scratch_shapes=scratch_shapes,
        compiler_params=pltpu.CompilerParams(
            dimension_semantics=("parallel",),
            vmem_limit_bytes=vmem_limit),
        cost_estimate=cost,
    )(x, a_mat, wp_t, bp_p, *layer_args)

    # (N, Kp, H*W) f32 -> (N, kdim, H, W): a cheap row slice + free reshape (no transpose)
    return out[:, :kdim, :].reshape(N, kdim, H, W)


# ---------------------------------------------------------------------------
# Module parameters (c2_msra_fill init) and a pure-JAX reference with the same
# precision policy (bf16 MXU operands, f32 accumulation / GroupNorm stats).
# ---------------------------------------------------------------------------
def init_params(key, in_channels, dim, num_convs, kernel_dim):
    params = {"mask_convs": [], "proj": None}
    cin = in_channels
    for _ in range(num_convs):
        key, sub = jax.random.split(key)
        std = math.sqrt(2.0 / (dim * 3 * 3))                          # fan_out, relu
        w = jax.random.normal(sub, (3, 3, cin, dim), jnp.float32) * std    # HWIO
        params["mask_convs"].append(
            (w, jnp.ones((dim,), jnp.float32), jnp.zeros((dim,), jnp.float32)))
        cin = dim
    key, sub = jax.random.split(key)
    std = math.sqrt(2.0 / kernel_dim)
    wp = jax.random.normal(sub, (dim, kernel_dim), jnp.float32) * std
    bp = jnp.zeros((kernel_dim,), jnp.float32)
    params["proj"] = (wp, bp)
    return params


def _ref_forward(x_nchw, params):
    x = jnp.transpose(x_nchw, (0, 2, 3, 1)).astype(jnp.bfloat16)
    for (w, gamma, beta) in params["mask_convs"]:
        y = lax.conv_general_dilated(
            x, w.astype(jnp.bfloat16), (1, 1), "SAME",
            dimension_numbers=("NHWC", "HWIO", "NHWC"),
            preferred_element_type=jnp.float32)
        N, H, W, C = y.shape
        g = y.reshape(N, H, W, NUM_GROUPS, C // NUM_GROUPS)
        mean = g.mean(axis=(1, 2, 4), keepdims=True)
        var = ((g - mean) ** 2).mean(axis=(1, 2, 4), keepdims=True)
        y = ((g - mean) * lax.rsqrt(var + GN_EPS)).reshape(N, H, W, C) * gamma + beta
        x = jnp.maximum(y, 0.0).astype(jnp.bfloat16)
    wp, bp = params["proj"]
    y = jnp.einsum("nhwc,ck->nhwk", x, wp.astype(jnp.bfloat16),
                   preferred_element_type=jnp.float32) + bp
    return jnp.transpose(y, (0, 3, 1, 2))


if __name__ == "__main__":
    key = jax.random.PRNGKey(0)

    configs = [
        # (N, Cin, H, W, dim, num_convs, kernel_dim, max_band_rows)
        (2, 4, 16, 16, 64, 2, 16, None),   # single band (static fast path)
        (1, 3, 20, 16, 64, 2, 16, 8),      # multi-band fori_loop + remainder band
    ]
    for (N, Cin, H, W, dim, num_convs, kdim, cap) in configs:
        key, xkey, pkey = jax.random.split(key, 3)
        x = jax.random.normal(xkey, (N, Cin, H, W), jnp.float32)
        params = init_params(pkey, Cin, dim, num_convs, kdim)

        out = jax.block_until_ready(
            embedding_branch_forward(x, params, max_band_rows=cap))
        assert out.shape == (N, kdim, H, W), out.shape

        ref = jax.block_until_ready(_ref_forward(x, params))
        err = float(jnp.max(jnp.abs(out - ref)))
        assert jnp.allclose(out, ref, rtol=1e-2, atol=1e-2), err

    print("KERNEL_OK")
</pallas_src>

<mosaic_0001>
module attributes {stable_mosaic.version = 11 : i64} {
  func.func @kernel(%arg0: i32, %arg1: memref<1x16x16x4xbf16, #tpu.memory_space<vmem>>, %arg2: memref<128x128xf32, #tpu.memory_space<vmem>>, %arg3: memref<16x128xbf16, #tpu.memory_space<vmem>>, %arg4: memref<16x1xf32, #tpu.memory_space<vmem>>, %arg5: memref<9x128x128xbf16, #tpu.memory_space<vmem>>, %arg6: memref<1x128xf32, #tpu.memory_space<vmem>>, %arg7: memref<1x128xf32, #tpu.memory_space<vmem>>, %arg8: memref<9x128x128xbf16, #tpu.memory_space<vmem>>, %arg9: memref<1x128xf32, #tpu.memory_space<vmem>>, %arg10: memref<1x128xf32, #tpu.memory_space<vmem>>, %arg11: memref<1x16x256xf32, #tpu.memory_space<vmem>>, %arg12: memref<18x18x128xbf16, #tpu.memory_space<vmem>>, %arg13: memref<16x16x128xf32, #tpu.memory_space<vmem>>) attributes {dimension_semantics = [#tpu.dimension_semantics<parallel>], iteration_bounds = array<i64: 2>, scalar_prefetch = 0 : i64, scratch_operands = 2 : i64, tpu.core_type = #tpu.core_type<tc>, window_params = [{transform_indices = @transform_0, window_bounds = array<i64: 1, 16, 16, 4>}, {pipeline_mode = #tpu.pipeline_mode<synchronous>, transform_indices = @transform_1, window_bounds = array<i64: 128, 128>}, {pipeline_mode = #tpu.pipeline_mode<synchronous>, transform_indices = @transform_2, window_bounds = array<i64: 16, 128>}, {pipeline_mode = #tpu.pipeline_mode<synchronous>, transform_indices = @transform_3, window_bounds = array<i64: 16, 1>}, {pipeline_mode = #tpu.pipeline_mode<synchronous>, transform_indices = @transform_4, window_bounds = array<i64: 9, 128, 128>}, {pipeline_mode = #tpu.pipeline_mode<synchronous>, transform_indices = @transform_5, window_bounds = array<i64: 1, 128>}, {pipeline_mode = #tpu.pipeline_mode<synchronous>, transform_indices = @transform_6, window_bounds = array<i64: 1, 128>}, {pipeline_mode = #tpu.pipeline_mode<synchronous>, transform_indices = @transform_7, window_bounds = array<i64: 9, 128, 128>}, {pipeline_mode = #tpu.pipeline_mode<synchronous>, transform_indices = @transform_8, window_bounds = array<i64: 1, 128>}, {pipeline_mode = #tpu.pipeline_mode<synchronous>, transform_indices = @transform_9, window_bounds = array<i64: 1, 128>}, {transform_indices = @transform_10, window_bounds = array<i64: 1, 16, 256>}]} {
    %cst = arith.constant 0.000000e+00 : bf16
    %0 = vector.broadcast %cst : bf16 to vector<1x18x128xbf16>
    %c0 = arith.constant 0 : index
    %c0_0 = arith.constant 0 : index
    %c0_1 = arith.constant 0 : index
    %1 = vector.load %arg12[%c0, %c0_0, %c0_1] : memref<18x18x128xbf16, #tpu.memory_space<vmem>>, vector<1x18x128xbf16>
    tpu.vector_store %arg12[%c0, %c0_0, %c0_1], %0 {strides = array<i32>} : memref<18x18x128xbf16, #tpu.memory_space<vmem>>, vector<1x18x128xbf16>,
    %c17 = arith.constant 17 : index
    %c0_2 = arith.constant 0 : index
    %c0_3 = arith.constant 0 : index
    %2 = vector.load %arg12[%c17, %c0_2, %c0_3] : memref<18x18x128xbf16, #tpu.memory_space<vmem>>, vector<1x18x128xbf16>
    tpu.vector_store %arg12[%c17, %c0_2, %c0_3], %0 {strides = array<i32>} : memref<18x18x128xbf16, #tpu.memory_space<vmem>>, vector<1x18x128xbf16>,
    %cst_4 = arith.constant 0.000000e+00 : bf16
    %3 = vector.broadcast %cst_4 : bf16 to vector<18x1x128xbf16>
    %c0_5 = arith.constant 0 : index
    %c0_6 = arith.constant 0 : index
    %c0_7 = arith.constant 0 : index
    %4 = vector.load %arg12[%c0_5, %c0_6, %c0_7] : memref<18x18x128xbf16, #tpu.memory_space<vmem>>, vector<18x1x128xbf16>
    tpu.vector_store %arg12[%c0_5, %c0_6, %c0_7], %3 {strides = array<i32>} : memref<18x18x128xbf16, #tpu.memory_space<vmem>>, vector<18x1x128xbf16>,
    %c0_8 = arith.constant 0 : index
    %c17_9 = arith.constant 17 : index
    %c0_10 = arith.constant 0 : index
    %5 = vector.load %arg12[%c0_8, %c17_9, %c0_10] : memref<18x18x128xbf16, #tpu.memory_space<vmem>>, vector<18x1x128xbf16>
    tpu.vector_store %arg12[%c0_8, %c17_9, %c0_10], %3 {strides = array<i32>} : memref<18x18x128xbf16, #tpu.memory_space<vmem>>, vector<18x1x128xbf16>,
    %cst_11 = arith.constant 0.000000e+00 : bf16
    %6 = vector.broadcast %cst_11 : bf16 to vector<16x16x128xbf16>
    %c1 = arith.constant 1 : index
    %c1_12 = arith.constant 1 : index
    %c0_13 = arith.constant 0 : index
    %7 = vector.load %arg12[%c1, %c1_12, %c0_13] : memref<18x18x128xbf16, #tpu.memory_space<vmem>>, vector<16x16x128xbf16>
    tpu.vector_store %arg12[%c1, %c1_12, %c0_13], %6 {strides = array<i32>} : memref<18x18x128xbf16, #tpu.memory_space<vmem>>, vector<16x16x128xbf16>,
    %c0_14 = arith.constant 0 : index
    %c0_15 = arith.constant 0 : index
    %c0_16 = arith.constant 0 : index
    %c0_17 = arith.constant 0 : index
    %8 = vector.load %arg1[%c0_14, %c0_15, %c0_16, %c0_17] : memref<1x16x16x4xbf16, #tpu.memory_space<vmem>>, vector<1x16x16x4xbf16>
    %9 = vector.shape_cast %8 : vector<1x16x16x4xbf16> to vector<16x16x4xbf16>
    %c1_18 = arith.constant 1 : index
    %c1_19 = arith.constant 1 : index
    %c0_20 = arith.constant 0 : index
    %10 = vector.load %arg12[%c1_18, %c1_19, %c0_20] : memref<18x18x128xbf16, #tpu.memory_space<vmem>>, vector<16x16x4xbf16>
    tpu.vector_store %arg12[%c1_18, %c1_19, %c0_20], %9 {strides = array<i32>} : memref<18x18x128xbf16, #tpu.memory_space<vmem>>, vector<16x16x4xbf16>,
    %c0_21 = arith.constant 0 : index
    %c0_22 = arith.constant 0 : index
    %11 = vector.load %arg3[%c0_21, %c0_22] : memref<16x128xbf16, #tpu.memory_space<vmem>>, vector<16x128xbf16>
    %c0_23 = arith.constant 0 : index
    %c0_24 = arith.constant 0 : index
    %12 = vector.load %arg4[%c0_23, %c0_24] : memref<16x1xf32, #tpu.memory_space<vmem>>, vector<16x1xf32>
    %cst_25 = arith.constant 0.000000e+00 : f32
    %13 = vector.broadcast %cst_25 : f32 to vector<1x128xf32>
    %c0_i32 = arith.constant 0 : i32
    %c16_i32 = arith.constant 16 : i32
    %14 = arith.muli %c0_i32, %c16_i32 : i32
    %cst_26 = arith.constant 0.000000e+00 : f32
    %15 = vector.broadcast %cst_26 : f32 to vector<256x128xf32>
    %c0_i32_27 = arith.constant 0 : i32
    %16 = arith.addi %14, %c0_i32_27 : i32
    %17 = arith.index_cast %16 : i32 to index
    %c0_28 = arith.constant 0 : index
    %c0_29 = arith.constant 0 : index
    %18 = vector.load %arg12[%17, %c0_28, %c0_29] : memref<18x18x128xbf16, #tpu.memory_space<vmem>>, vector<16x16x128xbf16>
    %19 = vector.shape_cast %18 : vector<16x16x128xbf16> to vector<256x128xbf16>
    %c0_30 = arith.constant 0 : index
    %c0_31 = arith.constant 0 : index
    %c0_32 = arith.constant 0 : index
    %20 = vector.load %arg5[%c0_30, %c0_31, %c0_32] : memref<9x128x128xbf16, #tpu.memory_space<vmem>>, vector<1x128x128xbf16>
    %21 = vector.shape_cast %20 : vector<1x128x128xbf16> to vector<128x128xbf16>
    %cst_33 = arith.constant dense<0.000000e+00> : vector<256x128xf32>
    %22 = tpu.matmul %19, %21, %cst_33 {dimension_numbers = #tpu.dot_dimension_numbers<[1], [0], [0], [1], [0, 0, 1, 1], [], []>} : vector<256x128xbf16>, vector<128x128xbf16>, vector<256x128xf32> -> vector<256x128xf32>
    %23 = arith.addf %15, %22 : vector<256x128xf32>
    %c0_i32_34 = arith.constant 0 : i32
    %24 = arith.addi %14, %c0_i32_34 : i32
    %25 = arith.index_cast %24 : i32 to index
    %c1_35 = arith.constant 1 : index
    %c0_36 = arith.constant 0 : index
    %26 = vector.load %arg12[%25, %c1_35, %c0_36] : memref<18x18x128xbf16, #tpu.memory_space<vmem>>, vector<16x16x128xbf16>
    %27 = vector.shape_cast %26 : vector<16x16x128xbf16> to vector<256x128xbf16>
    %c1_37 = arith.constant 1 : index
    %c0_38 = arith.constant 0 : index
    %c0_39 = arith.constant 0 : index
    %28 = vector.load %arg5[%c1_37, %c0_38, %c0_39] : memref<9x128x128xbf16, #tpu.memory_space<vmem>>, vector<1x128x128xbf16>
    %29 = vector.shape_cast %28 : vector<1x128x128xbf16> to vector<128x128xbf16>
    %cst_40 = arith.constant dense<0.000000e+00> : vector<256x128xf32>
    %30 = tpu.matmul %27, %29, %cst_40 {dimension_numbers = #tpu.dot_dimension_numbers<[1], [0], [0], [1], [0, 0, 1, 1], [], []>} : vector<256x128xbf16>, vector<128x128xbf16>, vector<256x128xf32> -> vector<256x128xf32>
    %31 = arith.addf %23, %30 : vector<256x128xf32>
    %c0_i32_41 = arith.constant 0 : i32
    %32 = arith.addi %14, %c0_i32_41 : i32
    %33 = arith.index_cast %32 : i32 to index
    %c2 = arith.constant 2 : index
    %c0_42 = arith.constant 0 : index
    %34 = vector.load %arg12[%33, %c2, %c0_42] : memref<18x18x128xbf16, #tpu.memory_space<vmem>>, vector<16x16x128xbf16>
    %35 = vector.shape_cast %34 : vector<16x16x128xbf16> to vector<256x128xbf16>
    %c2_43 = arith.constant 2 : index
    %c0_44 = arith.constant 0 : index
    %c0_45 = arith.constant 0 : index
    %36 = vector.load %arg5[%c2_43, %c0_44, %c0_45] : memref<9x128x128xbf16, #tpu.memory_space<vmem>>, vector<1x128x128xbf16>
    %37 = vector.shape_cast %36 : vector<1x128x128xbf16> to vector<128x128xbf16>
    %cst_46 = arith.constant dense<0.000000e+00> : vector<256x128xf32>
    %38 = tpu.matmul %35, %37, %cst_46 {dimension_numbers = #tpu.dot_dimension_numbers<[1], [0], [0], [1], [0, 0, 1, 1], [], []>} : vector<256x128xbf16>, vector<128x128xbf16>, vector<256x128xf32> -> vector<256x128xf32>
    %39 = arith.addf %31, %38 : vector<256x128xf32>
    %c1_i32 = arith.constant 1 : i32
    %40 = arith.addi %14, %c1_i32 : i32
    %41 = arith.index_cast %40 : i32 to index
    %c0_47 = arith.constant 0 : index
    %c0_48 = arith.constant 0 : index
    %42 = vector.load %arg12[%41, %c0_47, %c0_48] : memref<18x18x128xbf16, #tpu.memory_space<vmem>>, vector<16x16x128xbf16>
    %43 = vector.shape_cast %42 : vector<16x16x128xbf16> to vector<256x128xbf16>
    %c3 = arith.constant 3 : index
    %c0_49 = arith.constant 0 : index
    %c0_50 = arith.constant 0 : index
    %44 = vector.load %arg5[%c3, %c0_49, %c0_50] : memref<9x128x128xbf16, #tpu.memory_space<vmem>>, vector<1x128x128xbf16>
    %45 = vector.shape_cast %44 : vector<1x128x128xbf16> to vector<128x128xbf16>
    %cst_51 = arith.constant dense<0.000000e+00> : vector<256x128xf32>
    %46 = tpu.matmul %43, %45, %cst_51 {dimension_numbers = #tpu.dot_dimension_numbers<[1], [0], [0], [1], [0, 0, 1, 1], [], []>} : vector<256x128xbf16>, vector<128x128xbf16>, vector<256x128xf32> -> vector<256x128xf32>
    %47 = arith.addf %39, %46 : vector<256x128xf32>
    %c1_i32_52 = arith.constant 1 : i32
    %48 = arith.addi %14, %c1_i32_52 : i32
    %49 = arith.index_cast %48 : i32 to index
    %c1_53 = arith.constant 1 : index
    %c0_54 = arith.constant 0 : index
    %50 = vector.load %arg12[%49, %c1_53, %c0_54] : memref<18x18x128xbf16, #tpu.memory_space<vmem>>, vector<16x16x128xbf16>
    %51 = vector.shape_cast %50 : vector<16x16x128xbf16> to vector<256x128xbf16>
    %c4 = arith.constant 4 : index
    %c0_55 = arith.constant 0 : index
    %c0_56 = arith.constant 0 : index
    %52 = vector.load %arg5[%c4, %c0_55, %c0_56] : memref<9x128x128xbf16, #tpu.memory_space<vmem>>, vector<1x128x128xbf16>
    %53 = vector.shape_cast %52 : vector<1x128x128xbf16> to vector<128x128xbf16>
    %cst_57 = arith.constant dense<0.000000e+00> : vector<256x128xf32>
    %54 = tpu.matmul %51, %53, %cst_57 {dimension_numbers = #tpu.dot_dimension_numbers<[1], [0], [0], [1], [0, 0, 1, 1], [], []>} : vector<256x128xbf16>, vector<128x128xbf16>, vector<256x128xf32> -> vector<256x128xf32>
    %55 = arith.addf %47, %54 : vector<256x128xf32>
    %c1_i32_58 = arith.constant 1 : i32
    %56 = arith.addi %14, %c1_i32_58 : i32
    %57 = arith.index_cast %56 : i32 to index
    %c2_59 = arith.constant 2 : index
    %c0_60 = arith.constant 0 : index
    %58 = vector.load %arg12[%57, %c2_59, %c0_60] : memref<18x18x128xbf16, #tpu.memory_space<vmem>>, vector<16x16x128xbf16>
    %59 = vector.shape_cast %58 : vector<16x16x128xbf16> to vector<256x128xbf16>
    %c5 = arith.constant 5 : index
    %c0_61 = arith.constant 0 : index
    %c0_62 = arith.constant 0 : index
    %60 = vector.load %arg5[%c5, %c0_61, %c0_62] : memref<9x128x128xbf16, #tpu.memory_space<vmem>>, vector<1x128x128xbf16>
    %61 = vector.shape_cast %60 : vector<1x128x128xbf16> to vector<128x128xbf16>
    %cst_63 = arith.constant dense<0.000000e+00> : vector<256x128xf32>
    %62 = tpu.matmul %59, %61, %cst_63 {dimension_numbers = #tpu.dot_dimension_numbers<[1], [0], [0], [1], [0, 0, 1, 1], [], []>} : vector<256x128xbf16>, vector<128x128xbf16>, vector<256x128xf32> -> vector<256x128xf32>
    %63 = arith.addf %55, %62 : vector<256x128xf32>
    %c2_i32 = arith.constant 2 : i32
    %64 = arith.addi %14, %c2_i32 : i32
    %65 = arith.index_cast %64 : i32 to index
    %c0_64 = arith.constant 0 : index
    %c0_65 = arith.constant 0 : index
    %66 = vector.load %arg12[%65, %c0_64, %c0_65] : memref<18x18x128xbf16, #tpu.memory_space<vmem>>, vector<16x16x128xbf16>
    %67 = vector.shape_cast %66 : vector<16x16x128xbf16> to vector<256x128xbf16>
    %c6 = arith.constant 6 : index
    %c0_66 = arith.constant 0 : index
    %c0_67 = arith.constant 0 : index
    %68 = vector.load %arg5[%c6, %c0_66, %c0_67] : memref<9x128x128xbf16, #tpu.memory_space<vmem>>, vector<1x128x128xbf16>
    %69 = vector.shape_cast %68 : vector<1x128x128xbf16> to vector<128x128xbf16>
    %cst_68 = arith.constant dense<0.000000e+00> : vector<256x128xf32>
    %70 = tpu.matmul %67, %69, %cst_68 {dimension_numbers = #tpu.dot_dimension_numbers<[1], [0], [0], [1], [0, 0, 1, 1], [], []>} : vector<256x128xbf16>, vector<128x128xbf16>, vector<256x128xf32> -> vector<256x128xf32>
    %71 = arith.addf %63, %70 : vector<256x128xf32>
    %c2_i32_69 = arith.constant 2 : i32
    %72 = arith.addi %14, %c2_i32_69 : i32
    %73 = arith.index_cast %72 : i32 to index
    %c1_70 = arith.constant 1 : index
    %c0_71 = arith.constant 0 : index
    %74 = vector.load %arg12[%73, %c1_70, %c0_71] : memref<18x18x128xbf16, #tpu.memory_space<vmem>>, vector<16x16x128xbf16>
    %75 = vector.shape_cast %74 : vector<16x16x128xbf16> to vector<256x128xbf16>
    %c7 = arith.constant 7 : index
    %c0_72 = arith.constant 0 : index
    %c0_73 = arith.constant 0 : index
    %76 = vector.load %arg5[%c7, %c0_72, %c0_73] : memref<9x128x128xbf16, #tpu.memory_space<vmem>>, vector<1x128x128xbf16>
    %77 = vector.shape_cast %76 : vector<1x128x128xbf16> to vector<128x128xbf16>
    %cst_74 = arith.constant dense<0.000000e+00> : vector<256x128xf32>
    %78 = tpu.matmul %75, %77, %cst_74 {dimension_numbers = #tpu.dot_dimension_numbers<[1], [0], [0], [1], [0, 0, 1, 1], [], []>} : vector<256x128xbf16>, vector<128x128xbf16>, vector<256x128xf32> -> vector<256x128xf32>
    %79 = arith.addf %71, %78 : vector<256x128xf32>
    %c2_i32_75 = arith.constant 2 : i32
    %80 = arith.addi %14, %c2_i32_75 : i32
    %81 = arith.index_cast %80 : i32 to index
    %c2_76 = arith.constant 2 : index
    %c0_77 = arith.constant 0 : index
    %82 = vector.load %arg12[%81, %c2_76, %c0_77] : memref<18x18x128xbf16, #tpu.memory_space<vmem>>, vector<16x16x128xbf16>
    %83 = vector.shape_cast %82 : vector<16x16x128xbf16> to vector<256x128xbf16>
    %c8 = arith.constant 8 : index
    %c0_78 = arith.constant 0 : index
    %c0_79 = arith.constant 0 : index
    %84 = vector.load %arg5[%c8, %c0_78, %c0_79] : memref<9x128x128xbf16, #tpu.memory_space<vmem>>, vector<1x128x128xbf16>
    %85 = vector.shape_cast %84 : vector<1x128x128xbf16> to vector<128x128xbf16>
    %cst_80 = arith.constant dense<0.000000e+00> : vector<256x128xf32>
    %86 = tpu.matmul %83, %85, %cst_80 {dimension_numbers = #tpu.dot_dimension_numbers<[1], [0], [0], [1], [0, 0, 1, 1], [], []>} : vector<256x128xbf16>, vector<128x128xbf16>, vector<256x128xf32> -> vector<256x128xf32>
    %87 = arith.addf %79, %86 : vector<256x128xf32>
    %88 = vector.shape_cast %87 : vector<256x128xf32> to vector<16x16x128xf32>
    %89 = arith.index_cast %14 : i32 to index
    %c0_81 = arith.constant 0 : index
    %c0_82 = arith.constant 0 : index
    %90 = vector.load %arg13[%89, %c0_81, %c0_82] : memref<16x16x128xf32, #tpu.memory_space<vmem>>, vector<16x16x128xf32>
    tpu.vector_store %arg13[%89, %c0_81, %c0_82], %88 {strides = array<i32>} : memref<16x16x128xf32, #tpu.memory_space<vmem>>, vector<16x16x128xf32>,
    %cst_83 = arith.constant dense<0.000000e+00> : vector<128xf32>
    %91 = vector.multi_reduction <add>, %87, %cst_83 [0] : vector<256x128xf32> to vector<128xf32>
    %92 = vector.shape_cast %91 : vector<128xf32> to vector<1x128xf32>
    %93 = arith.addf %13, %92 : vector<1x128xf32>
    %c1_i32_84 = arith.constant 1 : i32
    %cst_85 = arith.constant 3.906250e-03 : f32
    %94 = vector.broadcast %cst_85 : f32 to vector<1x128xf32>
    %95 = arith.mulf %93, %94 : vector<1x128xf32>
    %c0_86 = arith.constant 0 : index
    %c0_87 = arith.constant 0 : index
    %96 = vector.load %arg2[%c0_86, %c0_87] : memref<128x128xf32, #tpu.memory_space<vmem>>, vector<128x128xf32>
    %cst_88 = arith.constant dense<0.000000e+00> : vector<1x128xf32>
    %97 = tpu.matmul %95, %96, %cst_88 {dimension_numbers = #tpu.dot_dimension_numbers<[1], [0], [0], [1], [0, 0, 1, 1], [], []>} : vector<1x128xf32>, vector<128x128xf32>, vector<1x128xf32> -> vector<1x128xf32>
    %cst_89 = arith.constant 0.000000e+00 : f32
    %98 = vector.broadcast %cst_89 : f32 to vector<1x128xf32>
    %c0_i32_90 = arith.constant 0 : i32
    %c16_i32_91 = arith.constant 16 : i32
    %99 = arith.muli %c0_i32_90, %c16_i32_91 : i32
    %100 = arith.index_cast %99 : i32 to index
    %c0_92 = arith.constant 0 : index
    %c0_93 = arith.constant 0 : index
    %101 = vector.load %arg13[%100, %c0_92, %c0_93] : memref<16x16x128xf32, #tpu.memory_space<vmem>>, vector<16x16x128xf32>
    %102 = vector.shape_cast %101 : vector<16x16x128xf32> to vector<256x128xf32>
    %103 = vector.broadcast %97 : vector<1x128xf32> to vector<256x128xf32>
    %104 = arith.subf %102, %103 : vector<256x128xf32>
    %105 = arith.mulf %104, %104 : vector<256x128xf32>
    %cst_94 = arith.constant dense<0.000000e+00> : vector<128xf32>
    %106 = vector.multi_reduction <add>, %105, %cst_94 [0] : vector<256x128xf32> to vector<128xf32>
    %107 = vector.shape_cast %106 : vector<128xf32> to vector<1x128xf32>
    %108 = arith.addf %98, %107 : vector<1x128xf32>
    %c1_i32_95 = arith.constant 1 : i32
    %cst_96 = arith.constant 3.906250e-03 : f32
    %109 = vector.broadcast %cst_96 : f32 to vector<1x128xf32>
    %110 = arith.mulf %108, %109 : vector<1x128xf32>
    %c0_97 = arith.constant 0 : index
    %c0_98 = arith.constant 0 : index
    %111 = vector.load %arg2[%c0_97, %c0_98] : memref<128x128xf32, #tpu.memory_space<vmem>>, vector<128x128xf32>
    %cst_99 = arith.constant dense<0.000000e+00> : vector<1x128xf32>
    %112 = tpu.matmul %110, %111, %cst_99 {dimension_numbers = #tpu.dot_dimension_numbers<[1], [0], [0], [1], [0, 0, 1, 1], [], []>} : vector<1x128xf32>, vector<128x128xf32>, vector<1x128xf32> -> vector<1x128xf32>
    %c0_100 = arith.constant 0 : index
    %c0_101 = arith.constant 0 : index
    %113 = vector.load %arg6[%c0_100, %c0_101] : memref<1x128xf32, #tpu.memory_space<vmem>>, vector<1x128xf32>
    %cst_102 = arith.constant 9.99999974E-6 : f32
    %114 = vector.broadcast %cst_102 : f32 to vector<1x128xf32>
    %115 = arith.addf %112, %114 : vector<1x128xf32>
    %116 = math.rsqrt %115 : vector<1x128xf32>
    %117 = arith.mulf %113, %116 : vector<1x128xf32>
    %c0_103 = arith.constant 0 : index
    %c0_104 = arith.constant 0 : index
    %118 = vector.load %arg7[%c0_103, %c0_104] : memref<1x128xf32, #tpu.memory_space<vmem>>, vector<1x128xf32>
    %119 = arith.mulf %97, %117 : vector<1x128xf32>
    %120 = arith.subf %118, %119 : vector<1x128xf32>
    %c0_i32_105 = arith.constant 0 : i32
    %c16_i32_106 = arith.constant 16 : i32
    %121 = arith.muli %c0_i32_105, %c16_i32_106 : i32
    %122 = arith.index_cast %121 : i32 to index
    %c0_107 = arith.constant 0 : index
    %c0_108 = arith.constant 0 : index
    %123 = vector.load %arg13[%122, %c0_107, %c0_108] : memref<16x16x128xf32, #tpu.memory_space<vmem>>, vector<16x16x128xf32>
    %124 = vector.shape_cast %123 : vector<16x16x128xf32> to vector<256x128xf32>
    %125 = vector.broadcast %117 : vector<1x128xf32> to vector<256x128xf32>
    %126 = arith.mulf %124, %125 : vector<256x128xf32>
    %127 = vector.broadcast %120 : vector<1x128xf32> to vector<256x128xf32>
    %128 = arith.addf %126, %127 : vector<256x128xf32>
    %cst_109 = arith.constant 0.000000e+00 : f32
    %129 = vector.broadcast %cst_109 : f32 to vector<256x128xf32>
    %130 = arith.maximumf %128, %129 : vector<256x128xf32>
    %131 = vector.shape_cast %130 : vector<256x128xf32> to vector<16x16x128xf32>
    %132 = arith.truncf %131 : vector<16x16x128xf32> to vector<16x16x128xbf16>
    %c1_i32_110 = arith.constant 1 : i32
    %133 = arith.addi %121, %c1_i32_110 : i32
    %134 = arith.index_cast %133 : i32 to index
    %c1_111 = arith.constant 1 : index
    %c0_112 = arith.constant 0 : index
    %135 = vector.load %arg12[%134, %c1_111, %c0_112] : memref<18x18x128xbf16, #tpu.memory_space<vmem>>, vector<16x16x128xbf16>
    tpu.vector_store %arg12[%134, %c1_111, %c0_112], %132 {strides = array<i32>} : memref<18x18x128xbf16, #tpu.memory_space<vmem>>, vector<16x16x128xbf16>,
    %c1_i32_113 = arith.constant 1 : i32
    %cst_114 = arith.constant 0.000000e+00 : f32
    %136 = vector.broadcast %cst_114 : f32 to vector<1x128xf32>
    %c0_i32_115 = arith.constant 0 : i32
    %c16_i32_116 = arith.constant 16 : i32
    %137 = arith.muli %c0_i32_115, %c16_i32_116 : i32
    %cst_117 = arith.constant 0.000000e+00 : f32
    %138 = vector.broadcast %cst_117 : f32 to vector<256x128xf32>
    %c0_i32_118 = arith.constant 0 : i32
    %139 = arith.addi %137, %c0_i32_118 : i32
    %140 = arith.index_cast %139 : i32 to index
    %c0_119 = arith.constant 0 : index
    %c0_120 = arith.constant 0 : index
    %141 = vector.load %arg12[%140, %c0_119, %c0_120] : memref<18x18x128xbf16, #tpu.memory_space<vmem>>, vector<16x16x128xbf16>
    %142 = vector.shape_cast %141 : vector<16x16x128xbf16> to vector<256x128xbf16>
    %c0_121 = arith.constant 0 : index
    %c0_122 = arith.constant 0 : index
    %c0_123 = arith.constant 0 : index
    %143 = vector.load %arg8[%c0_121, %c0_122, %c0_123] : memref<9x128x128xbf16, #tpu.memory_space<vmem>>, vector<1x128x128xbf16>
    %144 = vector.shape_cast %143 : vector<1x128x128xbf16> to vector<128x128xbf16>
    %cst_124 = arith.constant dense<0.000000e+00> : vector<256x128xf32>
    %145 = tpu.matmul %142, %144, %cst_124 {dimension_numbers = #tpu.dot_dimension_numbers<[1], [0], [0], [1], [0, 0, 1, 1], [], []>} : vector<256x128xbf16>, vector<128x128xbf16>, vector<256x128xf32> -> vector<256x128xf32>
    %146 = arith.addf %138, %145 : vector<256x128xf32>
    %c0_i32_125 = arith.constant 0 : i32
    %147 = arith.addi %137, %c0_i32_125 : i32
    %148 = arith.index_cast %147 : i32 to index
    %c1_126 = arith.constant 1 : index
    %c0_127 = arith.constant 0 : index
    %149 = vector.load %arg12[%148, %c1_126, %c0_127] : memref<18x18x128xbf16, #tpu.memory_space<vmem>>, vector<16x16x128xbf16>
    %150 = vector.shape_cast %149 : vector<16x16x128xbf16> to vector<256x128xbf16>
    %c1_128 = arith.constant 1 : index
    %c0_129 = arith.constant 0 : index
    %c0_130 = arith.constant 0 : index
    %151 = vector.load %arg8[%c1_128, %c0_129, %c0_130] : memref<9x128x128xbf16, #tpu.memory_space<vmem>>, vector<1x128x128xbf16>
    %152 = vector.shape_cast %151 : vector<1x128x128xbf16> to vector<128x128xbf16>
    %cst_131 = arith.constant dense<0.000000e+00> : vector<256x128xf32>
    %153 = tpu.matmul %150, %152, %cst_131 {dimension_numbers = #tpu.dot_dimension_numbers<[1], [0], [0], [1], [0, 0, 1, 1], [], []>} : vector<256x128xbf16>, vector<128x128xbf16>, vector<256x128xf32> -> vector<256x128xf32>
    %154 = arith.addf %146, %153 : vector<256x128xf32>
    %c0_i32_132 = arith.constant 0 : i32
    %155 = arith.addi %137, %c0_i32_132 : i32
    %156 = arith.index_cast %155 : i32 to index
    %c2_133 = arith.constant 2 : index
    %c0_134 = arith.constant 0 : index
    %157 = vector.load %arg12[%156, %c2_133, %c0_134] : memref<18x18x128xbf16, #tpu.memory_space<vmem>>, vector<16x16x128xbf16>
    %158 = vector.shape_cast %157 : vector<16x16x128xbf16> to vector<256x128xbf16>
    %c2_135 = arith.constant 2 : index
    %c0_136 = arith.constant 0 : index
    %c0_137 = arith.constant 0 : index
    %159 = vector.load %arg8[%c2_135, %c0_136, %c0_137] : memref<9x128x128xbf16, #tpu.memory_space<vmem>>, vector<1x128x128xbf16>
    %160 = vector.shape_cast %159 : vector<1x128x128xbf16> to vector<128x128xbf16>
    %cst_138 = arith.constant dense<0.000000e+00> : vector<256x128xf32>
    %161 = tpu.matmul %158, %160, %cst_138 {dimension_numbers = #tpu.dot_dimension_numbers<[1], [0], [0], [1], [0, 0, 1, 1], [], []>} : vector<256x128xbf16>, vector<128x128xbf16>, vector<256x128xf32> -> vector<256x128xf32>
    %162 = arith.addf %154, %161 : vector<256x128xf32>
    %c1_i32_139 = arith.constant 1 : i32
    %163 = arith.addi %137, %c1_i32_139 : i32
    %164 = arith.index_cast %163 : i32 to index
    %c0_140 = arith.constant 0 : index
    %c0_141 = arith.constant 0 : index
    %165 = vector.load %arg12[%164, %c0_140, %c0_141] : memref<18x18x128xbf16, #tpu.memory_space<vmem>>, vector<16x16x128xbf16>
    %166 = vector.shape_cast %165 : vector<16x16x128xbf16> to vector<256x128xbf16>
    %c3_142 = arith.constant 3 : index
    %c0_143 = arith.constant 0 : index
    %c0_144 = arith.constant 0 : index
    %167 = vector.load %arg8[%c3_142, %c0_143, %c0_144] : memref<9x128x128xbf16, #tpu.memory_space<vmem>>, vector<1x128x128xbf16>
    %168 = vector.shape_cast %167 : vector<1x128x128xbf16> to vector<128x128xbf16>
    %cst_145 = arith.constant dense<0.000000e+00> : vector<256x128xf32>
    %169 = tpu.matmul %166, %168, %cst_145 {dimension_numbers = #tpu.dot_dimension_numbers<[1], [0], [0], [1], [0, 0, 1, 1], [], []>} : vector<256x128xbf16>, vector<128x128xbf16>, vector<256x128xf32> -> vector<256x128xf32>
    %170 = arith.addf %162, %169 : vector<256x128xf32>
    %c1_i32_146 = arith.constant 1 : i32
    %171 = arith.addi %137, %c1_i32_146 : i32
    %172 = arith.index_cast %171 : i32 to index
    %c1_147 = arith.constant 1 : index
    %c0_148 = arith.constant 0 : index
    %173 = vector.load %arg12[%172, %c1_147, %c0_148] : memref<18x18x128xbf16, #tpu.memory_space<vmem>>, vector<16x16x128xbf16>
    %174 = vector.shape_cast %173 : vector<16x16x128xbf16> to vector<256x128xbf16>
    %c4_149 = arith.constant 4 : index
    %c0_150 = arith.constant 0 : index
    %c0_151 = arith.constant 0 : index
    %175 = vector.load %arg8[%c4_149, %c0_150, %c0_151] : memref<9x128x128xbf16, #tpu.memory_space<vmem>>, vector<1x128x128xbf16>
    %176 = vector.shape_cast %175 : vector<1x128x128xbf16> to vector<128x128xbf16>
    %cst_152 = arith.constant dense<0.000000e+00> : vector<256x128xf32>
    %177 = tpu.matmul %174, %176, %cst_152 {dimension_numbers = #tpu.dot_dimension_numbers<[1], [0], [0], [1], [0, 0, 1, 1], [], []>} : vector<256x128xbf16>, vector<128x128xbf16>, vector<256x128xf32> -> vector<256x128xf32>
    %178 = arith.addf %170, %177 : vector<256x128xf32>
    %c1_i32_153 = arith.constant 1 : i32
    %179 = arith.addi %137, %c1_i32_153 : i32
    %180 = arith.index_cast %179 : i32 to index
    %c2_154 = arith.constant 2 : index
    %c0_155 = arith.constant 0 : index
    %181 = vector.load %arg12[%180, %c2_154, %c0_155] : memref<18x18x128xbf16, #tpu.memory_space<vmem>>, vector<16x16x128xbf16>
    %182 = vector.shape_cast %181 : vector<16x16x128xbf16> to vector<256x128xbf16>
    %c5_156 = arith.constant 5 : index
    %c0_157 = arith.constant 0 : index
    %c0_158 = arith.constant 0 : index
    %183 = vector.load %arg8[%c5_156, %c0_157, %c0_158] : memref<9x128x128xbf16, #tpu.memory_space<vmem>>, vector<1x128x128xbf16>
    %184 = vector.shape_cast %183 : vector<1x128x128xbf16> to vector<128x128xbf16>
    %cst_159 = arith.constant dense<0.000000e+00> : vector<256x128xf32>
    %185 = tpu.matmul %182, %184, %cst_159 {dimension_numbers = #tpu.dot_dimension_numbers<[1], [0], [0], [1], [0, 0, 1, 1], [], []>} : vector<256x128xbf16>, vector<128x128xbf16>, vector<256x128xf32> -> vector<256x128xf32>
    %186 = arith.addf %178, %185 : vector<256x128xf32>
    %c2_i32_160 = arith.constant 2 : i32
    %187 = arith.addi %137, %c2_i32_160 : i32
    %188 = arith.index_cast %187 : i32 to index
    %c0_161 = arith.constant 0 : index
    %c0_162 = arith.constant 0 : index
    %189 = vector.load %arg12[%188, %c0_161, %c0_162] : memref<18x18x128xbf16, #tpu.memory_space<vmem>>, vector<16x16x128xbf16>
    %190 = vector.shape_cast %189 : vector<16x16x128xbf16> to vector<256x128xbf16>
    %c6_163 = arith.constant 6 : index
    %c0_164 = arith.constant 0 : index
    %c0_165 = arith.constant 0 : index
    %191 = vector.load %arg8[%c6_163, %c0_164, %c0_165] : memref<9x128x128xbf16, #tpu.memory_space<vmem>>, vector<1x128x128xbf16>
    %192 = vector.shape_cast %191 : vector<1x128x128xbf16> to vector<128x128xbf16>
    %cst_166 = arith.constant dense<0.000000e+00> : vector<256x128xf32>
    %193 = tpu.matmul %190, %192, %cst_166 {dimension_numbers = #tpu.dot_dimension_numbers<[1], [0], [0], [1], [0, 0, 1, 1], [], []>} : vector<256x128xbf16>, vector<128x128xbf16>, vector<256x128xf32> -> vector<256x128xf32>
    %194 = arith.addf %186, %193 : vector<256x128xf32>
    %c2_i32_167 = arith.constant 2 : i32
    %195 = arith.addi %137, %c2_i32_167 : i32
    %196 = arith.index_cast %195 : i32 to index
    %c1_168 = arith.constant 1 : index
    %c0_169 = arith.constant 0 : index
    %197 = vector.load %arg12[%196, %c1_168, %c0_169] : memref<18x18x128xbf16, #tpu.memory_space<vmem>>, vector<16x16x128xbf16>
    %198 = vector.shape_cast %197 : vector<16x16x128xbf16> to vector<256x128xbf16>
    %c7_170 = arith.constant 7 : index
    %c0_171 = arith.constant 0 : index
    %c0_172 = arith.constant 0 : index
    %199 = vector.load %arg8[%c7_170, %c0_171, %c0_172] : memref<9x128x128xbf16, #tpu.memory_space<vmem>>, vector<1x128x128xbf16>
    %200 = vector.shape_cast %199 : vector<1x128x128xbf16> to vector<128x128xbf16>
    %cst_173 = arith.constant dense<0.000000e+00> : vector<256x128xf32>
    %201 = tpu.matmul %198, %200, %cst_173 {dimension_numbers = #tpu.dot_dimension_numbers<[1], [0], [0], [1], [0, 0, 1, 1], [], []>} : vector<256x128xbf16>, vector<128x128xbf16>, vector<256x128xf32> -> vector<256x128xf32>
    %202 = arith.addf %194, %201 : vector<256x128xf32>
    %c2_i32_174 = arith.constant 2 : i32
    %203 = arith.addi %137, %c2_i32_174 : i32
    %204 = arith.index_cast %203 : i32 to index
    %c2_175 = arith.constant 2 : index
    %c0_176 = arith.constant 0 : index
    %205 = vector.load %arg12[%204, %c2_175, %c0_176] : memref<18x18x128xbf16, #tpu.memory_space<vmem>>, vector<16x16x128xbf16>
    %206 = vector.shape_cast %205 : vector<16x16x128xbf16> to vector<256x128xbf16>
    %c8_177 = arith.constant 8 : index
    %c0_178 = arith.constant 0 : index
    %c0_179 = arith.constant 0 : index
    %207 = vector.load %arg8[%c8_177, %c0_178, %c0_179] : memref<9x128x128xbf16, #tpu.memory_space<vmem>>, vector<1x128x128xbf16>
    %208 = vector.shape_cast %207 : vector<1x128x128xbf16> to vector<128x128xbf16>
    %cst_180 = arith.constant dense<0.000000e+00> : vector<256x128xf32>
    %209 = tpu.matmul %206, %208, %cst_180 {dimension_numbers = #tpu.dot_dimension_numbers<[1], [0], [0], [1], [0, 0, 1, 1], [], []>} : vector<256x128xbf16>, vector<128x128xbf16>, vector<256x128xf32> -> vector<256x128xf32>
    %210 = arith.addf %202, %209 : vector<256x128xf32>
    %211 = vector.shape_cast %210 : vector<256x128xf32> to vector<16x16x128xf32>
    %212 = arith.index_cast %137 : i32 to index
    %c0_181 = arith.constant 0 : index
    %c0_182 = arith.constant 0 : index
    %213 = vector.load %arg13[%212, %c0_181, %c0_182] : memref<16x16x128xf32, #tpu.memory_space<vmem>>, vector<16x16x128xf32>
    tpu.vector_store %arg13[%212, %c0_181, %c0_182], %211 {strides = array<i32>} : memref<16x16x128xf32, #tpu.memory_space<vmem>>, vector<16x16x128xf32>,
    %cst_183 = arith.constant dense<0.000000e+00> : vector<128xf32>
    %214 = vector.multi_reduction <add>, %210, %cst_183 [0] : vector<256x128xf32> to vector<128xf32>
    %215 = vector.shape_cast %214 : vector<128xf32> to vector<1x128xf32>
    %216 = arith.addf %136, %215 : vector<1x128xf32>
    %c1_i32_184 = arith.constant 1 : i32
    %cst_185 = arith.constant 3.906250e-03 : f32
    %217 = vector.broadcast %cst_185 : f32 to vector<1x128xf32>
    %218 = arith.mulf %216, %217 : vector<1x128xf32>
    %c0_186 = arith.constant 0 : index
    %c0_187 = arith.constant 0 : index
    %219 = vector.load %arg2[%c0_186, %c0_187] : memref<128x128xf32, #tpu.memory_space<vmem>>, vector<128x128xf32>
    %cst_188 = arith.constant dense<0.000000e+00> : vector<1x128xf32>
    %220 = tpu.matmul %218, %219, %cst_188 {dimension_numbers = #tpu.dot_dimension_numbers<[1], [0], [0], [1], [0, 0, 1, 1], [], []>} : vector<1x128xf32>, vector<128x128xf32>, vector<1x128xf32> -> vector<1x128xf32>
    %cst_189 = arith.constant 0.000000e+00 : f32
    %221 = vector.broadcast %cst_189 : f32 to vector<1x128xf32>
    %c0_i32_190 = arith.constant 0 : i32
    %c16_i32_191 = arith.constant 16 : i32
    %222 = arith.muli %c0_i32_190, %c16_i32_191 : i32
    %223 = arith.index_cast %222 : i32 to index
    %c0_192 = arith.constant 0 : index
    %c0_193 = arith.constant 0 : index
    %224 = vector.load %arg13[%223, %c0_192, %c0_193] : memref<16x16x128xf32, #tpu.memory_space<vmem>>, vector<16x16x128xf32>
    %225 = vector.shape_cast %224 : vector<16x16x128xf32> to vector<256x128xf32>
    %226 = vector.broadcast %220 : vector<1x128xf32> to vector<256x128xf32>
    %227 = arith.subf %225, %226 : vector<256x128xf32>
    %228 = arith.mulf %227, %227 : vector<256x128xf32>
    %cst_194 = arith.constant dense<0.000000e+00> : vector<128xf32>
    %229 = vector.multi_reduction <add>, %228, %cst_194 [0] : vector<256x128xf32> to vector<128xf32>
    %230 = vector.shape_cast %229 : vector<128xf32> to vector<1x128xf32>
    %231 = arith.addf %221, %230 : vector<1x128xf32>
    %c1_i32_195 = arith.constant 1 : i32
    %cst_196 = arith.constant 3.906250e-03 : f32
    %232 = vector.broadcast %cst_196 : f32 to vector<1x128xf32>
    %233 = arith.mulf %231, %232 : vector<1x128xf32>
    %c0_197 = arith.constant 0 : index
    %c0_198 = arith.constant 0 : index
    %234 = vector.load %arg2[%c0_197, %c0_198] : memref<128x128xf32, #tpu.memory_space<vmem>>, vector<128x128xf32>
    %cst_199 = arith.constant dense<0.000000e+00> : vector<1x128xf32>
    %235 = tpu.matmul %233, %234, %cst_199 {dimension_numbers = #tpu.dot_dimension_numbers<[1], [0], [0], [1], [0, 0, 1, 1], [], []>} : vector<1x128xf32>, vector<128x128xf32>, vector<1x128xf32> -> vector<1x128xf32>
    %c0_200 = arith.constant 0 : index
    %c0_201 = arith.constant 0 : index
    %236 = vector.load %arg9[%c0_200, %c0_201] : memref<1x128xf32, #tpu.memory_space<vmem>>, vector<1x128xf32>
    %cst_202 = arith.constant 9.99999974E-6 : f32
    %237 = vector.broadcast %cst_202 : f32 to vector<1x128xf32>
    %238 = arith.addf %235, %237 : vector<1x128xf32>
    %239 = math.rsqrt %238 : vector<1x128xf32>
    %240 = arith.mulf %236, %239 : vector<1x128xf32>
    %c0_203 = arith.constant 0 : index
    %c0_204 = arith.constant 0 : index
    %241 = vector.load %arg10[%c0_203, %c0_204] : memref<1x128xf32, #tpu.memory_space<vmem>>, vector<1x128xf32>
    %242 = arith.mulf %220, %240 : vector<1x128xf32>
    %243 = arith.subf %241, %242 : vector<1x128xf32>
    %c0_205 = arith.constant 0 : index
    %c0_206 = arith.constant 0 : index
    %c0_207 = arith.constant 0 : index
    %244 = vector.load %arg13[%c0_205, %c0_206, %c0_207] : memref<16x16x128xf32, #tpu.memory_space<vmem>>, vector<16x16x128xf32>
    %245 = vector.shape_cast %244 : vector<16x16x128xf32> to vector<256x128xf32>
    %246 = vector.broadcast %240 : vector<1x128xf32> to vector<256x128xf32>
    %247 = arith.mulf %245, %246 : vector<256x128xf32>
    %248 = vector.broadcast %243 : vector<1x128xf32> to vector<256x128xf32>
    %249 = arith.addf %247, %248 : vector<256x128xf32>
    %cst_208 = arith.constant 0.000000e+00 : f32
    %250 = vector.broadcast %cst_208 : f32 to vector<256x128xf32>
    %251 = arith.maximumf %249, %250 : vector<256x128xf32>
    %252 = arith.truncf %251 : vector<256x128xf32> to vector<256x128xbf16>
    %cst_209 = arith.constant dense<0.000000e+00> : vector<16x256xf32>
    %253 = tpu.matmul %11, %252, %cst_209 {dimension_numbers = #tpu.dot_dimension_numbers<[1], [1], [0], [0], [0, 0, 1, 0], [], []>} : vector<16x128xbf16>, vector<256x128xbf16>, vector<16x256xf32> -> vector<16x256xf32>
    %254 = vector.broadcast %12 : vector<16x1xf32> to vector<16x256xf32>
    %255 = arith.addf %253, %254 : vector<16x256xf32>
    %c0_210 = arith.constant 0 : index
    %c0_211 = arith.constant 0 : index
    %c0_212 = arith.constant 0 : index
    %256 = vector.load %arg11[%c0_210, %c0_211, %c0_212] : memref<1x16x256xf32, #tpu.memory_space<vmem>>, vector<1x16x256xf32>
    %257 = vector.shape_cast %256 : vector<1x16x256xf32> to vector<16x256xf32>
    %258 = vector.shape_cast %255 : vector<16x256xf32> to vector<1x16x256xf32>
    tpu.vector_store %arg11[%c0_210, %c0_211, %c0_212], %258 {strides = array<i32>} : memref<1x16x256xf32, #tpu.memory_space<vmem>>, vector<1x16x256xf32>,
    return
  }
  func.func @transform_0(%arg0: i32) -> (i32, i32, i32, i32) {
    %c0_i32 = arith.constant 0 : i32
    %c0_i32_0 = arith.constant 0 : i32
    %c0_i32_1 = arith.constant 0 : i32
    %c0_i32_2 = arith.constant 0 : i32
    return %arg0, %c0_i32, %c0_i32_0, %c0_i32_1 : i32, i32, i32, i32
  }
  func.func @transform_1(%arg0: i32) -> (i32, i32) {
    %c0_i32 = arith.constant 0 : i32
    %c0_i32_0 = arith.constant 0 : i32
    %c0_i32_1 = arith.constant 0 : i32
    return %c0_i32, %c0_i32_0 : i32, i32
  }
  func.func @transform_2(%arg0: i32) -> (i32, i32) {
    %c0_i32 = arith.constant 0 : i32
    %c0_i32_0 = arith.constant 0 : i32
    %c0_i32_1 = arith.constant 0 : i32
    return %c0_i32, %c0_i32_0 : i32, i32
  }
  func.func @transform_3(%arg0: i32) -> (i32, i32) {
    %c0_i32 = arith.constant 0 : i32
    %c0_i32_0 = arith.constant 0 : i32
    %c0_i32_1 = arith.constant 0 : i32
    return %c0_i32, %c0_i32_0 : i32, i32
  }
  func.func @transform_4(%arg0: i32) -> (i32, i32, i32) {
    %c0_i32 = arith.constant 0 : i32
    %c0_i32_0 = arith.constant 0 : i32
    %c0_i32_1 = arith.constant 0 : i32
    %c0_i32_2 = arith.constant 0 : i32
    return %c0_i32, %c0_i32_0, %c0_i32_1 : i32, i32, i32
  }
  func.func @transform_5(%arg0: i32) -> (i32, i32) {
    %c0_i32 = arith.constant 0 : i32
    %c0_i32_0 = arith.constant 0 : i32
    %c0_i32_1 = arith.constant 0 : i32
    return %c0_i32, %c0_i32_0 : i32, i32
  }
  func.func @transform_6(%arg0: i32) -> (i32, i32) {
    %c0_i32 = arith.constant 0 : i32
    %c0_i32_0 = arith.constant 0 : i32
    %c0_i32_1 = arith.constant 0 : i32
    return %c0_i32, %c0_i32_0 : i32, i32
  }
  func.func @transform_7(%arg0: i32) -> (i32, i32, i32) {
    %c0_i32 = arith.constant 0 : i32
    %c0_i32_0 = arith.constant 0 : i32
    %c0_i32_1 = arith.constant 0 : i32
    %c0_i32_2 = arith.constant 0 : i32
    return %c0_i32, %c0_i32_0, %c0_i32_1 : i32, i32, i32
  }
  func.func @transform_8(%arg0: i32) -> (i32, i32) {
    %c0_i32 = arith.constant 0 : i32
    %c0_i32_0 = arith.constant 0 : i32
    %c0_i32_1 = arith.constant 0 : i32
    return %c0_i32, %c0_i32_0 : i32, i32
  }
  func.func @transform_9(%arg0: i32) -> (i32, i32) {
    %c0_i32 = arith.constant 0 : i32
    %c0_i32_0 = arith.constant 0 : i32
    %c0_i32_1 = arith.constant 0 : i32
    return %c0_i32, %c0_i32_0 : i32, i32
  }
  func.func @transform_10(%arg0: i32) -> (i32, i32, i32) {
    %c0_i32 = arith.constant 0 : i32
    %c0_i32_0 = arith.constant 0 : i32
    %c0_i32_1 = arith.constant 0 : i32
    return %arg0, %c0_i32, %c0_i32_0 : i32, i32, i32
  }
}

</mosaic_0001>

<llo_original>
// kernel: tpu_custom_call.1
$region0: #{tpu_custom_call.1}
  #allocation0 [shape = 'u32[]', space=smem, size = 0x4, offset = 0x4, fixed_abs, tag = 'smem constant byte address 0x4 - core index']
  #allocation1 [shape = 'u32[144,128]{1,0:T(1,128)}', space=vmem, size = 0x12000, scoped, tag = 'internal scratch']
  #allocation2 [shape = 'bf16[18,18,128]{2,1,0:T(8,128)(2,1)}', space=vmem, size = 0x1b000, scoped, tag = 'scratch operand']
  #allocation3 [shape = 'f32[16,16,128]{2,1,0:T(8,128)}', space=vmem, size = 0x20000, scoped, tag = 'scratch operand']
  %s0 = inlined_call_operand.vmem [shape: bf16[2,16,16,4], index: 0, kind: input, shape index: {}]
  %s1 = inlined_call_operand.vmem [shape: f32[128,128], index: 1, kind: input, shape index: {}]
  %s2 = inlined_call_operand.vmem [shape: bf16[16,128], index: 2, kind: input, shape index: {}]
  %s3 = inlined_call_operand.vmem [shape: f32[16,1], index: 3, kind: input, shape index: {}]
  %s4 = inlined_call_operand.hbm [shape: bf16[9,128,128], index: 4, kind: input, shape index: {}]
  %s5 = inlined_call_operand.vmem [shape: f32[1,128], index: 5, kind: input, shape index: {}]
  %s6 = inlined_call_operand.vmem [shape: f32[1,128], index: 6, kind: input, shape index: {}]
  %s7 = inlined_call_operand.hbm [shape: bf16[9,128,128], index: 7, kind: input, shape index: {}]
  %s8 = inlined_call_operand.vmem [shape: f32[1,128], index: 8, kind: input, shape index: {}]
  %s9 = inlined_call_operand.vmem [shape: f32[1,128], index: 9, kind: input, shape index: {}]
  %s10 = inlined_call_operand.hbm [shape: f32[2,16,256], index: 10, kind: output, shape index: {}]
  %s11 = sld [smem:[#allocation0]]
  $region81: #{tpu_custom_call.1} parent=0
    _
  %s13 = ssub.s32 1, %s11
  %s14 = scalar_select 0, %s13, %s11
  $region1: #{tpu_custom_call.1} parent=0
    #allocation4 [shape = 'u8[294912]{0}', space=vmem, size = 0x48000, scoped, tag = 'input window, operand 4, single buffered']
    #allocation5 [shape = 's32[2]{0}', space=sflag, size = 0x8, scoped, tag = 'scoped memory for tpu_custom_call.1']
    #allocation6 [shape = 's32[2]{0}', space=sflag, size = 0x8, scoped, tag = 'scoped memory for tpu_custom_call.1']
    #allocation7 [shape = 'u8[294912]{0}', space=vmem, size = 0x48000, scoped, tag = 'input window, operand 7, single buffered']
    #allocation8 [shape = 's32[1]{0}', space=sflag, size = 0x4, scoped, tag = 'scoped memory for tpu_custom_call.1']
    #allocation9 [shape = 'u8[32768]{0}', space=vmem, size = 0x8000, scoped, tag = 'output window, operand 0']
    %15 = vsyncpa [#allocation5], 0
    %16 = vsyncpa [#allocation8], 0
    %17 = vsyncpa [#allocation6], 0
    %s18 = scalar_lea.sflag [#allocation6], 1
    %19 = vsyncpa %s18, 0
    loop: start=0, step=1, limit=4
    $region2: #{tpu_custom_call.1} parent=1 // loop_pre_header
      _
    $region3: #{tpu_custom_call.1} parent=1 // loop_header
      %s21 = sphi 0, %s25
      %p22 = scmp.ge.s32.totalorder %s21, 4
      %s31 = sphi 0, %s33
      %s34 = sphi 0, %s31
      %s35 = sphi 0, %s34
      %s51 = sphi 0, %s35
      %s55 = sphi 0, %s55
      %s57 = sphi 0, %s55
      %s58 = sphi 0, %s57
      %s72 = sphi 0, %s58
      %s76 = sphi 0, %s76
      %s78 = sphi 0, %s76
      %s79 = sphi 0, %s78
      %s93 = sphi 0, %s79
      %s97 = sphi 0, %s97
      %s99 = sphi 0, %s97
      %s100 = sphi 0, %s99
      %s114 = sphi 0, %s100
      %s118 = sphi 0, %s118
      %s120 = sphi 0, %s118
      %s121 = sphi 0, %s120
      %s135 = sphi 0, %s121
      %s139 = sphi 0, %s139
      %s141 = sphi 0, %s139
      %s142 = sphi 0, %s141
      %s156 = sphi 0, %s142
      %s160 = sphi 0, %s160
      %s162 = sphi 0, %s160
      %s163 = sphi 0, %s162
      %s177 = sphi 0, %s163
      %s181 = sphi 0, %s181
      %s183 = sphi 0, %s181
      %s184 = sphi 0, %s183
      %s198 = sphi 0, %s184
      %s202 = sphi 0, %s202
      %s204 = sphi 0, %s202
      %s205 = sphi 0, %s204
      %s219 = sphi 0, %s205
      %s223 = sphi 0, %s223
      %s225 = sphi 0, %s223
      %s226 = sphi 0, %s225
      %s240 = sphi 0, %s226
      %s246 = sphi 0, %s248
      %s249 = sphi 0, %s246
      %s250 = sphi 0, %s249
      %s266 = sphi 0, %s250
    $region4: #{tpu_custom_call.1} parent=1 // loop_header_branch
      %24 = sbr.rel (%p22) target = $region8
    $region5: #{tpu_custom_call.1} parent=1 // loop_body
      %s26 = ssub.s32 %s21, 1
      %s27 = ssub.s32 %s21, 2
      %s28 = sadd.s32 %s21, 1
      %s29 = ssub.s32 %s21, %s28
      %p30 = scmp.eq.s32.totalorder %s29, 0
      %s32 = sadd.s32 %s31, 1
      %s33 = scalar_select %p30, %s31, %s32
      %p36 = pneg %p30
      %p37 = scmp.eq.s32.totalorder %s21, 1
      %p38 = por %p36, %p37
      %p39 = scmp.ne.s32.totalorder %s31, %s34
      %p40 = scmp.eq.s32.totalorder %s21, 0
      %p41 = por %p39, %p40
      %p42 = scmp.ne.s32.totalorder %s31, %s34
      %p43 = scmp.eq.s32.totalorder %s26, 1
      %p44 = por %p42, %p43
      %p45 = scmp.ne.s32.totalorder %s34, %s35
      %p46 = scmp.eq.s32.totalorder %s26, 0
      %p47 = por %p45, %p46
      %p48 = scmp.ne.s32.totalorder %s34, %s35
      %p49 = scmp.eq.s32.totalorder %s27, 1
      %p50 = por %p48, %p49
      %p52 = scmp.ne.s32.totalorder %s35, %s51
      %p53 = scmp.eq.s32.totalorder %s27, 0
      %p54 = por %p52, %p53
      %s56 = sadd.s32 %s55, 1
      %p59 = scmp.eq.s32.totalorder %s21, 1
      %p60 = scmp.ne.s32.totalorder %s55, %s57
      %p61 = scmp.eq.s32.totalorder %s21, 0
      %p62 = por %p60, %p61
      %p63 = scmp.ne.s32.totalorder %s55, %s57
      %p64 = scmp.eq.s32.totalorder %s26, 1
      %p65 = por %p63, %p64
      %p66 = scmp.ne.s32.totalorder %s57, %s58
      %p67 = scmp.eq.s32.totalorder %s26, 0
      %p68 = por %p66, %p67
      %p69 = scmp.ne.s32.totalorder %s57, %s58
      %p70 = scmp.eq.s32.totalorder %s27, 1
      %p71 = por %p69, %p70
      %p73 = scmp.ne.s32.totalorder %s58, %s72
      %p74 = scmp.eq.s32.totalorder %s27, 0
      %p75 = por %p73, %p74
      %s77 = sadd.s32 %s76, 1
      %p80 = scmp.eq.s32.totalorder %s21, 1
      %p81 = scmp.ne.s32.totalorder %s76, %s78
      %p82 = scmp.eq.s32.totalorder %s21, 0
      %p83 = por %p81, %p82
      %p84 = scmp.ne.s32.totalorder %s76, %s78
      %p85 = scmp.eq.s32.totalorder %s26, 1
      %p86 = por %p84, %p85
      %p87 = scmp.ne.s32.totalorder %s78, %s79
      %p88 = scmp.eq.s32.totalorder %s26, 0
      %p89 = por %p87, %p88
      %p90 = scmp.ne.s32.totalorder %s78, %s79
      %p91 = scmp.eq.s32.totalorder %s27, 1
      %p92 = por %p90, %p91
      %p94 = scmp.ne.s32.totalorder %s79, %s93
      %p95 = scmp.eq.s32.totalorder %s27, 0
      %p96 = por %p94, %p95
      %s98 = sadd.s32 %s97, 1
      %p101 = scmp.eq.s32.totalorder %s21, 1
      %p102 = scmp.ne.s32.totalorder %s97, %s99
      %p103 = scmp.eq.s32.totalorder %s21, 0
      %p104 = por %p102, %p103
      %p105 = scmp.ne.s32.totalorder %s97, %s99
      %p106 = scmp.eq.s32.totalorder %s26, 1
      %p107 = por %p105, %p106
      %p108 = scmp.ne.s32.totalorder %s99, %s100
      %p109 = scmp.eq.s32.totalorder %s26, 0
      %p110 = por %p108, %p109
      %p111 = scmp.ne.s32.totalorder %s99, %s100
      %p112 = scmp.eq.s32.totalorder %s27, 1
      %p113 = por %p111, %p112
      %p115 = scmp.ne.s32.totalorder %s100, %s114
      %p116 = scmp.eq.s32.totalorder %s27, 0
      %p117 = por %p115, %p116
      %s119 = sadd.s32 %s118, 1
      %p122 = scmp.eq.s32.totalorder %s21, 1
      %p123 = scmp.ne.s32.totalorder %s118, %s120
      %p124 = scmp.eq.s32.totalorder %s21, 0
      %p125 = por %p123, %p124
      %p126 = scmp.ne.s32.totalorder %s118, %s120
      %p127 = scmp.eq.s32.totalorder %s26, 1
      %p128 = por %p126, %p127
      %p129 = scmp.ne.s32.totalorder %s120, %s121
      %p130 = scmp.eq.s32.totalorder %s26, 0
      %p131 = por %p129, %p130
      %p132 = scmp.ne.s32.totalorder %s120, %s121
      %p133 = scmp.eq.s32.totalorder %s27, 1
      %p134 = por %p132, %p133
      %p136 = scmp.ne.s32.totalorder %s121, %s135
      %p137 = scmp.eq.s32.totalorder %s27, 0
      %p138 = por %p136, %p137
      %s140 = sadd.s32 %s139, 1
      %p143 = scmp.eq.s32.totalorder %s21, 1
      %p144 = scmp.ne.s32.totalorder %s139, %s141
      %p145 = scmp.eq.s32.totalorder %s21, 0
      %p146 = por %p144, %p145
      %p147 = scmp.ne.s32.totalorder %s139, %s141
      %p148 = scmp.eq.s32.totalorder %s26, 1
      %p149 = por %p147, %p148
      %p150 = scmp.ne.s32.totalorder %s141, %s142
      %p151 = scmp.eq.s32.totalorder %s26, 0
      %p152 = por %p150, %p151
      %p153 = scmp.ne.s32.totalorder %s141, %s142
      %p154 = scmp.eq.s32.totalorder %s27, 1
      %p155 = por %p153, %p154
      %p157 = scmp.ne.s32.totalorder %s142, %s156
      %p158 = scmp.eq.s32.totalorder %s27, 0
      %p159 = por %p157, %p158
      %s161 = sadd.s32 %s160, 1
      %p164 = scmp.eq.s32.totalorder %s21, 1
      %p165 = scmp.ne.s32.totalorder %s160, %s162
      %p166 = scmp.eq.s32.totalorder %s21, 0
      %p167 = por %p165, %p166
      %p168 = scmp.ne.s32.totalorder %s160, %s162
      %p169 = scmp.eq.s32.totalorder %s26, 1
      %p170 = por %p168, %p169
      %p171 = scmp.ne.s32.totalorder %s162, %s163
      %p172 = scmp.eq.s32.totalorder %s26, 0
      %p173 = por %p171, %p172
      %p174 = scmp.ne.s32.totalorder %s162, %s163
      %p175 = scmp.eq.s32.totalorder %s27, 1
      %p176 = por %p174, %p175
      %p178 = scmp.ne.s32.totalorder %s163, %s177
      %p179 = scmp.eq.s32.totalorder %s27, 0
      %p180 = por %p178, %p179
      %s182 = sadd.s32 %s181, 1
      %p185 = scmp.eq.s32.totalorder %s21, 1
      %p186 = scmp.ne.s32.totalorder %s181, %s183
      %p187 = scmp.eq.s32.totalorder %s21, 0
      %p188 = por %p186, %p187
      %p189 = scmp.ne.s32.totalorder %s181, %s183
      %p190 = scmp.eq.s32.totalorder %s26, 1
      %p191 = por %p189, %p190
      %p192 = scmp.ne.s32.totalorder %s183, %s184
      %p193 = scmp.eq.s32.totalorder %s26, 0
      %p194 = por %p192, %p193
      %p195 = scmp.ne.s32.totalorder %s183, %s184
      %p196 = scmp.eq.s32.totalorder %s27, 1
      %p197 = por %p195, %p196
      %p199 = scmp.ne.s32.totalorder %s184, %s198
      %p200 = scmp.eq.s32.totalorder %s27, 0
      %p201 = por %p199, %p200
      %s203 = sadd.s32 %s202, 1
      %p206 = scmp.eq.s32.totalorder %s21, 1
      %p207 = scmp.ne.s32.totalorder %s202, %s204
      %p208 = scmp.eq.s32.totalorder %s21, 0
      %p209 = por %p207, %p208
      %p210 = scmp.ne.s32.totalorder %s202, %s204
      %p211 = scmp.eq.s32.totalorder %s26, 1
      %p212 = por %p210, %p211
      %p213 = scmp.ne.s32.totalorder %s204, %s205
      %p214 = scmp.eq.s32.totalorder %s26, 0
      %p215 = por %p213, %p214
      %p216 = scmp.ne.s32.totalorder %s204, %s205
      %p217 = scmp.eq.s32.totalorder %s27, 1
      %p218 = por %p216, %p217
      %p220 = scmp.ne.s32.totalorder %s205, %s219
      %p221 = scmp.eq.s32.totalorder %s27, 0
      %p222 = por %p220, %p221
      %s224 = sadd.s32 %s223, 1
      %p227 = scmp.eq.s32.totalorder %s21, 1
      %p228 = scmp.ne.s32.totalorder %s223, %s225
      %p229 = scmp.eq.s32.totalorder %s21, 0
      %p230 = por %p228, %p229
      %p231 = scmp.ne.s32.totalorder %s223, %s225
      %p232 = scmp.eq.s32.totalorder %s26, 1
      %p233 = por %p231, %p232
      %p234 = scmp.ne.s32.totalorder %s225, %s226
      %p235 = scmp.eq.s32.totalorder %s26, 0
      %p236 = por %p234, %p235
      %p237 = scmp.ne.s32.totalorder %s225, %s226
      %p238 = scmp.eq.s32.totalorder %s27, 1
      %p239 = por %p237, %p238
      %p241 = scmp.ne.s32.totalorder %s226, %s240
      %p242 = scmp.eq.s32.totalorder %s27, 0
      %p243 = por %p241, %p242
      %s244 = ssub.s32 %s21, %s28
      %p245 = scmp.eq.s32.totalorder %s244, 0
      %s247 = sadd.s32 %s246, 1
      %s248 = scalar_select %p245, %s246, %s247
      %p251 = pneg %p245
      %p252 = scmp.eq.s32.totalorder %s21, 1
      %p253 = por %p251, %p252
      %p254 = scmp.ne.s32.totalorder %s246, %s249
      %p255 = scmp.eq.s32.totalorder %s21, 0
      %p256 = por %p254, %p255
      %p257 = scmp.ne.s32.totalorder %s246, %s249
      %p258 = scmp.eq.s32.totalorder %s26, 1
      %p259 = por %p257, %p258
      %p260 = scmp.ne.s32.totalorder %s249, %s250
      %p261 = scmp.eq.s32.totalorder %s26, 0
      %p262 = por %p260, %p261
      %p263 = scmp.ne.s32.totalorder %s249, %s250
      %p264 = scmp.eq.s32.totalorder %s27, 1
      %p265 = por %p263, %p264
      %p267 = scmp.ne.s32.totalorder %s250, %s266
      %p268 = scmp.eq.s32.totalorder %s27, 0
      %p269 = por %p267, %p268
      %p270 = scmp.le.s32.totalorder 1, %s21
      %p271 = scmp.lt.s32.totalorder %s21, 3
      %p272 = pnand %p270, %p271
      %p273 = pneg %p272
      // Predicated region
      $region9: #{tpu_custom_call.1} parent=5 // pred_check
        _
      $region10: #{tpu_custom_call.1} parent=5 // pred_check_branch
        %275 = sbr.rel (%p272) target = $region12
      $region11: #{tpu_custom_call.1} parent=5 // pred_region
        %s276 = ssub.s32 %s21, 1
        // Predicated region
        $region13: #{tpu_custom_call.1} parent=11 // pred_check
          %p277 = pneg %p68
        $region14: #{tpu_custom_call.1} parent=11 // pred_check_branch
          %279 = sbr.rel (%p277) target = $region16
        $region15: #{tpu_custom_call.1} parent=11 // pred_region
          _
        $region16: #{tpu_custom_call.1} parent=11 // pred_fallthru
          _
        // Predicated region
        $region17: #{tpu_custom_call.1} parent=11 // pred_check
          %p280 = pneg %p89
        $region18: #{tpu_custom_call.1} parent=11 // pred_check_branch
          %282 = sbr.rel (%p280) target = $region20
        $region19: #{tpu_custom_call.1} parent=11 // pred_region
          _
        $region20: #{tpu_custom_call.1} parent=11 // pred_fallthru
          _
        // Predicated region
        $region21: #{tpu_custom_call.1} parent=11 // pred_check
          %p283 = pneg %p110
        $region22: #{tpu_custom_call.1} parent=11 // pred_check_branch
          %285 = sbr.rel (%p283) target = $region24
        $region23: #{tpu_custom_call.1} parent=11 // pred_region
          _
        $region24: #{tpu_custom_call.1} parent=11 // pred_fallthru
          _
        // Predicated region
        $region25: #{tpu_custom_call.1} parent=11 // pred_check
          %p286 = pneg %p131
        $region26: #{tpu_custom_call.1} parent=11 // pred_check_branch
          %288 = sbr.rel (%p286) target = $region28
        $region27: #{tpu_custom_call.1} parent=11 // pred_region
          %s290 = ssub.s32 9216, 9216
          %291 = vsyncadd [#allocation5], %s290
          %s292 = sshll.u32 [#allocation4], 4
          %s293 = int_to_ptr.vmem [resolvable:$true] %s292
          %298 = dma.hbm_to_vmem [thread:$0]  %s4, 9216, %s293, [#allocation5], 64, 64, 4
        $region28: #{tpu_custom_call.1} parent=11 // pred_fallthru
          _
        // Predicated region
        $region29: #{tpu_custom_call.1} parent=11 // pred_check
          %p299 = pneg %p152
        $region30: #{tpu_custom_call.1} parent=11 // pred_check_branch
          %301 = sbr.rel (%p299) target = $region32
        $region31: #{tpu_custom_call.1} parent=11 // pred_region
          _
        $region32: #{tpu_custom_call.1} parent=11 // pred_fallthru
          _
        // Predicated region
        $region33: #{tpu_custom_call.1} parent=11 // pred_check
          %p302 = pneg %p173
        $region34: #{tpu_custom_call.1} parent=11 // pred_check_branch
          %304 = sbr.rel (%p302) target = $region36
        $region35: #{tpu_custom_call.1} parent=11 // pred_region
          _
        $region36: #{tpu_custom_call.1} parent=11 // pred_fallthru
          _
        // Predicated region
        $region37: #{tpu_custom_call.1} parent=11 // pred_check
          %p305 = pneg %p194
        $region38: #{tpu_custom_call.1} parent=11 // pred_check_branch
          %307 = sbr.rel (%p305) target = $region40
        $region39: #{tpu_custom_call.1} parent=11 // pred_region
          %s309 = ssub.s32 9216, 9216
          %310 = vsyncadd [#allocation8], %s309
          %s311 = sshll.u32 [#allocation7], 4
          %s312 = int_to_ptr.vmem [resolvable:$true] %s311
          %317 = dma.hbm_to_vmem [thread:$0]  %s7, 9216, %s312, [#allocation8], 64, 64, 4
        $region40: #{tpu_custom_call.1} parent=11 // pred_fallthru
          _
        // Predicated region
        $region41: #{tpu_custom_call.1} parent=11 // pred_check
          %p318 = pneg %p215
        $region42: #{tpu_custom_call.1} parent=11 // pred_check_branch
          %320 = sbr.rel (%p318) target = $region44
        $region43: #{tpu_custom_call.1} parent=11 // pred_region
          _
        $region44: #{tpu_custom_call.1} parent=11 // pred_fallthru
          _
        // Predicated region
        $region45: #{tpu_custom_call.1} parent=11 // pred_check
          %p321 = pneg %p236
        $region46: #{tpu_custom_call.1} parent=11 // pred_check_branch
          %323 = sbr.rel (%p321) target = $region48
        $region47: #{tpu_custom_call.1} parent=11 // pred_region
          _
        $region48: #{tpu_custom_call.1} parent=11 // pred_fallthru
          _
      $region12: #{tpu_custom_call.1} parent=5 // pred_fallthru
        _
      %p324 = scmp.lt.s32.totalorder %s21, 2
      // Predicated region
      $region49: #{tpu_custom_call.1} parent=5 // pred_check
        %p325 = pneg %p324
      $region50: #{tpu_custom_call.1} parent=5 // pred_check_branch
        %327 = sbr.rel (%p325) target = $region52
      $region51: #{tpu_custom_call.1} parent=5 // pred_region
        // Predicated region
        $region53: #{tpu_custom_call.1} parent=51 // pred_check
          %p328 = pneg %p41
        $region54: #{tpu_custom_call.1} parent=51 // pred_check_branch
          %330 = sbr.rel (%p328) target = $region56
        $region55: #{tpu_custom_call.1} parent=51 // pred_region
          %p331 = scmp.lt.s32.totalorder %s21, 1
          %s332 = scalar_select %p331, %s21, 1
          %s333 = smul.addr %s332, 32
          %s334 = smul.addr %s333, 4
          %s335 = scalar_lea.vmem %s0, %s334
        $region56: #{tpu_custom_call.1} parent=51 // pred_fallthru
          _
      $region52: #{tpu_custom_call.1} parent=5 // pred_fallthru
        _
      %p336 = scmp.le.s32.totalorder 1, %s21
      %p337 = scmp.lt.s32.totalorder %s21, 3
      %p338 = pnand %p336, %p337
      %p339 = pneg %p338
      // Predicated region
      $region57: #{tpu_custom_call.1} parent=5 // pred_check
        _
      $region58: #{tpu_custom_call.1} parent=5 // pred_check_branch
        %341 = sbr.rel (%p338) target = $region60
      $region59: #{tpu_custom_call.1} parent=5 // pred_region
        %s342 = ssub.s32 %s21, 1
        // Predicated region
        $region61: #{tpu_custom_call.1} parent=59 // pred_check
          %p343 = pneg %p131
        $region62: #{tpu_custom_call.1} parent=59 // pred_check_branch
          %345 = sbr.rel (%p343) target = $region64
        $region63: #{tpu_custom_call.1} parent=59 // pred_region
          %346 = dma.done [#allocation5], 9216
        $region64: #{tpu_custom_call.1} parent=59 // pred_fallthru
          _
        // Predicated region
        $region65: #{tpu_custom_call.1} parent=59 // pred_check
          %p347 = pneg %p194
        $region66: #{tpu_custom_call.1} parent=59 // pred_check_branch
          %349 = sbr.rel (%p347) target = $region68
        $region67: #{tpu_custom_call.1} parent=59 // pred_region
          %350 = dma.done [#allocation8], 9216
        $region68: #{tpu_custom_call.1} parent=59 // pred_fallthru
          _
        %p351 = scmp.lt.s32.totalorder %s26, 1
        %s352 = scalar_select %p351, %s26, 1
        %s353 = smul.addr %s352, 32
        %s354 = smul.addr %s353, 4
        %s355 = scalar_lea.vmem %s0, %s354
        %p356 = pneg %p47
        %p357 = pneg %p44
        %p358 = pneg %p68
        %p359 = pneg %p65
        %p360 = pneg %p89
        %p361 = pneg %p86
        %p362 = pneg %p110
        %p363 = pneg %p107
        %p364 = pneg %p131
        %p365 = pneg %p128
        %p366 = pneg %p152
        %p367 = pneg %p149
        %p368 = pneg %p173
        %p369 = pneg %p170
        %p370 = pneg %p194
        %p371 = pneg %p191
        %p372 = pneg %p215
        %p373 = pneg %p212
        %p374 = pneg %p236
        %p375 = pneg %p233
        %p376 = pneg %p262
        %p377 = pneg %p259
        %s378 = sand.u32 %s249, 1
        %s379 = scalar_lea.sflag [#allocation6], %s378
        %s380 = sand.u32 %s249, 1
        %s381 = smul.addr %s380, 32
        %s382 = scalar_lea.vmem [#allocation9], %s381
        %p383 = scmp.lt.s32.totalorder %s26, 1
        %s384 = scalar_select %p383, %s26, 1
        %s385 = smul.addr %s384, 32
        %s386 = smul.addr %s385, 4
        %s387 = scalar_lea.vmem %s0, %s386
        %389 = vst [vmem:[#allocation2] sm:$0xf] 0
        %390 = vst [vmem:[#allocation2 + $0x4] sm:$0xf] 0
        %391 = vst [vmem:[#allocation2 + $0x8] sm:$0x1] 0
        %s392 = scalar_lea.vmem [#allocation2], 204
        %393 = vst [vmem:[%s392] sm:$0xf] 0
        %394 = vst [vmem:[%s392 + $0x4] sm:$0xf] 0
        %395 = vst [vmem:[%s392 + $0x8] sm:$0x1] 0
        %vm396 = vcmask 1040384
        %vm397 = vsmask.f32 256
        %vm398 = vmand %vm396, %vm397
        %v399 = vld [vmem:[#allocation2] sm:$0x1]
        %v400 = vsel %vm398, 0, %v399
        %401 = vst [vmem:[#allocation2] sm:$0x1] %v400
        %v402 = vld [vmem:[#allocation2 + $0xc] sm:$0x1]
        %v403 = vsel %vm398, 0, %v402
        %404 = vst [vmem:[#allocation2 + $0xc] sm:$0x1] %v403
        %v405 = vld [vmem:[#allocation2 + $0x18] sm:$0x1]
        %v406 = vsel %vm398, 0, %v405
        %407 = vst [vmem:[#allocation2 + $0x18] sm:$0x1] %v406
        %v408 = vld [vmem:[#allocation2 + $0x24] sm:$0x1]
        %v409 = vsel %vm398, 0, %v408
        %410 = vst [vmem:[#allocation2 + $0x24] sm:$0x1] %v409
        %v411 = vld [vmem:[#allocation2 + $0x30] sm:$0x1]
        %v412 = vsel %vm398, 0, %v411
        %413 = vst [vmem:[#allocation2 + $0x30] sm:$0x1] %v412
        %v414 = vld [vmem:[#allocation2 + $0x3c] sm:$0x1]
        %v415 = vsel %vm398, 0, %v414
        %416 = vst [vmem:[#allocation2 + $0x3c] sm:$0x1] %v415
        %v417 = vld [vmem:[#allocation2 + $0x48] sm:$0x1]
        %v418 = vsel %vm398, 0, %v417
        %419 = vst [vmem:[#allocation2 + $0x48] sm:$0x1] %v418
        %v420 = vld [vmem:[#allocation2 + $0x54] sm:$0x1]
        %v421 = vsel %vm398, 0, %v420
        %422 = vst [vmem:[#allocation2 + $0x54] sm:$0x1] %v421
        %v423 = vld [vmem:[#allocation2 + $0x60] sm:$0x1]
        %v424 = vsel %vm398, 0, %v423
        %425 = vst [vmem:[#allocation2 + $0x60] sm:$0x1] %v424
        %v426 = vld [vmem:[#allocation2 + $0x6c] sm:$0x1]
        %v427 = vsel %vm398, 0, %v426
        %428 = vst [vmem:[#allocation2 + $0x6c] sm:$0x1] %v427
        %v429 = vld [vmem:[#allocation2 + $0x78] sm:$0x1]
        %v430 = vsel %vm398, 0, %v429
        %431 = vst [vmem:[#allocation2 + $0x78] sm:$0x1] %v430
        %v432 = vld [vmem:[#allocation2 + $0x84] sm:$0x1]
        %v433 = vsel %vm398, 0, %v432
        %434 = vst [vmem:[#allocation2 + $0x84] sm:$0x1] %v433
        %v435 = vld [vmem:[#allocation2 + $0x90] sm:$0x1]
        %v436 = vsel %vm398, 0, %v435
        %437 = vst [vmem:[#allocation2 + $0x90] sm:$0x1] %v436
        %v438 = vld [vmem:[#allocation2 + $0x9c] sm:$0x1]
        %v439 = vsel %vm398, 0, %v438
        %440 = vst [vmem:[#allocation2 + $0x9c] sm:$0x1] %v439
        %v441 = vld [vmem:[#allocation2 + $0xa8] sm:$0x1]
        %v442 = vsel %vm398, 0, %v441
        %443 = vst [vmem:[#allocation2 + $0xa8] sm:$0x1] %v442
        %v444 = vld [vmem:[#allocation2 + $0xb4] sm:$0x1]
        %v445 = vsel %vm398, 0, %v444
        %446 = vst [vmem:[#allocation2 + $0xb4] sm:$0x1] %v445
        %v447 = vld [vmem:[#allocation2 + $0xc0] sm:$0x1]
        %v448 = vsel %vm398, 0, %v447
        %449 = vst [vmem:[#allocation2 + $0xc0] sm:$0x1] %v448
        %v450 = vld [vmem:[#allocation2 + $0xcc] sm:$0x1]
        %v451 = vsel %vm398, 0, %v450
        %452 = vst [vmem:[#allocation2 + $0xcc] sm:$0x1] %v451
        %vm453 = vsmask.f32 7938
        %vm454 = vmand %vm396, %vm453
        %v455 = vld [vmem:[#allocation2 + $0x8] sm:$0x1]
        %v456 = vsel %vm454, 0, %v455
        %457 = vst [vmem:[#allocation2 + $0x8] sm:$0x1] %v456
        %v458 = vld [vmem:[#allocation2 + $0x14] sm:$0x1]
        %v459 = vsel %vm454, 0, %v458
        %460 = vst [vmem:[#allocation2 + $0x14] sm:$0x1] %v459
        %v461 = vld [vmem:[#allocation2 + $0x20] sm:$0x1]
        %v462 = vsel %vm454, 0, %v461
        %463 = vst [vmem:[#allocation2 + $0x20] sm:$0x1] %v462
        %v464 = vld [vmem:[#allocation2 + $0x2c] sm:$0x1]
        %v465 = vsel %vm454, 0, %v464
        %466 = vst [vmem:[#allocation2 + $0x2c] sm:$0x1] %v465
        %v467 = vld [vmem:[#allocation2 + $0x38] sm:$0x1]
        %v468 = vsel %vm454, 0, %v467
        %469 = vst [vmem:[#allocation2 + $0x38] sm:$0x1] %v468
        %v470 = vld [vmem:[#allocation2 + $0x44] sm:$0x1]
        %v471 = vsel %vm454, 0, %v470
        %472 = vst [vmem:[#allocation2 + $0x44] sm:$0x1] %v471
        %v473 = vld [vmem:[#allocation2 + $0x50] sm:$0x1]
        %v474 = vsel %vm454, 0, %v473
        %475 = vst [vmem:[#allocation2 + $0x50] sm:$0x1] %v474
        %v476 = vld [vmem:[#allocation2 + $0x5c] sm:$0x1]
        %v477 = vsel %vm454, 0, %v476
        %478 = vst [vmem:[#allocation2 + $0x5c] sm:$0x1] %v477
        %v479 = vld [vmem:[#allocation2 + $0x68] sm:$0x1]
        %v480 = vsel %vm454, 0, %v479
        %481 = vst [vmem:[#allocation2 + $0x68] sm:$0x1] %v480
        %v482 = vld [vmem:[#allocation2 + $0x74] sm:$0x1]
        %v483 = vsel %vm454, 0, %v482
        %484 = vst [vmem:[#allocation2 + $0x74] sm:$0x1] %v483
        %v485 = vld [vmem:[#allocation2 + $0x80] sm:$0x1]
        %v486 = vsel %vm454, 0, %v485
        %487 = vst [vmem:[#allocation2 + $0x80] sm:$0x1] %v486
        %v488 = vld [vmem:[#allocation2 + $0x8c] sm:$0x1]
        %v489 = vsel %vm454, 0, %v488
        %490 = vst [vmem:[#allocation2 + $0x8c] sm:$0x1] %v489
        %v491 = vld [vmem:[#allocation2 + $0x98] sm:$0x1]
        %v492 = vsel %vm454, 0, %v491
        %493 = vst [vmem:[#allocation2 + $0x98] sm:$0x1] %v492
        %v494 = vld [vmem:[#allocation2 + $0xa4] sm:$0x1]
        %v495 = vsel %vm454, 0, %v494
        %496 = vst [vmem:[#allocation2 + $0xa4] sm:$0x1] %v495
        %v497 = vld [vmem:[#allocation2 + $0xb0] sm:$0x1]
        %v498 = vsel %vm454, 0, %v497
        %499 = vst [vmem:[#allocation2 + $0xb0] sm:$0x1] %v498
        %v500 = vld [vmem:[#allocation2 + $0xbc] sm:$0x1]
        %v501 = vsel %vm454, 0, %v500
        %502 = vst [vmem:[#allocation2 + $0xbc] sm:$0x1] %v501
        %v503 = vld [vmem:[#allocation2 + $0xc8] sm:$0x1]
        %v504 = vsel %vm454, 0, %v503
        %505 = vst [vmem:[#allocation2 + $0xc8] sm:$0x1] %v504
        %v506 = vld [vmem:[#allocation2 + $0xd4] sm:$0x1]
        %v507 = vsel %vm454, 0, %v506
        %508 = vst [vmem:[#allocation2 + $0xd4] sm:$0x1] %v507
        %s509 = scalar_lea.vmem [#allocation2], 12
        %vm510 = vcmask 1043456
        %vm511 = vmand %vm510, %vm453
        %v512 = vld [vmem:[%s509] sm:$0xf]
        %v513 = vsel %vm511, 0, %v512
        %514 = vst [vmem:[%s509] sm:$0xf] %v513
        %515 = vst [vmem:[%s509 + $0x4] sm:$0xf] 0
        %v516 = vld [vmem:[%s509 + $0x8] sm:$0x1]
        %v517 = vsel %vm398, 0, %v516
        %518 = vst [vmem:[%s509 + $0x8] sm:$0x1] %v517
        %v519 = vld [vmem:[%s509 + $0xc] sm:$0xf]
        %v520 = vsel %vm511, 0, %v519
        %521 = vst [vmem:[%s509 + $0xc] sm:$0xf] %v520
        %522 = vst [vmem:[%s509 + $0x10] sm:$0xf] 0
        %v523 = vld [vmem:[%s509 + $0x14] sm:$0x1]
        %v524 = vsel %vm398, 0, %v523
        %525 = vst [vmem:[%s509 + $0x14] sm:$0x1] %v524
        %v526 = vld [vmem:[%s509 + $0x18] sm:$0xf]
        %v527 = vsel %vm511, 0, %v526
        %528 = vst [vmem:[%s509 + $0x18] sm:$0xf] %v527
        %529 = vst [vmem:[%s509 + $0x1c] sm:$0xf] 0
        %v530 = vld [vmem:[%s509 + $0x20] sm:$0x1]
        %v531 = vsel %vm398, 0, %v530
        %532 = vst [vmem:[%s509 + $0x20] sm:$0x1] %v531
        %v533 = vld [vmem:[%s509 + $0x24] sm:$0xf]
        %v534 = vsel %vm511, 0, %v533
        %535 = vst [vmem:[%s509 + $0x24] sm:$0xf] %v534
        %536 = vst [vmem:[%s509 + $0x28] sm:$0xf] 0
        %v537 = vld [vmem:[%s509 + $0x2c] sm:$0x1]
        %v538 = vsel %vm398, 0, %v537
        %539 = vst [vmem:[%s509 + $0x2c] sm:$0x1] %v538
        %v540 = vld [vmem:[%s509 + $0x30] sm:$0xf]
        %v541 = vsel %vm511, 0, %v540
        %542 = vst [vmem:[%s509 + $0x30] sm:$0xf] %v541
        %543 = vst [vmem:[%s509 + $0x34] sm:$0xf] 0
        %v544 = vld [vmem:[%s509 + $0x38] sm:$0x1]
        %v545 = vsel %vm398, 0, %v544
        %546 = vst [vmem:[%s509 + $0x38] sm:$0x1] %v545
        %v547 = vld [vmem:[%s509 + $0x3c] sm:$0xf]
        %v548 = vsel %vm511, 0, %v547
        %549 = vst [vmem:[%s509 + $0x3c] sm:$0xf] %v548
        %550 = vst [vmem:[%s509 + $0x40] sm:$0xf] 0
        %v551 = vld [vmem:[%s509 + $0x44] sm:$0x1]
        %v552 = vsel %vm398, 0, %v551
        %553 = vst [vmem:[%s509 + $0x44] sm:$0x1] %v552
        %v554 = vld [vmem:[%s509 + $0x48] sm:$0xf]
        %v555 = vsel %vm511, 0, %v554
        %556 = vst [vmem:[%s509 + $0x48] sm:$0xf] %v555
        %557 = vst [vmem:[%s509 + $0x4c] sm:$0xf] 0
        %v558 = vld [vmem:[%s509 + $0x50] sm:$0x1]
        %v559 = vsel %vm398, 0, %v558
        %560 = vst [vmem:[%s509 + $0x50] sm:$0x1] %v559
        %v561 = vld [vmem:[%s509 + $0x54] sm:$0xf]
        %v562 = vsel %vm511, 0, %v561
        %563 = vst [vmem:[%s509 + $0x54] sm:$0xf] %v562
        %564 = vst [vmem:[%s509 + $0x58] sm:$0xf] 0
        %v565 = vld [vmem:[%s509 + $0x5c] sm:$0x1]
        %v566 = vsel %vm398, 0, %v565
        %567 = vst [vmem:[%s509 + $0x5c] sm:$0x1] %v566
        %v568 = vld [vmem:[%s509 + $0x60] sm:$0xf]
        %v569 = vsel %vm511, 0, %v568
        %570 = vst [vmem:[%s509 + $0x60] sm:$0xf] %v569
        %571 = vst [vmem:[%s509 + $0x64] sm:$0xf] 0
        %v572 = vld [vmem:[%s509 + $0x68] sm:$0x1]
        %v573 = vsel %vm398, 0, %v572
        %574 = vst [vmem:[%s509 + $0x68] sm:$0x1] %v573
        %v575 = vld [vmem:[%s509 + $0x6c] sm:$0xf]
        %v576 = vsel %vm511, 0, %v575
        %577 = vst [vmem:[%s509 + $0x6c] sm:$0xf] %v576
        %578 = vst [vmem:[%s509 + $0x70] sm:$0xf] 0
        %v579 = vld [vmem:[%s509 + $0x74] sm:$0x1]
        %v580 = vsel %vm398, 0, %v579
        %581 = vst [vmem:[%s509 + $0x74] sm:$0x1] %v580
        %v582 = vld [vmem:[%s509 + $0x78] sm:$0xf]
        %v583 = vsel %vm511, 0, %v582
        %584 = vst [vmem:[%s509 + $0x78] sm:$0xf] %v583
        %585 = vst [vmem:[%s509 + $0x7c] sm:$0xf] 0
        %v586 = vld [vmem:[%s509 + $0x80] sm:$0x1]
        %v587 = vsel %vm398, 0, %v586
        %588 = vst [vmem:[%s509 + $0x80] sm:$0x1] %v587
        %v589 = vld [vmem:[%s509 + $0x84] sm:$0xf]
        %v590 = vsel %vm511, 0, %v589
        %591 = vst [vmem:[%s509 + $0x84] sm:$0xf] %v590
        %592 = vst [vmem:[%s509 + $0x88] sm:$0xf] 0
        %v593 = vld [vmem:[%s509 + $0x8c] sm:$0x1]
        %v594 = vsel %vm398, 0, %v593
        %595 = vst [vmem:[%s509 + $0x8c] sm:$0x1] %v594
        %v596 = vld [vmem:[%s509 + $0x90] sm:$0xf]
        %v597 = vsel %vm511, 0, %v596
        %598 = vst [vmem:[%s509 + $0x90] sm:$0xf] %v597
        %599 = vst [vmem:[%s509 + $0x94] sm:$0xf] 0
        %v600 = vld [vmem:[%s509 + $0x98] sm:$0x1]
        %v601 = vsel %vm398, 0, %v600
        %602 = vst [vmem:[%s509 + $0x98] sm:$0x1] %v601
        %v603 = vld [vmem:[%s509 + $0x9c] sm:$0xf]
        %v604 = vsel %vm511, 0, %v603
        %605 = vst [vmem:[%s509 + $0x9c] sm:$0xf] %v604
        %606 = vst [vmem:[%s509 + $0xa0] sm:$0xf] 0
        %v607 = vld [vmem:[%s509 + $0xa4] sm:$0x1]
        %v608 = vsel %vm398, 0, %v607
        %609 = vst [vmem:[%s509 + $0xa4] sm:$0x1] %v608
        %v610 = vld [vmem:[%s509 + $0xa8] sm:$0xf]
        %v611 = vsel %vm511, 0, %v610
        %612 = vst [vmem:[%s509 + $0xa8] sm:$0xf] %v611
        %613 = vst [vmem:[%s509 + $0xac] sm:$0xf] 0
        %v614 = vld [vmem:[%s509 + $0xb0] sm:$0x1]
        %v615 = vsel %vm398, 0, %v614
        %616 = vst [vmem:[%s509 + $0xb0] sm:$0x1] %v615
        %v617 = vld [vmem:[%s509 + $0xb4] sm:$0xf]
        %v618 = vsel %vm511, 0, %v617
        %619 = vst [vmem:[%s509 + $0xb4] sm:$0xf] %v618
        %620 = vst [vmem:[%s509 + $0xb8] sm:$0xf] 0
        %v621 = vld [vmem:[%s509 + $0xbc] sm:$0x1]
        %v622 = vsel %vm398, 0, %v621
        %623 = vst [vmem:[%s509 + $0xbc] sm:$0x1] %v622
        %v624 = vld [vmem:[%s387] sm:$0xf]
        %v625 = vld [vmem:[%s387 + $0x4] sm:$0xf]
        %v626 = vld [vmem:[%s387 + $0x8] sm:$0xf]
        %v627 = vld [vmem:[%s387 + $0xc] sm:$0xf]
        %v628 = vld [vmem:[%s387 + $0x10] sm:$0xf]
        %v629 = vld [vmem:[%s387 + $0x14] sm:$0xf]
        %v630 = vld [vmem:[%s387 + $0x18] sm:$0xf]
        %v631 = vld [vmem:[%s387 + $0x1c] sm:$0xf]
        %v632 = vld [vmem:[%s387 + $0x20] sm:$0xf]
        %v633 = vld [vmem:[%s387 + $0x24] sm:$0xf]
        %v634 = vld [vmem:[%s387 + $0x28] sm:$0xf]
        %v635 = vld [vmem:[%s387 + $0x2c] sm:$0xf]
        %v636 = vld [vmem:[%s387 + $0x30] sm:$0xf]
        %v637 = vld [vmem:[%s387 + $0x34] sm:$0xf]
        %v638 = vld [vmem:[%s387 + $0x38] sm:$0xf]
        %v639 = vld [vmem:[%s387 + $0x3c] sm:$0xf]
        %v640 = vld [vmem:[%s387 + $0x40] sm:$0xf]
        %v641 = vld [vmem:[%s387 + $0x44] sm:$0xf]
        %v642 = vld [vmem:[%s387 + $0x48] sm:$0xf]
        %v643 = vld [vmem:[%s387 + $0x4c] sm:$0xf]
        %v644 = vld [vmem:[%s387 + $0x50] sm:$0xf]
        %v645 = vld [vmem:[%s387 + $0x54] sm:$0xf]
        %v646 = vld [vmem:[%s387 + $0x58] sm:$0xf]
        %v647 = vld [vmem:[%s387 + $0x5c] sm:$0xf]
        %v648 = vld [vmem:[%s387 + $0x60] sm:$0xf]
        %v649 = vld [vmem:[%s387 + $0x64] sm:$0xf]
        %v650 = vld [vmem:[%s387 + $0x68] sm:$0xf]
        %v651 = vld [vmem:[%s387 + $0x6c] sm:$0xf]
        %v652 = vld [vmem:[%s387 + $0x70] sm:$0xf]
        %v653 = vld [vmem:[%s387 + $0x74] sm:$0xf]
        %v654 = vld [vmem:[%s387 + $0x78] sm:$0xf]
        %v655 = vld [vmem:[%s387 + $0x7c] sm:$0xf]
        %vm656 = vsmask.f32 4368
        %vm657 = vmor %vm397, %vm656
        %v659 = vshrl.u32 %v624, 16
        %v661 = vrot.slane %v659, 7
        %v662 = vshll.u32 %v624, 16
        %v664 = vor.u32 %v661, %v662
        %v665 = vrot.slane %v661, 4
        %v667 = vshrl.u32 %v625, 16
        %v669 = vrot.slane %v667, 7
        %v670 = vshll.u32 %v625, 16
        %v672 = vor.u32 %v669, %v670
        %v673 = vsel %vm657, %v665, %v672
        %v674 = vrot.slane %v669, 4
        %v676 = vshrl.u32 %v626, 16
        %v678 = vrot.slane %v676, 7
        %v679 = vshll.u32 %v626, 16
        %v681 = vor.u32 %v678, %v679
        %v682 = vrot.slane %v678, 4
        %v684 = vshrl.u32 %v627, 16
        %v686 = vrot.slane %v684, 7
        %v687 = vshll.u32 %v627, 16
        %v689 = vor.u32 %v686, %v687
        %v690 = vsel %vm657, %v682, %v689
        %v691 = vrot.slane %v686, 4
        %v693 = vshrl.u32 %v628, 16
        %v695 = vrot.slane %v693, 7
        %v696 = vshll.u32 %v628, 16
        %v698 = vor.u32 %v695, %v696
        %v699 = vrot.slane %v695, 4
        %v701 = vshrl.u32 %v629, 16
        %v703 = vrot.slane %v701, 7
        %v704 = vshll.u32 %v629, 16
        %v706 = vor.u32 %v703, %v704
        %v707 = vsel %vm657, %v699, %v706
        %v708 = vrot.slane %v703, 4
        %v710 = vshrl.u32 %v630, 16
        %v712 = vrot.slane %v710, 7
        %v713 = vshll.u32 %v630, 16
        %v715 = vor.u32 %v712, %v713
        %v716 = vrot.slane %v712, 4
        %v718 = vshrl.u32 %v631, 16
        %v720 = vrot.slane %v718, 7
        %v721 = vshll.u32 %v631, 16
        %v723 = vor.u32 %v720, %v721
        %v724 = vsel %vm657, %v716, %v723
        %v725 = vrot.slane %v720, 4
        %v727 = vshrl.u32 %v632, 16
        %v729 = vrot.slane %v727, 7
        %v730 = vshll.u32 %v632, 16
        %v732 = vor.u32 %v729, %v730
        %v733 = vrot.slane %v729, 4
        %v735 = vshrl.u32 %v633, 16
        %v737 = vrot.slane %v735, 7
        %v738 = vshll.u32 %v633, 16
        %v740 = vor.u32 %v737, %v738
        %v741 = vsel %vm657, %v733, %v740
        %v742 = vrot.slane %v737, 4
        %v744 = vshrl.u32 %v634, 16
        %v746 = vrot.slane %v744, 7
        %v747 = vshll.u32 %v634, 16
        %v749 = vor.u32 %v746, %v747
        %v750 = vrot.slane %v746, 4
        %v752 = vshrl.u32 %v635, 16
        %v754 = vrot.slane %v752, 7
        %v755 = vshll.u32 %v635, 16
        %v757 = vor.u32 %v754, %v755
        %v758 = vsel %vm657, %v750, %v757
        %v759 = vrot.slane %v754, 4
        %v761 = vshrl.u32 %v636, 16
        %v763 = vrot.slane %v761, 7
        %v764 = vshll.u32 %v636, 16
        %v766 = vor.u32 %v763, %v764
        %v767 = vrot.slane %v763, 4
        %v769 = vshrl.u32 %v637, 16
        %v771 = vrot.slane %v769, 7
        %v772 = vshll.u32 %v637, 16
        %v774 = vor.u32 %v771, %v772
        %v775 = vsel %vm657, %v767, %v774
        %v776 = vrot.slane %v771, 4
        %v778 = vshrl.u32 %v638, 16
        %v780 = vrot.slane %v778, 7
        %v781 = vshll.u32 %v638, 16
        %v783 = vor.u32 %v780, %v781
        %v784 = vrot.slane %v780, 4
        %v786 = vshrl.u32 %v639, 16
        %v788 = vrot.slane %v786, 7
        %v789 = vshll.u32 %v639, 16
        %v791 = vor.u32 %v788, %v789
        %v792 = vsel %vm657, %v784, %v791
        %v793 = vrot.slane %v788, 4
        %v795 = vshrl.u32 %v640, 16
        %v797 = vrot.slane %v795, 7
        %v798 = vshll.u32 %v640, 16
        %v800 = vor.u32 %v797, %v798
        %v801 = vrot.slane %v797, 4
        %v803 = vshrl.u32 %v641, 16
        %v805 = vrot.slane %v803, 7
        %v806 = vshll.u32 %v641, 16
        %v808 = vor.u32 %v805, %v806
        %v809 = vsel %vm657, %v801, %v808
        %v810 = vrot.slane %v805, 4
        %v812 = vshrl.u32 %v642, 16
        %v814 = vrot.slane %v812, 7
        %v815 = vshll.u32 %v642, 16
        %v817 = vor.u32 %v814, %v815
        %v818 = vrot.slane %v814, 4
        %v820 = vshrl.u32 %v643, 16
        %v822 = vrot.slane %v820, 7
        %v823 = vshll.u32 %v643, 16
        %v825 = vor.u32 %v822, %v823
        %v826 = vsel %vm657, %v818, %v825
        %v827 = vrot.slane %v822, 4
        %v829 = vshrl.u32 %v644, 16
        %v831 = vrot.slane %v829, 7
        %v832 = vshll.u32 %v644, 16
        %v834 = vor.u32 %v831, %v832
        %v835 = vrot.slane %v831, 4
        %v837 = vshrl.u32 %v645, 16
        %v839 = vrot.slane %v837, 7
        %v840 = vshll.u32 %v645, 16
        %v842 = vor.u32 %v839, %v840
        %v843 = vsel %vm657, %v835, %v842
        %v844 = vrot.slane %v839, 4
        %v846 = vshrl.u32 %v646, 16
        %v848 = vrot.slane %v846, 7
        %v849 = vshll.u32 %v646, 16
        %v851 = vor.u32 %v848, %v849
        %v852 = vrot.slane %v848, 4
        %v854 = vshrl.u32 %v647, 16
        %v856 = vrot.slane %v854, 7
        %v857 = vshll.u32 %v647, 16
        %v859 = vor.u32 %v856, %v857
        %v860 = vsel %vm657, %v852, %v859
        %v861 = vrot.slane %v856, 4
        %v863 = vshrl.u32 %v648, 16
        %v865 = vrot.slane %v863, 7
        %v866 = vshll.u32 %v648, 16
        %v868 = vor.u32 %v865, %v866
        %v869 = vrot.slane %v865, 4
        %v871 = vshrl.u32 %v649, 16
        %v873 = vrot.slane %v871, 7
        %v874 = vshll.u32 %v649, 16
        %v876 = vor.u32 %v873, %v874
        %v877 = vsel %vm657, %v869, %v876
        %v878 = vrot.slane %v873, 4
        %v880 = vshrl.u32 %v650, 16
        %v882 = vrot.slane %v880, 7
        %v883 = vshll.u32 %v650, 16
        %v885 = vor.u32 %v882, %v883
        %v886 = vrot.slane %v882, 4
        %v888 = vshrl.u32 %v651, 16
        %v890 = vrot.slane %v888, 7
        %v891 = vshll.u32 %v651, 16
        %v893 = vor.u32 %v890, %v891
        %v894 = vsel %vm657, %v886, %v893
        %v895 = vrot.slane %v890, 4
        %v897 = vshrl.u32 %v652, 16
        %v899 = vrot.slane %v897, 7
        %v900 = vshll.u32 %v652, 16
        %v902 = vor.u32 %v899, %v900
        %v903 = vrot.slane %v899, 4
        %v905 = vshrl.u32 %v653, 16
        %v907 = vrot.slane %v905, 7
        %v908 = vshll.u32 %v653, 16
        %v910 = vor.u32 %v907, %v908
        %v911 = vsel %vm657, %v903, %v910
        %v912 = vrot.slane %v907, 4
        %v914 = vshrl.u32 %v654, 16
        %v916 = vrot.slane %v914, 7
        %v917 = vshll.u32 %v654, 16
        %v919 = vor.u32 %v916, %v917
        %v920 = vrot.slane %v916, 4
        %v922 = vshrl.u32 %v655, 16
        %v924 = vrot.slane %v922, 7
        %v925 = vshll.u32 %v655, 16
        %v927 = vor.u32 %v924, %v925
        %v928 = vsel %vm657, %v920, %v927
        %v929 = vrot.slane %v924, 4
        %vm978 = vcmask 27648
        %vm979 = vmand %vm978, %vm453
        %v980 = vld [vmem:[%s509] sm:$0xf]
        %v981 = vsel %vm979, %v664, %v980
        %982 = vst [vmem:[%s509] sm:$0xf] %v981
        %vm983 = vcmask 27648
        %984 = vst.msk [vmem:[%s509 + $0x4] sm:$0xf] %vm983, %v673
        %vm985 = vcmask 24576
        %vm986 = vmand %vm985, %vm397
        %v987 = vld [vmem:[%s509 + $0x8] sm:$0x1]
        %v988 = vsel %vm986, %v674, %v987
        %989 = vst [vmem:[%s509 + $0x8] sm:$0x1] %v988
        %v990 = vld [vmem:[%s509 + $0xc] sm:$0xf]
        %v991 = vsel %vm979, %v681, %v990
        %992 = vst [vmem:[%s509 + $0xc] sm:$0xf] %v991
        %993 = vst.msk [vmem:[%s509 + $0x10] sm:$0xf] %vm983, %v690
        %v994 = vld [vmem:[%s509 + $0x14] sm:$0x1]
        %v995 = vsel %vm986, %v691, %v994
        %996 = vst [vmem:[%s509 + $0x14] sm:$0x1] %v995
        %v997 = vld [vmem:[%s509 + $0x18] sm:$0xf]
        %v998 = vsel %vm979, %v698, %v997
        %999 = vst [vmem:[%s509 + $0x18] sm:$0xf] %v998
        %1000 = vst.msk [vmem:[%s509 + $0x1c] sm:$0xf] %vm983, %v707
        %v1001 = vld [vmem:[%s509 + $0x20] sm:$0x1]
        %v1002 = vsel %vm986, %v708, %v1001
        %1003 = vst [vmem:[%s509 + $0x20] sm:$0x1] %v1002
        %v1004 = vld [vmem:[%s509 + $0x24] sm:$0xf]
        %v1005 = vsel %vm979, %v715, %v1004
        %1006 = vst [vmem:[%s509 + $0x24] sm:$0xf] %v1005
        %1007 = vst.msk [vmem:[%s509 + $0x28] sm:$0xf] %vm983, %v724
        %v1008 = vld [vmem:[%s509 + $0x2c] sm:$0x1]
        %v1009 = vsel %vm986, %v725, %v1008
        %1010 = vst [vmem:[%s509 + $0x2c] sm:$0x1] %v1009
        %v1011 = vld [vmem:[%s509 + $0x30] sm:$0xf]
        %v1012 = vsel %vm979, %v732, %v1011
        %1013 = vst [vmem:[%s509 + $0x30] sm:$0xf] %v1012
        %1014 = vst.msk [vmem:[%s509 + $0x34] sm:$0xf] %vm983, %v741
        %v1015 = vld [vmem:[%s509 + $0x38] sm:$0x1]
        %v1016 = vsel %vm986, %v742, %v1015
        %1017 = vst [vmem:[%s509 + $0x38] sm:$0x1] %v1016
        %v1018 = vld [vmem:[%s509 + $0x3c] sm:$0xf]
        %v1019 = vsel %vm979, %v749, %v1018
        %1020 = vst [vmem:[%s509 + $0x3c] sm:$0xf] %v1019
        %1021 = vst.msk [vmem:[%s509 + $0x40] sm:$0xf] %vm983, %v758
        %v1022 = vld [vmem:[%s509 + $0x44] sm:$0x1]
        %v1023 = vsel %vm986, %v759, %v1022
        %1024 = vst [vmem:[%s509 + $0x44] sm:$0x1] %v1023
        %v1025 = vld [vmem:[%s509 + $0x48] sm:$0xf]
        %v1026 = vsel %vm979, %v766, %v1025
        %1027 = vst [vmem:[%s509 + $0x48] sm:$0xf] %v1026
        %1028 = vst.msk [vmem:[%s509 + $0x4c] sm:$0xf] %vm983, %v775
        %v1029 = vld [vmem:[%s509 + $0x50] sm:$0x1]
        %v1030 = vsel %vm986, %v776, %v1029
        %1031 = vst [vmem:[%s509 + $0x50] sm:$0x1] %v1030
        %v1032 = vld [vmem:[%s509 + $0x54] sm:$0xf]
        %v1033 = vsel %vm979, %v783, %v1032
        %1034 = vst [vmem:[%s509 + $0x54] sm:$0xf] %v1033
        %1035 = vst.msk [vmem:[%s509 + $0x58] sm:$0xf] %vm983, %v792
        %v1036 = vld [vmem:[%s509 + $0x5c] sm:$0x1]
        %v1037 = vsel %vm986, %v793, %v1036
        %1038 = vst [vmem:[%s509 + $0x5c] sm:$0x1] %v1037
        %v1039 = vld [vmem:[%s509 + $0x60] sm:$0xf]
        %v1040 = vsel %vm979, %v800, %v1039
        %1041 = vst [vmem:[%s509 + $0x60] sm:$0xf] %v1040
        %1042 = vst.msk [vmem:[%s509 + $0x64] sm:$0xf] %vm983, %v809
        %v1043 = vld [vmem:[%s509 + $0x68] sm:$0x1]
        %v1044 = vsel %vm986, %v810, %v1043
        %1045 = vst [vmem:[%s509 + $0x68] sm:$0x1] %v1044
        %v1046 = vld [vmem:[%s509 + $0x6c] sm:$0xf]
        %v1047 = vsel %vm979, %v817, %v1046
        %1048 = vst [vmem:[%s509 + $0x6c] sm:$0xf] %v1047
        %1049 = vst.msk [vmem:[%s509 + $0x70] sm:$0xf] %vm983, %v826
        %v1050 = vld [vmem:[%s509 + $0x74] sm:$0x1]
        %v1051 = vsel %vm986, %v827, %v1050
        %1052 = vst [vmem:[%s509 + $0x74] sm:$0x1] %v1051
        %v1053 = vld [vmem:[%s509 + $0x78] sm:$0xf]
        %v1054 = vsel %vm979, %v834, %v1053
        %1055 = vst [vmem:[%s509 + $0x78] sm:$0xf] %v1054
        %1056 = vst.msk [vmem:[%s509 + $0x7c] sm:$0xf] %vm983, %v843
        %v1057 = vld [vmem:[%s509 + $0x80] sm:$0x1]
        %v1058 = vsel %vm986, %v844, %v1057
        %1059 = vst [vmem:[%s509 + $0x80] sm:$0x1] %v1058
        %v1060 = vld [vmem:[%s509 + $0x84] sm:$0xf]
        %v1061 = vsel %vm979, %v851, %v1060
        %1062 = vst [vmem:[%s509 + $0x84] sm:$0xf] %v1061
        %1063 = vst.msk [vmem:[%s509 + $0x88] sm:$0xf] %vm983, %v860
        %v1064 = vld [vmem:[%s509 + $0x8c] sm:$0x1]
        %v1065 = vsel %vm986, %v861, %v1064
        %1066 = vst [vmem:[%s509 + $0x8c] sm:$0x1] %v1065
        %v1067 = vld [vmem:[%s509 + $0x90] sm:$0xf]
        %v1068 = vsel %vm979, %v868, %v1067
        %1069 = vst [vmem:[%s509 + $0x90] sm:$0xf] %v1068
        %1070 = vst.msk [vmem:[%s509 + $0x94] sm:$0xf] %vm983, %v877
        %v1071 = vld [vmem:[%s509 + $0x98] sm:$0x1]
        %v1072 = vsel %vm986, %v878, %v1071
        %1073 = vst [vmem:[%s509 + $0x98] sm:$0x1] %v1072
        %v1074 = vld [vmem:[%s509 + $0x9c] sm:$0xf]
        %v1075 = vsel %vm979, %v885, %v1074
        %1076 = vst [vmem:[%s509 + $0x9c] sm:$0xf] %v1075
        %1077 = vst.msk [vmem:[%s509 + $0xa0] sm:$0xf] %vm983, %v894
        %v1078 = vld [vmem:[%s509 + $0xa4] sm:$0x1]
        %v1079 = vsel %vm986, %v895, %v1078
        %1080 = vst [vmem:[%s509 + $0xa4] sm:$0x1] %v1079
        %v1081 = vld [vmem:[%s509 + $0xa8] sm:$0xf]
        %v1082 = vsel %vm979, %v902, %v1081
        %1083 = vst [vmem:[%s509 + $0xa8] sm:$0xf] %v1082
        %1084 = vst.msk [vmem:[%s509 + $0xac] sm:$0xf] %vm983, %v911
        %v1085 = vld [vmem:[%s509 + $0xb0] sm:$0x1]
        %v1086 = vsel %vm986, %v912, %v1085
        %1087 = vst [vmem:[%s509 + $0xb0] sm:$0x1] %v1086
        %v1088 = vld [vmem:[%s509 + $0xb4] sm:$0xf]
        %v1089 = vsel %vm979, %v919, %v1088
        %1090 = vst [vmem:[%s509 + $0xb4] sm:$0xf] %v1089
        %1091 = vst.msk [vmem:[%s509 + $0xb8] sm:$0xf] %vm983, %v928
        %v1092 = vld [vmem:[%s509 + $0xbc] sm:$0x1]
        %v1093 = vsel %vm986, %v929, %v1092
        %1094 = vst [vmem:[%s509 + $0xbc] sm:$0x1] %v1093
        %v1095 = vld [vmem:[%s2] sm:$0xf]
        %v1096 = vld [vmem:[%s2 + $0x4] sm:$0xf]
        %v1097 = vld [vmem:[%s3] sm:$0xff]
        %v1098 = vld [vmem:[%s3 + $0x8] sm:$0xff]
        %v1099 = vld [vmem:[#allocation2] sm:$0xf]
        %v1100 = vld [vmem:[#allocation2 + $0x4] sm:$0xf]
        %v1101 = vld [vmem:[#allocation2 + $0xc] sm:$0xf]
        %v1102 = vld [vmem:[#allocation2 + $0x10] sm:$0xf]
        %v1103 = vld [vmem:[#allocation2 + $0x18] sm:$0xf]
        %v1104 = vld [vmem:[#allocation2 + $0x1c] sm:$0xf]
        %v1105 = vld [vmem:[#allocation2 + $0x24] sm:$0xf]
        %v1106 = vld [vmem:[#allocation2 + $0x28] sm:$0xf]
        %v1107 = vld [vmem:[#allocation2 + $0x30] sm:$0xf]
        %v1108 = vld [vmem:[#allocation2 + $0x34] sm:$0xf]
        %v1109 = vld [vmem:[#allocation2 + $0x3c] sm:$0xf]
        %v1110 = vld [vmem:[#allocation2 + $0x40] sm:$0xf]
        %v1111 = vld [vmem:[#allocation2 + $0x48] sm:$0xf]
        %v1112 = vld [vmem:[#allocation2 + $0x4c] sm:$0xf]
        %v1113 = vld [vmem:[#allocation2 + $0x54] sm:$0xf]
        %v1114 = vld [vmem:[#allocation2 + $0x58] sm:$0xf]
        %v1115 = vld [vmem:[#allocation2 + $0x60] sm:$0xf]
        %v1116 = vld [vmem:[#allocation2 + $0x64] sm:$0xf]
        %v1117 = vld [vmem:[#allocation2 + $0x6c] sm:$0xf]
        %v1118 = vld [vmem:[#allocation2 + $0x70] sm:$0xf]
        %v1119 = vld [vmem:[#allocation2 + $0x78] sm:$0xf]
        %v1120 = vld [vmem:[#allocation2 + $0x7c] sm:$0xf]
        %v1121 = vld [vmem:[#allocation2 + $0x84] sm:$0xf]
        %v1122 = vld [vmem:[#allocation2 + $0x88] sm:$0xf]
        %v1123 = vld [vmem:[#allocation2 + $0x90] sm:$0xf]
        %v1124 = vld [vmem:[#allocation2 + $0x94] sm:$0xf]
        %v1125 = vld [vmem:[#allocation2 + $0x9c] sm:$0xf]
        %v1126 = vld [vmem:[#allocation2 + $0xa0] sm:$0xf]
        %v1127 = vld [vmem:[#allocation2 + $0xa8] sm:$0xf]
        %v1128 = vld [vmem:[#allocation2 + $0xac] sm:$0xf]
        %v1129 = vld [vmem:[#allocation2 + $0xb4] sm:$0xf]
        %v1130 = vld [vmem:[#allocation2 + $0xb8] sm:$0xf]
        %v1131 = vld [vmem:[#allocation4] sm:$0xf]
        %v1132 = vld [vmem:[#allocation4 + $0x4] sm:$0xf]
        %v1133 = vld [vmem:[#allocation4 + $0x8] sm:$0xf]
        %v1134 = vld [vmem:[#allocation4 + $0xc] sm:$0xf]
        %v1135 = vld [vmem:[#allocation4 + $0x10] sm:$0xf]
        %v1136 = vld [vmem:[#allocation4 + $0x14] sm:$0xf]
        %v1137 = vld [vmem:[#allocation4 + $0x18] sm:$0xf]
        %v1138 = vld [vmem:[#allocation4 + $0x1c] sm:$0xf]
        %v1139 = vld [vmem:[#allocation4 + $0x20] sm:$0xf]
        %v1140 = vld [vmem:[#allocation4 + $0x24] sm:$0xf]
        %v1141 = vld [vmem:[#allocation4 + $0x28] sm:$0xf]
        %v1142 = vld [vmem:[#allocation4 + $0x2c] sm:$0xf]
        %v1143 = vld [vmem:[#allocation4 + $0x30] sm:$0xf]
        %v1144 = vld [vmem:[#allocation4 + $0x34] sm:$0xf]
        %v1145 = vld [vmem:[#allocation4 + $0x38] sm:$0xf]
        %v1146 = vld [vmem:[#allocation4 + $0x3c] sm:$0xf]
        %v1147 = vld [vmem:[#allocation2 + $0x8] sm:$0x1]
        %v1148 = vld [vmem:[#allocation2 + $0x14] sm:$0x1]
        %v1149 = vld [vmem:[#allocation2 + $0x20] sm:$0x1]
        %v1150 = vld [vmem:[#allocation2 + $0x2c] sm:$0x1]
        %v1151 = vld [vmem:[#allocation2 + $0x38] sm:$0x1]
        %v1152 = vld [vmem:[#allocation2 + $0x44] sm:$0x1]
        %v1153 = vld [vmem:[#allocation2 + $0x50] sm:$0x1]
        %v1154 = vld [vmem:[#allocation2 + $0x5c] sm:$0x1]
        %v1155 = vld [vmem:[#allocation2 + $0x68] sm:$0x1]
        %v1156 = vld [vmem:[#allocation2 + $0x74] sm:$0x1]
        %v1157 = vld [vmem:[#allocation2 + $0x80] sm:$0x1]
        %v1158 = vld [vmem:[#allocation2 + $0x8c] sm:$0x1]
        %v1159 = vld [vmem:[#allocation2 + $0x98] sm:$0x1]
        %v1160 = vld [vmem:[#allocation2 + $0xa4] sm:$0x1]
        %v1161 = vld [vmem:[#allocation2 + $0xb0] sm:$0x1]
        %v1162 = vld [vmem:[#allocation2 + $0xbc] sm:$0x1]
        %vm1163 = vsmask.f32 3328
        %vm1164 = vsmask.f32 7440
        %vm1165 = vmor %vm1163, %vm1164
        %v1167 = vshrl.u32 %v1099, 16
        %v1169 = vrot.slane %v1167, 4
        %v1170 = vshll.u32 %v1099, 16
        %v1172 = vrot.slane %v1170, 5
        %v1173 = vor.u32 %v1169, %v1172
        %v1174 = vrot.slane %v1173, 4
        %v1176 = vshll.u32 %v1100, 16
        %v1178 = vrot.slane %v1176, 5
        %v1179 = vsel %vm1165, %v1174, %v1178
        %v1180 = vshrl.u32 %v1100, 16
        %v1182 = vrot.slane %v1180, 4
        %v1183 = vor.u32 %v1182, %v1178
        %v1184 = vrot.slane %v1183, 4
        %v1186 = vshll.u32 %v1147, 16
        %v1188 = vrot.slane %v1186, 5
        %v1189 = vsel %vm1165, %v1184, %v1188
        %v1191 = vshrl.u32 %v1101, 16
        %v1193 = vrot.slane %v1191, 4
        %v1194 = vshll.u32 %v1101, 16
        %v1196 = vrot.slane %v1194, 5
        %v1197 = vor.u32 %v1193, %v1196
        %v1198 = vrot.slane %v1197, 4
        %v1200 = vshll.u32 %v1102, 16
        %v1202 = vrot.slane %v1200, 5
        %v1203 = vsel %vm1165, %v1198, %v1202
        %v1204 = vshrl.u32 %v1102, 16
        %v1206 = vrot.slane %v1204, 4
        %v1207 = vor.u32 %v1206, %v1202
        %v1208 = vrot.slane %v1207, 4
        %v1210 = vshll.u32 %v1148, 16
        %v1212 = vrot.slane %v1210, 5
        %v1213 = vsel %vm1165, %v1208, %v1212
        %v1215 = vshrl.u32 %v1103, 16
        %v1217 = vrot.slane %v1215, 4
        %v1218 = vshll.u32 %v1103, 16
        %v1220 = vrot.slane %v1218, 5
        %v1221 = vor.u32 %v1217, %v1220
        %v1222 = vrot.slane %v1221, 4
        %v1224 = vshll.u32 %v1104, 16
        %v1226 = vrot.slane %v1224, 5
        %v1227 = vsel %vm1165, %v1222, %v1226
        %v1228 = vshrl.u32 %v1104, 16
        %v1230 = vrot.slane %v1228, 4
        %v1231 = vor.u32 %v1230, %v1226
        %v1232 = vrot.slane %v1231, 4
        %v1234 = vshll.u32 %v1149, 16
        %v1236 = vrot.slane %v1234, 5
        %v1237 = vsel %vm1165, %v1232, %v1236
        %v1239 = vshrl.u32 %v1105, 16
        %v1241 = vrot.slane %v1239, 4
        %v1242 = vshll.u32 %v1105, 16
        %v1244 = vrot.slane %v1242, 5
        %v1245 = vor.u32 %v1241, %v1244
        %v1246 = vrot.slane %v1245, 4
        %v1248 = vshll.u32 %v1106, 16
        %v1250 = vrot.slane %v1248, 5
        %v1251 = vsel %vm1165, %v1246, %v1250
        %v1252 = vshrl.u32 %v1106, 16
        %v1254 = vrot.slane %v1252, 4
        %v1255 = vor.u32 %v1254, %v1250
        %v1256 = vrot.slane %v1255, 4
        %v1258 = vshll.u32 %v1150, 16
        %v1260 = vrot.slane %v1258, 5
        %v1261 = vsel %vm1165, %v1256, %v1260
        %v1263 = vshrl.u32 %v1107, 16
        %v1265 = vrot.slane %v1263, 4
        %v1266 = vshll.u32 %v1107, 16
        %v1268 = vrot.slane %v1266, 5
        %v1269 = vor.u32 %v1265, %v1268
        %v1270 = vrot.slane %v1269, 4
        %v1272 = vshll.u32 %v1108, 16
        %v1274 = vrot.slane %v1272, 5
        %v1275 = vsel %vm1165, %v1270, %v1274
        %v1276 = vshrl.u32 %v1108, 16
        %v1278 = vrot.slane %v1276, 4
        %v1279 = vor.u32 %v1278, %v1274
        %v1280 = vrot.slane %v1279, 4
        %v1282 = vshll.u32 %v1151, 16
        %v1284 = vrot.slane %v1282, 5
        %v1285 = vsel %vm1165, %v1280, %v1284
        %v1287 = vshrl.u32 %v1109, 16
        %v1289 = vrot.slane %v1287, 4
        %v1290 = vshll.u32 %v1109, 16
        %v1292 = vrot.slane %v1290, 5
        %v1293 = vor.u32 %v1289, %v1292
        %v1294 = vrot.slane %v1293, 4
        %v1296 = vshll.u32 %v1110, 16
        %v1298 = vrot.slane %v1296, 5
        %v1299 = vsel %vm1165, %v1294, %v1298
        %v1300 = vshrl.u32 %v1110, 16
        %v1302 = vrot.slane %v1300, 4
        %v1303 = vor.u32 %v1302, %v1298
        %v1304 = vrot.slane %v1303, 4
        %v1306 = vshll.u32 %v1152, 16
        %v1308 = vrot.slane %v1306, 5
        %v1309 = vsel %vm1165, %v1304, %v1308
        %v1311 = vshrl.u32 %v1111, 16
        %v1313 = vrot.slane %v1311, 4
        %v1314 = vshll.u32 %v1111, 16
        %v1316 = vrot.slane %v1314, 5
        %v1317 = vor.u32 %v1313, %v1316
        %v1318 = vrot.slane %v1317, 4
        %v1320 = vshll.u32 %v1112, 16
        %v1322 = vrot.slane %v1320, 5
        %v1323 = vsel %vm1165, %v1318, %v1322
        %v1324 = vshrl.u32 %v1112, 16
        %v1326 = vrot.slane %v1324, 4
        %v1327 = vor.u32 %v1326, %v1322
        %v1328 = vrot.slane %v1327, 4
        %v1330 = vshll.u32 %v1153, 16
        %v1332 = vrot.slane %v1330, 5
        %v1333 = vsel %vm1165, %v1328, %v1332
        %v1335 = vshrl.u32 %v1113, 16
        %v1337 = vrot.slane %v1335, 4
        %v1338 = vshll.u32 %v1113, 16
        %v1340 = vrot.slane %v1338, 5
        %v1341 = vor.u32 %v1337, %v1340
        %v1342 = vrot.slane %v1341, 4
        %v1344 = vshll.u32 %v1114, 16
        %v1346 = vrot.slane %v1344, 5
        %v1347 = vsel %vm1165, %v1342, %v1346
        %v1348 = vshrl.u32 %v1114, 16
        %v1350 = vrot.slane %v1348, 4
        %v1351 = vor.u32 %v1350, %v1346
        %v1352 = vrot.slane %v1351, 4
        %v1354 = vshll.u32 %v1154, 16
        %v1356 = vrot.slane %v1354, 5
        %v1357 = vsel %vm1165, %v1352, %v1356
        %v1359 = vshrl.u32 %v1115, 16
        %v1361 = vrot.slane %v1359, 4
        %v1362 = vshll.u32 %v1115, 16
        %v1364 = vrot.slane %v1362, 5
        %v1365 = vor.u32 %v1361, %v1364
        %v1366 = vrot.slane %v1365, 4
        %v1368 = vshll.u32 %v1116, 16
        %v1370 = vrot.slane %v1368, 5
        %v1371 = vsel %vm1165, %v1366, %v1370
        %v1372 = vshrl.u32 %v1116, 16
        %v1374 = vrot.slane %v1372, 4
        %v1375 = vor.u32 %v1374, %v1370
        %v1376 = vrot.slane %v1375, 4
        %v1378 = vshll.u32 %v1155, 16
        %v1380 = vrot.slane %v1378, 5
        %v1381 = vsel %vm1165, %v1376, %v1380
        %v1383 = vshrl.u32 %v1117, 16
        %v1385 = vrot.slane %v1383, 4
        %v1386 = vshll.u32 %v1117, 16
        %v1388 = vrot.slane %v1386, 5
        %v1389 = vor.u32 %v1385, %v1388
        %v1390 = vrot.slane %v1389, 4
        %v1392 = vshll.u32 %v1118, 16
        %v1394 = vrot.slane %v1392, 5
        %v1395 = vsel %vm1165, %v1390, %v1394
        %v1396 = vshrl.u32 %v1118, 16
        %v1398 = vrot.slane %v1396, 4
        %v1399 = vor.u32 %v1398, %v1394
        %v1400 = vrot.slane %v1399, 4
        %v1402 = vshll.u32 %v1156, 16
        %v1404 = vrot.slane %v1402, 5
        %v1405 = vsel %vm1165, %v1400, %v1404
        %v1407 = vshrl.u32 %v1119, 16
        %v1409 = vrot.slane %v1407, 4
        %v1410 = vshll.u32 %v1119, 16
        %v1412 = vrot.slane %v1410, 5
        %v1413 = vor.u32 %v1409, %v1412
        %v1414 = vrot.slane %v1413, 4
        %v1416 = vshll.u32 %v1120, 16
        %v1418 = vrot.slane %v1416, 5
        %v1419 = vsel %vm1165, %v1414, %v1418
        %v1420 = vshrl.u32 %v1120, 16
        %v1422 = vrot.slane %v1420, 4
        %v1423 = vor.u32 %v1422, %v1418
        %v1424 = vrot.slane %v1423, 4
        %v1426 = vshll.u32 %v1157, 16
        %v1428 = vrot.slane %v1426, 5
        %v1429 = vsel %vm1165, %v1424, %v1428
        %v1431 = vshrl.u32 %v1121, 16
        %v1433 = vrot.slane %v1431, 4
        %v1434 = vshll.u32 %v1121, 16
        %v1436 = vrot.slane %v1434, 5
        %v1437 = vor.u32 %v1433, %v1436
        %v1438 = vrot.slane %v1437, 4
        %v1440 = vshll.u32 %v1122, 16
        %v1442 = vrot.slane %v1440, 5
        %v1443 = vsel %vm1165, %v1438, %v1442
        %v1444 = vshrl.u32 %v1122, 16
        %v1446 = vrot.slane %v1444, 4
        %v1447 = vor.u32 %v1446, %v1442
        %v1448 = vrot.slane %v1447, 4
        %v1450 = vshll.u32 %v1158, 16
        %v1452 = vrot.slane %v1450, 5
        %v1453 = vsel %vm1165, %v1448, %v1452
        %v1455 = vshrl.u32 %v1123, 16
        %v1457 = vrot.slane %v1455, 4
        %v1458 = vshll.u32 %v1123, 16
        %v1460 = vrot.slane %v1458, 5
        %v1461 = vor.u32 %v1457, %v1460
        %v1462 = vrot.slane %v1461, 4
        %v1464 = vshll.u32 %v1124, 16
        %v1466 = vrot.slane %v1464, 5
        %v1467 = vsel %vm1165, %v1462, %v1466
        %v1468 = vshrl.u32 %v1124, 16
        %v1470 = vrot.slane %v1468, 4
        %v1471 = vor.u32 %v1470, %v1466
        %v1472 = vrot.slane %v1471, 4
        %v1474 = vshll.u32 %v1159, 16
        %v1476 = vrot.slane %v1474, 5
        %v1477 = vsel %vm1165, %v1472, %v1476
        %v1479 = vshrl.u32 %v1125, 16
        %v1481 = vrot.slane %v1479, 4
        %v1482 = vshll.u32 %v1125, 16
        %v1484 = vrot.slane %v1482, 5
        %v1485 = vor.u32 %v1481, %v1484
        %v1486 = vrot.slane %v1485, 4
        %v1488 = vshll.u32 %v1126, 16
        %v1490 = vrot.slane %v1488, 5
        %v1491 = vsel %vm1165, %v1486, %v1490
        %v1492 = vshrl.u32 %v1126, 16
        %v1494 = vrot.slane %v1492, 4
        %v1495 = vor.u32 %v1494, %v1490
        %v1496 = vrot.slane %v1495, 4
        %v1498 = vshll.u32 %v1160, 16
        %v1500 = vrot.slane %v1498, 5
        %v1501 = vsel %vm1165, %v1496, %v1500
        %v1503 = vshrl.u32 %v1127, 16
        %v1505 = vrot.slane %v1503, 4
        %v1506 = vshll.u32 %v1127, 16
        %v1508 = vrot.slane %v1506, 5
        %v1509 = vor.u32 %v1505, %v1508
        %v1510 = vrot.slane %v1509, 4
        %v1512 = vshll.u32 %v1128, 16
        %v1514 = vrot.slane %v1512, 5
        %v1515 = vsel %vm1165, %v1510, %v1514
        %v1516 = vshrl.u32 %v1128, 16
        %v1518 = vrot.slane %v1516, 4
        %v1519 = vor.u32 %v1518, %v1514
        %v1520 = vrot.slane %v1519, 4
        %v1522 = vshll.u32 %v1161, 16
        %v1524 = vrot.slane %v1522, 5
        %v1525 = vsel %vm1165, %v1520, %v1524
        %v1527 = vshrl.u32 %v1129, 16
        %v1529 = vrot.slane %v1527, 4
        %v1530 = vshll.u32 %v1129, 16
        %v1532 = vrot.slane %v1530, 5
        %v1533 = vor.u32 %v1529, %v1532
        %v1534 = vrot.slane %v1533, 4
        %v1536 = vshll.u32 %v1130, 16
        %v1538 = vrot.slane %v1536, 5
        %v1539 = vsel %vm1165, %v1534, %v1538
        %v1540 = vshrl.u32 %v1130, 16
        %v1542 = vrot.slane %v1540, 4
        %v1543 = vor.u32 %v1542, %v1538
        %v1544 = vrot.slane %v1543, 4
        %v1546 = vshll.u32 %v1162, 16
        %v1548 = vrot.slane %v1546, 5
        %v1549 = vsel %vm1165, %v1544, %v1548
        %s1550 = scalar_lea.vmem [#allocation4], 64
        %v1551 = vld [vmem:[%s1550] sm:$0xf]
        %v1552 = vld [vmem:[%s1550 + $0x4] sm:$0xf]
        %v1553 = vld [vmem:[%s1550 + $0x8] sm:$0xf]
        %v1554 = vld [vmem:[%s1550 + $0xc] sm:$0xf]
        %v1555 = vld [vmem:[%s1550 + $0x10] sm:$0xf]
        %v1556 = vld [vmem:[%s1550 + $0x14] sm:$0xf]
        %v1557 = vld [vmem:[%s1550 + $0x18] sm:$0xf]
        %v1558 = vld [vmem:[%s1550 + $0x1c] sm:$0xf]
        %v1559 = vld [vmem:[%s1550 + $0x20] sm:$0xf]
        %v1560 = vld [vmem:[%s1550 + $0x24] sm:$0xf]
        %v1561 = vld [vmem:[%s1550 + $0x28] sm:$0xf]
        %v1562 = vld [vmem:[%s1550 + $0x2c] sm:$0xf]
        %v1563 = vld [vmem:[%s1550 + $0x30] sm:$0xf]
        %v1564 = vld [vmem:[%s1550 + $0x34] sm:$0xf]
        %v1565 = vld [vmem:[%s1550 + $0x38] sm:$0xf]
        %v1566 = vld [vmem:[%s1550 + $0x3c] sm:$0xf]
        %v1567 = vunpack.c.l.b16 %v1179
        %v1568 = vunpack.c.l.b16 %v1189
        %v1569 = vunpack.c.l.b16 %v1203
        %v1570 = vunpack.c.l.b16 %v1213
        %v1571 = vunpack.c.l.b16 %v1227
        %v1572 = vunpack.c.l.b16 %v1237
        %v1573 = vunpack.c.l.b16 %v1251
        %v1574 = vunpack.c.l.b16 %v1261
        %v1575 = vunpack.c.l.b16 %v1275
        %v1576 = vunpack.c.l.b16 %v1285
        %v1577 = vunpack.c.l.b16 %v1299
        %v1578 = vunpack.c.l.b16 %v1309
        %v1579 = vunpack.c.l.b16 %v1323
        %v1580 = vunpack.c.l.b16 %v1333
        %v1581 = vunpack.c.l.b16 %v1347
        %v1582 = vunpack.c.l.b16 %v1357
        %v1583 = vunpack.c.l.b16 %v1371
        %v1584 = vunpack.c.l.b16 %v1381
        %v1585 = vunpack.c.l.b16 %v1395
        %v1586 = vunpack.c.l.b16 %v1405
        %v1587 = vunpack.c.l.b16 %v1419
        %v1588 = vunpack.c.l.b16 %v1429
        %v1589 = vunpack.c.l.b16 %v1443
        %v1590 = vunpack.c.l.b16 %v1453
        %v1591 = vunpack.c.l.b16 %v1467
        %v1592 = vunpack.c.l.b16 %v1477
        %v1593 = vunpack.c.l.b16 %v1491
        %v1594 = vunpack.c.l.b16 %v1501
        %v1595 = vunpack.c.l.b16 %v1515
        %v1596 = vunpack.c.l.b16 %v1525
        %v1597 = vunpack.c.l.b16 %v1539
        %v1598 = vunpack.c.l.b16 %v1549
        %v1599 = vpack.c.b16 %v1568, %v1567
        %v1600 = vpack.c.b16 %v1570, %v1569
        %v1601 = vpack.c.b16 %v1572, %v1571
        %v1602 = vpack.c.b16 %v1574, %v1573
        %v1603 = vpack.c.b16 %v1576, %v1575
        %v1604 = vpack.c.b16 %v1578, %v1577
        %v1605 = vpack.c.b16 %v1580, %v1579
        %v1606 = vpack.c.b16 %v1582, %v1581
        %v1607 = vpack.c.b16 %v1584, %v1583
        %v1608 = vpack.c.b16 %v1586, %v1585
        %v1609 = vpack.c.b16 %v1588, %v1587
        %v1610 = vpack.c.b16 %v1590, %v1589
        %v1611 = vpack.c.b16 %v1592, %v1591
        %v1612 = vpack.c.b16 %v1594, %v1593
        %v1613 = vpack.c.b16 %v1596, %v1595
        %v1614 = vpack.c.b16 %v1598, %v1597
        %v1647 = vunpack.c.l.b16 %v1551
        %v1648 = vunpack.c.l.b16 %v1552
        %v1649 = vunpack.c.l.b16 %v1553
        %v1650 = vunpack.c.l.b16 %v1554
        %v1651 = vunpack.c.l.b16 %v1555
        %v1652 = vunpack.c.l.b16 %v1556
        %v1653 = vunpack.c.l.b16 %v1557
        %v1654 = vunpack.c.l.b16 %v1558
        %v1655 = vunpack.c.l.b16 %v1559
        %v1656 = vunpack.c.l.b16 %v1560
        %v1657 = vunpack.c.l.b16 %v1561
        %v1658 = vunpack.c.l.b16 %v1562
        %v1659 = vunpack.c.l.b16 %v1563
        %v1660 = vunpack.c.l.b16 %v1564
        %v1661 = vunpack.c.l.b16 %v1565
        %v1662 = vunpack.c.l.b16 %v1566
        %v1663 = vpack.c.b16 %v1648, %v1647
        %v1664 = vpack.c.b16 %v1650, %v1649
        %v1665 = vpack.c.b16 %v1652, %v1651
        %v1666 = vpack.c.b16 %v1654, %v1653
        %v1667 = vpack.c.b16 %v1656, %v1655
        %v1668 = vpack.c.b16 %v1658, %v1657
        %v1669 = vpack.c.b16 %v1660, %v1659
        %v1670 = vpack.c.b16 %v1662, %v1661
        %1679 = vmatprep.subr.bf16.mxu0 0
        %1680 = vmatpush1.bf16.msra.mxu0 %v1663
        %1681 = vmatprep.subr.bf16.mxu0 0
        %1682 = vmatpush1.bf16.msra.mxu0 %v1664
        %1683 = vmatprep.subr.bf16.mxu0 0
        %1684 = vmatpush1.bf16.msra.mxu0 %v1665
        %1685 = vmatprep.subr.bf16.mxu0 0
        %1686 = vmatpush1.bf16.msra.mxu0 %v1666
        %1687 = vmatprep.subr.bf16.mxu0 0
        %1688 = vmatpush1.bf16.msra.mxu0 %v1667
        %1689 = vmatprep.subr.bf16.mxu0 0
        %1690 = vmatpush1.bf16.msra.mxu0 %v1668
        %1691 = vmatprep.subr.bf16.mxu0 0
        %1692 = vmatpush1.bf16.msra.mxu0 %v1669
        %1693 = vmatprep.subr.bf16.mxu0 0
        %1694 = vmatpush1.bf16.msra.mxu0 %v1670
        %1695 = vmatprep.subr.bf16.mxu0 0
        %1696 = vmatpush1.bf16.msra.mxu0 0
        %1697 = vmatprep.subr.bf16.mxu0 0
        %1698 = vmatpush1.bf16.msra.mxu0 0
        %1699 = vmatprep.subr.bf16.mxu0 0
        %1700 = vmatpush1.bf16.msra.mxu0 0
        %1701 = vmatprep.subr.bf16.mxu0 0
        %1702 = vmatpush1.bf16.msra.mxu0 0
        %1703 = vmatprep.subr.bf16.mxu0 0
        %1704 = vmatpush1.bf16.msra.mxu0 0
        %1705 = vmatprep.subr.bf16.mxu0 0
        %1706 = vmatpush1.bf16.msra.mxu0 0
        %1707 = vmatprep.subr.bf16.mxu0 0
        %1708 = vmatpush1.bf16.msra.mxu0 0
        %1709 = vmatprep.subr.bf16.mxu0 0
        %1710 = vmatpush1.bf16.msra.mxu0 0
        %1711 = vmatprep.mubr.bf16.mxu0 0
        %1712 = vmatmul.mubr.bf16.gmra.mrb[0].mxu0 %v1599
        %v1713 = vpop.f32.mrb[0].mxu0
        %v1714 = vadd.f32 0.0, %v1713
        %v1715 = vpop.f32.mrb[0].mxu0
        %v1716 = vpop.f32.mrb[0].mxu0
        %v1717 = vadd.f32 0.0, %v1716
        %v1718 = vpop.f32.mrb[0].mxu0
        %1719 = vmatprep.mubr.bf16.mxu0 0
        %1720 = vmatmul.mubr.bf16.gmra.mrb[0].mxu0 %v1600
        %v1721 = vpop.f32.mrb[0].mxu0
        %v1722 = vadd.f32 0.0, %v1721
        %v1723 = vpop.f32.mrb[0].mxu0
        %v1724 = vpop.f32.mrb[0].mxu0
        %v1725 = vadd.f32 0.0, %v1724
        %v1726 = vpop.f32.mrb[0].mxu0
        %1727 = vmatprep.mubr.bf16.mxu0 0
        %1728 = vmatmul.mubr.bf16.gmra.mrb[0].mxu0 %v1601
        %v1729 = vpop.f32.mrb[0].mxu0
        %v1730 = vadd.f32 0.0, %v1729
        %v1731 = vpop.f32.mrb[0].mxu0
        %v1732 = vpop.f32.mrb[0].mxu0
        %v1733 = vadd.f32 0.0, %v1732
        %v1734 = vpop.f32.mrb[0].mxu0
        %1735 = vmatprep.mubr.bf16.mxu0 0
        %1736 = vmatmul.mubr.bf16.gmra.mrb[0].mxu0 %v1602
        %v1737 = vpop.f32.mrb[0].mxu0
        %v1738 = vadd.f32 0.0, %v1737
        %v1739 = vpop.f32.mrb[0].mxu0
        %v1740 = vpop.f32.mrb[0].mxu0
        %v1741 = vadd.f32 0.0, %v1740
        %v1742 = vpop.f32.mrb[0].mxu0
        %1743 = vmatprep.mubr.bf16.mxu0 0
        %1744 = vmatmul.mubr.bf16.gmra.mrb[0].mxu0 %v1603
        %v1745 = vpop.f32.mrb[0].mxu0
        %v1746 = vadd.f32 0.0, %v1745
        %v1747 = vpop.f32.mrb[0].mxu0
        %v1748 = vpop.f32.mrb[0].mxu0
        %v1749 = vadd.f32 0.0, %v1748
        %v1750 = vpop.f32.mrb[0].mxu0
        %1751 = vmatprep.mubr.bf16.mxu0 0
        %1752 = vmatmul.mubr.bf16.gmra.mrb[0].mxu0 %v1604
        %v1753 = vpop.f32.mrb[0].mxu0
        %v1754 = vadd.f32 0.0, %v1753
        %v1755 = vpop.f32.mrb[0].mxu0
        %v1756 = vpop.f32.mrb[0].mxu0
        %v1757 = vadd.f32 0.0, %v1756
        %v1758 = vpop.f32.mrb[0].mxu0
        %1759 = vmatprep.mubr.bf16.mxu0 0
        %1760 = vmatmul.mubr.bf16.gmra.mrb[0].mxu0 %v1605
        %v1761 = vpop.f32.mrb[0].mxu0
        %v1762 = vadd.f32 0.0, %v1761
        %v1763 = vpop.f32.mrb[0].mxu0
        %v1764 = vpop.f32.mrb[0].mxu0
        %v1765 = vadd.f32 0.0, %v1764
        %v1766 = vpop.f32.mrb[0].mxu0
        %1767 = vmatprep.mubr.bf16.mxu0 0
        %1768 = vmatmul.mubr.bf16.gmra.mrb[0].mxu0 %v1606
        %v1769 = vpop.f32.mrb[0].mxu0
        %v1770 = vadd.f32 0.0, %v1769
        %v1771 = vpop.f32.mrb[0].mxu0
        %v1772 = vpop.f32.mrb[0].mxu0
        %v1773 = vadd.f32 0.0, %v1772
        %v1774 = vpop.f32.mrb[0].mxu0
        %1775 = vmatprep.mubr.bf16.mxu0 0
        %1776 = vmatmul.mubr.bf16.gmra.mrb[0].mxu0 %v1607
        %v1777 = vpop.f32.mrb[0].mxu0
        %v1778 = vadd.f32 0.0, %v1777
        %v1779 = vpop.f32.mrb[0].mxu0
        %v1780 = vpop.f32.mrb[0].mxu0
        %v1781 = vadd.f32 0.0, %v1780
        %v1782 = vpop.f32.mrb[0].mxu0
        %1783 = vmatprep.mubr.bf16.mxu0 0
        %1784 = vmatmul.mubr.bf16.gmra.mrb[0].mxu0 %v1608
        %v1785 = vpop.f32.mrb[0].mxu0
        %v1786 = vadd.f32 0.0, %v1785
        %v1787 = vpop.f32.mrb[0].mxu0
        %v1788 = vpop.f32.mrb[0].mxu0
        %v1789 = vadd.f32 0.0, %v1788
        %v1790 = vpop.f32.mrb[0].mxu0
        %1791 = vmatprep.mubr.bf16.mxu0 0
        %1792 = vmatmul.mubr.bf16.gmra.mrb[0].mxu0 %v1609
        %v1793 = vpop.f32.mrb[0].mxu0
        %v1794 = vadd.f32 0.0, %v1793
        %v1795 = vpop.f32.mrb[0].mxu0
        %v1796 = vpop.f32.mrb[0].mxu0
        %v1797 = vadd.f32 0.0, %v1796
        %v1798 = vpop.f32.mrb[0].mxu0
        %1799 = vmatprep.mubr.bf16.mxu0 0
        %1800 = vmatmul.mubr.bf16.gmra.mrb[0].mxu0 %v1610
        %v1801 = vpop.f32.mrb[0].mxu0
        %v1802 = vadd.f32 0.0, %v1801
        %v1803 = vpop.f32.mrb[0].mxu0
        %v1804 = vpop.f32.mrb[0].mxu0
        %v1805 = vadd.f32 0.0, %v1804
        %v1806 = vpop.f32.mrb[0].mxu0
        %1807 = vmatprep.mubr.bf16.mxu0 0
        %1808 = vmatmul.mubr.bf16.gmra.mrb[0].mxu0 %v1611
        %v1809 = vpop.f32.mrb[0].mxu0
        %v1810 = vadd.f32 0.0, %v1809
        %v1811 = vpop.f32.mrb[0].mxu0
        %v1812 = vpop.f32.mrb[0].mxu0
        %v1813 = vadd.f32 0.0, %v1812
        %v1814 = vpop.f32.mrb[0].mxu0
        %1815 = vmatprep.mubr.bf16.mxu0 0
        %1816 = vmatmul.mubr.bf16.gmra.mrb[0].mxu0 %v1612
        %v1817 = vpop.f32.mrb[0].mxu0
        %v1818 = vadd.f32 0.0, %v1817
        %v1819 = vpop.f32.mrb[0].mxu0
        %v1820 = vpop.f32.mrb[0].mxu0
        %v1821 = vadd.f32 0.0, %v1820
        %v1822 = vpop.f32.mrb[0].mxu0
        %1823 = vmatprep.mubr.bf16.mxu0 0
        %1824 = vmatmul.mubr.bf16.gmra.mrb[0].mxu0 %v1613
        %v1825 = vpop.f32.mrb[0].mxu0
        %v1826 = vadd.f32 0.0, %v1825
        %v1827 = vpop.f32.mrb[0].mxu0
        %v1828 = vpop.f32.mrb[0].mxu0
        %v1829 = vadd.f32 0.0, %v1828
        %v1830 = vpop.f32.mrb[0].mxu0
        %1831 = vmatprep.mubr.bf16.mxu0 0
        %1832 = vmatmul.mubr.bf16.gmra.mrb[0].mxu0 %v1614
        %v1833 = vpop.f32.mrb[0].mxu0
        %v1834 = vadd.f32 0.0, %v1833
        %v1835 = vpop.f32.mrb[0].mxu0
        %v1836 = vpop.f32.mrb[0].mxu0
        %v1837 = vadd.f32 0.0, %v1836
        %v1838 = vpop.f32.mrb[0].mxu0
        %1839 = vdwg.mxu0
        %v1872 = vunpack.c.l.b16 %v1099
        %v1873 = vunpack.c.l.b16 %v1100
        %v1874 = vunpack.c.l.b16 %v1101
        %v1875 = vunpack.c.l.b16 %v1102
        %v1876 = vunpack.c.l.b16 %v1103
        %v1877 = vunpack.c.l.b16 %v1104
        %v1878 = vunpack.c.l.b16 %v1105
        %v1879 = vunpack.c.l.b16 %v1106
        %v1880 = vunpack.c.l.b16 %v1107
        %v1881 = vunpack.c.l.b16 %v1108
        %v1882 = vunpack.c.l.b16 %v1109
        %v1883 = vunpack.c.l.b16 %v1110
        %v1884 = vunpack.c.l.b16 %v1111
        %v1885 = vunpack.c.l.b16 %v1112
        %v1886 = vunpack.c.l.b16 %v1113
        %v1887 = vunpack.c.l.b16 %v1114
        %v1888 = vunpack.c.l.b16 %v1115
        %v1889 = vunpack.c.l.b16 %v1116
        %v1890 = vunpack.c.l.b16 %v1117
        %v1891 = vunpack.c.l.b16 %v1118
        %v1892 = vunpack.c.l.b16 %v1119
        %v1893 = vunpack.c.l.b16 %v1120
        %v1894 = vunpack.c.l.b16 %v1121
        %v1895 = vunpack.c.l.b16 %v1122
        %v1896 = vunpack.c.l.b16 %v1123
        %v1897 = vunpack.c.l.b16 %v1124
        %v1898 = vunpack.c.l.b16 %v1125
        %v1899 = vunpack.c.l.b16 %v1126
        %v1900 = vunpack.c.l.b16 %v1127
        %v1901 = vunpack.c.l.b16 %v1128
        %v1902 = vunpack.c.l.b16 %v1129
        %v1903 = vunpack.c.l.b16 %v1130
        %v1904 = vpack.c.b16 %v1873, %v1872
        %v1905 = vpack.c.b16 %v1875, %v1874
        %v1906 = vpack.c.b16 %v1877, %v1876
        %v1907 = vpack.c.b16 %v1879, %v1878
        %v1908 = vpack.c.b16 %v1881, %v1880
        %v1909 = vpack.c.b16 %v1883, %v1882
        %v1910 = vpack.c.b16 %v1885, %v1884
        %v1911 = vpack.c.b16 %v1887, %v1886
        %v1912 = vpack.c.b16 %v1889, %v1888
        %v1913 = vpack.c.b16 %v1891, %v1890
        %v1914 = vpack.c.b16 %v1893, %v1892
        %v1915 = vpack.c.b16 %v1895, %v1894
        %v1916 = vpack.c.b16 %v1897, %v1896
        %v1917 = vpack.c.b16 %v1899, %v1898
        %v1918 = vpack.c.b16 %v1901, %v1900
        %v1919 = vpack.c.b16 %v1903, %v1902
        %v1952 = vunpack.c.l.b16 %v1131
        %v1953 = vunpack.c.l.b16 %v1132
        %v1954 = vunpack.c.l.b16 %v1133
        %v1955 = vunpack.c.l.b16 %v1134
        %v1956 = vunpack.c.l.b16 %v1135
        %v1957 = vunpack.c.l.b16 %v1136
        %v1958 = vunpack.c.l.b16 %v1137
        %v1959 = vunpack.c.l.b16 %v1138
        %v1960 = vunpack.c.l.b16 %v1139
        %v1961 = vunpack.c.l.b16 %v1140
        %v1962 = vunpack.c.l.b16 %v1141
        %v1963 = vunpack.c.l.b16 %v1142
        %v1964 = vunpack.c.l.b16 %v1143
        %v1965 = vunpack.c.l.b16 %v1144
        %v1966 = vunpack.c.l.b16 %v1145
        %v1967 = vunpack.c.l.b16 %v1146
        %v1968 = vpack.c.b16 %v1953, %v1952
        %v1969 = vpack.c.b16 %v1955, %v1954
        %v1970 = vpack.c.b16 %v1957, %v1956
        %v1971 = vpack.c.b16 %v1959, %v1958
        %v1972 = vpack.c.b16 %v1961, %v1960
        %v1973 = vpack.c.b16 %v1963, %v1962
        %v1974 = vpack.c.b16 %v1965, %v1964
        %v1975 = vpack.c.b16 %v1967, %v1966
        %1984 = vmatprep.subr.bf16.mxu0 0
        %1985 = vmatpush1.bf16.msra.mxu0 %v1968
        %1986 = vmatprep.subr.bf16.mxu0 0
        %1987 = vmatpush1.bf16.msra.mxu0 %v1969
        %1988 = vmatprep.subr.bf16.mxu0 0
        %1989 = vmatpush1.bf16.msra.mxu0 %v1970
        %1990 = vmatprep.subr.bf16.mxu0 0
        %1991 = vmatpush1.bf16.msra.mxu0 %v1971
        %1992 = vmatprep.subr.bf16.mxu0 0
        %1993 = vmatpush1.bf16.msra.mxu0 %v1972
        %1994 = vmatprep.subr.bf16.mxu0 0
        %1995 = vmatpush1.bf16.msra.mxu0 %v1973
        %1996 = vmatprep.subr.bf16.mxu0 0
        %1997 = vmatpush1.bf16.msra.mxu0 %v1974
        %1998 = vmatprep.subr.bf16.mxu0 0
        %1999 = vmatpush1.bf16.msra.mxu0 %v1975
        %2000 = vmatprep.subr.bf16.mxu0 0
        %2001 = vmatpush1.bf16.msra.mxu0 0
        %2002 = vmatprep.subr.bf16.mxu0 0
        %2003 = vmatpush1.bf16.msra.mxu0 0
        %2004 = vmatprep.subr.bf16.mxu0 0
        %2005 = vmatpush1.bf16.msra.mxu0 0
        %2006 = vmatprep.subr.bf16.mxu0 0
        %2007 = vmatpush1.bf16.msra.mxu0 0
        %2008 = vmatprep.subr.bf16.mxu0 0
        %2009 = vmatpush1.bf16.msra.mxu0 0
        %2010 = vmatprep.subr.bf16.mxu0 0
        %2011 = vmatpush1.bf16.msra.mxu0 0
        %2012 = vmatprep.subr.bf16.mxu0 0
        %2013 = vmatpush1.bf16.msra.mxu0 0
        %2014 = vmatprep.subr.bf16.mxu0 0
        %2015 = vmatpush1.bf16.msra.mxu0 0
        %2016 = vmatprep.mubr.bf16.mxu0 0
        %2017 = vmatmul.mubr.bf16.gmra.mrb[0].mxu0 %v1904
        %v2018 = vpop.f32.mrb[0].mxu0
        %v2019 = vadd.f32 %v1714, %v2018
        %v2020 = vpop.f32.mrb[0].mxu0
        %v2021 = vpop.f32.mrb[0].mxu0
        %v2022 = vadd.f32 %v1717, %v2021
        %v2023 = vpop.f32.mrb[0].mxu0
        %2024 = vmatprep.mubr.bf16.mxu0 0
        %2025 = vmatmul.mubr.bf16.gmra.mrb[0].mxu0 %v1905
        %v2026 = vpop.f32.mrb[0].mxu0
        %v2027 = vadd.f32 %v1722, %v2026
        %v2028 = vpop.f32.mrb[0].mxu0
        %v2029 = vpop.f32.mrb[0].mxu0
        %v2030 = vadd.f32 %v1725, %v2029
        %v2031 = vpop.f32.mrb[0].mxu0
        %2032 = vmatprep.mubr.bf16.mxu0 0
        %2033 = vmatmul.mubr.bf16.gmra.mrb[0].mxu0 %v1906
        %v2034 = vpop.f32.mrb[0].mxu0
        %v2035 = vadd.f32 %v1730, %v2034
        %v2036 = vpop.f32.mrb[0].mxu0
        %v2037 = vpop.f32.mrb[0].mxu0
        %v2038 = vadd.f32 %v1733, %v2037
        %v2039 = vpop.f32.mrb[0].mxu0
        %2040 = vmatprep.mubr.bf16.mxu0 0
        %2041 = vmatmul.mubr.bf16.gmra.mrb[0].mxu0 %v1907
        %v2042 = vpop.f32.mrb[0].mxu0
        %v2043 = vadd.f32 %v1738, %v2042
        %v2044 = vpop.f32.mrb[0].mxu0
        %v2045 = vpop.f32.mrb[0].mxu0
        %v2046 = vadd.f32 %v1741, %v2045
        %v2047 = vpop.f32.mrb[0].mxu0
        %2048 = vmatprep.mubr.bf16.mxu0 0
        %2049 = vmatmul.mubr.bf16.gmra.mrb[0].mxu0 %v1908
        %v2050 = vpop.f32.mrb[0].mxu0
        %v2051 = vadd.f32 %v1746, %v2050
        %v2052 = vpop.f32.mrb[0].mxu0
        %v2053 = vpop.f32.mrb[0].mxu0
        %v2054 = vadd.f32 %v1749, %v2053
        %v2055 = vpop.f32.mrb[0].mxu0
        %2056 = vmatprep.mubr.bf16.mxu0 0
        %2057 = vmatmul.mubr.bf16.gmra.mrb[0].mxu0 %v1909
        %v2058 = vpop.f32.mrb[0].mxu0
        %v2059 = vadd.f32 %v1754, %v2058
        %v2060 = vpop.f32.mrb[0].mxu0
        %v2061 = vpop.f32.mrb[0].mxu0
        %v2062 = vadd.f32 %v1757, %v2061
        %v2063 = vpop.f32.mrb[0].mxu0
        %2064 = vmatprep.mubr.bf16.mxu0 0
        %2065 = vmatmul.mubr.bf16.gmra.mrb[0].mxu0 %v1910
        %v2066 = vpop.f32.mrb[0].mxu0
        %v2067 = vadd.f32 %v1762, %v2066
        %v2068 = vpop.f32.mrb[0].mxu0
        %v2069 = vpop.f32.mrb[0].mxu0
        %v2070 = vadd.f32 %v1765, %v2069
        %v2071 = vpop.f32.mrb[0].mxu0
        %2072 = vmatprep.mubr.bf16.mxu0 0
        %2073 = vmatmul.mubr.bf16.gmra.mrb[0].mxu0 %v1911
        %v2074 = vpop.f32.mrb[0].mxu0
        %v2075 = vadd.f32 %v1770, %v2074
        %v2076 = vpop.f32.mrb[0].mxu0
        %v2077 = vpop.f32.mrb[0].mxu0
        %v2078 = vadd.f32 %v1773, %v2077
        %v2079 = vpop.f32.mrb[0].mxu0
        %2080 = vmatprep.mubr.bf16.mxu0 0
        %2081 = vmatmul.mubr.bf16.gmra.mrb[0].mxu0 %v1912
        %v2082 = vpop.f32.mrb[0].mxu0
        %v2083 = vadd.f32 %v1778, %v2082
        %v2084 = vpop.f32.mrb[0].mxu0
        %v2085 = vpop.f32.mrb[0].mxu0
        %v2086 = vadd.f32 %v1781, %v2085
        %v2087 = vpop.f32.mrb[0].mxu0
        %2088 = vmatprep.mubr.bf16.mxu0 0
        %2089 = vmatmul.mubr.bf16.gmra.mrb[0].mxu0 %v1913
        %v2090 = vpop.f32.mrb[0].mxu0
        %v2091 = vadd.f32 %v1786, %v2090
        %v2092 = vpop.f32.mrb[0].mxu0
        %v2093 = vpop.f32.mrb[0].mxu0
        %v2094 = vadd.f32 %v1789, %v2093
        %v2095 = vpop.f32.mrb[0].mxu0
        %2096 = vmatprep.mubr.bf16.mxu0 0
        %2097 = vmatmul.mubr.bf16.gmra.mrb[0].mxu0 %v1914
        %v2098 = vpop.f32.mrb[0].mxu0
        %v2099 = vadd.f32 %v1794, %v2098
        %v2100 = vpop.f32.mrb[0].mxu0
        %v2101 = vpop.f32.mrb[0].mxu0
        %v2102 = vadd.f32 %v1797, %v2101
        %v2103 = vpop.f32.mrb[0].mxu0
        %2104 = vmatprep.mubr.bf16.mxu0 0
        %2105 = vmatmul.mubr.bf16.gmra.mrb[0].mxu0 %v1915
        %v2106 = vpop.f32.mrb[0].mxu0
        %v2107 = vadd.f32 %v1802, %v2106
        %v2108 = vpop.f32.mrb[0].mxu0
        %v2109 = vpop.f32.mrb[0].mxu0
        %v2110 = vadd.f32 %v1805, %v2109
        %v2111 = vpop.f32.mrb[0].mxu0
        %2112 = vmatprep.mubr.bf16.mxu0 0
        %2113 = vmatmul.mubr.bf16.gmra.mrb[0].mxu0 %v1916
        %v2114 = vpop.f32.mrb[0].mxu0
        %v2115 = vadd.f32 %v1810, %v2114
        %v2116 = vpop.f32.mrb[0].mxu0
        %v2117 = vpop.f32.mrb[0].mxu0
        %v2118 = vadd.f32 %v1813, %v2117
        %v2119 = vpop.f32.mrb[0].mxu0
        %2120 = vmatprep.mubr.bf16.mxu0 0
        %2121 = vmatmul.mubr.bf16.gmra.mrb[0].mxu0 %v1917
        %v2122 = vpop.f32.mrb[0].mxu0
        %v2123 = vadd.f32 %v1818, %v2122
        %v2124 = vpop.f32.mrb[0].mxu0
        %v2125 = vpop.f32.mrb[0].mxu0
        %v2126 = vadd.f32 %v1821, %v2125
        %v2127 = vpop.f32.mrb[0].mxu0
        %2128 = vmatprep.mubr.bf16.mxu0 0
        %2129 = vmatmul.mubr.bf16.gmra.mrb[0].mxu0 %v1918
        %v2130 = vpop.f32.mrb[0].mxu0
        %v2131 = vadd.f32 %v1826, %v2130
        %v2132 = vpop.f32.mrb[0].mxu0
        %v2133 = vpop.f32.mrb[0].mxu0
        %v2134 = vadd.f32 %v1829, %v2133
        %v2135 = vpop.f32.mrb[0].mxu0
        %2136 = vmatprep.mubr.bf16.mxu0 0
        %2137 = vmatmul.mubr.bf16.gmra.mrb[0].mxu0 %v1919
        %v2138 = vpop.f32.mrb[0].mxu0
        %v2139 = vadd.f32 %v1834, %v2138
        %v2140 = vpop.f32.mrb[0].mxu0
        %v2141 = vpop.f32.mrb[0].mxu0
        %v2142 = vadd.f32 %v1837, %v2141
        %v2143 = vpop.f32.mrb[0].mxu0
        %2144 = vdwg.mxu0
        %v2145 = vld [vmem:[#allocation2] sm:$0xe]
        %v2146 = vld [vmem:[#allocation2 + $0xc] sm:$0xe]
        %v2147 = vld [vmem:[#allocation2 + $0x18] sm:$0xe]
        %v2148 = vld [vmem:[#allocation2 + $0x24] sm:$0xe]
        %v2149 = vld [vmem:[#allocation2 + $0x30] sm:$0xe]
        %v2150 = vld [vmem:[#allocation2 + $0x3c] sm:$0xe]
        %v2151 = vld [vmem:[#allocation2 + $0x48] sm:$0xe]
        %v2152 = vld [vmem:[#allocation2 + $0x54] sm:$0xe]
        %v2153 = vld [vmem:[#allocation2 + $0x60] sm:$0xe]
        %v2154 = vld [vmem:[#allocation2 + $0x6c] sm:$0xe]
        %v2155 = vld [vmem:[#allocation2 + $0x78] sm:$0xe]
        %v2156 = vld [vmem:[#allocation2 + $0x84] sm:$0xe]
        %v2157 = vld [vmem:[#allocation2 + $0x90] sm:$0xe]
        %v2158 = vld [vmem:[#allocation2 + $0x9c] sm:$0xe]
        %v2159 = vld [vmem:[#allocation2 + $0xa8] sm:$0xe]
        %v2160 = vld [vmem:[#allocation2 + $0xb4] sm:$0xe]
        %vm2193 = vcmask 1042432
        %vm2194 = vcmask 1046532
        %vm2195 = vmor %vm2193, %vm2194
        %v2196 = vrot.slane %v2145, 5
        %v2197 = vrot.slane %v2196, 4
        %v2198 = vrot.slane %v1100, 5
        %v2199 = vsel %vm2195, %v2197, %v2198
        %v2200 = vrot.slane %v2198, 4
        %v2201 = vrot.slane %v1147, 5
        %v2202 = vsel %vm2195, %v2200, %v2201
        %v2203 = vrot.slane %v2146, 5
        %v2204 = vrot.slane %v2203, 4
        %v2205 = vrot.slane %v1102, 5
        %v2206 = vsel %vm2195, %v2204, %v2205
        %v2207 = vrot.slane %v2205, 4
        %v2208 = vrot.slane %v1148, 5
        %v2209 = vsel %vm2195, %v2207, %v2208
        %v2210 = vrot.slane %v2147, 5
        %v2211 = vrot.slane %v2210, 4
        %v2212 = vrot.slane %v1104, 5
        %v2213 = vsel %vm2195, %v2211, %v2212
        %v2214 = vrot.slane %v2212, 4
        %v2215 = vrot.slane %v1149, 5
        %v2216 = vsel %vm2195, %v2214, %v2215
        %v2217 = vrot.slane %v2148, 5
        %v2218 = vrot.slane %v2217, 4
        %v2219 = vrot.slane %v1106, 5
        %v2220 = vsel %vm2195, %v2218, %v2219
        %v2221 = vrot.slane %v2219, 4
        %v2222 = vrot.slane %v1150, 5
        %v2223 = vsel %vm2195, %v2221, %v2222
        %v2224 = vrot.slane %v2149, 5
        %v2225 = vrot.slane %v2224, 4
        %v2226 = vrot.slane %v1108, 5
        %v2227 = vsel %vm2195, %v2225, %v2226
        %v2228 = vrot.slane %v2226, 4
        %v2229 = vrot.slane %v1151, 5
        %v2230 = vsel %vm2195, %v2228, %v2229
        %v2231 = vrot.slane %v2150, 5
        %v2232 = vrot.slane %v2231, 4
        %v2233 = vrot.slane %v1110, 5
        %v2234 = vsel %vm2195, %v2232, %v2233
        %v2235 = vrot.slane %v2233, 4
        %v2236 = vrot.slane %v1152, 5
        %v2237 = vsel %vm2195, %v2235, %v2236
        %v2238 = vrot.slane %v2151, 5
        %v2239 = vrot.slane %v2238, 4
        %v2240 = vrot.slane %v1112, 5
        %v2241 = vsel %vm2195, %v2239, %v2240
        %v2242 = vrot.slane %v2240, 4
        %v2243 = vrot.slane %v1153, 5
        %v2244 = vsel %vm2195, %v2242, %v2243
        %v2245 = vrot.slane %v2152, 5
        %v2246 = vrot.slane %v2245, 4
        %v2247 = vrot.slane %v1114, 5
        %v2248 = vsel %vm2195, %v2246, %v2247
        %v2249 = vrot.slane %v2247, 4
        %v2250 = vrot.slane %v1154, 5
        %v2251 = vsel %vm2195, %v2249, %v2250
        %v2252 = vrot.slane %v2153, 5
        %v2253 = vrot.slane %v2252, 4
        %v2254 = vrot.slane %v1116, 5
        %v2255 = vsel %vm2195, %v2253, %v2254
        %v2256 = vrot.slane %v2254, 4
        %v2257 = vrot.slane %v1155, 5
        %v2258 = vsel %vm2195, %v2256, %v2257
        %v2259 = vrot.slane %v2154, 5
        %v2260 = vrot.slane %v2259, 4
        %v2261 = vrot.slane %v1118, 5
        %v2262 = vsel %vm2195, %v2260, %v2261
        %v2263 = vrot.slane %v2261, 4
        %v2264 = vrot.slane %v1156, 5
        %v2265 = vsel %vm2195, %v2263, %v2264
        %v2266 = vrot.slane %v2155, 5
        %v2267 = vrot.slane %v2266, 4
        %v2268 = vrot.slane %v1120, 5
        %v2269 = vsel %vm2195, %v2267, %v2268
        %v2270 = vrot.slane %v2268, 4
        %v2271 = vrot.slane %v1157, 5
        %v2272 = vsel %vm2195, %v2270, %v2271
        %v2273 = vrot.slane %v2156, 5
        %v2274 = vrot.slane %v2273, 4
        %v2275 = vrot.slane %v1122, 5
        %v2276 = vsel %vm2195, %v2274, %v2275
        %v2277 = vrot.slane %v2275, 4
        %v2278 = vrot.slane %v1158, 5
        %v2279 = vsel %vm2195, %v2277, %v2278
        %v2280 = vrot.slane %v2157, 5
        %v2281 = vrot.slane %v2280, 4
        %v2282 = vrot.slane %v1124, 5
        %v2283 = vsel %vm2195, %v2281, %v2282
        %v2284 = vrot.slane %v2282, 4
        %v2285 = vrot.slane %v1159, 5
        %v2286 = vsel %vm2195, %v2284, %v2285
        %v2287 = vrot.slane %v2158, 5
        %v2288 = vrot.slane %v2287, 4
        %v2289 = vrot.slane %v1126, 5
        %v2290 = vsel %vm2195, %v2288, %v2289
        %v2291 = vrot.slane %v2289, 4
        %v2292 = vrot.slane %v1160, 5
        %v2293 = vsel %vm2195, %v2291, %v2292
        %v2294 = vrot.slane %v2159, 5
        %v2295 = vrot.slane %v2294, 4
        %v2296 = vrot.slane %v1128, 5
        %v2297 = vsel %vm2195, %v2295, %v2296
        %v2298 = vrot.slane %v2296, 4
        %v2299 = vrot.slane %v1161, 5
        %v2300 = vsel %vm2195, %v2298, %v2299
        %v2301 = vrot.slane %v2160, 5
        %v2302 = vrot.slane %v2301, 4
        %v2303 = vrot.slane %v1130, 5
        %v2304 = vsel %vm2195, %v2302, %v2303
        %v2305 = vrot.slane %v2303, 4
        %v2306 = vrot.slane %v1162, 5
        %v2307 = vsel %vm2195, %v2305, %v2306
        %s2308 = scalar_lea.vmem [#allocation4], 128
        %v2309 = vld [vmem:[%s2308] sm:$0xf]
        %v2310 = vld [vmem:[%s2308 + $0x4] sm:$0xf]
        %v2311 = vld [vmem:[%s2308 + $0x8] sm:$0xf]
        %v2312 = vld [vmem:[%s2308 + $0xc] sm:$0xf]
        %v2313 = vld [vmem:[%s2308 + $0x10] sm:$0xf]
        %v2314 = vld [vmem:[%s2308 + $0x14] sm:$0xf]
        %v2315 = vld [vmem:[%s2308 + $0x18] sm:$0xf]
        %v2316 = vld [vmem:[%s2308 + $0x1c] sm:$0xf]
        %v2317 = vld [vmem:[%s2308 + $0x20] sm:$0xf]
        %v2318 = vld [vmem:[%s2308 + $0x24] sm:$0xf]
        %v2319 = vld [vmem:[%s2308 + $0x28] sm:$0xf]
        %v2320 = vld [vmem:[%s2308 + $0x2c] sm:$0xf]
        %v2321 = vld [vmem:[%s2308 + $0x30] sm:$0xf]
        %v2322 = vld [vmem:[%s2308 + $0x34] sm:$0xf]
        %v2323 = vld [vmem:[%s2308 + $0x38] sm:$0xf]
        %v2324 = vld [vmem:[%s2308 + $0x3c] sm:$0xf]
        %v2325 = vunpack.c.l.b16 %v2199
        %v2326 = vunpack.c.l.b16 %v2202
        %v2327 = vunpack.c.l.b16 %v2206
        %v2328 = vunpack.c.l.b16 %v2209
        %v2329 = vunpack.c.l.b16 %v2213
        %v2330 = vunpack.c.l.b16 %v2216
        %v2331 = vunpack.c.l.b16 %v2220
        %v2332 = vunpack.c.l.b16 %v2223
        %v2333 = vunpack.c.l.b16 %v2227
        %v2334 = vunpack.c.l.b16 %v2230
        %v2335 = vunpack.c.l.b16 %v2234
        %v2336 = vunpack.c.l.b16 %v2237
        %v2337 = vunpack.c.l.b16 %v2241
        %v2338 = vunpack.c.l.b16 %v2244
        %v2339 = vunpack.c.l.b16 %v2248
        %v2340 = vunpack.c.l.b16 %v2251
        %v2341 = vunpack.c.l.b16 %v2255
        %v2342 = vunpack.c.l.b16 %v2258
        %v2343 = vunpack.c.l.b16 %v2262
        %v2344 = vunpack.c.l.b16 %v2265
        %v2345 = vunpack.c.l.b16 %v2269
        %v2346 = vunpack.c.l.b16 %v2272
        %v2347 = vunpack.c.l.b16 %v2276
        %v2348 = vunpack.c.l.b16 %v2279
        %v2349 = vunpack.c.l.b16 %v2283
        %v2350 = vunpack.c.l.b16 %v2286
        %v2351 = vunpack.c.l.b16 %v2290
        %v2352 = vunpack.c.l.b16 %v2293
        %v2353 = vunpack.c.l.b16 %v2297
        %v2354 = vunpack.c.l.b16 %v2300
        %v2355 = vunpack.c.l.b16 %v2304
        %v2356 = vunpack.c.l.b16 %v2307
        %v2357 = vpack.c.b16 %v2326, %v2325
        %v2358 = vpack.c.b16 %v2328, %v2327
        %v2359 = vpack.c.b16 %v2330, %v2329
        %v2360 = vpack.c.b16 %v2332, %v2331
        %v2361 = vpack.c.b16 %v2334, %v2333
        %v2362 = vpack.c.b16 %v2336, %v2335
        %v2363 = vpack.c.b16 %v2338, %v2337
        %v2364 = vpack.c.b16 %v2340, %v2339
        %v2365 = vpack.c.b16 %v2342, %v2341
        %v2366 = vpack.c.b16 %v2344, %v2343
        %v2367 = vpack.c.b16 %v2346, %v2345
        %v2368 = vpack.c.b16 %v2348, %v2347
        %v2369 = vpack.c.b16 %v2350, %v2349
        %v2370 = vpack.c.b16 %v2352, %v2351
        %v2371 = vpack.c.b16 %v2354, %v2353
        %v2372 = vpack.c.b16 %v2356, %v2355
        %v2405 = vunpack.c.l.b16 %v2309
        %v2406 = vunpack.c.l.b16 %v2310
        %v2407 = vunpack.c.l.b16 %v2311
        %v2408 = vunpack.c.l.b16 %v2312
        %v2409 = vunpack.c.l.b16 %v2313
        %v2410 = vunpack.c.l.b16 %v2314
        %v2411 = vunpack.c.l.b16 %v2315
        %v2412 = vunpack.c.l.b16 %v2316
        %v2413 = vunpack.c.l.b16 %v2317
        %v2414 = vunpack.c.l.b16 %v2318
        %v2415 = vunpack.c.l.b16 %v2319
        %v2416 = vunpack.c.l.b16 %v2320
        %v2417 = vunpack.c.l.b16 %v2321
        %v2418 = vunpack.c.l.b16 %v2322
        %v2419 = vunpack.c.l.b16 %v2323
        %v2420 = vunpack.c.l.b16 %v2324
        %v2421 = vpack.c.b16 %v2406, %v2405
        %v2422 = vpack.c.b16 %v2408, %v2407
        %v2423 = vpack.c.b16 %v2410, %v2409
        %v2424 = vpack.c.b16 %v2412, %v2411
        %v2425 = vpack.c.b16 %v2414, %v2413
        %v2426 = vpack.c.b16 %v2416, %v2415
        %v2427 = vpack.c.b16 %v2418, %v2417
        %v2428 = vpack.c.b16 %v2420, %v2419
        %2437 = vmatprep.subr.bf16.mxu0 0
        %2438 = vmatpush1.bf16.msra.mxu0 %v2421
        %2439 = vmatprep.subr.bf16.mxu0 0
        %2440 = vmatpush1.bf16.msra.mxu0 %v2422
        %2441 = vmatprep.subr.bf16.mxu0 0
        %2442 = vmatpush1.bf16.msra.mxu0 %v2423
        %2443 = vmatprep.subr.bf16.mxu0 0
        %2444 = vmatpush1.bf16.msra.mxu0 %v2424
        %2445 = vmatprep.subr.bf16.mxu0 0
        %2446 = vmatpush1.bf16.msra.mxu0 %v2425
        %2447 = vmatprep.subr.bf16.mxu0 0
        %2448 = vmatpush1.bf16.msra.mxu0 %v2426
        %2449 = vmatprep.subr.bf16.mxu0 0
        %2450 = vmatpush1.bf16.msra.mxu0 %v2427
        %2451 = vmatprep.subr.bf16.mxu0 0
        %2452 = vmatpush1.bf16.msra.mxu0 %v2428
        %2453 = vmatprep.subr.bf16.mxu0 0
        %2454 = vmatpush1.bf16.msra.mxu0 0
        %2455 = vmatprep.subr.bf16.mxu0 0
        %2456 = vmatpush1.bf16.msra.mxu0 0
        %2457 = vmatprep.subr.bf16.mxu0 0
        %2458 = vmatpush1.bf16.msra.mxu0 0
        %2459 = vmatprep.subr.bf16.mxu0 0
        %2460 = vmatpush1.bf16.msra.mxu0 0
        %2461 = vmatprep.subr.bf16.mxu0 0
        %2462 = vmatpush1.bf16.msra.mxu0 0
        %2463 = vmatprep.subr.bf16.mxu0 0
        %2464 = vmatpush1.bf16.msra.mxu0 0
        %2465 = vmatprep.subr.bf16.mxu0 0
        %2466 = vmatpush1.bf16.msra.mxu0 0
        %2467 = vmatprep.subr.bf16.mxu0 0
        %2468 = vmatpush1.bf16.msra.mxu0 0
        %2469 = vmatprep.mubr.bf16.mxu0 0
        %2470 = vmatmul.mubr.bf16.gmra.mrb[0].mxu0 %v2357
        %v2471 = vpop.f32.mrb[0].mxu0
        %v2472 = vadd.f32 0.0, %v2471
        %v2473 = vpop.f32.mrb[0].mxu0
        %v2474 = vpop.f32.mrb[0].mxu0
        %v2475 = vadd.f32 0.0, %v2474
        %v2476 = vpop.f32.mrb[0].mxu0
        %2477 = vmatprep.mubr.bf16.mxu0 0
        %2478 = vmatmul.mubr.bf16.gmra.mrb[0].mxu0 %v2358
        %v2479 = vpop.f32.mrb[0].mxu0
        %v2480 = vadd.f32 0.0, %v2479
        %v2481 = vpop.f32.mrb[0].mxu0
        %v2482 = vpop.f32.mrb[0].mxu0
        %v2483 = vadd.f32 0.0, %v2482
        %v2484 = vpop.f32.mrb[0].mxu0
        %2485 = vmatprep.mubr.bf16.mxu0 0
        %2486 = vmatmul.mubr.bf16.gmra.mrb[0].mxu0 %v2359
        %v2487 = vpop.f32.mrb[0].mxu0
        %v2488 = vadd.f32 0.0, %v2487
        %v2489 = vpop.f32.mrb[0].mxu0
        %v2490 = vpop.f32.mrb[0].mxu0
        %v2491 = vadd.f32 0.0, %v2490
        %v2492 = vpop.f32.mrb[0].mxu0
        %2493 = vmatprep.mubr.bf16.mxu0 0
        %2494 = vmatmul.mubr.bf16.gmra.mrb[0].mxu0 %v2360
        %v2495 = vpop.f32.mrb[0].mxu0
        %v2496 = vadd.f32 0.0, %v2495
        %v2497 = vpop.f32.mrb[0].mxu0
        %v2498 = vpop.f32.mrb[0].mxu0
        %v2499 = vadd.f32 0.0, %v2498
        %v2500 = vpop.f32.mrb[0].mxu0
        %2501 = vmatprep.mubr.bf16.mxu0 0
        %2502 = vmatmul.mubr.bf16.gmra.mrb[0].mxu0 %v2361
        %v2503 = vpop.f32.mrb[0].mxu0
        %v2504 = vadd.f32 0.0, %v2503
        %v2505 = vpop.f32.mrb[0].mxu0
        %v2506 = vpop.f32.mrb[0].mxu0
        %v2507 = vadd.f32 0.0, %v2506
        %v2508 = vpop.f32.mrb[0].mxu0
        %2509 = vmatprep.mubr.bf16.mxu0 0
        %2510 = vmatmul.mubr.bf16.gmra.mrb[0].mxu0 %v2362
        %v2511 = vpop.f32.mrb[0].mxu0
        %v2512 = vadd.f32 0.0, %v2511
        %v2513 = vpop.f32.mrb[0].mxu0
        %v2514 = vpop.f32.mrb[0].mxu0
        %v2515 = vadd.f32 0.0, %v2514
        %v2516 = vpop.f32.mrb[0].mxu0
        %2517 = vmatprep.mubr.bf16.mxu0 0
        %2518 = vmatmul.mubr.bf16.gmra.mrb[0].mxu0 %v2363
        %v2519 = vpop.f32.mrb[0].mxu0
        %v2520 = vadd.f32 0.0, %v2519
        %v2521 = vpop.f32.mrb[0].mxu0
        %v2522 = vpop.f32.mrb[0].mxu0
        %v2523 = vadd.f32 0.0, %v2522
        %v2524 = vpop.f32.mrb[0].mxu0
        %2525 = vmatprep.mubr.bf16.mxu0 0
        %2526 = vmatmul.mubr.bf16.gmra.mrb[0].mxu0 %v2364
        %v2527 = vpop.f32.mrb[0].mxu0
        %v2528 = vadd.f32 0.0, %v2527
        %v2529 = vpop.f32.mrb[0].mxu0
        %v2530 = vpop.f32.mrb[0].mxu0
        %v2531 = vadd.f32 0.0, %v2530
        %v2532 = vpop.f32.mrb[0].mxu0
        %2533 = vmatprep.mubr.bf16.mxu0 0
        %2534 = vmatmul.mubr.bf16.gmra.mrb[0].mxu0 %v2365
        %v2535 = vpop.f32.mrb[0].mxu0
        %v2536 = vadd.f32 0.0, %v2535
        %v2537 = vpop.f32.mrb[0].mxu0
        %v2538 = vpop.f32.mrb[0].mxu0
        %v2539 = vadd.f32 0.0, %v2538
        %v2540 = vpop.f32.mrb[0].mxu0
        %2541 = vmatprep.mubr.bf16.mxu0 0
        %2542 = vmatmul.mubr.bf16.gmra.mrb[0].mxu0 %v2366
        %v2543 = vpop.f32.mrb[0].mxu0
        %v2544 = vadd.f32 0.0, %v2543
        %v2545 = vpop.f32.mrb[0].mxu0
        %v2546 = vpop.f32.mrb[0].mxu0
        %v2547 = vadd.f32 0.0, %v2546
        %v2548 = vpop.f32.mrb[0].mxu0
        %2549 = vmatprep.mubr.bf16.mxu0 0
        %2550 = vmatmul.mubr.bf16.gmra.mrb[0].mxu0 %v2367
        %v2551 = vpop.f32.mrb[0].mxu0
        %v2552 = vadd.f32 0.0, %v2551
        %v2553 = vpop.f32.mrb[0].mxu0
        %v2554 = vpop.f32.mrb[0].mxu0
        %v2555 = vadd.f32 0.0, %v2554
        %v2556 = vpop.f32.mrb[0].mxu0
        %2557 = vmatprep.mubr.bf16.mxu0 0
        %2558 = vmatmul.mubr.bf16.gmra.mrb[0].mxu0 %v2368
        %v2559 = vpop.f32.mrb[0].mxu0
        %v2560 = vadd.f32 0.0, %v2559
        %v2561 = vpop.f32.mrb[0].mxu0
        %v2562 = vpop.f32.mrb[0].mxu0
        %v2563 = vadd.f32 0.0, %v2562
        %v2564 = vpop.f32.mrb[0].mxu0
        %2565 = vmatprep.mubr.bf16.mxu0 0
        %2566 = vmatmul.mubr.bf16.gmra.mrb[0].mxu0 %v2369
        %v2567 = vpop.f32.mrb[0].mxu0
        %v2568 = vadd.f32 0.0, %v2567
        %v2569 = vpop.f32.mrb[0].mxu0
        %v2570 = vpop.f32.mrb[0].mxu0
        %v2571 = vadd.f32 0.0, %v2570
        %v2572 = vpop.f32.mrb[0].mxu0
        %2573 = vmatprep.mubr.bf16.mxu0 0
        %2574 = vmatmul.mubr.bf16.gmra.mrb[0].mxu0 %v2370
        %v2575 = vpop.f32.mrb[0].mxu0
        %v2576 = vadd.f32 0.0, %v2575
        %v2577 = vpop.f32.mrb[0].mxu0
        %v2578 = vpop.f32.mrb[0].mxu0
        %v2579 = vadd.f32 0.0, %v2578
        %v2580 = vpop.f32.mrb[0].mxu0
        %2581 = vmatprep.mubr.bf16.mxu0 0
        %2582 = vmatmul.mubr.bf16.gmra.mrb[0].mxu0 %v2371
        %v2583 = vpop.f32.mrb[0].mxu0
        %v2584 = vadd.f32 0.0, %v2583
        %v2585 = vpop.f32.mrb[0].mxu0
        %v2586 = vpop.f32.mrb[0].mxu0
        %v2587 = vadd.f32 0.0, %v2586
        %v2588 = vpop.f32.mrb[0].mxu0
        %2589 = vmatprep.mubr.bf16.mxu0 0
        %2590 = vmatmul.mubr.bf16.gmra.mrb[0].mxu0 %v2372
        %v2591 = vpop.f32.mrb[0].mxu0
        %v2592 = vadd.f32 0.0, %v2591
        %v2593 = vpop.f32.mrb[0].mxu0
        %v2594 = vpop.f32.mrb[0].mxu0
        %v2595 = vadd.f32 0.0, %v2594
        %v2596 = vpop.f32.mrb[0].mxu0
        %2597 = vdwg.mxu0
        %v2598 = vadd.f32 %v2019, %v2472
        %v2599 = vadd.f32 %v2022, %v2475
        %v2600 = vadd.f32 %v2027, %v2480
        %v2601 = vadd.f32 %v2030, %v2483
        %v2602 = vadd.f32 %v2035, %v2488
        %v2603 = vadd.f32 %v2038, %v2491
        %v2604 = vadd.f32 %v2043, %v2496
        %v2605 = vadd.f32 %v2046, %v2499
        %v2606 = vadd.f32 %v2051, %v2504
        %v2607 = vadd.f32 %v2054, %v2507
        %v2608 = vadd.f32 %v2059, %v2512
        %v2609 = vadd.f32 %v2062, %v2515
        %v2610 = vadd.f32 %v2067, %v2520
        %v2611 = vadd.f32 %v2070, %v2523
        %v2612 = vadd.f32 %v2075, %v2528
        %v2613 = vadd.f32 %v2078, %v2531
        %v2614 = vadd.f32 %v2083, %v2536
        %v2615 = vadd.f32 %v2086, %v2539
        %v2616 = vadd.f32 %v2091, %v2544
        %v2617 = vadd.f32 %v2094, %v2547
        %v2618 = vadd.f32 %v2099, %v2552
        %v2619 = vadd.f32 %v2102, %v2555
        %v2620 = vadd.f32 %v2107, %v2560
        %v2621 = vadd.f32 %v2110, %v2563
        %v2622 = vadd.f32 %v2115, %v2568
        %v2623 = vadd.f32 %v2118, %v2571
        %v2624 = vadd.f32 %v2123, %v2576
        %v2625 = vadd.f32 %v2126, %v2579
        %v2626 = vadd.f32 %v2131, %v2584
        %v2627 = vadd.f32 %v2134, %v2587
        %v2628 = vadd.f32 %v2139, %v2592
        %v2629 = vadd.f32 %v2142, %v2595
        %v2630 = vld [vmem:[%s509] sm:$0xf]
        %v2631 = vld [vmem:[%s509 + $0x4] sm:$0xf]
        %v2632 = vld [vmem:[%s509 + $0xc] sm:$0xf]
        %v2633 = vld [vmem:[%s509 + $0x10] sm:$0xf]
        %v2634 = vld [vmem:[%s509 + $0x18] sm:$0xf]
        %v2635 = vld [vmem:[%s509 + $0x1c] sm:$0xf]
        %v2636 = vld [vmem:[%s509 + $0x24] sm:$0xf]
        %v2637 = vld [vmem:[%s509 + $0x28] sm:$0xf]
        %v2638 = vld [vmem:[%s509 + $0x30] sm:$0xf]
        %v2639 = vld [vmem:[%s509 + $0x34] sm:$0xf]
        %v2640 = vld [vmem:[%s509 + $0x3c] sm:$0xf]
        %v2641 = vld [vmem:[%s509 + $0x40] sm:$0xf]
        %v2642 = vld [vmem:[%s509 + $0x48] sm:$0xf]
        %v2643 = vld [vmem:[%s509 + $0x4c] sm:$0xf]
        %v2644 = vld [vmem:[%s509 + $0x54] sm:$0xf]
        %v2645 = vld [vmem:[%s509 + $0x58] sm:$0xf]
        %v2646 = vld [vmem:[%s509 + $0x60] sm:$0xf]
        %v2647 = vld [vmem:[%s509 + $0x64] sm:$0xf]
        %v2648 = vld [vmem:[%s509 + $0x6c] sm:$0xf]
        %v2649 = vld [vmem:[%s509 + $0x70] sm:$0xf]
        %v2650 = vld [vmem:[%s509 + $0x78] sm:$0xf]
        %v2651 = vld [vmem:[%s509 + $0x7c] sm:$0xf]
        %v2652 = vld [vmem:[%s509 + $0x84] sm:$0xf]
        %v2653 = vld [vmem:[%s509 + $0x88] sm:$0xf]
        %v2654 = vld [vmem:[%s509 + $0x90] sm:$0xf]
        %v2655 = vld [vmem:[%s509 + $0x94] sm:$0xf]
        %v2656 = vld [vmem:[%s509 + $0x9c] sm:$0xf]
        %v2657 = vld [vmem:[%s509 + $0xa0] sm:$0xf]
        %v2658 = vld [vmem:[%s509 + $0xa8] sm:$0xf]
        %v2659 = vld [vmem:[%s509 + $0xac] sm:$0xf]
        %v2660 = vld [vmem:[%s509 + $0xb4] sm:$0xf]
        %v2661 = vld [vmem:[%s509 + $0xb8] sm:$0xf]
        %s2662 = scalar_lea.vmem [#allocation4], 192
        %v2663 = vld [vmem:[%s2662] sm:$0xf]
        %v2664 = vld [vmem:[%s2662 + $0x4] sm:$0xf]
        %v2665 = vld [vmem:[%s2662 + $0x8] sm:$0xf]
        %v2666 = vld [vmem:[%s2662 + $0xc] sm:$0xf]
        %v2667 = vld [vmem:[%s2662 + $0x10] sm:$0xf]
        %v2668 = vld [vmem:[%s2662 + $0x14] sm:$0xf]
        %v2669 = vld [vmem:[%s2662 + $0x18] sm:$0xf]
        %v2670 = vld [vmem:[%s2662 + $0x1c] sm:$0xf]
        %v2671 = vld [vmem:[%s2662 + $0x20] sm:$0xf]
        %v2672 = vld [vmem:[%s2662 + $0x24] sm:$0xf]
        %v2673 = vld [vmem:[%s2662 + $0x28] sm:$0xf]
        %v2674 = vld [vmem:[%s2662 + $0x2c] sm:$0xf]
        %v2675 = vld [vmem:[%s2662 + $0x30] sm:$0xf]
        %v2676 = vld [vmem:[%s2662 + $0x34] sm:$0xf]
        %v2677 = vld [vmem:[%s2662 + $0x38] sm:$0xf]
        %v2678 = vld [vmem:[%s2662 + $0x3c] sm:$0xf]
        %v2711 = vunpack.c.l.b16 %v2630
        %v2712 = vunpack.c.l.b16 %v2631
        %v2713 = vunpack.c.l.b16 %v2632
        %v2714 = vunpack.c.l.b16 %v2633
        %v2715 = vunpack.c.l.b16 %v2634
        %v2716 = vunpack.c.l.b16 %v2635
        %v2717 = vunpack.c.l.b16 %v2636
        %v2718 = vunpack.c.l.b16 %v2637
        %v2719 = vunpack.c.l.b16 %v2638
        %v2720 = vunpack.c.l.b16 %v2639
        %v2721 = vunpack.c.l.b16 %v2640
        %v2722 = vunpack.c.l.b16 %v2641
        %v2723 = vunpack.c.l.b16 %v2642
        %v2724 = vunpack.c.l.b16 %v2643
        %v2725 = vunpack.c.l.b16 %v2644
        %v2726 = vunpack.c.l.b16 %v2645
        %v2727 = vunpack.c.l.b16 %v2646
        %v2728 = vunpack.c.l.b16 %v2647
        %v2729 = vunpack.c.l.b16 %v2648
        %v2730 = vunpack.c.l.b16 %v2649
        %v2731 = vunpack.c.l.b16 %v2650
        %v2732 = vunpack.c.l.b16 %v2651
        %v2733 = vunpack.c.l.b16 %v2652
        %v2734 = vunpack.c.l.b16 %v2653
        %v2735 = vunpack.c.l.b16 %v2654
        %v2736 = vunpack.c.l.b16 %v2655
        %v2737 = vunpack.c.l.b16 %v2656
        %v2738 = vunpack.c.l.b16 %v2657
        %v2739 = vunpack.c.l.b16 %v2658
        %v2740 = vunpack.c.l.b16 %v2659
        %v2741 = vunpack.c.l.b16 %v2660
        %v2742 = vunpack.c.l.b16 %v2661
        %v2743 = vpack.c.b16 %v2712, %v2711
        %v2744 = vpack.c.b16 %v2714, %v2713
        %v2745 = vpack.c.b16 %v2716, %v2715
        %v2746 = vpack.c.b16 %v2718, %v2717
        %v2747 = vpack.c.b16 %v2720, %v2719
        %v2748 = vpack.c.b16 %v2722, %v2721
        %v2749 = vpack.c.b16 %v2724, %v2723
        %v2750 = vpack.c.b16 %v2726, %v2725
        %v2751 = vpack.c.b16 %v2728, %v2727
        %v2752 = vpack.c.b16 %v2730, %v2729
        %v2753 = vpack.c.b16 %v2732, %v2731
        %v2754 = vpack.c.b16 %v2734, %v2733
        %v2755 = vpack.c.b16 %v2736, %v2735
        %v2756 = vpack.c.b16 %v2738, %v2737
        %v2757 = vpack.c.b16 %v2740, %v2739
        %v2758 = vpack.c.b16 %v2742, %v2741
        %v2791 = vunpack.c.l.b16 %v2663
        %v2792 = vunpack.c.l.b16 %v2664
        %v2793 = vunpack.c.l.b16 %v2665
        %v2794 = vunpack.c.l.b16 %v2666
        %v2795 = vunpack.c.l.b16 %v2667
        %v2796 = vunpack.c.l.b16 %v2668
        %v2797 = vunpack.c.l.b16 %v2669
        %v2798 = vunpack.c.l.b16 %v2670
        %v2799 = vunpack.c.l.b16 %v2671
        %v2800 = vunpack.c.l.b16 %v2672
        %v2801 = vunpack.c.l.b16 %v2673
        %v2802 = vunpack.c.l.b16 %v2674
        %v2803 = vunpack.c.l.b16 %v2675
        %v2804 = vunpack.c.l.b16 %v2676
        %v2805 = vunpack.c.l.b16 %v2677
        %v2806 = vunpack.c.l.b16 %v2678
        %v2807 = vpack.c.b16 %v2792, %v2791
        %v2808 = vpack.c.b16 %v2794, %v2793
        %v2809 = vpack.c.b16 %v2796, %v2795
        %v2810 = vpack.c.b16 %v2798, %v2797
        %v2811 = vpack.c.b16 %v2800, %v2799
        %v2812 = vpack.c.b16 %v2802, %v2801
        %v2813 = vpack.c.b16 %v2804, %v2803
        %v2814 = vpack.c.b16 %v2806, %v2805
        %2823 = vmatprep.subr.bf16.mxu0 0
        %2824 = vmatpush1.bf16.msra.mxu0 %v2807
        %2825 = vmatprep.subr.bf16.mxu0 0
        %2826 = vmatpush1.bf16.msra.mxu0 %v2808
        %2827 = vmatprep.subr.bf16.mxu0 0
        %2828 = vmatpush1.bf16.msra.mxu0 %v2809
        %2829 = vmatprep.subr.bf16.mxu0 0
        %2830 = vmatpush1.bf16.msra.mxu0 %v2810
        %2831 = vmatprep.subr.bf16.mxu0 0
        %2832 = vmatpush1.bf16.msra.mxu0 %v2811
        %2833 = vmatprep.subr.bf16.mxu0 0
        %2834 = vmatpush1.bf16.msra.mxu0 %v2812
        %2835 = vmatprep.subr.bf16.mxu0 0
        %2836 = vmatpush1.bf16.msra.mxu0 %v2813
        %2837 = vmatprep.subr.bf16.mxu0 0
        %2838 = vmatpush1.bf16.msra.mxu0 %v2814
        %2839 = vmatprep.subr.bf16.mxu0 0
        %2840 = vmatpush1.bf16.msra.mxu0 0
        %2841 = vmatprep.subr.bf16.mxu0 0
        %2842 = vmatpush1.bf16.msra.mxu0 0
        %2843 = vmatprep.subr.bf16.mxu0 0
        %2844 = vmatpush1.bf16.msra.mxu0 0
        %2845 = vmatprep.subr.bf16.mxu0 0
        %2846 = vmatpush1.bf16.msra.mxu0 0
        %2847 = vmatprep.subr.bf16.mxu0 0
        %2848 = vmatpush1.bf16.msra.mxu0 0
        %2849 = vmatprep.subr.bf16.mxu0 0
        %2850 = vmatpush1.bf16.msra.mxu0 0
        %2851 = vmatprep.subr.bf16.mxu0 0
        %2852 = vmatpush1.bf16.msra.mxu0 0
        %2853 = vmatprep.subr.bf16.mxu0 0
        %2854 = vmatpush1.bf16.msra.mxu0 0
        %2855 = vmatprep.mubr.bf16.mxu0 0
        %2856 = vmatmul.mubr.bf16.gmra.mrb[0].mxu0 %v2743
        %v2857 = vpop.f32.mrb[0].mxu0
        %v2858 = vadd.f32 0.0, %v2857
        %v2859 = vpop.f32.mrb[0].mxu0
        %v2860 = vpop.f32.mrb[0].mxu0
        %v2861 = vadd.f32 0.0, %v2860
        %v2862 = vpop.f32.mrb[0].mxu0
        %2863 = vmatprep.mubr.bf16.mxu0 0
        %2864 = vmatmul.mubr.bf16.gmra.mrb[0].mxu0 %v2744
        %v2865 = vpop.f32.mrb[0].mxu0
        %v2866 = vadd.f32 0.0, %v2865
        %v2867 = vpop.f32.mrb[0].mxu0
        %v2868 = vpop.f32.mrb[0].mxu0
        %v2869 = vadd.f32 0.0, %v2868
        %v2870 = vpop.f32.mrb[0].mxu0
        %2871 = vmatprep.mubr.bf16.mxu0 0
        %2872 = vmatmul.mubr.bf16.gmra.mrb[0].mxu0 %v2745
        %v2873 = vpop.f32.mrb[0].mxu0
        %v2874 = vadd.f32 0.0, %v2873
        %v2875 = vpop.f32.mrb[0].mxu0
        %v2876 = vpop.f32.mrb[0].mxu0
        %v2877 = vadd.f32 0.0, %v2876
        %v2878 = vpop.f32.mrb[0].mxu0
        %2879 = vmatprep.mubr.bf16.mxu0 0
        %2880 = vmatmul.mubr.bf16.gmra.mrb[0].mxu0 %v2746
        %v2881 = vpop.f32.mrb[0].mxu0
        %v2882 = vadd.f32 0.0, %v2881
        %v2883 = vpop.f32.mrb[0].mxu0
        %v2884 = vpop.f32.mrb[0].mxu0
        %v2885 = vadd.f32 0.0, %v2884
        %v2886 = vpop.f32.mrb[0].mxu0
        %2887 = vmatprep.mubr.bf16.mxu0 0
        %2888 = vmatmul.mubr.bf16.gmra.mrb[0].mxu0 %v2747
        %v2889 = vpop.f32.mrb[0].mxu0
        %v2890 = vadd.f32 0.0, %v2889
        %v2891 = vpop.f32.mrb[0].mxu0
        %v2892 = vpop.f32.mrb[0].mxu0
        %v2893 = vadd.f32 0.0, %v2892
        %v2894 = vpop.f32.mrb[0].mxu0
        %2895 = vmatprep.mubr.bf16.mxu0 0
        %2896 = vmatmul.mubr.bf16.gmra.mrb[0].mxu0 %v2748
        %v2897 = vpop.f32.mrb[0].mxu0
        %v2898 = vadd.f32 0.0, %v2897
        %v2899 = vpop.f32.mrb[0].mxu0
        %v2900 = vpop.f32.mrb[0].mxu0
        %v2901 = vadd.f32 0.0, %v2900
        %v2902 = vpop.f32.mrb[0].mxu0
        %2903 = vmatprep.mubr.bf16.mxu0 0
        %2904 = vmatmul.mubr.bf16.gmra.mrb[0].mxu0 %v2749
        %v2905 = vpop.f32.mrb[0].mxu0
        %v2906 = vadd.f32 0.0, %v2905
        %v2907 = vpop.f32.mrb[0].mxu0
        %v2908 = vpop.f32.mrb[0].mxu0
        %v2909 = vadd.f32 0.0, %v2908
        %v2910 = vpop.f32.mrb[0].mxu0
        %2911 = vmatprep.mubr.bf16.mxu0 0
        %2912 = vmatmul.mubr.bf16.gmra.mrb[0].mxu0 %v2750
        %v2913 = vpop.f32.mrb[0].mxu0
        %v2914 = vadd.f32 0.0, %v2913
        %v2915 = vpop.f32.mrb[0].mxu0
        %v2916 = vpop.f32.mrb[0].mxu0
        %v2917 = vadd.f32 0.0, %v2916
        %v2918 = vpop.f32.mrb[0].mxu0
        %2919 = vmatprep.mubr.bf16.mxu0 0
        %2920 = vmatmul.mubr.bf16.gmra.mrb[0].mxu0 %v2751
        %v2921 = vpop.f32.mrb[0].mxu0
        %v2922 = vadd.f32 0.0, %v2921
        %v2923 = vpop.f32.mrb[0].mxu0
        %v2924 = vpop.f32.mrb[0].mxu0
        %v2925 = vadd.f32 0.0, %v2924
        %v2926 = vpop.f32.mrb[0].mxu0
        %2927 = vmatprep.mubr.bf16.mxu0 0
        %2928 = vmatmul.mubr.bf16.gmra.mrb[0].mxu0 %v2752
        %v2929 = vpop.f32.mrb[0].mxu0
        %v2930 = vadd.f32 0.0, %v2929
        %v2931 = vpop.f32.mrb[0].mxu0
        %v2932 = vpop.f32.mrb[0].mxu0
        %v2933 = vadd.f32 0.0, %v2932
        %v2934 = vpop.f32.mrb[0].mxu0
        %2935 = vmatprep.mubr.bf16.mxu0 0
        %2936 = vmatmul.mubr.bf16.gmra.mrb[0].mxu0 %v2753
        %v2937 = vpop.f32.mrb[0].mxu0
        %v2938 = vadd.f32 0.0, %v2937
        %v2939 = vpop.f32.mrb[0].mxu0
        %v2940 = vpop.f32.mrb[0].mxu0
        %v2941 = vadd.f32 0.0, %v2940
        %v2942 = vpop.f32.mrb[0].mxu0
        %2943 = vmatprep.mubr.bf16.mxu0 0
        %2944 = vmatmul.mubr.bf16.gmra.mrb[0].mxu0 %v2754
        %v2945 = vpop.f32.mrb[0].mxu0
        %v2946 = vadd.f32 0.0, %v2945
        %v2947 = vpop.f32.mrb[0].mxu0
        %v2948 = vpop.f32.mrb[0].mxu0
        %v2949 = vadd.f32 0.0, %v2948
        %v2950 = vpop.f32.mrb[0].mxu0
        %2951 = vmatprep.mubr.bf16.mxu0 0
        %2952 = vmatmul.mubr.bf16.gmra.mrb[0].mxu0 %v2755
        %v2953 = vpop.f32.mrb[0].mxu0
        %v2954 = vadd.f32 0.0, %v2953
        %v2955 = vpop.f32.mrb[0].mxu0
        %v2956 = vpop.f32.mrb[0].mxu0
        %v2957 = vadd.f32 0.0, %v2956
        %v2958 = vpop.f32.mrb[0].mxu0
        %2959 = vmatprep.mubr.bf16.mxu0 0
        %2960 = vmatmul.mubr.bf16.gmra.mrb[0].mxu0 %v2756
        %v2961 = vpop.f32.mrb[0].mxu0
        %v2962 = vadd.f32 0.0, %v2961
        %v2963 = vpop.f32.mrb[0].mxu0
        %v2964 = vpop.f32.mrb[0].mxu0
        %v2965 = vadd.f32 0.0, %v2964
        %v2966 = vpop.f32.mrb[0].mxu0
        %2967 = vmatprep.mubr.bf16.mxu0 0
        %2968 = vmatmul.mubr.bf16.gmra.mrb[0].mxu0 %v2757
        %v2969 = vpop.f32.mrb[0].mxu0
        %v2970 = vadd.f32 0.0, %v2969
        %v2971 = vpop.f32.mrb[0].mxu0
        %v2972 = vpop.f32.mrb[0].mxu0
        %v2973 = vadd.f32 0.0, %v2972
        %v2974 = vpop.f32.mrb[0].mxu0
        %2975 = vmatprep.mubr.bf16.mxu0 0
        %2976 = vmatmul.mubr.bf16.gmra.mrb[0].mxu0 %v2758
        %v2977 = vpop.f32.mrb[0].mxu0
        %v2978 = vadd.f32 0.0, %v2977
        %v2979 = vpop.f32.mrb[0].mxu0
        %v2980 = vpop.f32.mrb[0].mxu0
        %v2981 = vadd.f32 0.0, %v2980
        %v2982 = vpop.f32.mrb[0].mxu0
        %2983 = vdwg.mxu0
        %v2984 = vadd.f32 %v2598, %v2858
        %v2985 = vadd.f32 %v2599, %v2861
        %v2986 = vadd.f32 %v2600, %v2866
        %v2987 = vadd.f32 %v2601, %v2869
        %v2988 = vadd.f32 %v2602, %v2874
        %v2989 = vadd.f32 %v2603, %v2877
        %v2990 = vadd.f32 %v2604, %v2882
        %v2991 = vadd.f32 %v2605, %v2885
        %v2992 = vadd.f32 %v2606, %v2890
        %v2993 = vadd.f32 %v2607, %v2893
        %v2994 = vadd.f32 %v2608, %v2898
        %v2995 = vadd.f32 %v2609, %v2901
        %v2996 = vadd.f32 %v2610, %v2906
        %v2997 = vadd.f32 %v2611, %v2909
        %v2998 = vadd.f32 %v2612, %v2914
        %v2999 = vadd.f32 %v2613, %v2917
        %v3000 = vadd.f32 %v2614, %v2922
        %v3001 = vadd.f32 %v2615, %v2925
        %v3002 = vadd.f32 %v2616, %v2930
        %v3003 = vadd.f32 %v2617, %v2933
        %v3004 = vadd.f32 %v2618, %v2938
        %v3005 = vadd.f32 %v2619, %v2941
        %v3006 = vadd.f32 %v2620, %v2946
        %v3007 = vadd.f32 %v2621, %v2949
        %v3008 = vadd.f32 %v2622, %v2954
        %v3009 = vadd.f32 %v2623, %v2957
        %v3010 = vadd.f32 %v2624, %v2962
        %v3011 = vadd.f32 %v2625, %v2965
        %v3012 = vadd.f32 %v2626, %v2970
        %v3013 = vadd.f32 %v2627, %v2973
        %v3014 = vadd.f32 %v2628, %v2978
        %v3015 = vadd.f32 %v2629, %v2981
        %v3016 = vld [vmem:[%s509] sm:$0xf]
        %v3017 = vld [vmem:[%s509 + $0x4] sm:$0xf]
        %v3018 = vld [vmem:[%s509 + $0x8] sm:$0x1]
        %v3019 = vld [vmem:[%s509 + $0xc] sm:$0xf]
        %v3020 = vld [vmem:[%s509 + $0x10] sm:$0xf]
        %v3021 = vld [vmem:[%s509 + $0x14] sm:$0x1]
        %v3022 = vld [vmem:[%s509 + $0x18] sm:$0xf]
        %v3023 = vld [vmem:[%s509 + $0x1c] sm:$0xf]
        %v3024 = vld [vmem:[%s509 + $0x20] sm:$0x1]
        %v3025 = vld [vmem:[%s509 + $0x24] sm:$0xf]
        %v3026 = vld [vmem:[%s509 + $0x28] sm:$0xf]
        %v3027 = vld [vmem:[%s509 + $0x2c] sm:$0x1]
        %v3028 = vld [vmem:[%s509 + $0x30] sm:$0xf]
        %v3029 = vld [vmem:[%s509 + $0x34] sm:$0xf]
        %v3030 = vld [vmem:[%s509 + $0x38] sm:$0x1]
        %v3031 = vld [vmem:[%s509 + $0x3c] sm:$0xf]
        %v3032 = vld [vmem:[%s509 + $0x40] sm:$0xf]
        %v3033 = vld [vmem:[%s509 + $0x44] sm:$0x1]
        %v3034 = vld [vmem:[%s509 + $0x48] sm:$0xf]
        %v3035 = vld [vmem:[%s509 + $0x4c] sm:$0xf]
        %v3036 = vld [vmem:[%s509 + $0x50] sm:$0x1]
        %v3037 = vld [vmem:[%s509 + $0x54] sm:$0xf]
        %v3038 = vld [vmem:[%s509 + $0x58] sm:$0xf]
        %v3039 = vld [vmem:[%s509 + $0x5c] sm:$0x1]
        %v3040 = vld [vmem:[%s509 + $0x60] sm:$0xf]
        %v3041 = vld [vmem:[%s509 + $0x64] sm:$0xf]
        %v3042 = vld [vmem:[%s509 + $0x68] sm:$0x1]
        %v3043 = vld [vmem:[%s509 + $0x6c] sm:$0xf]
        %v3044 = vld [vmem:[%s509 + $0x70] sm:$0xf]
        %v3045 = vld [vmem:[%s509 + $0x74] sm:$0x1]
        %v3046 = vld [vmem:[%s509 + $0x78] sm:$0xf]
        %v3047 = vld [vmem:[%s509 + $0x7c] sm:$0xf]
        %v3048 = vld [vmem:[%s509 + $0x80] sm:$0x1]
        %v3049 = vld [vmem:[%s509 + $0x84] sm:$0xf]
        %v3050 = vld [vmem:[%s509 + $0x88] sm:$0xf]
        %v3051 = vld [vmem:[%s509 + $0x8c] sm:$0x1]
        %v3052 = vld [vmem:[%s509 + $0x90] sm:$0xf]
        %v3053 = vld [vmem:[%s509 + $0x94] sm:$0xf]
        %v3054 = vld [vmem:[%s509 + $0x98] sm:$0x1]
        %v3055 = vld [vmem:[%s509 + $0x9c] sm:$0xf]
        %v3056 = vld [vmem:[%s509 + $0xa0] sm:$0xf]
        %v3057 = vld [vmem:[%s509 + $0xa4] sm:$0x1]
        %v3058 = vld [vmem:[%s509 + $0xa8] sm:$0xf]
        %v3059 = vld [vmem:[%s509 + $0xac] sm:$0xf]
        %v3060 = vld [vmem:[%s509 + $0xb0] sm:$0x1]
        %v3061 = vld [vmem:[%s509 + $0xb4] sm:$0xf]
        %v3062 = vld [vmem:[%s509 + $0xb8] sm:$0xf]
        %v3063 = vld [vmem:[%s509 + $0xbc] sm:$0x1]
        %v3065 = vshrl.u32 %v3016, 16
        %v3067 = vrot.slane %v3065, 4
        %v3068 = vshll.u32 %v3016, 16
        %v3070 = vrot.slane %v3068, 5
        %v3071 = vor.u32 %v3067, %v3070
        %v3072 = vrot.slane %v3071, 4
        %v3074 = vshll.u32 %v3017, 16
        %v3076 = vrot.slane %v3074, 5
        %v3077 = vsel %vm1165, %v3072, %v3076
        %v3078 = vshrl.u32 %v3017, 16
        %v3080 = vrot.slane %v3078, 4
        %v3081 = vor.u32 %v3080, %v3076
        %v3082 = vrot.slane %v3081, 4
        %v3084 = vshll.u32 %v3018, 16
        %v3086 = vrot.slane %v3084, 5
        %v3087 = vsel %vm1165, %v3082, %v3086
        %v3089 = vshrl.u32 %v3019, 16
        %v3091 = vrot.slane %v3089, 4
        %v3092 = vshll.u32 %v3019, 16
        %v3094 = vrot.slane %v3092, 5
        %v3095 = vor.u32 %v3091, %v3094
        %v3096 = vrot.slane %v3095, 4
        %v3098 = vshll.u32 %v3020, 16
        %v3100 = vrot.slane %v3098, 5
        %v3101 = vsel %vm1165, %v3096, %v3100
        %v3102 = vshrl.u32 %v3020, 16
        %v3104 = vrot.slane %v3102, 4
        %v3105 = vor.u32 %v3104, %v3100
        %v3106 = vrot.slane %v3105, 4
        %v3108 = vshll.u32 %v3021, 16
        %v3110 = vrot.slane %v3108, 5
        %v3111 = vsel %vm1165, %v3106, %v3110
        %v3113 = vshrl.u32 %v3022, 16
        %v3115 = vrot.slane %v3113, 4
        %v3116 = vshll.u32 %v3022, 16
        %v3118 = vrot.slane %v3116, 5
        %v3119 = vor.u32 %v3115, %v3118
        %v3120 = vrot.slane %v3119, 4
        %v3122 = vshll.u32 %v3023, 16
        %v3124 = vrot.slane %v3122, 5
        %v3125 = vsel %vm1165, %v3120, %v3124
        %v3126 = vshrl.u32 %v3023, 16
        %v3128 = vrot.slane %v3126, 4
        %v3129 = vor.u32 %v3128, %v3124
        %v3130 = vrot.slane %v3129, 4
        %v3132 = vshll.u32 %v3024, 16
        %v3134 = vrot.slane %v3132, 5
        %v3135 = vsel %vm1165, %v3130, %v3134
        %v3137 = vshrl.u32 %v3025, 16
        %v3139 = vrot.slane %v3137, 4
        %v3140 = vshll.u32 %v3025, 16
        %v3142 = vrot.slane %v3140, 5
        %v3143 = vor.u32 %v3139, %v3142
        %v3144 = vrot.slane %v3143, 4
        %v3146 = vshll.u32 %v3026, 16
        %v3148 = vrot.slane %v3146, 5
        %v3149 = vsel %vm1165, %v3144, %v3148
        %v3150 = vshrl.u32 %v3026, 16
        %v3152 = vrot.slane %v3150, 4
        %v3153 = vor.u32 %v3152, %v3148
        %v3154 = vrot.slane %v3153, 4
        %v3156 = vshll.u32 %v3027, 16
        %v3158 = vrot.slane %v3156, 5
        %v3159 = vsel %vm1165, %v3154, %v3158
        %v3161 = vshrl.u32 %v3028, 16
        %v3163 = vrot.slane %v3161, 4
        %v3164 = vshll.u32 %v3028, 16
        %v3166 = vrot.slane %v3164, 5
        %v3167 = vor.u32 %v3163, %v3166
        %v3168 = vrot.slane %v3167, 4
        %v3170 = vshll.u32 %v3029, 16
        %v3172 = vrot.slane %v3170, 5
        %v3173 = vsel %vm1165, %v3168, %v3172
        %v3174 = vshrl.u32 %v3029, 16
        %v3176 = vrot.slane %v3174, 4
        %v3177 = vor.u32 %v3176, %v3172
        %v3178 = vrot.slane %v3177, 4
        %v3180 = vshll.u32 %v3030, 16
        %v3182 = vrot.slane %v3180, 5
        %v3183 = vsel %vm1165, %v3178, %v3182
        %v3185 = vshrl.u32 %v3031, 16
        %v3187 = vrot.slane %v3185, 4
        %v3188 = vshll.u32 %v3031, 16
        %v3190 = vrot.slane %v3188, 5
        %v3191 = vor.u32 %v3187, %v3190
        %v3192 = vrot.slane %v3191, 4
        %v3194 = vshll.u32 %v3032, 16
        %v3196 = vrot.slane %v3194, 5
        %v3197 = vsel %vm1165, %v3192, %v3196
        %v3198 = vshrl.u32 %v3032, 16
        %v3200 = vrot.slane %v3198, 4
        %v3201 = vor.u32 %v3200, %v3196
        %v3202 = vrot.slane %v3201, 4
        %v3204 = vshll.u32 %v3033, 16
        %v3206 = vrot.slane %v3204, 5
        %v3207 = vsel %vm1165, %v3202, %v3206
        %v3209 = vshrl.u32 %v3034, 16
        %v3211 = vrot.slane %v3209, 4
        %v3212 = vshll.u32 %v3034, 16
        %v3214 = vrot.slane %v3212, 5
        %v3215 = vor.u32 %v3211, %v3214
        %v3216 = vrot.slane %v3215, 4
        %v3218 = vshll.u32 %v3035, 16
        %v3220 = vrot.slane %v3218, 5
        %v3221 = vsel %vm1165, %v3216, %v3220
        %v3222 = vshrl.u32 %v3035, 16
        %v3224 = vrot.slane %v3222, 4
        %v3225 = vor.u32 %v3224, %v3220
        %v3226 = vrot.slane %v3225, 4
        %v3228 = vshll.u32 %v3036, 16
        %v3230 = vrot.slane %v3228, 5
        %v3231 = vsel %vm1165, %v3226, %v3230
        %v3233 = vshrl.u32 %v3037, 16
        %v3235 = vrot.slane %v3233, 4
        %v3236 = vshll.u32 %v3037, 16
        %v3238 = vrot.slane %v3236, 5
        %v3239 = vor.u32 %v3235, %v3238
        %v3240 = vrot.slane %v3239, 4
        %v3242 = vshll.u32 %v3038, 16
        %v3244 = vrot.slane %v3242, 5
        %v3245 = vsel %vm1165, %v3240, %v3244
        %v3246 = vshrl.u32 %v3038, 16
        %v3248 = vrot.slane %v3246, 4
        %v3249 = vor.u32 %v3248, %v3244
        %v3250 = vrot.slane %v3249, 4
        %v3252 = vshll.u32 %v3039, 16
        %v3254 = vrot.slane %v3252, 5
        %v3255 = vsel %vm1165, %v3250, %v3254
        %v3257 = vshrl.u32 %v3040, 16
        %v3259 = vrot.slane %v3257, 4
        %v3260 = vshll.u32 %v3040, 16
        %v3262 = vrot.slane %v3260, 5
        %v3263 = vor.u32 %v3259, %v3262
        %v3264 = vrot.slane %v3263, 4
        %v3266 = vshll.u32 %v3041, 16
        %v3268 = vrot.slane %v3266, 5
        %v3269 = vsel %vm1165, %v3264, %v3268
        %v3270 = vshrl.u32 %v3041, 16
        %v3272 = vrot.slane %v3270, 4
        %v3273 = vor.u32 %v3272, %v3268
        %v3274 = vrot.slane %v3273, 4
        %v3276 = vshll.u32 %v3042, 16
        %v3278 = vrot.slane %v3276, 5
        %v3279 = vsel %vm1165, %v3274, %v3278
        %v3281 = vshrl.u32 %v3043, 16
        %v3283 = vrot.slane %v3281, 4
        %v3284 = vshll.u32 %v3043, 16
        %v3286 = vrot.slane %v3284, 5
        %v3287 = vor.u32 %v3283, %v3286
        %v3288 = vrot.slane %v3287, 4
        %v3290 = vshll.u32 %v3044, 16
        %v3292 = vrot.slane %v3290, 5
        %v3293 = vsel %vm1165, %v3288, %v3292
        %v3294 = vshrl.u32 %v3044, 16
        %v3296 = vrot.slane %v3294, 4
        %v3297 = vor.u32 %v3296, %v3292
        %v3298 = vrot.slane %v3297, 4
        %v3300 = vshll.u32 %v3045, 16
        %v3302 = vrot.slane %v3300, 5
        %v3303 = vsel %vm1165, %v3298, %v3302
        %v3305 = vshrl.u32 %v3046, 16
        %v3307 = vrot.slane %v3305, 4
        %v3308 = vshll.u32 %v3046, 16
        %v3310 = vrot.slane %v3308, 5
        %v3311 = vor.u32 %v3307, %v3310
        %v3312 = vrot.slane %v3311, 4
        %v3314 = vshll.u32 %v3047, 16
        %v3316 = vrot.slane %v3314, 5
        %v3317 = vsel %vm1165, %v3312, %v3316
        %v3318 = vshrl.u32 %v3047, 16
        %v3320 = vrot.slane %v3318, 4
        %v3321 = vor.u32 %v3320, %v3316
        %v3322 = vrot.slane %v3321, 4
        %v3324 = vshll.u32 %v3048, 16
        %v3326 = vrot.slane %v3324, 5
        %v3327 = vsel %vm1165, %v3322, %v3326
        %v3329 = vshrl.u32 %v3049, 16
        %v3331 = vrot.slane %v3329, 4
        %v3332 = vshll.u32 %v3049, 16
        %v3334 = vrot.slane %v3332, 5
        %v3335 = vor.u32 %v3331, %v3334
        %v3336 = vrot.slane %v3335, 4
        %v3338 = vshll.u32 %v3050, 16
        %v3340 = vrot.slane %v3338, 5
        %v3341 = vsel %vm1165, %v3336, %v3340
        %v3342 = vshrl.u32 %v3050, 16
        %v3344 = vrot.slane %v3342, 4
        %v3345 = vor.u32 %v3344, %v3340
        %v3346 = vrot.slane %v3345, 4
        %v3348 = vshll.u32 %v3051, 16
        %v3350 = vrot.slane %v3348, 5
        %v3351 = vsel %vm1165, %v3346, %v3350
        %v3353 = vshrl.u32 %v3052, 16
        %v3355 = vrot.slane %v3353, 4
        %v3356 = vshll.u32 %v3052, 16
        %v3358 = vrot.slane %v3356, 5
        %v3359 = vor.u32 %v3355, %v3358
        %v3360 = vrot.slane %v3359, 4
        %v3362 = vshll.u32 %v3053, 16
        %v3364 = vrot.slane %v3362, 5
        %v3365 = vsel %vm1165, %v3360, %v3364
        %v3366 = vshrl.u32 %v3053, 16
        %v3368 = vrot.slane %v3366, 4
        %v3369 = vor.u32 %v3368, %v3364
        %v3370 = vrot.slane %v3369, 4
        %v3372 = vshll.u32 %v3054, 16
        %v3374 = vrot.slane %v3372, 5
        %v3375 = vsel %vm1165, %v3370, %v3374
        %v3377 = vshrl.u32 %v3055, 16
        %v3379 = vrot.slane %v3377, 4
        %v3380 = vshll.u32 %v3055, 16
        %v3382 = vrot.slane %v3380, 5
        %v3383 = vor.u32 %v3379, %v3382
        %v3384 = vrot.slane %v3383, 4
        %v3386 = vshll.u32 %v3056, 16
        %v3388 = vrot.slane %v3386, 5
        %v3389 = vsel %vm1165, %v3384, %v3388
        %v3390 = vshrl.u32 %v3056, 16
        %v3392 = vrot.slane %v3390, 4
        %v3393 = vor.u32 %v3392, %v3388
        %v3394 = vrot.slane %v3393, 4
        %v3396 = vshll.u32 %v3057, 16
        %v3398 = vrot.slane %v3396, 5
        %v3399 = vsel %vm1165, %v3394, %v3398
        %v3401 = vshrl.u32 %v3058, 16
        %v3403 = vrot.slane %v3401, 4
        %v3404 = vshll.u32 %v3058, 16
        %v3406 = vrot.slane %v3404, 5
        %v3407 = vor.u32 %v3403, %v3406
        %v3408 = vrot.slane %v3407, 4
        %v3410 = vshll.u32 %v3059, 16
        %v3412 = vrot.slane %v3410, 5
        %v3413 = vsel %vm1165, %v3408, %v3412
        %v3414 = vshrl.u32 %v3059, 16
        %v3416 = vrot.slane %v3414, 4
        %v3417 = vor.u32 %v3416, %v3412
        %v3418 = vrot.slane %v3417, 4
        %v3420 = vshll.u32 %v3060, 16
        %v3422 = vrot.slane %v3420, 5
        %v3423 = vsel %vm1165, %v3418, %v3422
        %v3425 = vshrl.u32 %v3061, 16
        %v3427 = vrot.slane %v3425, 4
        %v3428 = vshll.u32 %v3061, 16
        %v3430 = vrot.slane %v3428, 5
        %v3431 = vor.u32 %v3427, %v3430
        %v3432 = vrot.slane %v3431, 4
        %v3434 = vshll.u32 %v3062, 16
        %v3436 = vrot.slane %v3434, 5
        %v3437 = vsel %vm1165, %v3432, %v3436
        %v3438 = vshrl.u32 %v3062, 16
        %v3440 = vrot.slane %v3438, 4
        %v3441 = vor.u32 %v3440, %v3436
        %v3442 = vrot.slane %v3441, 4
        %v3444 = vshll.u32 %v3063, 16
        %v3446 = vrot.slane %v3444, 5
        %v3447 = vsel %vm1165, %v3442, %v3446
        %s3448 = scalar_lea.vmem [#allocation4], 256
        %v3449 = vld [vmem:[%s3448] sm:$0xf]
        %v3450 = vld [vmem:[%s3448 + $0x4] sm:$0xf]
        %v3451 = vld [vmem:[%s3448 + $0x8] sm:$0xf]
        %v3452 = vld [vmem:[%s3448 + $0xc] sm:$0xf]
        %v3453 = vld [vmem:[%s3448 + $0x10] sm:$0xf]
        %v3454 = vld [vmem:[%s3448 + $0x14] sm:$0xf]
        %v3455 = vld [vmem:[%s3448 + $0x18] sm:$0xf]
        %v3456 = vld [vmem:[%s3448 + $0x1c] sm:$0xf]
        %v3457 = vld [vmem:[%s3448 + $0x20] sm:$0xf]
        %v3458 = vld [vmem:[%s3448 + $0x24] sm:$0xf]
        %v3459 = vld [vmem:[%s3448 + $0x28] sm:$0xf]
        %v3460 = vld [vmem:[%s3448 + $0x2c] sm:$0xf]
        %v3461 = vld [vmem:[%s3448 + $0x30] sm:$0xf]
        %v3462 = vld [vmem:[%s3448 + $0x34] sm:$0xf]
        %v3463 = vld [vmem:[%s3448 + $0x38] sm:$0xf]
        %v3464 = vld [vmem:[%s3448 + $0x3c] sm:$0xf]
        %v3465 = vunpack.c.l.b16 %v3077
        %v3466 = vunpack.c.l.b16 %v3087
        %v3467 = vunpack.c.l.b16 %v3101
        %v3468 = vunpack.c.l.b16 %v3111
        %v3469 = vunpack.c.l.b16 %v3125
        %v3470 = vunpack.c.l.b16 %v3135
        %v3471 = vunpack.c.l.b16 %v3149
        %v3472 = vunpack.c.l.b16 %v3159
        %v3473 = vunpack.c.l.b16 %v3173
        %v3474 = vunpack.c.l.b16 %v3183
        %v3475 = vunpack.c.l.b16 %v3197
        %v3476 = vunpack.c.l.b16 %v3207
        %v3477 = vunpack.c.l.b16 %v3221
        %v3478 = vunpack.c.l.b16 %v3231
        %v3479 = vunpack.c.l.b16 %v3245
        %v3480 = vunpack.c.l.b16 %v3255
        %v3481 = vunpack.c.l.b16 %v3269
        %v3482 = vunpack.c.l.b16 %v3279
        %v3483 = vunpack.c.l.b16 %v3293
        %v3484 = vunpack.c.l.b16 %v3303
        %v3485 = vunpack.c.l.b16 %v3317
        %v3486 = vunpack.c.l.b16 %v3327
        %v3487 = vunpack.c.l.b16 %v3341
        %v3488 = vunpack.c.l.b16 %v3351
        %v3489 = vunpack.c.l.b16 %v3365
        %v3490 = vunpack.c.l.b16 %v3375
        %v3491 = vunpack.c.l.b16 %v3389
        %v3492 = vunpack.c.l.b16 %v3399
        %v3493 = vunpack.c.l.b16 %v3413
        %v3494 = vunpack.c.l.b16 %v3423
        %v3495 = vunpack.c.l.b16 %v3437
        %v3496 = vunpack.c.l.b16 %v3447
        %v3497 = vpack.c.b16 %v3466, %v3465
        %v3498 = vpack.c.b16 %v3468, %v3467
        %v3499 = vpack.c.b16 %v3470, %v3469
        %v3500 = vpack.c.b16 %v3472, %v3471
        %v3501 = vpack.c.b16 %v3474, %v3473
        %v3502 = vpack.c.b16 %v3476, %v3475
        %v3503 = vpack.c.b16 %v3478, %v3477
        %v3504 = vpack.c.b16 %v3480, %v3479
        %v3505 = vpack.c.b16 %v3482, %v3481
        %v3506 = vpack.c.b16 %v3484, %v3483
        %v3507 = vpack.c.b16 %v3486, %v3485
        %v3508 = vpack.c.b16 %v3488, %v3487
        %v3509 = vpack.c.b16 %v3490, %v3489
        %v3510 = vpack.c.b16 %v3492, %v3491
        %v3511 = vpack.c.b16 %v3494, %v3493
        %v3512 = vpack.c.b16 %v3496, %v3495
        %v3545 = vunpack.c.l.b16 %v3449
        %v3546 = vunpack.c.l.b16 %v3450
        %v3547 = vunpack.c.l.b16 %v3451
        %v3548 = vunpack.c.l.b16 %v3452
        %v3549 = vunpack.c.l.b16 %v3453
        %v3550 = vunpack.c.l.b16 %v3454
        %v3551 = vunpack.c.l.b16 %v3455
        %v3552 = vunpack.c.l.b16 %v3456
        %v3553 = vunpack.c.l.b16 %v3457
        %v3554 = vunpack.c.l.b16 %v3458
        %v3555 = vunpack.c.l.b16 %v3459
        %v3556 = vunpack.c.l.b16 %v3460
        %v3557 = vunpack.c.l.b16 %v3461
        %v3558 = vunpack.c.l.b16 %v3462
        %v3559 = vunpack.c.l.b16 %v3463
        %v3560 = vunpack.c.l.b16 %v3464
        %v3561 = vpack.c.b16 %v3546, %v3545
        %v3562 = vpack.c.b16 %v3548, %v3547
        %v3563 = vpack.c.b16 %v3550, %v3549
        %v3564 = vpack.c.b16 %v3552, %v3551
        %v3565 = vpack.c.b16 %v3554, %v3553
        %v3566 = vpack.c.b16 %v3556, %v3555
        %v3567 = vpack.c.b16 %v3558, %v3557
        %v3568 = vpack.c.b16 %v3560, %v3559
        %3577 = vmatprep.subr.bf16.mxu0 0
        %3578 = vmatpush1.bf16.msra.mxu0 %v3561
        %3579 = vmatprep.subr.bf16.mxu0 0
        %3580 = vmatpush1.bf16.msra.mxu0 %v3562
        %3581 = vmatprep.subr.bf16.mxu0 0
        %3582 = vmatpush1.bf16.msra.mxu0 %v3563
        %3583 = vmatprep.subr.bf16.mxu0 0
        %3584 = vmatpush1.bf16.msra.mxu0 %v3564
        %3585 = vmatprep.subr.bf16.mxu0 0
        %3586 = vmatpush1.bf16.msra.mxu0 %v3565
        %3587 = vmatprep.subr.bf16.mxu0 0
        %3588 = vmatpush1.bf16.msra.mxu0 %v3566
        %3589 = vmatprep.subr.bf16.mxu0 0
        %3590 = vmatpush1.bf16.msra.mxu0 %v3567
        %3591 = vmatprep.subr.bf16.mxu0 0
        %3592 = vmatpush1.bf16.msra.mxu0 %v3568
        %3593 = vmatprep.subr.bf16.mxu0 0
        %3594 = vmatpush1.bf16.msra.mxu0 0
        %3595 = vmatprep.subr.bf16.mxu0 0
        %3596 = vmatpush1.bf16.msra.mxu0 0
        %3597 = vmatprep.subr.bf16.mxu0 0
        %3598 = vmatpush1.bf16.msra.mxu0 0
        %3599 = vmatprep.subr.bf16.mxu0 0
        %3600 = vmatpush1.bf16.msra.mxu0 0
        %3601 = vmatprep.subr.bf16.mxu0 0
        %3602 = vmatpush1.bf16.msra.mxu0 0
        %3603 = vmatprep.subr.bf16.mxu0 0
        %3604 = vmatpush1.bf16.msra.mxu0 0
        %3605 = vmatprep.subr.bf16.mxu0 0
        %3606 = vmatpush1.bf16.msra.mxu0 0
        %3607 = vmatprep.subr.bf16.mxu0 0
        %3608 = vmatpush1.bf16.msra.mxu0 0
        %3609 = vmatprep.mubr.bf16.mxu0 0
        %3610 = vmatmul.mubr.bf16.gmra.mrb[0].mxu0 %v3497
        %v3611 = vpop.f32.mrb[0].mxu0
        %v3612 = vadd.f32 0.0, %v3611
        %v3613 = vpop.f32.mrb[0].mxu0
        %v3614 = vpop.f32.mrb[0].mxu0
        %v3615 = vadd.f32 0.0, %v3614
        %v3616 = vpop.f32.mrb[0].mxu0
        %3617 = vmatprep.mubr.bf16.mxu0 0
        %3618 = vmatmul.mubr.bf16.gmra.mrb[0].mxu0 %v3498
        %v3619 = vpop.f32.mrb[0].mxu0
        %v3620 = vadd.f32 0.0, %v3619
        %v3621 = vpop.f32.mrb[0].mxu0
        %v3622 = vpop.f32.mrb[0].mxu0
        %v3623 = vadd.f32 0.0, %v3622
        %v3624 = vpop.f32.mrb[0].mxu0
        %3625 = vmatprep.mubr.bf16.mxu0 0
        %3626 = vmatmul.mubr.bf16.gmra.mrb[0].mxu0 %v3499
        %v3627 = vpop.f32.mrb[0].mxu0
        %v3628 = vadd.f32 0.0, %v3627
        %v3629 = vpop.f32.mrb[0].mxu0
        %v3630 = vpop.f32.mrb[0].mxu0
        %v3631 = vadd.f32 0.0, %v3630
        %v3632 = vpop.f32.mrb[0].mxu0
        %3633 = vmatprep.mubr.bf16.mxu0 0
        %3634 = vmatmul.mubr.bf16.gmra.mrb[0].mxu0 %v3500
        %v3635 = vpop.f32.mrb[0].mxu0
        %v3636 = vadd.f32 0.0, %v3635
        %v3637 = vpop.f32.mrb[0].mxu0
        %v3638 = vpop.f32.mrb[0].mxu0
        %v3639 = vadd.f32 0.0, %v3638
        %v3640 = vpop.f32.mrb[0].mxu0
        %3641 = vmatprep.mubr.bf16.mxu0 0
        %3642 = vmatmul.mubr.bf16.gmra.mrb[0].mxu0 %v3501
        %v3643 = vpop.f32.mrb[0].mxu0
        %v3644 = vadd.f32 0.0, %v3643
        %v3645 = vpop.f32.mrb[0].mxu0
        %v3646 = vpop.f32.mrb[0].mxu0
        %v3647 = vadd.f32 0.0, %v3646
        %v3648 = vpop.f32.mrb[0].mxu0
        %3649 = vmatprep.mubr.bf16.mxu0 0
        %3650 = vmatmul.mubr.bf16.gmra.mrb[0].mxu0 %v3502
        %v3651 = vpop.f32.mrb[0].mxu0
        %v3652 = vadd.f32 0.0, %v3651
        %v3653 = vpop.f32.mrb[0].mxu0
        %v3654 = vpop.f32.mrb[0].mxu0
        %v3655 = vadd.f32 0.0, %v3654
        %v3656 = vpop.f32.mrb[0].mxu0
        %3657 = vmatprep.mubr.bf16.mxu0 0
        %3658 = vmatmul.mubr.bf16.gmra.mrb[0].mxu0 %v3503
        %v3659 = vpop.f32.mrb[0].mxu0
        %v3660 = vadd.f32 0.0, %v3659
        %v3661 = vpop.f32.mrb[0].mxu0
        %v3662 = vpop.f32.mrb[0].mxu0
        %v3663 = vadd.f32 0.0, %v3662
        %v3664 = vpop.f32.mrb[0].mxu0
        %3665 = vmatprep.mubr.bf16.mxu0 0
        %3666 = vmatmul.mubr.bf16.gmra.mrb[0].mxu0 %v3504
        %v3667 = vpop.f32.mrb[0].mxu0
        %v3668 = vadd.f32 0.0, %v3667
        %v3669 = vpop.f32.mrb[0].mxu0
        %v3670 = vpop.f32.mrb[0].mxu0
        %v3671 = vadd.f32 0.0, %v3670
        %v3672 = vpop.f32.mrb[0].mxu0
        %3673 = vmatprep.mubr.bf16.mxu0 0
        %3674 = vmatmul.mubr.bf16.gmra.mrb[0].mxu0 %v3505
        %v3675 = vpop.f32.mrb[0].mxu0
        %v3676 = vadd.f32 0.0, %v3675
        %v3677 = vpop.f32.mrb[0].mxu0
        %v3678 = vpop.f32.mrb[0].mxu0
        %v3679 = vadd.f32 0.0, %v3678
        %v3680 = vpop.f32.mrb[0].mxu0
        %3681 = vmatprep.mubr.bf16.mxu0 0
        %3682 = vmatmul.mubr.bf16.gmra.mrb[0].mxu0 %v3506
        %v3683 = vpop.f32.mrb[0].mxu0
        %v3684 = vadd.f32 0.0, %v3683
        %v3685 = vpop.f32.mrb[0].mxu0
        %v3686 = vpop.f32.mrb[0].mxu0
        %v3687 = vadd.f32 0.0, %v3686
        %v3688 = vpop.f32.mrb[0].mxu0
        %3689 = vmatprep.mubr.bf16.mxu0 0
        %3690 = vmatmul.mubr.bf16.gmra.mrb[0].mxu0 %v3507
        %v3691 = vpop.f32.mrb[0].mxu0
        %v3692 = vadd.f32 0.0, %v3691
        %v3693 = vpop.f32.mrb[0].mxu0
        %v3694 = vpop.f32.mrb[0].mxu0
        %v3695 = vadd.f32 0.0, %v3694
        %v3696 = vpop.f32.mrb[0].mxu0
        %3697 = vmatprep.mubr.bf16.mxu0 0
        %3698 = vmatmul.mubr.bf16.gmra.mrb[0].mxu0 %v3508
        %v3699 = vpop.f32.mrb[0].mxu0
        %v3700 = vadd.f32 0.0, %v3699
        %v3701 = vpop.f32.mrb[0].mxu0
        %v3702 = vpop.f32.mrb[0].mxu0
        %v3703 = vadd.f32 0.0, %v3702
        %v3704 = vpop.f32.mrb[0].mxu0
        %3705 = vmatprep.mubr.bf16.mxu0 0
        %3706 = vmatmul.mubr.bf16.gmra.mrb[0].mxu0 %v3509
        %v3707 = vpop.f32.mrb[0].mxu0
        %v3708 = vadd.f32 0.0, %v3707
        %v3709 = vpop.f32.mrb[0].mxu0
        %v3710 = vpop.f32.mrb[0].mxu0
        %v3711 = vadd.f32 0.0, %v3710
        %v3712 = vpop.f32.mrb[0].mxu0
        %3713 = vmatprep.mubr.bf16.mxu0 0
        %3714 = vmatmul.mubr.bf16.gmra.mrb[0].mxu0 %v3510
        %v3715 = vpop.f32.mrb[0].mxu0
        %v3716 = vadd.f32 0.0, %v3715
        %v3717 = vpop.f32.mrb[0].mxu0
        %v3718 = vpop.f32.mrb[0].mxu0
        %v3719 = vadd.f32 0.0, %v3718
        %v3720 = vpop.f32.mrb[0].mxu0
        %3721 = vmatprep.mubr.bf16.mxu0 0
        %3722 = vmatmul.mubr.bf16.gmra.mrb[0].mxu0 %v3511
        %v3723 = vpop.f32.mrb[0].mxu0
        %v3724 = vadd.f32 0.0, %v3723
        %v3725 = vpop.f32.mrb[0].mxu0
        %v3726 = vpop.f32.mrb[0].mxu0
        %v3727 = vadd.f32 0.0, %v3726
        %v3728 = vpop.f32.mrb[0].mxu0
        %3729 = vmatprep.mubr.bf16.mxu0 0
        %3730 = vmatmul.mubr.bf16.gmra.mrb[0].mxu0 %v3512
        %v3731 = vpop.f32.mrb[0].mxu0
        %v3732 = vadd.f32 0.0, %v3731
        %v3733 = vpop.f32.mrb[0].mxu0
        %v3734 = vpop.f32.mrb[0].mxu0
        %v3735 = vadd.f32 0.0, %v3734
        %v3736 = vpop.f32.mrb[0].mxu0
        %3737 = vdwg.mxu0
        %v3738 = vadd.f32 %v2984, %v3612
        %v3739 = vadd.f32 %v2985, %v3615
        %v3740 = vadd.f32 %v2986, %v3620
        %v3741 = vadd.f32 %v2987, %v3623
        %v3742 = vadd.f32 %v2988, %v3628
        %v3743 = vadd.f32 %v2989, %v3631
        %v3744 = vadd.f32 %v2990, %v3636
        %v3745 = vadd.f32 %v2991, %v3639
        %v3746 = vadd.f32 %v2992, %v3644
        %v3747 = vadd.f32 %v2993, %v3647
        %v3748 = vadd.f32 %v2994, %v3652
        %v3749 = vadd.f32 %v2995, %v3655
        %v3750 = vadd.f32 %v2996, %v3660
        %v3751 = vadd.f32 %v2997, %v3663
        %v3752 = vadd.f32 %v2998, %v3668
        %v3753 = vadd.f32 %v2999, %v3671
        %v3754 = vadd.f32 %v3000, %v3676
        %v3755 = vadd.f32 %v3001, %v3679
        %v3756 = vadd.f32 %v3002, %v3684
        %v3757 = vadd.f32 %v3003, %v3687
        %v3758 = vadd.f32 %v3004, %v3692
        %v3759 = vadd.f32 %v3005, %v3695
        %v3760 = vadd.f32 %v3006, %v3700
        %v3761 = vadd.f32 %v3007, %v3703
        %v3762 = vadd.f32 %v3008, %v3708
        %v3763 = vadd.f32 %v3009, %v3711
        %v3764 = vadd.f32 %v3010, %v3716
        %v3765 = vadd.f32 %v3011, %v3719
        %v3766 = vadd.f32 %v3012, %v3724
        %v3767 = vadd.f32 %v3013, %v3727
        %v3768 = vadd.f32 %v3014, %v3732
        %v3769 = vadd.f32 %v3015, %v3735
        %v3770 = vld [vmem:[%s509] sm:$0xe]
        %v3771 = vld [vmem:[%s509 + $0xc] sm:$0xe]
        %v3772 = vld [vmem:[%s509 + $0x18] sm:$0xe]
        %v3773 = vld [vmem:[%s509 + $0x24] sm:$0xe]
        %v3774 = vld [vmem:[%s509 + $0x30] sm:$0xe]
        %v3775 = vld [vmem:[%s509 + $0x3c] sm:$0xe]
        %v3776 = vld [vmem:[%s509 + $0x48] sm:$0xe]
        %v3777 = vld [vmem:[%s509 + $0x54] sm:$0xe]
        %v3778 = vld [vmem:[%s509 + $0x60] sm:$0xe]
        %v3779 = vld [vmem:[%s509 + $0x6c] sm:$0xe]
        %v3780 = vld [vmem:[%s509 + $0x78] sm:$0xe]
        %v3781 = vld [vmem:[%s509 + $0x84] sm:$0xe]
        %v3782 = vld [vmem:[%s509 + $0x90] sm:$0xe]
        %v3783 = vld [vmem:[%s509 + $0x9c] sm:$0xe]
        %v3784 = vld [vmem:[%s509 + $0xa8] sm:$0xe]
        %v3785 = vld [vmem:[%s509 + $0xb4] sm:$0xe]
        %v3834 = vrot.slane %v3770, 5
        %v3835 = vrot.slane %v3834, 4
        %v3836 = vrot.slane %v3017, 5
        %v3837 = vsel %vm2195, %v3835, %v3836
        %v3838 = vrot.slane %v3836, 4
        %v3839 = vrot.slane %v3018, 5
        %v3840 = vsel %vm2195, %v3838, %v3839
        %v3841 = vrot.slane %v3771, 5
        %v3842 = vrot.slane %v3841, 4
        %v3843 = vrot.slane %v3020, 5
        %v3844 = vsel %vm2195, %v3842, %v3843
        %v3845 = vrot.slane %v3843, 4
        %v3846 = vrot.slane %v3021, 5
        %v3847 = vsel %vm2195, %v3845, %v3846
        %v3848 = vrot.slane %v3772, 5
        %v3849 = vrot.slane %v3848, 4
        %v3850 = vrot.slane %v3023, 5
        %v3851 = vsel %vm2195, %v3849, %v3850
        %v3852 = vrot.slane %v3850, 4
        %v3853 = vrot.slane %v3024, 5
        %v3854 = vsel %vm2195, %v3852, %v3853
        %v3855 = vrot.slane %v3773, 5
        %v3856 = vrot.slane %v3855, 4
        %v3857 = vrot.slane %v3026, 5
        %v3858 = vsel %vm2195, %v3856, %v3857
        %v3859 = vrot.slane %v3857, 4
        %v3860 = vrot.slane %v3027, 5
        %v3861 = vsel %vm2195, %v3859, %v3860
        %v3862 = vrot.slane %v3774, 5
        %v3863 = vrot.slane %v3862, 4
        %v3864 = vrot.slane %v3029, 5
        %v3865 = vsel %vm2195, %v3863, %v3864
        %v3866 = vrot.slane %v3864, 4
        %v3867 = vrot.slane %v3030, 5
        %v3868 = vsel %vm2195, %v3866, %v3867
        %v3869 = vrot.slane %v3775, 5
        %v3870 = vrot.slane %v3869, 4
        %v3871 = vrot.slane %v3032, 5
        %v3872 = vsel %vm2195, %v3870, %v3871
        %v3873 = vrot.slane %v3871, 4
        %v3874 = vrot.slane %v3033, 5
        %v3875 = vsel %vm2195, %v3873, %v3874
        %v3876 = vrot.slane %v3776, 5
        %v3877 = vrot.slane %v3876, 4
        %v3878 = vrot.slane %v3035, 5
        %v3879 = vsel %vm2195, %v3877, %v3878
        %v3880 = vrot.slane %v3878, 4
        %v3881 = vrot.slane %v3036, 5
        %v3882 = vsel %vm2195, %v3880, %v3881
        %v3883 = vrot.slane %v3777, 5
        %v3884 = vrot.slane %v3883, 4
        %v3885 = vrot.slane %v3038, 5
        %v3886 = vsel %vm2195, %v3884, %v3885
        %v3887 = vrot.slane %v3885, 4
        %v3888 = vrot.slane %v3039, 5
        %v3889 = vsel %vm2195, %v3887, %v3888
        %v3890 = vrot.slane %v3778, 5
        %v3891 = vrot.slane %v3890, 4
        %v3892 = vrot.slane %v3041, 5
        %v3893 = vsel %vm2195, %v3891, %v3892
        %v3894 = vrot.slane %v3892, 4
        %v3895 = vrot.slane %v3042, 5
        %v3896 = vsel %vm2195, %v3894, %v3895
        %v3897 = vrot.slane %v3779, 5
        %v3898 = vrot.slane %v3897, 4
        %v3899 = vrot.slane %v3044, 5
        %v3900 = vsel %vm2195, %v3898, %v3899
        %v3901 = vrot.slane %v3899, 4
        %v3902 = vrot.slane %v3045, 5
        %v3903 = vsel %vm2195, %v3901, %v3902
        %v3904 = vrot.slane %v3780, 5
        %v3905 = vrot.slane %v3904, 4
        %v3906 = vrot.slane %v3047, 5
        %v3907 = vsel %vm2195, %v3905, %v3906
        %v3908 = vrot.slane %v3906, 4
        %v3909 = vrot.slane %v3048, 5
        %v3910 = vsel %vm2195, %v3908, %v3909
        %v3911 = vrot.slane %v3781, 5
        %v3912 = vrot.slane %v3911, 4
        %v3913 = vrot.slane %v3050, 5
        %v3914 = vsel %vm2195, %v3912, %v3913
        %v3915 = vrot.slane %v3913, 4
        %v3916 = vrot.slane %v3051, 5
        %v3917 = vsel %vm2195, %v3915, %v3916
        %v3918 = vrot.slane %v3782, 5
        %v3919 = vrot.slane %v3918, 4
        %v3920 = vrot.slane %v3053, 5
        %v3921 = vsel %vm2195, %v3919, %v3920
        %v3922 = vrot.slane %v3920, 4
        %v3923 = vrot.slane %v3054, 5
        %v3924 = vsel %vm2195, %v3922, %v3923
        %v3925 = vrot.slane %v3783, 5
        %v3926 = vrot.slane %v3925, 4
        %v3927 = vrot.slane %v3056, 5
        %v3928 = vsel %vm2195, %v3926, %v3927
        %v3929 = vrot.slane %v3927, 4
        %v3930 = vrot.slane %v3057, 5
        %v3931 = vsel %vm2195, %v3929, %v3930
        %v3932 = vrot.slane %v3784, 5
        %v3933 = vrot.slane %v3932, 4
        %v3934 = vrot.slane %v3059, 5
        %v3935 = vsel %vm2195, %v3933, %v3934
        %v3936 = vrot.slane %v3934, 4
        %v3937 = vrot.slane %v3060, 5
        %v3938 = vsel %vm2195, %v3936, %v3937
        %v3939 = vrot.slane %v3785, 5
        %v3940 = vrot.slane %v3939, 4
        %v3941 = vrot.slane %v3062, 5
        %v3942 = vsel %vm2195, %v3940, %v3941
        %v3943 = vrot.slane %v3941, 4
        %v3944 = vrot.slane %v3063, 5
        %v3945 = vsel %vm2195, %v3943, %v3944
        %s3946 = scalar_lea.vmem [#allocation4], 320
        %v3947 = vld [vmem:[%s3946] sm:$0xf]
        %v3948 = vld [vmem:[%s3946 + $0x4] sm:$0xf]
        %v3949 = vld [vmem:[%s3946 + $0x8] sm:$0xf]
        %v3950 = vld [vmem:[%s3946 + $0xc] sm:$0xf]
        %v3951 = vld [vmem:[%s3946 + $0x10] sm:$0xf]
        %v3952 = vld [vmem:[%s3946 + $0x14] sm:$0xf]
        %v3953 = vld [vmem:[%s3946 + $0x18] sm:$0xf]
        %v3954 = vld [vmem:[%s3946 + $0x1c] sm:$0xf]
        %v3955 = vld [vmem:[%s3946 + $0x20] sm:$0xf]
        %v3956 = vld [vmem:[%s3946 + $0x24] sm:$0xf]
        %v3957 = vld [vmem:[%s3946 + $0x28] sm:$0xf]
        %v3958 = vld [vmem:[%s3946 + $0x2c] sm:$0xf]
        %v3959 = vld [vmem:[%s3946 + $0x30] sm:$0xf]
        %v3960 = vld [vmem:[%s3946 + $0x34] sm:$0xf]
        %v3961 = vld [vmem:[%s3946 + $0x38] sm:$0xf]
        %v3962 = vld [vmem:[%s3946 + $0x3c] sm:$0xf]
        %v3963 = vunpack.c.l.b16 %v3837
        %v3964 = vunpack.c.l.b16 %v3840
        %v3965 = vunpack.c.l.b16 %v3844
        %v3966 = vunpack.c.l.b16 %v3847
        %v3967 = vunpack.c.l.b16 %v3851
        %v3968 = vunpack.c.l.b16 %v3854
        %v3969 = vunpack.c.l.b16 %v3858
        %v3970 = vunpack.c.l.b16 %v3861
        %v3971 = vunpack.c.l.b16 %v3865
        %v3972 = vunpack.c.l.b16 %v3868
        %v3973 = vunpack.c.l.b16 %v3872
        %v3974 = vunpack.c.l.b16 %v3875
        %v3975 = vunpack.c.l.b16 %v3879
        %v3976 = vunpack.c.l.b16 %v3882
        %v3977 = vunpack.c.l.b16 %v3886
        %v3978 = vunpack.c.l.b16 %v3889
        %v3979 = vunpack.c.l.b16 %v3893
        %v3980 = vunpack.c.l.b16 %v3896
        %v3981 = vunpack.c.l.b16 %v3900
        %v3982 = vunpack.c.l.b16 %v3903
        %v3983 = vunpack.c.l.b16 %v3907
        %v3984 = vunpack.c.l.b16 %v3910
        %v3985 = vunpack.c.l.b16 %v3914
        %v3986 = vunpack.c.l.b16 %v3917
        %v3987 = vunpack.c.l.b16 %v3921
        %v3988 = vunpack.c.l.b16 %v3924
        %v3989 = vunpack.c.l.b16 %v3928
        %v3990 = vunpack.c.l.b16 %v3931
        %v3991 = vunpack.c.l.b16 %v3935
        %v3992 = vunpack.c.l.b16 %v3938
        %v3993 = vunpack.c.l.b16 %v3942
        %v3994 = vunpack.c.l.b16 %v3945
        %v3995 = vpack.c.b16 %v3964, %v3963
        %v3996 = vpack.c.b16 %v3966, %v3965
        %v3997 = vpack.c.b16 %v3968, %v3967
        %v3998 = vpack.c.b16 %v3970, %v3969
        %v3999 = vpack.c.b16 %v3972, %v3971
        %v4000 = vpack.c.b16 %v3974, %v3973
        %v4001 = vpack.c.b16 %v3976, %v3975
        %v4002 = vpack.c.b16 %v3978, %v3977
        %v4003 = vpack.c.b16 %v3980, %v3979
        %v4004 = vpack.c.b16 %v3982, %v3981
        %v4005 = vpack.c.b16 %v3984, %v3983
        %v4006 = vpack.c.b16 %v3986, %v3985
        %v4007 = vpack.c.b16 %v3988, %v3987
        %v4008 = vpack.c.b16 %v3990, %v3989
        %v4009 = vpack.c.b16 %v3992, %v3991
        %v4010 = vpack.c.b16 %v3994, %v3993
        %v4043 = vunpack.c.l.b16 %v3947
        %v4044 = vunpack.c.l.b16 %v3948
        %v4045 = vunpack.c.l.b16 %v3949
        %v4046 = vunpack.c.l.b16 %v3950
        %v4047 = vunpack.c.l.b16 %v3951
        %v4048 = vunpack.c.l.b16 %v3952
        %v4049 = vunpack.c.l.b16 %v3953
        %v4050 = vunpack.c.l.b16 %v3954
        %v4051 = vunpack.c.l.b16 %v3955
        %v4052 = vunpack.c.l.b16 %v3956
        %v4053 = vunpack.c.l.b16 %v3957
        %v4054 = vunpack.c.l.b16 %v3958
        %v4055 = vunpack.c.l.b16 %v3959
        %v4056 = vunpack.c.l.b16 %v3960
        %v4057 = vunpack.c.l.b16 %v3961
        %v4058 = vunpack.c.l.b16 %v3962
        %v4059 = vpack.c.b16 %v4044, %v4043
        %v4060 = vpack.c.b16 %v4046, %v4045
        %v4061 = vpack.c.b16 %v4048, %v4047
        %v4062 = vpack.c.b16 %v4050, %v4049
        %v4063 = vpack.c.b16 %v4052, %v4051
        %v4064 = vpack.c.b16 %v4054, %v4053
        %v4065 = vpack.c.b16 %v4056, %v4055
        %v4066 = vpack.c.b16 %v4058, %v4057
        %4075 = vmatprep.subr.bf16.mxu0 0
        %4076 = vmatpush1.bf16.msra.mxu0 %v4059
        %4077 = vmatprep.subr.bf16.mxu0 0
        %4078 = vmatpush1.bf16.msra.mxu0 %v4060
        %4079 = vmatprep.subr.bf16.mxu0 0
        %4080 = vmatpush1.bf16.msra.mxu0 %v4061
        %4081 = vmatprep.subr.bf16.mxu0 0
        %4082 = vmatpush1.bf16.msra.mxu0 %v4062
        %4083 = vmatprep.subr.bf16.mxu0 0
        %4084 = vmatpush1.bf16.msra.mxu0 %v4063
        %4085 = vmatprep.subr.bf16.mxu0 0
        %4086 = vmatpush1.bf16.msra.mxu0 %v4064
        %4087 = vmatprep.subr.bf16.mxu0 0
        %4088 = vmatpush1.bf16.msra.mxu0 %v4065
        %4089 = vmatprep.subr.bf16.mxu0 0
        %4090 = vmatpush1.bf16.msra.mxu0 %v4066
        %4091 = vmatprep.subr.bf16.mxu0 0
        %4092 = vmatpush1.bf16.msra.mxu0 0
        %4093 = vmatprep.subr.bf16.mxu0 0
        %4094 = vmatpush1.bf16.msra.mxu0 0
        %4095 = vmatprep.subr.bf16.mxu0 0
        %4096 = vmatpush1.bf16.msra.mxu0 0
        %4097 = vmatprep.subr.bf16.mxu0 0
        %4098 = vmatpush1.bf16.msra.mxu0 0
        %4099 = vmatprep.subr.bf16.mxu0 0
        %4100 = vmatpush1.bf16.msra.mxu0 0
        %4101 = vmatprep.subr.bf16.mxu0 0
        %4102 = vmatpush1.bf16.msra.mxu0 0
        %4103 = vmatprep.subr.bf16.mxu0 0
        %4104 = vmatpush1.bf16.msra.mxu0 0
        %4105 = vmatprep.subr.bf16.mxu0 0
        %4106 = vmatpush1.bf16.msra.mxu0 0
        %4107 = vmatprep.mubr.bf16.mxu0 0
        %4108 = vmatmul.mubr.bf16.gmra.mrb[0].mxu0 %v3995
        %v4109 = vpop.f32.mrb[0].mxu0
        %v4110 = vadd.f32 0.0, %v4109
        %v4111 = vpop.f32.mrb[0].mxu0
        %v4112 = vpop.f32.mrb[0].mxu0
        %v4113 = vadd.f32 0.0, %v4112
        %v4114 = vpop.f32.mrb[0].mxu0
        %4115 = vmatprep.mubr.bf16.mxu0 0
        %4116 = vmatmul.mubr.bf16.gmra.mrb[0].mxu0 %v3996
        %v4117 = vpop.f32.mrb[0].mxu0
        %v4118 = vadd.f32 0.0, %v4117
        %v4119 = vpop.f32.mrb[0].mxu0
        %v4120 = vpop.f32.mrb[0].mxu0
        %v4121 = vadd.f32 0.0, %v4120
        %v4122 = vpop.f32.mrb[0].mxu0
        %4123 = vmatprep.mubr.bf16.mxu0 0
        %4124 = vmatmul.mubr.bf16.gmra.mrb[0].mxu0 %v3997
        %v4125 = vpop.f32.mrb[0].mxu0
        %v4126 = vadd.f32 0.0, %v4125
        %v4127 = vpop.f32.mrb[0].mxu0
        %v4128 = vpop.f32.mrb[0].mxu0
        %v4129 = vadd.f32 0.0, %v4128
        %v4130 = vpop.f32.mrb[0].mxu0
        %4131 = vmatprep.mubr.bf16.mxu0 0
        %4132 = vmatmul.mubr.bf16.gmra.mrb[0].mxu0 %v3998
        %v4133 = vpop.f32.mrb[0].mxu0
        %v4134 = vadd.f32 0.0, %v4133
        %v4135 = vpop.f32.mrb[0].mxu0
        %v4136 = vpop.f32.mrb[0].mxu0
        %v4137 = vadd.f32 0.0, %v4136
        %v4138 = vpop.f32.mrb[0].mxu0
        %4139 = vmatprep.mubr.bf16.mxu0 0
        %4140 = vmatmul.mubr.bf16.gmra.mrb[0].mxu0 %v3999
        %v4141 = vpop.f32.mrb[0].mxu0
        %v4142 = vadd.f32 0.0, %v4141
        %v4143 = vpop.f32.mrb[0].mxu0
        %v4144 = vpop.f32.mrb[0].mxu0
        %v4145 = vadd.f32 0.0, %v4144
        %v4146 = vpop.f32.mrb[0].mxu0
        %4147 = vmatprep.mubr.bf16.mxu0 0
        %4148 = vmatmul.mubr.bf16.gmra.mrb[0].mxu0 %v4000
        %v4149 = vpop.f32.mrb[0].mxu0
        %v4150 = vadd.f32 0.0, %v4149
        %v4151 = vpop.f32.mrb[0].mxu0
        %v4152 = vpop.f32.mrb[0].mxu0
        %v4153 = vadd.f32 0.0, %v4152
        %v4154 = vpop.f32.mrb[0].mxu0
        %4155 = vmatprep.mubr.bf16.mxu0 0
        %4156 = vmatmul.mubr.bf16.gmra.mrb[0].mxu0 %v4001
        %v4157 = vpop.f32.mrb[0].mxu0
        %v4158 = vadd.f32 0.0, %v4157
        %v4159 = vpop.f32.mrb[0].mxu0
        %v4160 = vpop.f32.mrb[0].mxu0
        %v4161 = vadd.f32 0.0, %v4160
        %v4162 = vpop.f32.mrb[0].mxu0
        %4163 = vmatprep.mubr.bf16.mxu0 0
        %4164 = vmatmul.mubr.bf16.gmra.mrb[0].mxu0 %v4002
        %v4165 = vpop.f32.mrb[0].mxu0
        %v4166 = vadd.f32 0.0, %v4165
        %v4167 = vpop.f32.mrb[0].mxu0
        %v4168 = vpop.f32.mrb[0].mxu0
        %v4169 = vadd.f32 0.0, %v4168
        %v4170 = vpop.f32.mrb[0].mxu0
        %4171 = vmatprep.mubr.bf16.mxu0 0
        %4172 = vmatmul.mubr.bf16.gmra.mrb[0].mxu0 %v4003
        %v4173 = vpop.f32.mrb[0].mxu0
        %v4174 = vadd.f32 0.0, %v4173
        %v4175 = vpop.f32.mrb[0].mxu0
        %v4176 = vpop.f32.mrb[0].mxu0
        %v4177 = vadd.f32 0.0, %v4176
        %v4178 = vpop.f32.mrb[0].mxu0
        %4179 = vmatprep.mubr.bf16.mxu0 0
        %4180 = vmatmul.mubr.bf16.gmra.mrb[0].mxu0 %v4004
        %v4181 = vpop.f32.mrb[0].mxu0
        %v4182 = vadd.f32 0.0, %v4181
        %v4183 = vpop.f32.mrb[0].mxu0
        %v4184 = vpop.f32.mrb[0].mxu0
        %v4185 = vadd.f32 0.0, %v4184
        %v4186 = vpop.f32.mrb[0].mxu0
        %4187 = vmatprep.mubr.bf16.mxu0 0
        %4188 = vmatmul.mubr.bf16.gmra.mrb[0].mxu0 %v4005
        %v4189 = vpop.f32.mrb[0].mxu0
        %v4190 = vadd.f32 0.0, %v4189
        %v4191 = vpop.f32.mrb[0].mxu0
        %v4192 = vpop.f32.mrb[0].mxu0
        %v4193 = vadd.f32 0.0, %v4192
        %v4194 = vpop.f32.mrb[0].mxu0
        %4195 = vmatprep.mubr.bf16.mxu0 0
        %4196 = vmatmul.mubr.bf16.gmra.mrb[0].mxu0 %v4006
        %v4197 = vpop.f32.mrb[0].mxu0
        %v4198 = vadd.f32 0.0, %v4197
        %v4199 = vpop.f32.mrb[0].mxu0
        %v4200 = vpop.f32.mrb[0].mxu0
        %v4201 = vadd.f32 0.0, %v4200
        %v4202 = vpop.f32.mrb[0].mxu0
        %4203 = vmatprep.mubr.bf16.mxu0 0
        %4204 = vmatmul.mubr.bf16.gmra.mrb[0].mxu0 %v4007
        %v4205 = vpop.f32.mrb[0].mxu0
        %v4206 = vadd.f32 0.0, %v4205
        %v4207 = vpop.f32.mrb[0].mxu0
        %v4208 = vpop.f32.mrb[0].mxu0
        %v4209 = vadd.f32 0.0, %v4208
        %v4210 = vpop.f32.mrb[0].mxu0
        %4211 = vmatprep.mubr.bf16.mxu0 0
        %4212 = vmatmul.mubr.bf16.gmra.mrb[0].mxu0 %v4008
        %v4213 = vpop.f32.mrb[0].mxu0
        %v4214 = vadd.f32 0.0, %v4213
        %v4215 = vpop.f32.mrb[0].mxu0
        %v4216 = vpop.f32.mrb[0].mxu0
        %v4217 = vadd.f32 0.0, %v4216
        %v4218 = vpop.f32.mrb[0].mxu0
        %4219 = vmatprep.mubr.bf16.mxu0 0
        %4220 = vmatmul.mubr.bf16.gmra.mrb[0].mxu0 %v4009
        %v4221 = vpop.f32.mrb[0].mxu0
        %v4222 = vadd.f32 0.0, %v4221
        %v4223 = vpop.f32.mrb[0].mxu0
        %v4224 = vpop.f32.mrb[0].mxu0
        %v4225 = vadd.f32 0.0, %v4224
        %v4226 = vpop.f32.mrb[0].mxu0
        %4227 = vmatprep.mubr.bf16.mxu0 0
        %4228 = vmatmul.mubr.bf16.gmra.mrb[0].mxu0 %v4010
        %v4229 = vpop.f32.mrb[0].mxu0
        %v4230 = vadd.f32 0.0, %v4229
        %v4231 = vpop.f32.mrb[0].mxu0
        %v4232 = vpop.f32.mrb[0].mxu0
        %v4233 = vadd.f32 0.0, %v4232
        %v4234 = vpop.f32.mrb[0].mxu0
        %4235 = vdwg.mxu0
        %v4236 = vadd.f32 %v3738, %v4110
        %v4237 = vadd.f32 %v3739, %v4113
        %v4238 = vadd.f32 %v3740, %v4118
        %v4239 = vadd.f32 %v3741, %v4121
        %v4240 = vadd.f32 %v3742, %v4126
        %v4241 = vadd.f32 %v3743, %v4129
        %v4242 = vadd.f32 %v3744, %v4134
        %v4243 = vadd.f32 %v3745, %v4137
        %v4244 = vadd.f32 %v3746, %v4142
        %v4245 = vadd.f32 %v3747, %v4145
        %v4246 = vadd.f32 %v3748, %v4150
        %v4247 = vadd.f32 %v3749, %v4153
        %v4248 = vadd.f32 %v3750, %v4158
        %v4249 = vadd.f32 %v3751, %v4161
        %v4250 = vadd.f32 %v3752, %v4166
        %v4251 = vadd.f32 %v3753, %v4169
        %v4252 = vadd.f32 %v3754, %v4174
        %v4253 = vadd.f32 %v3755, %v4177
        %v4254 = vadd.f32 %v3756, %v4182
        %v4255 = vadd.f32 %v3757, %v4185
        %v4256 = vadd.f32 %v3758, %v4190
        %v4257 = vadd.f32 %v3759, %v4193
        %v4258 = vadd.f32 %v3760, %v4198
        %v4259 = vadd.f32 %v3761, %v4201
        %v4260 = vadd.f32 %v3762, %v4206
        %v4261 = vadd.f32 %v3763, %v4209
        %v4262 = vadd.f32 %v3764, %v4214
        %v4263 = vadd.f32 %v3765, %v4217
        %v4264 = vadd.f32 %v3766, %v4222
        %v4265 = vadd.f32 %v3767, %v4225
        %v4266 = vadd.f32 %v3768, %v4230
        %v4267 = vadd.f32 %v3769, %v4233
        %s4268 = scalar_lea.vmem [#allocation2], 24
        %v4269 = vld [vmem:[%s4268] sm:$0xf]
        %v4270 = vld [vmem:[%s4268 + $0x4] sm:$0xf]
        %v4271 = vld [vmem:[%s4268 + $0xc] sm:$0xf]
        %v4272 = vld [vmem:[%s4268 + $0x10] sm:$0xf]
        %v4273 = vld [vmem:[%s4268 + $0x18] sm:$0xf]
        %v4274 = vld [vmem:[%s4268 + $0x1c] sm:$0xf]
        %v4275 = vld [vmem:[%s4268 + $0x24] sm:$0xf]
        %v4276 = vld [vmem:[%s4268 + $0x28] sm:$0xf]
        %v4277 = vld [vmem:[%s4268 + $0x30] sm:$0xf]
        %v4278 = vld [vmem:[%s4268 + $0x34] sm:$0xf]
        %v4279 = vld [vmem:[%s4268 + $0x3c] sm:$0xf]
        %v4280 = vld [vmem:[%s4268 + $0x40] sm:$0xf]
        %v4281 = vld [vmem:[%s4268 + $0x48] sm:$0xf]
        %v4282 = vld [vmem:[%s4268 + $0x4c] sm:$0xf]
        %v4283 = vld [vmem:[%s4268 + $0x54] sm:$0xf]
        %v4284 = vld [vmem:[%s4268 + $0x58] sm:$0xf]
        %v4285 = vld [vmem:[%s4268 + $0x60] sm:$0xf]
        %v4286 = vld [vmem:[%s4268 + $0x64] sm:$0xf]
        %v4287 = vld [vmem:[%s4268 + $0x6c] sm:$0xf]
        %v4288 = vld [vmem:[%s4268 + $0x70] sm:$0xf]
        %v4289 = vld [vmem:[%s4268 + $0x78] sm:$0xf]
        %v4290 = vld [vmem:[%s4268 + $0x7c] sm:$0xf]
        %v4291 = vld [vmem:[%s4268 + $0x84] sm:$0xf]
        %v4292 = vld [vmem:[%s4268 + $0x88] sm:$0xf]
        %v4293 = vld [vmem:[%s4268 + $0x90] sm:$0xf]
        %v4294 = vld [vmem:[%s4268 + $0x94] sm:$0xf]
        %v4295 = vld [vmem:[%s4268 + $0x9c] sm:$0xf]
        %v4296 = vld [vmem:[%s4268 + $0xa0] sm:$0xf]
        %v4297 = vld [vmem:[%s4268 + $0xa8] sm:$0xf]
        %v4298 = vld [vmem:[%s4268 + $0xac] sm:$0xf]
        %v4299 = vld [vmem:[%s4268 + $0xb4] sm:$0xf]
        %v4300 = vld [vmem:[%s4268 + $0xb8] sm:$0xf]
        %s4301 = scalar_lea.vmem [#allocation4], 384
        %v4302 = vld [vmem:[%s4301] sm:$0xf]
        %v4303 = vld [vmem:[%s4301 + $0x4] sm:$0xf]
        %v4304 = vld [vmem:[%s4301 + $0x8] sm:$0xf]
        %v4305 = vld [vmem:[%s4301 + $0xc] sm:$0xf]
        %v4306 = vld [vmem:[%s4301 + $0x10] sm:$0xf]
        %v4307 = vld [vmem:[%s4301 + $0x14] sm:$0xf]
        %v4308 = vld [vmem:[%s4301 + $0x18] sm:$0xf]
        %v4309 = vld [vmem:[%s4301 + $0x1c] sm:$0xf]
        %v4310 = vld [vmem:[%s4301 + $0x20] sm:$0xf]
        %v4311 = vld [vmem:[%s4301 + $0x24] sm:$0xf]
        %v4312 = vld [vmem:[%s4301 + $0x28] sm:$0xf]
        %v4313 = vld [vmem:[%s4301 + $0x2c] sm:$0xf]
        %v4314 = vld [vmem:[%s4301 + $0x30] sm:$0xf]
        %v4315 = vld [vmem:[%s4301 + $0x34] sm:$0xf]
        %v4316 = vld [vmem:[%s4301 + $0x38] sm:$0xf]
        %v4317 = vld [vmem:[%s4301 + $0x3c] sm:$0xf]
        %v4350 = vunpack.c.l.b16 %v4269
        %v4351 = vunpack.c.l.b16 %v4270
        %v4352 = vunpack.c.l.b16 %v4271
        %v4353 = vunpack.c.l.b16 %v4272
        %v4354 = vunpack.c.l.b16 %v4273
        %v4355 = vunpack.c.l.b16 %v4274
        %v4356 = vunpack.c.l.b16 %v4275
        %v4357 = vunpack.c.l.b16 %v4276
        %v4358 = vunpack.c.l.b16 %v4277
        %v4359 = vunpack.c.l.b16 %v4278
        %v4360 = vunpack.c.l.b16 %v4279
        %v4361 = vunpack.c.l.b16 %v4280
        %v4362 = vunpack.c.l.b16 %v4281
        %v4363 = vunpack.c.l.b16 %v4282
        %v4364 = vunpack.c.l.b16 %v4283
        %v4365 = vunpack.c.l.b16 %v4284
        %v4366 = vunpack.c.l.b16 %v4285
        %v4367 = vunpack.c.l.b16 %v4286
        %v4368 = vunpack.c.l.b16 %v4287
        %v4369 = vunpack.c.l.b16 %v4288
        %v4370 = vunpack.c.l.b16 %v4289
        %v4371 = vunpack.c.l.b16 %v4290
        %v4372 = vunpack.c.l.b16 %v4291
        %v4373 = vunpack.c.l.b16 %v4292
        %v4374 = vunpack.c.l.b16 %v4293
        %v4375 = vunpack.c.l.b16 %v4294
        %v4376 = vunpack.c.l.b16 %v4295
        %v4377 = vunpack.c.l.b16 %v4296
        %v4378 = vunpack.c.l.b16 %v4297
        %v4379 = vunpack.c.l.b16 %v4298
        %v4380 = vunpack.c.l.b16 %v4299
        %v4381 = vunpack.c.l.b16 %v4300
        %v4382 = vpack.c.b16 %v4351, %v4350
        %v4383 = vpack.c.b16 %v4353, %v4352
        %v4384 = vpack.c.b16 %v4355, %v4354
        %v4385 = vpack.c.b16 %v4357, %v4356
        %v4386 = vpack.c.b16 %v4359, %v4358
        %v4387 = vpack.c.b16 %v4361, %v4360
        %v4388 = vpack.c.b16 %v4363, %v4362
        %v4389 = vpack.c.b16 %v4365, %v4364
        %v4390 = vpack.c.b16 %v4367, %v4366
        %v4391 = vpack.c.b16 %v4369, %v4368
        %v4392 = vpack.c.b16 %v4371, %v4370
        %v4393 = vpack.c.b16 %v4373, %v4372
        %v4394 = vpack.c.b16 %v4375, %v4374
        %v4395 = vpack.c.b16 %v4377, %v4376
        %v4396 = vpack.c.b16 %v4379, %v4378
        %v4397 = vpack.c.b16 %v4381, %v4380
        %v4430 = vunpack.c.l.b16 %v4302
        %v4431 = vunpack.c.l.b16 %v4303
        %v4432 = vunpack.c.l.b16 %v4304
        %v4433 = vunpack.c.l.b16 %v4305
        %v4434 = vunpack.c.l.b16 %v4306
        %v4435 = vunpack.c.l.b16 %v4307
        %v4436 = vunpack.c.l.b16 %v4308
        %v4437 = vunpack.c.l.b16 %v4309
        %v4438 = vunpack.c.l.b16 %v4310
        %v4439 = vunpack.c.l.b16 %v4311
        %v4440 = vunpack.c.l.b16 %v4312
        %v4441 = vunpack.c.l.b16 %v4313
        %v4442 = vunpack.c.l.b16 %v4314
        %v4443 = vunpack.c.l.b16 %v4315
        %v4444 = vunpack.c.l.b16 %v4316
        %v4445 = vunpack.c.l.b16 %v4317
        %v4446 = vpack.c.b16 %v4431, %v4430
        %v4447 = vpack.c.b16 %v4433, %v4432
        %v4448 = vpack.c.b16 %v4435, %v4434
        %v4449 = vpack.c.b16 %v4437, %v4436
        %v4450 = vpack.c.b16 %v4439, %v4438
        %v4451 = vpack.c.b16 %v4441, %v4440
        %v4452 = vpack.c.b16 %v4443, %v4442
        %v4453 = vpack.c.b16 %v4445, %v4444
        %4462 = vmatprep.subr.bf16.mxu0 0
        %4463 = vmatpush1.bf16.msra.mxu0 %v4446
        %4464 = vmatprep.subr.bf16.mxu0 0
        %4465 = vmatpush1.bf16.msra.mxu0 %v4447
        %4466 = vmatprep.subr.bf16.mxu0 0
        %4467 = vmatpush1.bf16.msra.mxu0 %v4448
        %4468 = vmatprep.subr.bf16.mxu0 0
        %4469 = vmatpush1.bf16.msra.mxu0 %v4449
        %4470 = vmatprep.subr.bf16.mxu0 0
        %4471 = vmatpush1.bf16.msra.mxu0 %v4450
        %4472 = vmatprep.subr.bf16.mxu0 0
        %4473 = vmatpush1.bf16.msra.mxu0 %v4451
        %4474 = vmatprep.subr.bf16.mxu0 0
        %4475 = vmatpush1.bf16.msra.mxu0 %v4452
        %4476 = vmatprep.subr.bf16.mxu0 0
        %4477 = vmatpush1.bf16.msra.mxu0 %v4453
        %4478 = vmatprep.subr.bf16.mxu0 0
        %4479 = vmatpush1.bf16.msra.mxu0 0
        %4480 = vmatprep.subr.bf16.mxu0 0
        %4481 = vmatpush1.bf16.msra.mxu0 0
        %4482 = vmatprep.subr.bf16.mxu0 0
        %4483 = vmatpush1.bf16.msra.mxu0 0
        %4484 = vmatprep.subr.bf16.mxu0 0
        %4485 = vmatpush1.bf16.msra.mxu0 0
        %4486 = vmatprep.subr.bf16.mxu0 0
        %4487 = vmatpush1.bf16.msra.mxu0 0
        %4488 = vmatprep.subr.bf16.mxu0 0
        %4489 = vmatpush1.bf16.msra.mxu0 0
        %4490 = vmatprep.subr.bf16.mxu0 0
        %4491 = vmatpush1.bf16.msra.mxu0 0
        %4492 = vmatprep.subr.bf16.mxu0 0
        %4493 = vmatpush1.bf16.msra.mxu0 0
        %4494 = vmatprep.mubr.bf16.mxu0 0
        %4495 = vmatmul.mubr.bf16.gmra.mrb[0].mxu0 %v4382
        %v4496 = vpop.f32.mrb[0].mxu0
        %v4497 = vadd.f32 0.0, %v4496
        %v4498 = vpop.f32.mrb[0].mxu0
        %v4499 = vpop.f32.mrb[0].mxu0
        %v4500 = vadd.f32 0.0, %v4499
        %v4501 = vpop.f32.mrb[0].mxu0
        %4502 = vmatprep.mubr.bf16.mxu0 0
        %4503 = vmatmul.mubr.bf16.gmra.mrb[0].mxu0 %v4383
        %v4504 = vpop.f32.mrb[0].mxu0
        %v4505 = vadd.f32 0.0, %v4504
        %v4506 = vpop.f32.mrb[0].mxu0
        %v4507 = vpop.f32.mrb[0].mxu0
        %v4508 = vadd.f32 0.0, %v4507
        %v4509 = vpop.f32.mrb[0].mxu0
        %4510 = vmatprep.mubr.bf16.mxu0 0
        %4511 = vmatmul.mubr.bf16.gmra.mrb[0].mxu0 %v4384
        %v4512 = vpop.f32.mrb[0].mxu0
        %v4513 = vadd.f32 0.0, %v4512
        %v4514 = vpop.f32.mrb[0].mxu0
        %v4515 = vpop.f32.mrb[0].mxu0
        %v4516 = vadd.f32 0.0, %v4515
        %v4517 = vpop.f32.mrb[0].mxu0
        %4518 = vmatprep.mubr.bf16.mxu0 0
        %4519 = vmatmul.mubr.bf16.gmra.mrb[0].mxu0 %v4385
        %v4520 = vpop.f32.mrb[0].mxu0
        %v4521 = vadd.f32 0.0, %v4520
        %v4522 = vpop.f32.mrb[0].mxu0
        %v4523 = vpop.f32.mrb[0].mxu0
        %v4524 = vadd.f32 0.0, %v4523
        %v4525 = vpop.f32.mrb[0].mxu0
        %4526 = vmatprep.mubr.bf16.mxu0 0
        %4527 = vmatmul.mubr.bf16.gmra.mrb[0].mxu0 %v4386
        %v4528 = vpop.f32.mrb[0].mxu0
        %v4529 = vadd.f32 0.0, %v4528
        %v4530 = vpop.f32.mrb[0].mxu0
        %v4531 = vpop.f32.mrb[0].mxu0
        %v4532 = vadd.f32 0.0, %v4531
        %v4533 = vpop.f32.mrb[0].mxu0
        %4534 = vmatprep.mubr.bf16.mxu0 0
        %4535 = vmatmul.mubr.bf16.gmra.mrb[0].mxu0 %v4387
        %v4536 = vpop.f32.mrb[0].mxu0
        %v4537 = vadd.f32 0.0, %v4536
        %v4538 = vpop.f32.mrb[0].mxu0
        %v4539 = vpop.f32.mrb[0].mxu0
        %v4540 = vadd.f32 0.0, %v4539
        %v4541 = vpop.f32.mrb[0].mxu0
        %4542 = vmatprep.mubr.bf16.mxu0 0
        %4543 = vmatmul.mubr.bf16.gmra.mrb[0].mxu0 %v4388
        %v4544 = vpop.f32.mrb[0].mxu0
        %v4545 = vadd.f32 0.0, %v4544
        %v4546 = vpop.f32.mrb[0].mxu0
        %v4547 = vpop.f32.mrb[0].mxu0
        %v4548 = vadd.f32 0.0, %v4547
        %v4549 = vpop.f32.mrb[0].mxu0
        %4550 = vmatprep.mubr.bf16.mxu0 0
        %4551 = vmatmul.mubr.bf16.gmra.mrb[0].mxu0 %v4389
        %v4552 = vpop.f32.mrb[0].mxu0
        %v4553 = vadd.f32 0.0, %v4552
        %v4554 = vpop.f32.mrb[0].mxu0
        %v4555 = vpop.f32.mrb[0].mxu0
        %v4556 = vadd.f32 0.0, %v4555
        %v4557 = vpop.f32.mrb[0].mxu0
        %4558 = vmatprep.mubr.bf16.mxu0 0
        %4559 = vmatmul.mubr.bf16.gmra.mrb[0].mxu0 %v4390
        %v4560 = vpop.f32.mrb[0].mxu0
        %v4561 = vadd.f32 0.0, %v4560
        %v4562 = vpop.f32.mrb[0].mxu0
        %v4563 = vpop.f32.mrb[0].mxu0
        %v4564 = vadd.f32 0.0, %v4563
        %v4565 = vpop.f32.mrb[0].mxu0
        %4566 = vmatprep.mubr.bf16.mxu0 0
        %4567 = vmatmul.mubr.bf16.gmra.mrb[0].mxu0 %v4391
        %v4568 = vpop.f32.mrb[0].mxu0
        %v4569 = vadd.f32 0.0, %v4568
        %v4570 = vpop.f32.mrb[0].mxu0
        %v4571 = vpop.f32.mrb[0].mxu0
        %v4572 = vadd.f32 0.0, %v4571
        %v4573 = vpop.f32.mrb[0].mxu0
        %4574 = vmatprep.mubr.bf16.mxu0 0
        %4575 = vmatmul.mubr.bf16.gmra.mrb[0].mxu0 %v4392
        %v4576 = vpop.f32.mrb[0].mxu0
        %v4577 = vadd.f32 0.0, %v4576
        %v4578 = vpop.f32.mrb[0].mxu0
        %v4579 = vpop.f32.mrb[0].mxu0
        %v4580 = vadd.f32 0.0, %v4579
        %v4581 = vpop.f32.mrb[0].mxu0
        %4582 = vmatprep.mubr.bf16.mxu0 0
        %4583 = vmatmul.mubr.bf16.gmra.mrb[0].mxu0 %v4393
        %v4584 = vpop.f32.mrb[0].mxu0
        %v4585 = vadd.f32 0.0, %v4584
        %v4586 = vpop.f32.mrb[0].mxu0
        %v4587 = vpop.f32.mrb[0].mxu0
        %v4588 = vadd.f32 0.0, %v4587
        %v4589 = vpop.f32.mrb[0].mxu0
        %4590 = vmatprep.mubr.bf16.mxu0 0
        %4591 = vmatmul.mubr.bf16.gmra.mrb[0].mxu0 %v4394
        %v4592 = vpop.f32.mrb[0].mxu0
        %v4593 = vadd.f32 0.0, %v4592
        %v4594 = vpop.f32.mrb[0].mxu0
        %v4595 = vpop.f32.mrb[0].mxu0
        %v4596 = vadd.f32 0.0, %v4595
        %v4597 = vpop.f32.mrb[0].mxu0
        %4598 = vmatprep.mubr.bf16.mxu0 0
        %4599 = vmatmul.mubr.bf16.gmra.mrb[0].mxu0 %v4395
        %v4600 = vpop.f32.mrb[0].mxu0
        %v4601 = vadd.f32 0.0, %v4600
        %v4602 = vpop.f32.mrb[0].mxu0
        %v4603 = vpop.f32.mrb[0].mxu0
        %v4604 = vadd.f32 0.0, %v4603
        %v4605 = vpop.f32.mrb[0].mxu0
        %4606 = vmatprep.mubr.bf16.mxu0 0
        %4607 = vmatmul.mubr.bf16.gmra.mrb[0].mxu0 %v4396
        %v4608 = vpop.f32.mrb[0].mxu0
        %v4609 = vadd.f32 0.0, %v4608
        %v4610 = vpop.f32.mrb[0].mxu0
        %v4611 = vpop.f32.mrb[0].mxu0
        %v4612 = vadd.f32 0.0, %v4611
        %v4613 = vpop.f32.mrb[0].mxu0
        %4614 = vmatprep.mubr.bf16.mxu0 0
        %4615 = vmatmul.mubr.bf16.gmra.mrb[0].mxu0 %v4397
        %v4616 = vpop.f32.mrb[0].mxu0
        %v4617 = vadd.f32 0.0, %v4616
        %v4618 = vpop.f32.mrb[0].mxu0
        %v4619 = vpop.f32.mrb[0].mxu0
        %v4620 = vadd.f32 0.0, %v4619
        %v4621 = vpop.f32.mrb[0].mxu0
        %4622 = vdwg.mxu0
        %v4623 = vadd.f32 %v4236, %v4497
        %v4624 = vadd.f32 %v4237, %v4500
        %v4625 = vadd.f32 %v4238, %v4505
        %v4626 = vadd.f32 %v4239, %v4508
        %v4627 = vadd.f32 %v4240, %v4513
        %v4628 = vadd.f32 %v4241, %v4516
        %v4629 = vadd.f32 %v4242, %v4521
        %v4630 = vadd.f32 %v4243, %v4524
        %v4631 = vadd.f32 %v4244, %v4529
        %v4632 = vadd.f32 %v4245, %v4532
        %v4633 = vadd.f32 %v4246, %v4537
        %v4634 = vadd.f32 %v4247, %v4540
        %v4635 = vadd.f32 %v4248, %v4545
        %v4636 = vadd.f32 %v4249, %v4548
        %v4637 = vadd.f32 %v4250, %v4553
        %v4638 = vadd.f32 %v4251, %v4556
        %v4639 = vadd.f32 %v4252, %v4561
        %v4640 = vadd.f32 %v4253, %v4564
        %v4641 = vadd.f32 %v4254, %v4569
        %v4642 = vadd.f32 %v4255, %v4572
        %v4643 = vadd.f32 %v4256, %v4577
        %v4644 = vadd.f32 %v4257, %v4580
        %v4645 = vadd.f32 %v4258, %v4585
        %v4646 = vadd.f32 %v4259, %v4588
        %v4647 = vadd.f32 %v4260, %v4593
        %v4648 = vadd.f32 %v4261, %v4596
        %v4649 = vadd.f32 %v4262, %v4601
        %v4650 = vadd.f32 %v4263, %v4604
        %v4651 = vadd.f32 %v4264, %v4609
        %v4652 = vadd.f32 %v4265, %v4612
        %v4653 = vadd.f32 %v4266, %v4617
        %v4654 = vadd.f32 %v4267, %v4620
        %v4655 = vld [vmem:[%s4268] sm:$0xf]
        %v4656 = vld [vmem:[%s4268 + $0x4] sm:$0xf]
        %v4657 = vld [vmem:[%s4268 + $0x8] sm:$0x1]
        %v4658 = vld [vmem:[%s4268 + $0xc] sm:$0xf]
        %v4659 = vld [vmem:[%s4268 + $0x10] sm:$0xf]
        %v4660 = vld [vmem:[%s4268 + $0x14] sm:$0x1]
        %v4661 = vld [vmem:[%s4268 + $0x18] sm:$0xf]
        %v4662 = vld [vmem:[%s4268 + $0x1c] sm:$0xf]
        %v4663 = vld [vmem:[%s4268 + $0x20] sm:$0x1]
        %v4664 = vld [vmem:[%s4268 + $0x24] sm:$0xf]
        %v4665 = vld [vmem:[%s4268 + $0x28] sm:$0xf]
        %v4666 = vld [vmem:[%s4268 + $0x2c] sm:$0x1]
        %v4667 = vld [vmem:[%s4268 + $0x30] sm:$0xf]
        %v4668 = vld [vmem:[%s4268 + $0x34] sm:$0xf]
        %v4669 = vld [vmem:[%s4268 + $0x38] sm:$0x1]
        %v4670 = vld [vmem:[%s4268 + $0x3c] sm:$0xf]
        %v4671 = vld [vmem:[%s4268 + $0x40] sm:$0xf]
        %v4672 = vld [vmem:[%s4268 + $0x44] sm:$0x1]
        %v4673 = vld [vmem:[%s4268 + $0x48] sm:$0xf]
        %v4674 = vld [vmem:[%s4268 + $0x4c] sm:$0xf]
        %v4675 = vld [vmem:[%s4268 + $0x50] sm:$0x1]
        %v4676 = vld [vmem:[%s4268 + $0x54] sm:$0xf]
        %v4677 = vld [vmem:[%s4268 + $0x58] sm:$0xf]
        %v4678 = vld [vmem:[%s4268 + $0x5c] sm:$0x1]
        %v4679 = vld [vmem:[%s4268 + $0x60] sm:$0xf]
        %v4680 = vld [vmem:[%s4268 + $0x64] sm:$0xf]
        %v4681 = vld [vmem:[%s4268 + $0x68] sm:$0x1]
        %v4682 = vld [vmem:[%s4268 + $0x6c] sm:$0xf]
        %v4683 = vld [vmem:[%s4268 + $0x70] sm:$0xf]
        %v4684 = vld [vmem:[%s4268 + $0x74] sm:$0x1]
        %v4685 = vld [vmem:[%s4268 + $0x78] sm:$0xf]
        %v4686 = vld [vmem:[%s4268 + $0x7c] sm:$0xf]
        %v4687 = vld [vmem:[%s4268 + $0x80] sm:$0x1]
        %v4688 = vld [vmem:[%s4268 + $0x84] sm:$0xf]
        %v4689 = vld [vmem:[%s4268 + $0x88] sm:$0xf]
        %v4690 = vld [vmem:[%s4268 + $0x8c] sm:$0x1]
        %v4691 = vld [vmem:[%s4268 + $0x90] sm:$0xf]
        %v4692 = vld [vmem:[%s4268 + $0x94] sm:$0xf]
        %v4693 = vld [vmem:[%s4268 + $0x98] sm:$0x1]
        %v4694 = vld [vmem:[%s4268 + $0x9c] sm:$0xf]
        %v4695 = vld [vmem:[%s4268 + $0xa0] sm:$0xf]
        %v4696 = vld [vmem:[%s4268 + $0xa4] sm:$0x1]
        %v4697 = vld [vmem:[%s4268 + $0xa8] sm:$0xf]
        %v4698 = vld [vmem:[%s4268 + $0xac] sm:$0xf]
        %v4699 = vld [vmem:[%s4268 + $0xb0] sm:$0x1]
        %v4700 = vld [vmem:[%s4268 + $0xb4] sm:$0xf]
        %v4701 = vld [vmem:[%s4268 + $0xb8] sm:$0xf]
        %v4702 = vld [vmem:[%s4268 + $0xbc] sm:$0x1]
        %v4704 = vshrl.u32 %v4655, 16
        %v4706 = vrot.slane %v4704, 4
        %v4707 = vshll.u32 %v4655, 16
        %v4709 = vrot.slane %v4707, 5
        %v4710 = vor.u32 %v4706, %v4709
        %v4711 = vrot.slane %v4710, 4
        %v4713 = vshll.u32 %v4656, 16
        %v4715 = vrot.slane %v4713, 5
        %v4716 = vsel %vm1165, %v4711, %v4715
        %v4717 = vshrl.u32 %v4656, 16
        %v4719 = vrot.slane %v4717, 4
        %v4720 = vor.u32 %v4719, %v4715
        %v4721 = vrot.slane %v4720, 4
        %v4723 = vshll.u32 %v4657, 16
        %v4725 = vrot.slane %v4723, 5
        %v4726 = vsel %vm1165, %v4721, %v4725
        %v4728 = vshrl.u32 %v4658, 16
        %v4730 = vrot.slane %v4728, 4
        %v4731 = vshll.u32 %v4658, 16
        %v4733 = vrot.slane %v4731, 5
        %v4734 = vor.u32 %v4730, %v4733
        %v4735 = vrot.slane %v4734, 4
        %v4737 = vshll.u32 %v4659, 16
        %v4739 = vrot.slane %v4737, 5
        %v4740 = vsel %vm1165, %v4735, %v4739
        %v4741 = vshrl.u32 %v4659, 16
        %v4743 = vrot.slane %v4741, 4
        %v4744 = vor.u32 %v4743, %v4739
        %v4745 = vrot.slane %v4744, 4
        %v4747 = vshll.u32 %v4660, 16
        %v4749 = vrot.slane %v4747, 5
        %v4750 = vsel %vm1165, %v4745, %v4749
        %v4752 = vshrl.u32 %v4661, 16
        %v4754 = vrot.slane %v4752, 4
        %v4755 = vshll.u32 %v4661, 16
        %v4757 = vrot.slane %v4755, 5
        %v4758 = vor.u32 %v4754, %v4757
        %v4759 = vrot.slane %v4758, 4
        %v4761 = vshll.u32 %v4662, 16
        %v4763 = vrot.slane %v4761, 5
        %v4764 = vsel %vm1165, %v4759, %v4763
        %v4765 = vshrl.u32 %v4662, 16
        %v4767 = vrot.slane %v4765, 4
        %v4768 = vor.u32 %v4767, %v4763
        %v4769 = vrot.slane %v4768, 4
        %v4771 = vshll.u32 %v4663, 16
        %v4773 = vrot.slane %v4771, 5
        %v4774 = vsel %vm1165, %v4769, %v4773
        %v4776 = vshrl.u32 %v4664, 16
        %v4778 = vrot.slane %v4776, 4
        %v4779 = vshll.u32 %v4664, 16
        %v4781 = vrot.slane %v4779, 5
        %v4782 = vor.u32 %v4778, %v4781
        %v4783 = vrot.slane %v4782, 4
        %v4785 = vshll.u32 %v4665, 16
        %v4787 = vrot.slane %v4785, 5
        %v4788 = vsel %vm1165, %v4783, %v4787
        %v4789 = vshrl.u32 %v4665, 16
        %v4791 = vrot.slane %v4789, 4
        %v4792 = vor.u32 %v4791, %v4787
        %v4793 = vrot.slane %v4792, 4
        %v4795 = vshll.u32 %v4666, 16
        %v4797 = vrot.slane %v4795, 5
        %v4798 = vsel %vm1165, %v4793, %v4797
        %v4800 = vshrl.u32 %v4667, 16
        %v4802 = vrot.slane %v4800, 4
        %v4803 = vshll.u32 %v4667, 16
        %v4805 = vrot.slane %v4803, 5
        %v4806 = vor.u32 %v4802, %v4805
        %v4807 = vrot.slane %v4806, 4
        %v4809 = vshll.u32 %v4668, 16
        %v4811 = vrot.slane %v4809, 5
        %v4812 = vsel %vm1165, %v4807, %v4811
        %v4813 = vshrl.u32 %v4668, 16
        %v4815 = vrot.slane %v4813, 4
        %v4816 = vor.u32 %v4815, %v4811
        %v4817 = vrot.slane %v4816, 4
        %v4819 = vshll.u32 %v4669, 16
        %v4821 = vrot.slane %v4819, 5
        %v4822 = vsel %vm1165, %v4817, %v4821
        %v4824 = vshrl.u32 %v4670, 16
        %v4826 = vrot.slane %v4824, 4
        %v4827 = vshll.u32 %v4670, 16
        %v4829 = vrot.slane %v4827, 5
        %v4830 = vor.u32 %v4826, %v4829
        %v4831 = vrot.slane %v4830, 4
        %v4833 = vshll.u32 %v4671, 16
        %v4835 = vrot.slane %v4833, 5
        %v4836 = vsel %vm1165, %v4831, %v4835
        %v4837 = vshrl.u32 %v4671, 16
        %v4839 = vrot.slane %v4837, 4
        %v4840 = vor.u32 %v4839, %v4835
        %v4841 = vrot.slane %v4840, 4
        %v4843 = vshll.u32 %v4672, 16
        %v4845 = vrot.slane %v4843, 5
        %v4846 = vsel %vm1165, %v4841, %v4845
        %v4848 = vshrl.u32 %v4673, 16
        %v4850 = vrot.slane %v4848, 4
        %v4851 = vshll.u32 %v4673, 16
        %v4853 = vrot.slane %v4851, 5
        %v4854 = vor.u32 %v4850, %v4853
        %v4855 = vrot.slane %v4854, 4
        %v4857 = vshll.u32 %v4674, 16
        %v4859 = vrot.slane %v4857, 5
        %v4860 = vsel %vm1165, %v4855, %v4859
        %v4861 = vshrl.u32 %v4674, 16
        %v4863 = vrot.slane %v4861, 4
        %v4864 = vor.u32 %v4863, %v4859
        %v4865 = vrot.slane %v4864, 4
        %v4867 = vshll.u32 %v4675, 16
        %v4869 = vrot.slane %v4867, 5
        %v4870 = vsel %vm1165, %v4865, %v4869
        %v4872 = vshrl.u32 %v4676, 16
        %v4874 = vrot.slane %v4872, 4
        %v4875 = vshll.u32 %v4676, 16
        %v4877 = vrot.slane %v4875, 5
        %v4878 = vor.u32 %v4874, %v4877
        %v4879 = vrot.slane %v4878, 4
        %v4881 = vshll.u32 %v4677, 16
        %v4883 = vrot.slane %v4881, 5
        %v4884 = vsel %vm1165, %v4879, %v4883
        %v4885 = vshrl.u32 %v4677, 16
        %v4887 = vrot.slane %v4885, 4
        %v4888 = vor.u32 %v4887, %v4883
        %v4889 = vrot.slane %v4888, 4
        %v4891 = vshll.u32 %v4678, 16
        %v4893 = vrot.slane %v4891, 5
        %v4894 = vsel %vm1165, %v4889, %v4893
        %v4896 = vshrl.u32 %v4679, 16
        %v4898 = vrot.slane %v4896, 4
        %v4899 = vshll.u32 %v4679, 16
        %v4901 = vrot.slane %v4899, 5
        %v4902 = vor.u32 %v4898, %v4901
        %v4903 = vrot.slane %v4902, 4
        %v4905 = vshll.u32 %v4680, 16
        %v4907 = vrot.slane %v4905, 5
        %v4908 = vsel %vm1165, %v4903, %v4907
        %v4909 = vshrl.u32 %v4680, 16
        %v4911 = vrot.slane %v4909, 4
        %v4912 = vor.u32 %v4911, %v4907
        %v4913 = vrot.slane %v4912, 4
        %v4915 = vshll.u32 %v4681, 16
        %v4917 = vrot.slane %v4915, 5
        %v4918 = vsel %vm1165, %v4913, %v4917
        %v4920 = vshrl.u32 %v4682, 16
        %v4922 = vrot.slane %v4920, 4
        %v4923 = vshll.u32 %v4682, 16
        %v4925 = vrot.slane %v4923, 5
        %v4926 = vor.u32 %v4922, %v4925
        %v4927 = vrot.slane %v4926, 4
        %v4929 = vshll.u32 %v4683, 16
        %v4931 = vrot.slane %v4929, 5
        %v4932 = vsel %vm1165, %v4927, %v4931
        %v4933 = vshrl.u32 %v4683, 16
        %v4935 = vrot.slane %v4933, 4
        %v4936 = vor.u32 %v4935, %v4931
        %v4937 = vrot.slane %v4936, 4
        %v4939 = vshll.u32 %v4684, 16
        %v4941 = vrot.slane %v4939, 5
        %v4942 = vsel %vm1165, %v4937, %v4941
        %v4944 = vshrl.u32 %v4685, 16
        %v4946 = vrot.slane %v4944, 4
        %v4947 = vshll.u32 %v4685, 16
        %v4949 = vrot.slane %v4947, 5
        %v4950 = vor.u32 %v4946, %v4949
        %v4951 = vrot.slane %v4950, 4
        %v4953 = vshll.u32 %v4686, 16
        %v4955 = vrot.slane %v4953, 5
        %v4956 = vsel %vm1165, %v4951, %v4955
        %v4957 = vshrl.u32 %v4686, 16
        %v4959 = vrot.slane %v4957, 4
        %v4960 = vor.u32 %v4959, %v4955
        %v4961 = vrot.slane %v4960, 4
        %v4963 = vshll.u32 %v4687, 16
        %v4965 = vrot.slane %v4963, 5
        %v4966 = vsel %vm1165, %v4961, %v4965
        %v4968 = vshrl.u32 %v4688, 16
        %v4970 = vrot.slane %v4968, 4
        %v4971 = vshll.u32 %v4688, 16
        %v4973 = vrot.slane %v4971, 5
        %v4974 = vor.u32 %v4970, %v4973
        %v4975 = vrot.slane %v4974, 4
        %v4977 = vshll.u32 %v4689, 16
        %v4979 = vrot.slane %v4977, 5
        %v4980 = vsel %vm1165, %v4975, %v4979
        %v4981 = vshrl.u32 %v4689, 16
        %v4983 = vrot.slane %v4981, 4
        %v4984 = vor.u32 %v4983, %v4979
        %v4985 = vrot.slane %v4984, 4
        %v4987 = vshll.u32 %v4690, 16
        %v4989 = vrot.slane %v4987, 5
        %v4990 = vsel %vm1165, %v4985, %v4989
        %v4992 = vshrl.u32 %v4691, 16
        %v4994 = vrot.slane %v4992, 4
        %v4995 = vshll.u32 %v4691, 16
        %v4997 = vrot.slane %v4995, 5
        %v4998 = vor.u32 %v4994, %v4997
        %v4999 = vrot.slane %v4998, 4
        %v5001 = vshll.u32 %v4692, 16
        %v5003 = vrot.slane %v5001, 5
        %v5004 = vsel %vm1165, %v4999, %v5003
        %v5005 = vshrl.u32 %v4692, 16
        %v5007 = vrot.slane %v5005, 4
        %v5008 = vor.u32 %v5007, %v5003
        %v5009 = vrot.slane %v5008, 4
        %v5011 = vshll.u32 %v4693, 16
        %v5013 = vrot.slane %v5011, 5
        %v5014 = vsel %vm1165, %v5009, %v5013
        %v5016 = vshrl.u32 %v4694, 16
        %v5018 = vrot.slane %v5016, 4
        %v5019 = vshll.u32 %v4694, 16
        %v5021 = vrot.slane %v5019, 5
        %v5022 = vor.u32 %v5018, %v5021
        %v5023 = vrot.slane %v5022, 4
        %v5025 = vshll.u32 %v4695, 16
        %v5027 = vrot.slane %v5025, 5
        %v5028 = vsel %vm1165, %v5023, %v5027
        %v5029 = vshrl.u32 %v4695, 16
        %v5031 = vrot.slane %v5029, 4
        %v5032 = vor.u32 %v5031, %v5027
        %v5033 = vrot.slane %v5032, 4
        %v5035 = vshll.u32 %v4696, 16
        %v5037 = vrot.slane %v5035, 5
        %v5038 = vsel %vm1165, %v5033, %v5037
        %v5040 = vshrl.u32 %v4697, 16
        %v5042 = vrot.slane %v5040, 4
        %v5043 = vshll.u32 %v4697, 16
        %v5045 = vrot.slane %v5043, 5
        %v5046 = vor.u32 %v5042, %v5045
        %v5047 = vrot.slane %v5046, 4
        %v5049 = vshll.u32 %v4698, 16
        %v5051 = vrot.slane %v5049, 5
        %v5052 = vsel %vm1165, %v5047, %v5051
        %v5053 = vshrl.u32 %v4698, 16
        %v5055 = vrot.slane %v5053, 4
        %v5056 = vor.u32 %v5055, %v5051
        %v5057 = vrot.slane %v5056, 4
        %v5059 = vshll.u32 %v4699, 16
        %v5061 = vrot.slane %v5059, 5
        %v5062 = vsel %vm1165, %v5057, %v5061
        %v5064 = vshrl.u32 %v4700, 16
        %v5066 = vrot.slane %v5064, 4
        %v5067 = vshll.u32 %v4700, 16
        %v5069 = vrot.slane %v5067, 5
        %v5070 = vor.u32 %v5066, %v5069
        %v5071 = vrot.slane %v5070, 4
        %v5073 = vshll.u32 %v4701, 16
        %v5075 = vrot.slane %v5073, 5
        %v5076 = vsel %vm1165, %v5071, %v5075
        %v5077 = vshrl.u32 %v4701, 16
        %v5079 = vrot.slane %v5077, 4
        %v5080 = vor.u32 %v5079, %v5075
        %v5081 = vrot.slane %v5080, 4
        %v5083 = vshll.u32 %v4702, 16
        %v5085 = vrot.slane %v5083, 5
        %v5086 = vsel %vm1165, %v5081, %v5085
        %s5087 = scalar_lea.vmem [#allocation4], 448
        %v5088 = vld [vmem:[%s5087] sm:$0xf]
        %v5089 = vld [vmem:[%s5087 + $0x4] sm:$0xf]
        %v5090 = vld [vmem:[%s5087 + $0x8] sm:$0xf]
        %v5091 = vld [vmem:[%s5087 + $0xc] sm:$0xf]
        %v5092 = vld [vmem:[%s5087 + $0x10] sm:$0xf]
        %v5093 = vld [vmem:[%s5087 + $0x14] sm:$0xf]
        %v5094 = vld [vmem:[%s5087 + $0x18] sm:$0xf]
        %v5095 = vld [vmem:[%s5087 + $0x1c] sm:$0xf]
        %v5096 = vld [vmem:[%s5087 + $0x20] sm:$0xf]
        %v5097 = vld [vmem:[%s5087 + $0x24] sm:$0xf]
        %v5098 = vld [vmem:[%s5087 + $0x28] sm:$0xf]
        %v5099 = vld [vmem:[%s5087 + $0x2c] sm:$0xf]
        %v5100 = vld [vmem:[%s5087 + $0x30] sm:$0xf]
        %v5101 = vld [vmem:[%s5087 + $0x34] sm:$0xf]
        %v5102 = vld [vmem:[%s5087 + $0x38] sm:$0xf]
        %v5103 = vld [vmem:[%s5087 + $0x3c] sm:$0xf]
        %v5104 = vunpack.c.l.b16 %v4716
        %v5105 = vunpack.c.l.b16 %v4726
        %v5106 = vunpack.c.l.b16 %v4740
        %v5107 = vunpack.c.l.b16 %v4750
        %v5108 = vunpack.c.l.b16 %v4764
        %v5109 = vunpack.c.l.b16 %v4774
        %v5110 = vunpack.c.l.b16 %v4788
        %v5111 = vunpack.c.l.b16 %v4798
        %v5112 = vunpack.c.l.b16 %v4812
        %v5113 = vunpack.c.l.b16 %v4822
        %v5114 = vunpack.c.l.b16 %v4836
        %v5115 = vunpack.c.l.b16 %v4846
        %v5116 = vunpack.c.l.b16 %v4860
        %v5117 = vunpack.c.l.b16 %v4870
        %v5118 = vunpack.c.l.b16 %v4884
        %v5119 = vunpack.c.l.b16 %v4894
        %v5120 = vunpack.c.l.b16 %v4908
        %v5121 = vunpack.c.l.b16 %v4918
        %v5122 = vunpack.c.l.b16 %v4932
        %v5123 = vunpack.c.l.b16 %v4942
        %v5124 = vunpack.c.l.b16 %v4956
        %v5125 = vunpack.c.l.b16 %v4966
        %v5126 = vunpack.c.l.b16 %v4980
        %v5127 = vunpack.c.l.b16 %v4990
        %v5128 = vunpack.c.l.b16 %v5004
        %v5129 = vunpack.c.l.b16 %v5014
        %v5130 = vunpack.c.l.b16 %v5028
        %v5131 = vunpack.c.l.b16 %v5038
        %v5132 = vunpack.c.l.b16 %v5052
        %v5133 = vunpack.c.l.b16 %v5062
        %v5134 = vunpack.c.l.b16 %v5076
        %v5135 = vunpack.c.l.b16 %v5086
        %v5136 = vpack.c.b16 %v5105, %v5104
        %v5137 = vpack.c.b16 %v5107, %v5106
        %v5138 = vpack.c.b16 %v5109, %v5108
        %v5139 = vpack.c.b16 %v5111, %v5110
        %v5140 = vpack.c.b16 %v5113, %v5112
        %v5141 = vpack.c.b16 %v5115, %v5114
        %v5142 = vpack.c.b16 %v5117, %v5116
        %v5143 = vpack.c.b16 %v5119, %v5118
        %v5144 = vpack.c.b16 %v5121, %v5120
        %v5145 = vpack.c.b16 %v5123, %v5122
        %v5146 = vpack.c.b16 %v5125, %v5124
        %v5147 = vpack.c.b16 %v5127, %v5126
        %v5148 = vpack.c.b16 %v5129, %v5128
        %v5149 = vpack.c.b16 %v5131, %v5130
        %v5150 = vpack.c.b16 %v5133, %v5132
        %v5151 = vpack.c.b16 %v5135, %v5134
        %v5184 = vunpack.c.l.b16 %v5088
        %v5185 = vunpack.c.l.b16 %v5089
        %v5186 = vunpack.c.l.b16 %v5090
        %v5187 = vunpack.c.l.b16 %v5091
        %v5188 = vunpack.c.l.b16 %v5092
        %v5189 = vunpack.c.l.b16 %v5093
        %v5190 = vunpack.c.l.b16 %v5094
        %v5191 = vunpack.c.l.b16 %v5095
        %v5192 = vunpack.c.l.b16 %v5096
        %v5193 = vunpack.c.l.b16 %v5097
        %v5194 = vunpack.c.l.b16 %v5098
        %v5195 = vunpack.c.l.b16 %v5099
        %v5196 = vunpack.c.l.b16 %v5100
        %v5197 = vunpack.c.l.b16 %v5101
        %v5198 = vunpack.c.l.b16 %v5102
        %v5199 = vunpack.c.l.b16 %v5103
        %v5200 = vpack.c.b16 %v5185, %v5184
        %v5201 = vpack.c.b16 %v5187, %v5186
        %v5202 = vpack.c.b16 %v5189, %v5188
        %v5203 = vpack.c.b16 %v5191, %v5190
        %v5204 = vpack.c.b16 %v5193, %v5192
        %v5205 = vpack.c.b16 %v5195, %v5194
        %v5206 = vpack.c.b16 %v5197, %v5196
        %v5207 = vpack.c.b16 %v5199, %v5198
        %5216 = vmatprep.subr.bf16.mxu0 0
        %5217 = vmatpush1.bf16.msra.mxu0 %v5200
        %5218 = vmatprep.subr.bf16.mxu0 0
        %5219 = vmatpush1.bf16.msra.mxu0 %v5201
        %5220 = vmatprep.subr.bf16.mxu0 0
        %5221 = vmatpush1.bf16.msra.mxu0 %v5202
        %5222 = vmatprep.subr.bf16.mxu0 0
        %5223 = vmatpush1.bf16.msra.mxu0 %v5203
        %5224 = vmatprep.subr.bf16.mxu0 0
        %5225 = vmatpush1.bf16.msra.mxu0 %v5204
        %5226 = vmatprep.subr.bf16.mxu0 0
        %5227 = vmatpush1.bf16.msra.mxu0 %v5205
        %5228 = vmatprep.subr.bf16.mxu0 0
        %5229 = vmatpush1.bf16.msra.mxu0 %v5206
        %5230 = vmatprep.subr.bf16.mxu0 0
        %5231 = vmatpush1.bf16.msra.mxu0 %v5207
        %5232 = vmatprep.subr.bf16.mxu0 0
        %5233 = vmatpush1.bf16.msra.mxu0 0
        %5234 = vmatprep.subr.bf16.mxu0 0
        %5235 = vmatpush1.bf16.msra.mxu0 0
        %5236 = vmatprep.subr.bf16.mxu0 0
        %5237 = vmatpush1.bf16.msra.mxu0 0
        %5238 = vmatprep.subr.bf16.mxu0 0
        %5239 = vmatpush1.bf16.msra.mxu0 0
        %5240 = vmatprep.subr.bf16.mxu0 0
        %5241 = vmatpush1.bf16.msra.mxu0 0
        %5242 = vmatprep.subr.bf16.mxu0 0
        %5243 = vmatpush1.bf16.msra.mxu0 0
        %5244 = vmatprep.subr.bf16.mxu0 0
        %5245 = vmatpush1.bf16.msra.mxu0 0
        %5246 = vmatprep.subr.bf16.mxu0 0
        %5247 = vmatpush1.bf16.msra.mxu0 0
        %5248 = vmatprep.mubr.bf16.mxu0 0
        %5249 = vmatmul.mubr.bf16.gmra.mrb[0].mxu0 %v5136
        %v5250 = vpop.f32.mrb[0].mxu0
        %v5251 = vadd.f32 0.0, %v5250
        %v5252 = vpop.f32.mrb[0].mxu0
        %v5253 = vpop.f32.mrb[0].mxu0
        %v5254 = vadd.f32 0.0, %v5253
        %v5255 = vpop.f32.mrb[0].mxu0
        %5256 = vmatprep.mubr.bf16.mxu0 0
        %5257 = vmatmul.mubr.bf16.gmra.mrb[0].mxu0 %v5137
        %v5258 = vpop.f32.mrb[0].mxu0
        %v5259 = vadd.f32 0.0, %v5258
        %v5260 = vpop.f32.mrb[0].mxu0
        %v5261 = vpop.f32.mrb[0].mxu0
        %v5262 = vadd.f32 0.0, %v5261
        %v5263 = vpop.f32.mrb[0].mxu0
        %5264 = vmatprep.mubr.bf16.mxu0 0
        %5265 = vmatmul.mubr.bf16.gmra.mrb[0].mxu0 %v5138
        %v5266 = vpop.f32.mrb[0].mxu0
        %v5267 = vadd.f32 0.0, %v5266
        %v5268 = vpop.f32.mrb[0].mxu0
        %v5269 = vpop.f32.mrb[0].mxu0
        %v5270 = vadd.f32 0.0, %v5269
        %v5271 = vpop.f32.mrb[0].mxu0
        %5272 = vmatprep.mubr.bf16.mxu0 0
        %5273 = vmatmul.mubr.bf16.gmra.mrb[0].mxu0 %v5139
        %v5274 = vpop.f32.mrb[0].mxu0
        %v5275 = vadd.f32 0.0, %v5274
        %v5276 = vpop.f32.mrb[0].mxu0
        %v5277 = vpop.f32.mrb[0].mxu0
        %v5278 = vadd.f32 0.0, %v5277
        %v5279 = vpop.f32.mrb[0].mxu0
        %5280 = vmatprep.mubr.bf16.mxu0 0
        %5281 = vmatmul.mubr.bf16.gmra.mrb[0].mxu0 %v5140
        %v5282 = vpop.f32.mrb[0].mxu0
        %v5283 = vadd.f32 0.0, %v5282
        %v5284 = vpop.f32.mrb[0].mxu0
        %v5285 = vpop.f32.mrb[0].mxu0
        %v5286 = vadd.f32 0.0, %v5285
        %v5287 = vpop.f32.mrb[0].mxu0
        %5288 = vmatprep.mubr.bf16.mxu0 0
        %5289 = vmatmul.mubr.bf16.gmra.mrb[0].mxu0 %v5141
        %v5290 = vpop.f32.mrb[0].mxu0
        %v5291 = vadd.f32 0.0, %v5290
        %v5292 = vpop.f32.mrb[0].mxu0
        %v5293 = vpop.f32.mrb[0].mxu0
        %v5294 = vadd.f32 0.0, %v5293
        %v5295 = vpop.f32.mrb[0].mxu0
        %5296 = vmatprep.mubr.bf16.mxu0 0
        %5297 = vmatmul.mubr.bf16.gmra.mrb[0].mxu0 %v5142
        %v5298 = vpop.f32.mrb[0].mxu0
        %v5299 = vadd.f32 0.0, %v5298
        %v5300 = vpop.f32.mrb[0].mxu0
        %v5301 = vpop.f32.mrb[0].mxu0
        %v5302 = vadd.f32 0.0, %v5301
        %v5303 = vpop.f32.mrb[0].mxu0
        %5304 = vmatprep.mubr.bf16.mxu0 0
        %5305 = vmatmul.mubr.bf16.gmra.mrb[0].mxu0 %v5143
        %v5306 = vpop.f32.mrb[0].mxu0
        %v5307 = vadd.f32 0.0, %v5306
        %v5308 = vpop.f32.mrb[0].mxu0
        %v5309 = vpop.f32.mrb[0].mxu0
        %v5310 = vadd.f32 0.0, %v5309
        %v5311 = vpop.f32.mrb[0].mxu0
        %5312 = vmatprep.mubr.bf16.mxu0 0
        %5313 = vmatmul.mubr.bf16.gmra.mrb[0].mxu0 %v5144
        %v5314 = vpop.f32.mrb[0].mxu0
        %v5315 = vadd.f32 0.0, %v5314
        %v5316 = vpop.f32.mrb[0].mxu0
        %v5317 = vpop.f32.mrb[0].mxu0
        %v5318 = vadd.f32 0.0, %v5317
        %v5319 = vpop.f32.mrb[0].mxu0
        %5320 = vmatprep.mubr.bf16.mxu0 0
        %5321 = vmatmul.mubr.bf16.gmra.mrb[0].mxu0 %v5145
        %v5322 = vpop.f32.mrb[0].mxu0
        %v5323 = vadd.f32 0.0, %v5322
        %v5324 = vpop.f32.mrb[0].mxu0
        %v5325 = vpop.f32.mrb[0].mxu0
        %v5326 = vadd.f32 0.0, %v5325
        %v5327 = vpop.f32.mrb[0].mxu0
        %5328 = vmatprep.mubr.bf16.mxu0 0
        %5329 = vmatmul.mubr.bf16.gmra.mrb[0].mxu0 %v5146
        %v5330 = vpop.f32.mrb[0].mxu0
        %v5331 = vadd.f32 0.0, %v5330
        %v5332 = vpop.f32.mrb[0].mxu0
        %v5333 = vpop.f32.mrb[0].mxu0
        %v5334 = vadd.f32 0.0, %v5333
        %v5335 = vpop.f32.mrb[0].mxu0
        %5336 = vmatprep.mubr.bf16.mxu0 0
        %5337 = vmatmul.mubr.bf16.gmra.mrb[0].mxu0 %v5147
        %v5338 = vpop.f32.mrb[0].mxu0
        %v5339 = vadd.f32 0.0, %v5338
        %v5340 = vpop.f32.mrb[0].mxu0
        %v5341 = vpop.f32.mrb[0].mxu0
        %v5342 = vadd.f32 0.0, %v5341
        %v5343 = vpop.f32.mrb[0].mxu0
        %5344 = vmatprep.mubr.bf16.mxu0 0
        %5345 = vmatmul.mubr.bf16.gmra.mrb[0].mxu0 %v5148
        %v5346 = vpop.f32.mrb[0].mxu0
        %v5347 = vadd.f32 0.0, %v5346
        %v5348 = vpop.f32.mrb[0].mxu0
        %v5349 = vpop.f32.mrb[0].mxu0
        %v5350 = vadd.f32 0.0, %v5349
        %v5351 = vpop.f32.mrb[0].mxu0
        %5352 = vmatprep.mubr.bf16.mxu0 0
        %5353 = vmatmul.mubr.bf16.gmra.mrb[0].mxu0 %v5149
        %v5354 = vpop.f32.mrb[0].mxu0
        %v5355 = vadd.f32 0.0, %v5354
        %v5356 = vpop.f32.mrb[0].mxu0
        %v5357 = vpop.f32.mrb[0].mxu0
        %v5358 = vadd.f32 0.0, %v5357
        %v5359 = vpop.f32.mrb[0].mxu0
        %5360 = vmatprep.mubr.bf16.mxu0 0
        %5361 = vmatmul.mubr.bf16.gmra.mrb[0].mxu0 %v5150
        %v5362 = vpop.f32.mrb[0].mxu0
        %v5363 = vadd.f32 0.0, %v5362
        %v5364 = vpop.f32.mrb[0].mxu0
        %v5365 = vpop.f32.mrb[0].mxu0
        %v5366 = vadd.f32 0.0, %v5365
        %v5367 = vpop.f32.mrb[0].mxu0
        %5368 = vmatprep.mubr.bf16.mxu0 0
        %5369 = vmatmul.mubr.bf16.gmra.mrb[0].mxu0 %v5151
        %v5370 = vpop.f32.mrb[0].mxu0
        %v5371 = vadd.f32 0.0, %v5370
        %v5372 = vpop.f32.mrb[0].mxu0
        %v5373 = vpop.f32.mrb[0].mxu0
        %v5374 = vadd.f32 0.0, %v5373
        %v5375 = vpop.f32.mrb[0].mxu0
        %5376 = vdwg.mxu0
        %v5377 = vadd.f32 %v4623, %v5251
        %v5378 = vadd.f32 %v4624, %v5254
        %v5379 = vadd.f32 %v4625, %v5259
        %v5380 = vadd.f32 %v4626, %v5262
        %v5381 = vadd.f32 %v4627, %v5267
        %v5382 = vadd.f32 %v4628, %v5270
        %v5383 = vadd.f32 %v4629, %v5275
        %v5384 = vadd.f32 %v4630, %v5278
        %v5385 = vadd.f32 %v4631, %v5283
        %v5386 = vadd.f32 %v4632, %v5286
        %v5387 = vadd.f32 %v4633, %v5291
        %v5388 = vadd.f32 %v4634, %v5294
        %v5389 = vadd.f32 %v4635, %v5299
        %v5390 = vadd.f32 %v4636, %v5302
        %v5391 = vadd.f32 %v4637, %v5307
        %v5392 = vadd.f32 %v4638, %v5310
        %v5393 = vadd.f32 %v4639, %v5315
        %v5394 = vadd.f32 %v4640, %v5318
        %v5395 = vadd.f32 %v4641, %v5323
        %v5396 = vadd.f32 %v4642, %v5326
        %v5397 = vadd.f32 %v4643, %v5331
        %v5398 = vadd.f32 %v4644, %v5334
        %v5399 = vadd.f32 %v4645, %v5339
        %v5400 = vadd.f32 %v4646, %v5342
        %v5401 = vadd.f32 %v4647, %v5347
        %v5402 = vadd.f32 %v4648, %v5350
        %v5403 = vadd.f32 %v4649, %v5355
        %v5404 = vadd.f32 %v4650, %v5358
        %v5405 = vadd.f32 %v4651, %v5363
        %v5406 = vadd.f32 %v4652, %v5366
        %v5407 = vadd.f32 %v4653, %v5371
        %v5408 = vadd.f32 %v4654, %v5374
        %v5409 = vld [vmem:[%s4268] sm:$0xe]
        %v5410 = vld [vmem:[%s4268 + $0xc] sm:$0xe]
        %v5411 = vld [vmem:[%s4268 + $0x18] sm:$0xe]
        %v5412 = vld [vmem:[%s4268 + $0x24] sm:$0xe]
        %v5413 = vld [vmem:[%s4268 + $0x30] sm:$0xe]
        %v5414 = vld [vmem:[%s4268 + $0x3c] sm:$0xe]
        %v5415 = vld [vmem:[%s4268 + $0x48] sm:$0xe]
        %v5416 = vld [vmem:[%s4268 + $0x54] sm:$0xe]
        %v5417 = vld [vmem:[%s4268 + $0x60] sm:$0xe]
        %v5418 = vld [vmem:[%s4268 + $0x6c] sm:$0xe]
        %v5419 = vld [vmem:[%s4268 + $0x78] sm:$0xe]
        %v5420 = vld [vmem:[%s4268 + $0x84] sm:$0xe]
        %v5421 = vld [vmem:[%s4268 + $0x90] sm:$0xe]
        %v5422 = vld [vmem:[%s4268 + $0x9c] sm:$0xe]
        %v5423 = vld [vmem:[%s4268 + $0xa8] sm:$0xe]
        %v5424 = vld [vmem:[%s4268 + $0xb4] sm:$0xe]
        %v5473 = vrot.slane %v5409, 5
        %v5474 = vrot.slane %v5473, 4
        %v5475 = vrot.slane %v4656, 5
        %v5476 = vsel %vm2195, %v5474, %v5475
        %v5477 = vrot.slane %v5475, 4
        %v5478 = vrot.slane %v4657, 5
        %v5479 = vsel %vm2195, %v5477, %v5478
        %v5480 = vrot.slane %v5410, 5
        %v5481 = vrot.slane %v5480, 4
        %v5482 = vrot.slane %v4659, 5
        %v5483 = vsel %vm2195, %v5481, %v5482
        %v5484 = vrot.slane %v5482, 4
        %v5485 = vrot.slane %v4660, 5
        %v5486 = vsel %vm2195, %v5484, %v5485
        %v5487 = vrot.slane %v5411, 5
        %v5488 = vrot.slane %v5487, 4
        %v5489 = vrot.slane %v4662, 5
        %v5490 = vsel %vm2195, %v5488, %v5489
        %v5491 = vrot.slane %v5489, 4
        %v5492 = vrot.slane %v4663, 5
        %v5493 = vsel %vm2195, %v5491, %v5492
        %v5494 = vrot.slane %v5412, 5
        %v5495 = vrot.slane %v5494, 4
        %v5496 = vrot.slane %v4665, 5
        %v5497 = vsel %vm2195, %v5495, %v5496
        %v5498 = vrot.slane %v5496, 4
        %v5499 = vrot.slane %v4666, 5
        %v5500 = vsel %vm2195, %v5498, %v5499
        %v5501 = vrot.slane %v5413, 5
        %v5502 = vrot.slane %v5501, 4
        %v5503 = vrot.slane %v4668, 5
        %v5504 = vsel %vm2195, %v5502, %v5503
        %v5505 = vrot.slane %v5503, 4
        %v5506 = vrot.slane %v4669, 5
        %v5507 = vsel %vm2195, %v5505, %v5506
        %v5508 = vrot.slane %v5414, 5
        %v5509 = vrot.slane %v5508, 4
        %v5510 = vrot.slane %v4671, 5
        %v5511 = vsel %vm2195, %v5509, %v5510
        %v5512 = vrot.slane %v5510, 4
        %v5513 = vrot.slane %v4672, 5
        %v5514 = vsel %vm2195, %v5512, %v5513
        %v5515 = vrot.slane %v5415, 5
        %v5516 = vrot.slane %v5515, 4
        %v5517 = vrot.slane %v4674, 5
        %v5518 = vsel %vm2195, %v5516, %v5517
        %v5519 = vrot.slane %v5517, 4
        %v5520 = vrot.slane %v4675, 5
        %v5521 = vsel %vm2195, %v5519, %v5520
        %v5522 = vrot.slane %v5416, 5
        %v5523 = vrot.slane %v5522, 4
        %v5524 = vrot.slane %v4677, 5
        %v5525 = vsel %vm2195, %v5523, %v5524
        %v5526 = vrot.slane %v5524, 4
        %v5527 = vrot.slane %v4678, 5
        %v5528 = vsel %vm2195, %v5526, %v5527
        %v5529 = vrot.slane %v5417, 5
        %v5530 = vrot.slane %v5529, 4
        %v5531 = vrot.slane %v4680, 5
        %v5532 = vsel %vm2195, %v5530, %v5531
        %v5533 = vrot.slane %v5531, 4
        %v5534 = vrot.slane %v4681, 5
        %v5535 = vsel %vm2195, %v5533, %v5534
        %v5536 = vrot.slane %v5418, 5
        %v5537 = vrot.slane %v5536, 4
        %v5538 = vrot.slane %v4683, 5
        %v5539 = vsel %vm2195, %v5537, %v5538
        %v5540 = vrot.slane %v5538, 4
        %v5541 = vrot.slane %v4684, 5
        %v5542 = vsel %vm2195, %v5540, %v5541
        %v5543 = vrot.slane %v5419, 5
        %v5544 = vrot.slane %v5543, 4
        %v5545 = vrot.slane %v4686, 5
        %v5546 = vsel %vm2195, %v5544, %v5545
        %v5547 = vrot.slane %v5545, 4
        %v5548 = vrot.slane %v4687, 5
        %v5549 = vsel %vm2195, %v5547, %v5548
        %v5550 = vrot.slane %v5420, 5
        %v5551 = vrot.slane %v5550, 4
        %v5552 = vrot.slane %v4689, 5
        %v5553 = vsel %vm2195, %v5551, %v5552
        %v5554 = vrot.slane %v5552, 4
        %v5555 = vrot.slane %v4690, 5
        %v5556 = vsel %vm2195, %v5554, %v5555
        %v5557 = vrot.slane %v5421, 5
        %v5558 = vrot.slane %v5557, 4
        %v5559 = vrot.slane %v4692, 5
        %v5560 = vsel %vm2195, %v5558, %v5559
        %v5561 = vrot.slane %v5559, 4
        %v5562 = vrot.slane %v4693, 5
        %v5563 = vsel %vm2195, %v5561, %v5562
        %v5564 = vrot.slane %v5422, 5
        %v5565 = vrot.slane %v5564, 4
        %v5566 = vrot.slane %v4695, 5
        %v5567 = vsel %vm2195, %v5565, %v5566
        %v5568 = vrot.slane %v5566, 4
        %v5569 = vrot.slane %v4696, 5
        %v5570 = vsel %vm2195, %v5568, %v5569
        %v5571 = vrot.slane %v5423, 5
        %v5572 = vrot.slane %v5571, 4
        %v5573 = vrot.slane %v4698, 5
        %v5574 = vsel %vm2195, %v5572, %v5573
        %v5575 = vrot.slane %v5573, 4
        %v5576 = vrot.slane %v4699, 5
        %v5577 = vsel %vm2195, %v5575, %v5576
        %v5578 = vrot.slane %v5424, 5
        %v5579 = vrot.slane %v5578, 4
        %v5580 = vrot.slane %v4701, 5
        %v5581 = vsel %vm2195, %v5579, %v5580
        %v5582 = vrot.slane %v5580, 4
        %v5583 = vrot.slane %v4702, 5
        %v5584 = vsel %vm2195, %v5582, %v5583
        %s5585 = scalar_lea.vmem [#allocation4], 512
        %v5586 = vld [vmem:[%s5585] sm:$0xf]
        %v5587 = vld [vmem:[%s5585 + $0x4] sm:$0xf]
        %v5588 = vld [vmem:[%s5585 + $0x8] sm:$0xf]
        %v5589 = vld [vmem:[%s5585 + $0xc] sm:$0xf]
        %v5590 = vld [vmem:[%s5585 + $0x10] sm:$0xf]
        %v5591 = vld [vmem:[%s5585 + $0x14] sm:$0xf]
        %v5592 = vld [vmem:[%s5585 + $0x18] sm:$0xf]
        %v5593 = vld [vmem:[%s5585 + $0x1c] sm:$0xf]
        %v5594 = vld [vmem:[%s5585 + $0x20] sm:$0xf]
        %v5595 = vld [vmem:[%s5585 + $0x24] sm:$0xf]
        %v5596 = vld [vmem:[%s5585 + $0x28] sm:$0xf]
        %v5597 = vld [vmem:[%s5585 + $0x2c] sm:$0xf]
        %v5598 = vld [vmem:[%s5585 + $0x30] sm:$0xf]
        %v5599 = vld [vmem:[%s5585 + $0x34] sm:$0xf]
        %v5600 = vld [vmem:[%s5585 + $0x38] sm:$0xf]
        %v5601 = vld [vmem:[%s5585 + $0x3c] sm:$0xf]
        %v5602 = vunpack.c.l.b16 %v5476
        %v5603 = vunpack.c.l.b16 %v5479
        %v5604 = vunpack.c.l.b16 %v5483
        %v5605 = vunpack.c.l.b16 %v5486
        %v5606 = vunpack.c.l.b16 %v5490
        %v5607 = vunpack.c.l.b16 %v5493
        %v5608 = vunpack.c.l.b16 %v5497
        %v5609 = vunpack.c.l.b16 %v5500
        %v5610 = vunpack.c.l.b16 %v5504
        %v5611 = vunpack.c.l.b16 %v5507
        %v5612 = vunpack.c.l.b16 %v5511
        %v5613 = vunpack.c.l.b16 %v5514
        %v5614 = vunpack.c.l.b16 %v5518
        %v5615 = vunpack.c.l.b16 %v5521
        %v5616 = vunpack.c.l.b16 %v5525
        %v5617 = vunpack.c.l.b16 %v5528
        %v5618 = vunpack.c.l.b16 %v5532
        %v5619 = vunpack.c.l.b16 %v5535
        %v5620 = vunpack.c.l.b16 %v5539
        %v5621 = vunpack.c.l.b16 %v5542
        %v5622 = vunpack.c.l.b16 %v5546
        %v5623 = vunpack.c.l.b16 %v5549
        %v5624 = vunpack.c.l.b16 %v5553
        %v5625 = vunpack.c.l.b16 %v5556
        %v5626 = vunpack.c.l.b16 %v5560
        %v5627 = vunpack.c.l.b16 %v5563
        %v5628 = vunpack.c.l.b16 %v5567
        %v5629 = vunpack.c.l.b16 %v5570
        %v5630 = vunpack.c.l.b16 %v5574
        %v5631 = vunpack.c.l.b16 %v5577
        %v5632 = vunpack.c.l.b16 %v5581
        %v5633 = vunpack.c.l.b16 %v5584
        %v5634 = vpack.c.b16 %v5603, %v5602
        %v5635 = vpack.c.b16 %v5605, %v5604
        %v5636 = vpack.c.b16 %v5607, %v5606
        %v5637 = vpack.c.b16 %v5609, %v5608
        %v5638 = vpack.c.b16 %v5611, %v5610
        %v5639 = vpack.c.b16 %v5613, %v5612
        %v5640 = vpack.c.b16 %v5615, %v5614
        %v5641 = vpack.c.b16 %v5617, %v5616
        %v5642 = vpack.c.b16 %v5619, %v5618
        %v5643 = vpack.c.b16 %v5621, %v5620
        %v5644 = vpack.c.b16 %v5623, %v5622
        %v5645 = vpack.c.b16 %v5625, %v5624
        %v5646 = vpack.c.b16 %v5627, %v5626
        %v5647 = vpack.c.b16 %v5629, %v5628
        %v5648 = vpack.c.b16 %v5631, %v5630
        %v5649 = vpack.c.b16 %v5633, %v5632
        %v5682 = vunpack.c.l.b16 %v5586
        %v5683 = vunpack.c.l.b16 %v5587
        %v5684 = vunpack.c.l.b16 %v5588
        %v5685 = vunpack.c.l.b16 %v5589
        %v5686 = vunpack.c.l.b16 %v5590
        %v5687 = vunpack.c.l.b16 %v5591
        %v5688 = vunpack.c.l.b16 %v5592
        %v5689 = vunpack.c.l.b16 %v5593
        %v5690 = vunpack.c.l.b16 %v5594
        %v5691 = vunpack.c.l.b16 %v5595
        %v5692 = vunpack.c.l.b16 %v5596
        %v5693 = vunpack.c.l.b16 %v5597
        %v5694 = vunpack.c.l.b16 %v5598
        %v5695 = vunpack.c.l.b16 %v5599
        %v5696 = vunpack.c.l.b16 %v5600
        %v5697 = vunpack.c.l.b16 %v5601
        %v5698 = vpack.c.b16 %v5683, %v5682
        %v5699 = vpack.c.b16 %v5685, %v5684
        %v5700 = vpack.c.b16 %v5687, %v5686
        %v5701 = vpack.c.b16 %v5689, %v5688
        %v5702 = vpack.c.b16 %v5691, %v5690
        %v5703 = vpack.c.b16 %v5693, %v5692
        %v5704 = vpack.c.b16 %v5695, %v5694
        %v5705 = vpack.c.b16 %v5697, %v5696
        %5714 = vmatprep.subr.bf16.mxu0 0
        %5715 = vmatpush1.bf16.msra.mxu0 %v5698
        %5716 = vmatprep.subr.bf16.mxu0 0
        %5717 = vmatpush1.bf16.msra.mxu0 %v5699
        %5718 = vmatprep.subr.bf16.mxu0 0
        %5719 = vmatpush1.bf16.msra.mxu0 %v5700
        %5720 = vmatprep.subr.bf16.mxu0 0
        %5721 = vmatpush1.bf16.msra.mxu0 %v5701
        %5722 = vmatprep.subr.bf16.mxu0 0
        %5723 = vmatpush1.bf16.msra.mxu0 %v5702
        %5724 = vmatprep.subr.bf16.mxu0 0
        %5725 = vmatpush1.bf16.msra.mxu0 %v5703
        %5726 = vmatprep.subr.bf16.mxu0 0
        %5727 = vmatpush1.bf16.msra.mxu0 %v5704
        %5728 = vmatprep.subr.bf16.mxu0 0
        %5729 = vmatpush1.bf16.msra.mxu0 %v5705
        %5730 = vmatprep.subr.bf16.mxu0 0
        %5731 = vmatpush1.bf16.msra.mxu0 0
        %5732 = vmatprep.subr.bf16.mxu0 0
        %5733 = vmatpush1.bf16.msra.mxu0 0
        %5734 = vmatprep.subr.bf16.mxu0 0
        %5735 = vmatpush1.bf16.msra.mxu0 0
        %5736 = vmatprep.subr.bf16.mxu0 0
        %5737 = vmatpush1.bf16.msra.mxu0 0
        %5738 = vmatprep.subr.bf16.mxu0 0
        %5739 = vmatpush1.bf16.msra.mxu0 0
        %5740 = vmatprep.subr.bf16.mxu0 0
        %5741 = vmatpush1.bf16.msra.mxu0 0
        %5742 = vmatprep.subr.bf16.mxu0 0
        %5743 = vmatpush1.bf16.msra.mxu0 0
        %5744 = vmatprep.subr.bf16.mxu0 0
        %5745 = vmatpush1.bf16.msra.mxu0 0
        %5746 = vmatprep.mubr.bf16.mxu0 0
        %5747 = vmatmul.mubr.bf16.gmra.mrb[0].mxu0 %v5634
        %v5748 = vpop.f32.mrb[0].mxu0
        %v5749 = vadd.f32 0.0, %v5748
        %v5750 = vpop.f32.mrb[0].mxu0
        %v5751 = vpop.f32.mrb[0].mxu0
        %v5752 = vadd.f32 0.0, %v5751
        %v5753 = vpop.f32.mrb[0].mxu0
        %5754 = vmatprep.mubr.bf16.mxu0 0
        %5755 = vmatmul.mubr.bf16.gmra.mrb[0].mxu0 %v5635
        %v5756 = vpop.f32.mrb[0].mxu0
        %v5757 = vadd.f32 0.0, %v5756
        %v5758 = vpop.f32.mrb[0].mxu0
        %v5759 = vpop.f32.mrb[0].mxu0
        %v5760 = vadd.f32 0.0, %v5759
        %v5761 = vpop.f32.mrb[0].mxu0
        %5762 = vmatprep.mubr.bf16.mxu0 0
        %5763 = vmatmul.mubr.bf16.gmra.mrb[0].mxu0 %v5636
        %v5764 = vpop.f32.mrb[0].mxu0
        %v5765 = vadd.f32 0.0, %v5764
        %v5766 = vpop.f32.mrb[0].mxu0
        %v5767 = vpop.f32.mrb[0].mxu0
        %v5768 = vadd.f32 0.0, %v5767
        %v5769 = vpop.f32.mrb[0].mxu0
        %5770 = vmatprep.mubr.bf16.mxu0 0
        %5771 = vmatmul.mubr.bf16.gmra.mrb[0].mxu0 %v5637
        %v5772 = vpop.f32.mrb[0].mxu0
        %v5773 = vadd.f32 0.0, %v5772
        %v5774 = vpop.f32.mrb[0].mxu0
        %v5775 = vpop.f32.mrb[0].mxu0
        %v5776 = vadd.f32 0.0, %v5775
        %v5777 = vpop.f32.mrb[0].mxu0
        %5778 = vmatprep.mubr.bf16.mxu0 0
        %5779 = vmatmul.mubr.bf16.gmra.mrb[0].mxu0 %v5638
        %v5780 = vpop.f32.mrb[0].mxu0
        %v5781 = vadd.f32 0.0, %v5780
        %v5782 = vpop.f32.mrb[0].mxu0
        %v5783 = vpop.f32.mrb[0].mxu0
        %v5784 = vadd.f32 0.0, %v5783
        %v5785 = vpop.f32.mrb[0].mxu0
        %5786 = vmatprep.mubr.bf16.mxu0 0
        %5787 = vmatmul.mubr.bf16.gmra.mrb[0].mxu0 %v5639
        %v5788 = vpop.f32.mrb[0].mxu0
        %v5789 = vadd.f32 0.0, %v5788
        %v5790 = vpop.f32.mrb[0].mxu0
        %v5791 = vpop.f32.mrb[0].mxu0
        %v5792 = vadd.f32 0.0, %v5791
        %v5793 = vpop.f32.mrb[0].mxu0
        %5794 = vmatprep.mubr.bf16.mxu0 0
        %5795 = vmatmul.mubr.bf16.gmra.mrb[0].mxu0 %v5640
        %v5796 = vpop.f32.mrb[0].mxu0
        %v5797 = vadd.f32 0.0, %v5796
        %v5798 = vpop.f32.mrb[0].mxu0
        %v5799 = vpop.f32.mrb[0].mxu0
        %v5800 = vadd.f32 0.0, %v5799
        %v5801 = vpop.f32.mrb[0].mxu0
        %5802 = vmatprep.mubr.bf16.mxu0 0
        %5803 = vmatmul.mubr.bf16.gmra.mrb[0].mxu0 %v5641
        %v5804 = vpop.f32.mrb[0].mxu0
        %v5805 = vadd.f32 0.0, %v5804
        %v5806 = vpop.f32.mrb[0].mxu0
        %v5807 = vpop.f32.mrb[0].mxu0
        %v5808 = vadd.f32 0.0, %v5807
        %v5809 = vpop.f32.mrb[0].mxu0
        %5810 = vmatprep.mubr.bf16.mxu0 0
        %5811 = vmatmul.mubr.bf16.gmra.mrb[0].mxu0 %v5642
        %v5812 = vpop.f32.mrb[0].mxu0
        %v5813 = vadd.f32 0.0, %v5812
        %v5814 = vpop.f32.mrb[0].mxu0
        %v5815 = vpop.f32.mrb[0].mxu0
        %v5816 = vadd.f32 0.0, %v5815
        %v5817 = vpop.f32.mrb[0].mxu0
        %5818 = vmatprep.mubr.bf16.mxu0 0
        %5819 = vmatmul.mubr.bf16.gmra.mrb[0].mxu0 %v5643
        %v5820 = vpop.f32.mrb[0].mxu0
        %v5821 = vadd.f32 0.0, %v5820
        %v5822 = vpop.f32.mrb[0].mxu0
        %v5823 = vpop.f32.mrb[0].mxu0
        %v5824 = vadd.f32 0.0, %v5823
        %v5825 = vpop.f32.mrb[0].mxu0
        %5826 = vmatprep.mubr.bf16.mxu0 0
        %5827 = vmatmul.mubr.bf16.gmra.mrb[0].mxu0 %v5644
        %v5828 = vpop.f32.mrb[0].mxu0
        %v5829 = vadd.f32 0.0, %v5828
        %v5830 = vpop.f32.mrb[0].mxu0
        %v5831 = vpop.f32.mrb[0].mxu0
        %v5832 = vadd.f32 0.0, %v5831
        %v5833 = vpop.f32.mrb[0].mxu0
        %5834 = vmatprep.mubr.bf16.mxu0 0
        %5835 = vmatmul.mubr.bf16.gmra.mrb[0].mxu0 %v5645
        %v5836 = vpop.f32.mrb[0].mxu0
        %v5837 = vadd.f32 0.0, %v5836
        %v5838 = vpop.f32.mrb[0].mxu0
        %v5839 = vpop.f32.mrb[0].mxu0
        %v5840 = vadd.f32 0.0, %v5839
        %v5841 = vpop.f32.mrb[0].mxu0
        %5842 = vmatprep.mubr.bf16.mxu0 0
        %5843 = vmatmul.mubr.bf16.gmra.mrb[0].mxu0 %v5646
        %v5844 = vpop.f32.mrb[0].mxu0
        %v5845 = vadd.f32 0.0, %v5844
        %v5846 = vpop.f32.mrb[0].mxu0
        %v5847 = vpop.f32.mrb[0].mxu0
        %v5848 = vadd.f32 0.0, %v5847
        %v5849 = vpop.f32.mrb[0].mxu0
        %5850 = vmatprep.mubr.bf16.mxu0 0
        %5851 = vmatmul.mubr.bf16.gmra.mrb[0].mxu0 %v5647
        %v5852 = vpop.f32.mrb[0].mxu0
        %v5853 = vadd.f32 0.0, %v5852
        %v5854 = vpop.f32.mrb[0].mxu0
        %v5855 = vpop.f32.mrb[0].mxu0
        %v5856 = vadd.f32 0.0, %v5855
        %v5857 = vpop.f32.mrb[0].mxu0
        %5858 = vmatprep.mubr.bf16.mxu0 0
        %5859 = vmatmul.mubr.bf16.gmra.mrb[0].mxu0 %v5648
        %v5860 = vpop.f32.mrb[0].mxu0
        %v5861 = vadd.f32 0.0, %v5860
        %v5862 = vpop.f32.mrb[0].mxu0
        %v5863 = vpop.f32.mrb[0].mxu0
        %v5864 = vadd.f32 0.0, %v5863
        %v5865 = vpop.f32.mrb[0].mxu0
        %5866 = vmatprep.mubr.bf16.mxu0 0
        %5867 = vmatmul.mubr.bf16.gmra.mrb[0].mxu0 %v5649
        %v5868 = vpop.f32.mrb[0].mxu0
        %v5869 = vadd.f32 0.0, %v5868
        %v5870 = vpop.f32.mrb[0].mxu0
        %v5871 = vpop.f32.mrb[0].mxu0
        %v5872 = vadd.f32 0.0, %v5871
        %v5873 = vpop.f32.mrb[0].mxu0
        %5874 = vdwg.mxu0
        %v5875 = vadd.f32 %v5377, %v5749
        %v5876 = vadd.f32 %v5378, %v5752
        %v5877 = vadd.f32 %v5379, %v5757
        %v5878 = vadd.f32 %v5380, %v5760
        %v5879 = vadd.f32 %v5381, %v5765
        %v5880 = vadd.f32 %v5382, %v5768
        %v5881 = vadd.f32 %v5383, %v5773
        %v5882 = vadd.f32 %v5384, %v5776
        %v5883 = vadd.f32 %v5385, %v5781
        %v5884 = vadd.f32 %v5386, %v5784
        %v5885 = vadd.f32 %v5387, %v5789
        %v5886 = vadd.f32 %v5388, %v5792
        %v5887 = vadd.f32 %v5389, %v5797
        %v5888 = vadd.f32 %v5390, %v5800
        %v5889 = vadd.f32 %v5391, %v5805
        %v5890 = vadd.f32 %v5392, %v5808
        %v5891 = vadd.f32 %v5393, %v5813
        %v5892 = vadd.f32 %v5394, %v5816
        %v5893 = vadd.f32 %v5395, %v5821
        %v5894 = vadd.f32 %v5396, %v5824
        %v5895 = vadd.f32 %v5397, %v5829
        %v5896 = vadd.f32 %v5398, %v5832
        %v5897 = vadd.f32 %v5399, %v5837
        %v5898 = vadd.f32 %v5400, %v5840
        %v5899 = vadd.f32 %v5401, %v5845
        %v5900 = vadd.f32 %v5402, %v5848
        %v5901 = vadd.f32 %v5403, %v5853
        %v5902 = vadd.f32 %v5404, %v5856
        %v5903 = vadd.f32 %v5405, %v5861
        %v5904 = vadd.f32 %v5406, %v5864
        %v5905 = vadd.f32 %v5407, %v5869
        %v5906 = vadd.f32 %v5408, %v5872
        %5907 = vst [vmem:[#allocation3] sm:$0xff] %v5875
        %5908 = vst [vmem:[#allocation3 + $0x8] sm:$0xff] %v5876
        %5909 = vst [vmem:[#allocation3 + $0x10] sm:$0xff] %v5877
        %5910 = vst [vmem:[#allocation3 + $0x18] sm:$0xff] %v5878
        %5911 = vst [vmem:[#allocation3 + $0x20] sm:$0xff] %v5879
        %5912 = vst [vmem:[#allocation3 + $0x28] sm:$0xff] %v5880
        %5913 = vst [vmem:[#allocation3 + $0x30] sm:$0xff] %v5881
        %5914 = vst [vmem:[#allocation3 + $0x38] sm:$0xff] %v5882
        %5915 = vst [vmem:[#allocation3 + $0x40] sm:$0xff] %v5883
        %5916 = vst [vmem:[#allocation3 + $0x48] sm:$0xff] %v5884
        %5917 = vst [vmem:[#allocation3 + $0x50] sm:$0xff] %v5885
        %5918 = vst [vmem:[#allocation3 + $0x58] sm:$0xff] %v5886
        %5919 = vst [vmem:[#allocation3 + $0x60] sm:$0xff] %v5887
        %5920 = vst [vmem:[#allocation3 + $0x68] sm:$0xff] %v5888
        %5921 = vst [vmem:[#allocation3 + $0x70] sm:$0xff] %v5889
        %5922 = vst [vmem:[#allocation3 + $0x78] sm:$0xff] %v5890
        %5923 = vst [vmem:[#allocation3 + $0x80] sm:$0xff] %v5891
        %5924 = vst [vmem:[#allocation3 + $0x88] sm:$0xff] %v5892
        %5925 = vst [vmem:[#allocation3 + $0x90] sm:$0xff] %v5893
        %5926 = vst [vmem:[#allocation3 + $0x98] sm:$0xff] %v5894
        %5927 = vst [vmem:[#allocation3 + $0xa0] sm:$0xff] %v5895
        %5928 = vst [vmem:[#allocation3 + $0xa8] sm:$0xff] %v5896
        %5929 = vst [vmem:[#allocation3 + $0xb0] sm:$0xff] %v5897
        %5930 = vst [vmem:[#allocation3 + $0xb8] sm:$0xff] %v5898
        %5931 = vst [vmem:[#allocation3 + $0xc0] sm:$0xff] %v5899
        %5932 = vst [vmem:[#allocation3 + $0xc8] sm:$0xff] %v5900
        %5933 = vst [vmem:[#allocation3 + $0xd0] sm:$0xff] %v5901
        %5934 = vst [vmem:[#allocation3 + $0xd8] sm:$0xff] %v5902
        %5935 = vst [vmem:[#allocation3 + $0xe0] sm:$0xff] %v5903
        %5936 = vst [vmem:[#allocation3 + $0xe8] sm:$0xff] %v5904
        %5937 = vst [vmem:[#allocation3 + $0xf0] sm:$0xff] %v5905
        %5938 = vst [vmem:[#allocation3 + $0xf8] sm:$0xff] %v5906
        %v5939 = vadd.f32 %v5875, %v5876
        %v5940 = vadd.f32 %v5939, %v5877
        %v5941 = vadd.f32 %v5940, %v5878
        %v5942 = vadd.f32 %v5941, %v5879
        %v5943 = vadd.f32 %v5942, %v5880
        %v5944 = vadd.f32 %v5943, %v5881
        %v5945 = vadd.f32 %v5944, %v5882
        %v5946 = vadd.f32 %v5945, %v5883
        %v5947 = vadd.f32 %v5946, %v5884
        %v5948 = vadd.f32 %v5947, %v5885
        %v5949 = vadd.f32 %v5948, %v5886
        %v5950 = vadd.f32 %v5949, %v5887
        %v5951 = vadd.f32 %v5950, %v5888
        %v5952 = vadd.f32 %v5951, %v5889
        %v5953 = vadd.f32 %v5952, %v5890
        %v5954 = vadd.f32 %v5953, %v5891
        %v5955 = vadd.f32 %v5954, %v5892
        %v5956 = vadd.f32 %v5955, %v5893
        %v5957 = vadd.f32 %v5956, %v5894
        %v5958 = vadd.f32 %v5957, %v5895
        %v5959 = vadd.f32 %v5958, %v5896
        %v5960 = vadd.f32 %v5959, %v5897
        %v5961 = vadd.f32 %v5960, %v5898
        %v5962 = vadd.f32 %v5961, %v5899
        %v5963 = vadd.f32 %v5962, %v5900
        %v5964 = vadd.f32 %v5963, %v5901
        %v5965 = vadd.f32 %v5964, %v5902
        %v5966 = vadd.f32 %v5965, %v5903
        %v5967 = vadd.f32 %v5966, %v5904
        %v5968 = vadd.f32 %v5967, %v5905
        %v5969 = vadd.f32 %v5968, %v5906
        %v5970 = vrot.slane %v5969, 4
        %v5971 = vadd.f32 %v5969, %v5970
        %v5972 = vrot.slane %v5971, 2
        %v5973 = vadd.f32 %v5971, %v5972
        %v5974 = vrot.slane %v5973, 1
        %v5975 = vadd.f32 %v5973, %v5974
        %v5976 = vadd.f32 %v5975, 0.0
        %v5977 = vmul.f32 %v5976, 0.00390625
        %v5978 = vld [vmem:[%s1] sm:$0xff]
        %v5979 = vld [vmem:[%s1 + $0x8] sm:$0xff]
        %v5980 = vld [vmem:[%s1 + $0x10] sm:$0xff]
        %v5981 = vld [vmem:[%s1 + $0x18] sm:$0xff]
        %v5982 = vld [vmem:[%s1 + $0x20] sm:$0xff]
        %v5983 = vld [vmem:[%s1 + $0x28] sm:$0xff]
        %v5984 = vld [vmem:[%s1 + $0x30] sm:$0xff]
        %v5985 = vld [vmem:[%s1 + $0x38] sm:$0xff]
        %v5986 = vld [vmem:[%s1 + $0x40] sm:$0xff]
        %v5987 = vld [vmem:[%s1 + $0x48] sm:$0xff]
        %v5988 = vld [vmem:[%s1 + $0x50] sm:$0xff]
        %v5989 = vld [vmem:[%s1 + $0x58] sm:$0xff]
        %v5990 = vld [vmem:[%s1 + $0x60] sm:$0xff]
        %v5991 = vld [vmem:[%s1 + $0x68] sm:$0xff]
        %v5992 = vld [vmem:[%s1 + $0x70] sm:$0xff]
        %v5993 = vld [vmem:[%s1 + $0x78] sm:$0xff]
        %5994 = vmatprep.subr.mxu0 0.0
        %5995 = vmatpush1.msra.mxu0 %v5978
        %5996 = vmatprep.subr.mxu0 0.0
        %5997 = vmatpush1.msra.mxu0 %v5979
        %5998 = vmatprep.subr.mxu0 0.0
        %5999 = vmatpush1.msra.mxu0 %v5980
        %6000 = vmatprep.subr.mxu0 0.0
        %6001 = vmatpush1.msra.mxu0 %v5981
        %6002 = vmatprep.subr.mxu0 0.0
        %6003 = vmatpush1.msra.mxu0 %v5982
        %6004 = vmatprep.subr.mxu0 0.0
        %6005 = vmatpush1.msra.mxu0 %v5983
        %6006 = vmatprep.subr.mxu0 0.0
        %6007 = vmatpush1.msra.mxu0 %v5984
        %6008 = vmatprep.subr.mxu0 0.0
        %6009 = vmatpush1.msra.mxu0 %v5985
        %6010 = vmatprep.subr.mxu0 0.0
        %6011 = vmatpush1.msra.mxu0 %v5986
        %6012 = vmatprep.subr.mxu0 0.0
        %6013 = vmatpush1.msra.mxu0 %v5987
        %6014 = vmatprep.subr.mxu0 0.0
        %6015 = vmatpush1.msra.mxu0 %v5988
        %6016 = vmatprep.subr.mxu0 0.0
        %6017 = vmatpush1.msra.mxu0 %v5989
        %6018 = vmatprep.subr.mxu0 0.0
        %6019 = vmatpush1.msra.mxu0 %v5990
        %6020 = vmatprep.subr.mxu0 0.0
        %6021 = vmatpush1.msra.mxu0 %v5991
        %6022 = vmatprep.subr.mxu0 0.0
        %6023 = vmatpush1.msra.mxu0 %v5992
        %6024 = vmatprep.subr.mxu0 0.0
        %6025 = vmatpush1.msra.mxu0 %v5993
        %6026 = vmatprep.subr.mxu0 0.0
        %6027 = vmatpush1.msra.mxu0 0.0
        %6028 = vmatprep.subr.mxu0 0.0
        %6029 = vmatpush1.msra.mxu0 0.0
        %6030 = vmatprep.subr.mxu0 0.0
        %6031 = vmatpush1.msra.mxu0 0.0
        %6032 = vmatprep.subr.mxu0 0.0
        %6033 = vmatpush1.msra.mxu0 0.0
        %6034 = vmatprep.subr.mxu0 0.0
        %6035 = vmatpush1.msra.mxu0 0.0
        %6036 = vmatprep.subr.mxu0 0.0
        %6037 = vmatpush1.msra.mxu0 0.0
        %6038 = vmatprep.subr.mxu0 0.0
        %6039 = vmatpush1.msra.mxu0 0.0
        %6040 = vmatprep.subr.mxu0 0.0
        %6041 = vmatpush1.msra.mxu0 0.0
        %6042 = vmatprep.subr.mxu0 0.0
        %6043 = vmatpush1.msra.mxu0 0.0
        %6044 = vmatprep.subr.mxu0 0.0
        %6045 = vmatpush1.msra.mxu0 0.0
        %6046 = vmatprep.subr.mxu0 0.0
        %6047 = vmatpush1.msra.mxu0 0.0
        %6048 = vmatprep.subr.mxu0 0.0
        %6049 = vmatpush1.msra.mxu0 0.0
        %6050 = vmatprep.subr.mxu0 0.0
        %6051 = vmatpush1.msra.mxu0 0.0
        %6052 = vmatprep.subr.mxu0 0.0
        %6053 = vmatpush1.msra.mxu0 0.0
        %6054 = vmatprep.subr.mxu0 0.0
        %6055 = vmatpush1.msra.mxu0 0.0
        %6056 = vmatprep.subr.mxu0 0.0
        %6057 = vmatpush1.msra.mxu0 0.0
        %6058 = vmatprep.mubr.f32.mxu0 0.0
        %6059 = vmatmul.mubr.f32.gmra.mrb[0].mxu0 %v5977
        %v6060 = vpop.f32.mrb[0].mxu0
        %v6061 = vadd.f32 0.0, %v6060
        %v6062 = vpop.f32.mrb[0].mxu0
        %6063 = vdwg.mxu0
        %v6064 = vld [vmem:[#allocation3] sm:$0xff]
        %v6065 = vld [vmem:[#allocation3 + $0x8] sm:$0xff]
        %v6066 = vld [vmem:[#allocation3 + $0x10] sm:$0xff]
        %v6067 = vld [vmem:[#allocation3 + $0x18] sm:$0xff]
        %v6068 = vld [vmem:[#allocation3 + $0x20] sm:$0xff]
        %v6069 = vld [vmem:[#allocation3 + $0x28] sm:$0xff]
        %v6070 = vld [vmem:[#allocation3 + $0x30] sm:$0xff]
        %v6071 = vld [vmem:[#allocation3 + $0x38] sm:$0xff]
        %v6072 = vld [vmem:[#allocation3 + $0x40] sm:$0xff]
        %v6073 = vld [vmem:[#allocation3 + $0x48] sm:$0xff]
        %v6074 = vld [vmem:[#allocation3 + $0x50] sm:$0xff]
        %v6075 = vld [vmem:[#allocation3 + $0x58] sm:$0xff]
        %v6076 = vld [vmem:[#allocation3 + $0x60] sm:$0xff]
        %v6077 = vld [vmem:[#allocation3 + $0x68] sm:$0xff]
        %v6078 = vld [vmem:[#allocation3 + $0x70] sm:$0xff]
        %v6079 = vld [vmem:[#allocation3 + $0x78] sm:$0xff]
        %v6080 = vld [vmem:[#allocation3 + $0x80] sm:$0xff]
        %v6081 = vld [vmem:[#allocation3 + $0x88] sm:$0xff]
        %v6082 = vld [vmem:[#allocation3 + $0x90] sm:$0xff]
        %v6083 = vld [vmem:[#allocation3 + $0x98] sm:$0xff]
        %v6084 = vld [vmem:[#allocation3 + $0xa0] sm:$0xff]
        %v6085 = vld [vmem:[#allocation3 + $0xa8] sm:$0xff]
        %v6086 = vld [vmem:[#allocation3 + $0xb0] sm:$0xff]
        %v6087 = vld [vmem:[#allocation3 + $0xb8] sm:$0xff]
        %v6088 = vld [vmem:[#allocation3 + $0xc0] sm:$0xff]
        %v6089 = vld [vmem:[#allocation3 + $0xc8] sm:$0xff]
        %v6090 = vld [vmem:[#allocation3 + $0xd0] sm:$0xff]
        %v6091 = vld [vmem:[#allocation3 + $0xd8] sm:$0xff]
        %v6092 = vld [vmem:[#allocation3 + $0xe0] sm:$0xff]
        %v6093 = vld [vmem:[#allocation3 + $0xe8] sm:$0xff]
        %v6094 = vld [vmem:[#allocation3 + $0xf0] sm:$0xff]
        %v6095 = vld [vmem:[#allocation3 + $0xf8] sm:$0xff]
        %v6096 = vlaneseq
        %v6097 = vshrl.u32 %v6096, 7
        %v6098 = vsub.s32 0, %v6097
        %v6099 = vrot.slane %v6061, %v6098
        %v6100 = vsub.f32 %v6064, %v6099
        %v6101 = vsub.f32 %v6065, %v6099
        %v6102 = vsub.f32 %v6066, %v6099
        %v6103 = vsub.f32 %v6067, %v6099
        %v6104 = vsub.f32 %v6068, %v6099
        %v6105 = vsub.f32 %v6069, %v6099
        %v6106 = vsub.f32 %v6070, %v6099
        %v6107 = vsub.f32 %v6071, %v6099
        %v6108 = vsub.f32 %v6072, %v6099
        %v6109 = vsub.f32 %v6073, %v6099
        %v6110 = vsub.f32 %v6074, %v6099
        %v6111 = vsub.f32 %v6075, %v6099
        %v6112 = vsub.f32 %v6076, %v6099
        %v6113 = vsub.f32 %v6077, %v6099
        %v6114 = vsub.f32 %v6078, %v6099
        %v6115 = vsub.f32 %v6079, %v6099
        %v6116 = vsub.f32 %v6080, %v6099
        %v6117 = vsub.f32 %v6081, %v6099
        %v6118 = vsub.f32 %v6082, %v6099
        %v6119 = vsub.f32 %v6083, %v6099
        %v6120 = vsub.f32 %v6084, %v6099
        %v6121 = vsub.f32 %v6085, %v6099
        %v6122 = vsub.f32 %v6086, %v6099
        %v6123 = vsub.f32 %v6087, %v6099
        %v6124 = vsub.f32 %v6088, %v6099
        %v6125 = vsub.f32 %v6089, %v6099
        %v6126 = vsub.f32 %v6090, %v6099
        %v6127 = vsub.f32 %v6091, %v6099
        %v6128 = vsub.f32 %v6092, %v6099
        %v6129 = vsub.f32 %v6093, %v6099
        %v6130 = vsub.f32 %v6094, %v6099
        %v6131 = vsub.f32 %v6095, %v6099
        %v6132 = vmul.f32 %v6100, %v6100
        %v6133 = vmul.f32 %v6101, %v6101
        %v6134 = vmul.f32 %v6102, %v6102
        %v6135 = vmul.f32 %v6103, %v6103
        %v6136 = vmul.f32 %v6104, %v6104
        %v6137 = vmul.f32 %v6105, %v6105
        %v6138 = vmul.f32 %v6106, %v6106
        %v6139 = vmul.f32 %v6107, %v6107
        %v6140 = vmul.f32 %v6108, %v6108
        %v6141 = vmul.f32 %v6109, %v6109
        %v6142 = vmul.f32 %v6110, %v6110
        %v6143 = vmul.f32 %v6111, %v6111
        %v6144 = vmul.f32 %v6112, %v6112
        %v6145 = vmul.f32 %v6113, %v6113
        %v6146 = vmul.f32 %v6114, %v6114
        %v6147 = vmul.f32 %v6115, %v6115
        %v6148 = vmul.f32 %v6116, %v6116
        %v6149 = vmul.f32 %v6117, %v6117
        %v6150 = vmul.f32 %v6118, %v6118
        %v6151 = vmul.f32 %v6119, %v6119
        %v6152 = vmul.f32 %v6120, %v6120
        %v6153 = vmul.f32 %v6121, %v6121
        %v6154 = vmul.f32 %v6122, %v6122
        %v6155 = vmul.f32 %v6123, %v6123
        %v6156 = vmul.f32 %v6124, %v6124
        %v6157 = vmul.f32 %v6125, %v6125
        %v6158 = vmul.f32 %v6126, %v6126
        %v6159 = vmul.f32 %v6127, %v6127
        %v6160 = vmul.f32 %v6128, %v6128
        %v6161 = vmul.f32 %v6129, %v6129
        %v6162 = vmul.f32 %v6130, %v6130
        %v6163 = vmul.f32 %v6131, %v6131
        %v6164 = vadd.f32 %v6132, %v6133
        %v6165 = vadd.f32 %v6164, %v6134
        %v6166 = vadd.f32 %v6165, %v6135
        %v6167 = vadd.f32 %v6166, %v6136
        %v6168 = vadd.f32 %v6167, %v6137
        %v6169 = vadd.f32 %v6168, %v6138
        %v6170 = vadd.f32 %v6169, %v6139
        %v6171 = vadd.f32 %v6170, %v6140
        %v6172 = vadd.f32 %v6171, %v6141
        %v6173 = vadd.f32 %v6172, %v6142
        %v6174 = vadd.f32 %v6173, %v6143
        %v6175 = vadd.f32 %v6174, %v6144
        %v6176 = vadd.f32 %v6175, %v6145
        %v6177 = vadd.f32 %v6176, %v6146
        %v6178 = vadd.f32 %v6177, %v6147
        %v6179 = vadd.f32 %v6178, %v6148
        %v6180 = vadd.f32 %v6179, %v6149
        %v6181 = vadd.f32 %v6180, %v6150
        %v6182 = vadd.f32 %v6181, %v6151
        %v6183 = vadd.f32 %v6182, %v6152
        %v6184 = vadd.f32 %v6183, %v6153
        %v6185 = vadd.f32 %v6184, %v6154
        %v6186 = vadd.f32 %v6185, %v6155
        %v6187 = vadd.f32 %v6186, %v6156
        %v6188 = vadd.f32 %v6187, %v6157
        %v6189 = vadd.f32 %v6188, %v6158
        %v6190 = vadd.f32 %v6189, %v6159
        %v6191 = vadd.f32 %v6190, %v6160
        %v6192 = vadd.f32 %v6191, %v6161
        %v6193 = vadd.f32 %v6192, %v6162
        %v6194 = vadd.f32 %v6193, %v6163
        %v6195 = vrot.slane %v6194, 4
        %v6196 = vadd.f32 %v6194, %v6195
        %v6197 = vrot.slane %v6196, 2
        %v6198 = vadd.f32 %v6196, %v6197
        %v6199 = vrot.slane %v6198, 1
        %v6200 = vadd.f32 %v6198, %v6199
        %v6201 = vadd.f32 %v6200, 0.0
        %v6202 = vmul.f32 %v6201, 0.00390625
        %v6203 = vld [vmem:[%s5] sm:$0x1]
        %6204 = vmatprep.subr.mxu0 0.0
        %6205 = vmatpush1.msra.mxu0 %v5978
        %6206 = vmatprep.subr.mxu0 0.0
        %6207 = vmatpush1.msra.mxu0 %v5979
        %6208 = vmatprep.subr.mxu0 0.0
        %6209 = vmatpush1.msra.mxu0 %v5980
        %6210 = vmatprep.subr.mxu0 0.0
        %6211 = vmatpush1.msra.mxu0 %v5981
        %6212 = vmatprep.subr.mxu0 0.0
        %6213 = vmatpush1.msra.mxu0 %v5982
        %6214 = vmatprep.subr.mxu0 0.0
        %6215 = vmatpush1.msra.mxu0 %v5983
        %6216 = vmatprep.subr.mxu0 0.0
        %6217 = vmatpush1.msra.mxu0 %v5984
        %6218 = vmatprep.subr.mxu0 0.0
        %6219 = vmatpush1.msra.mxu0 %v5985
        %6220 = vmatprep.subr.mxu0 0.0
        %6221 = vmatpush1.msra.mxu0 %v5986
        %6222 = vmatprep.subr.mxu0 0.0
        %6223 = vmatpush1.msra.mxu0 %v5987
        %6224 = vmatprep.subr.mxu0 0.0
        %6225 = vmatpush1.msra.mxu0 %v5988
        %6226 = vmatprep.subr.mxu0 0.0
        %6227 = vmatpush1.msra.mxu0 %v5989
        %6228 = vmatprep.subr.mxu0 0.0
        %6229 = vmatpush1.msra.mxu0 %v5990
        %6230 = vmatprep.subr.mxu0 0.0
        %6231 = vmatpush1.msra.mxu0 %v5991
        %6232 = vmatprep.subr.mxu0 0.0
        %6233 = vmatpush1.msra.mxu0 %v5992
        %6234 = vmatprep.subr.mxu0 0.0
        %6235 = vmatpush1.msra.mxu0 %v5993
        %6236 = vmatprep.subr.mxu0 0.0
        %6237 = vmatpush1.msra.mxu0 0.0
        %6238 = vmatprep.subr.mxu0 0.0
        %6239 = vmatpush1.msra.mxu0 0.0
        %6240 = vmatprep.subr.mxu0 0.0
        %6241 = vmatpush1.msra.mxu0 0.0
        %6242 = vmatprep.subr.mxu0 0.0
        %6243 = vmatpush1.msra.mxu0 0.0
        %6244 = vmatprep.subr.mxu0 0.0
        %6245 = vmatpush1.msra.mxu0 0.0
        %6246 = vmatprep.subr.mxu0 0.0
        %6247 = vmatpush1.msra.mxu0 0.0
        %6248 = vmatprep.subr.mxu0 0.0
        %6249 = vmatpush1.msra.mxu0 0.0
        %6250 = vmatprep.subr.mxu0 0.0
        %6251 = vmatpush1.msra.mxu0 0.0
        %6252 = vmatprep.subr.mxu0 0.0
        %6253 = vmatpush1.msra.mxu0 0.0
        %6254 = vmatprep.subr.mxu0 0.0
        %6255 = vmatpush1.msra.mxu0 0.0
        %6256 = vmatprep.subr.mxu0 0.0
        %6257 = vmatpush1.msra.mxu0 0.0
        %6258 = vmatprep.subr.mxu0 0.0
        %6259 = vmatpush1.msra.mxu0 0.0
        %6260 = vmatprep.subr.mxu0 0.0
        %6261 = vmatpush1.msra.mxu0 0.0
        %6262 = vmatprep.subr.mxu0 0.0
        %6263 = vmatpush1.msra.mxu0 0.0
        %6264 = vmatprep.subr.mxu0 0.0
        %6265 = vmatpush1.msra.mxu0 0.0
        %6266 = vmatprep.subr.mxu0 0.0
        %6267 = vmatpush1.msra.mxu0 0.0
        %6268 = vmatprep.mubr.f32.mxu0 0.0
        %6269 = vmatmul.mubr.f32.gmra.mrb[0].mxu0 %v6202
        %v6270 = vpop.f32.mrb[0].mxu0
        %v6271 = vadd.f32 1e-05, %v6270
        %v6272 = vpop.f32.mrb[0].mxu0
        %6273 = vdwg.mxu0
        %v6274 = vrsqrt.pop %v6271
        %v6275 = vmul.f32 %v6203, %v6274
        %v6276 = vld [vmem:[%s6] sm:$0x1]
        %v6277 = vmul.f32 %v6061, %v6275
        %v6278 = vsub.f32 %v6276, %v6277
        %v6280 = vlaneseq
        %v6281 = vshrl.u32 %v6280, 7
        %v6282 = vsub.s32 0, %v6281
        %v6283 = vrot.slane %v6275, %v6282
        %v6285 = vmul.f32 %v6064, %v6283
        %v6286 = vmul.f32 %v6065, %v6283
        %v6287 = vmul.f32 %v6066, %v6283
        %v6288 = vmul.f32 %v6067, %v6283
        %v6289 = vmul.f32 %v6068, %v6283
        %v6290 = vmul.f32 %v6069, %v6283
        %v6291 = vmul.f32 %v6070, %v6283
        %v6292 = vmul.f32 %v6071, %v6283
        %v6293 = vmul.f32 %v6072, %v6283
        %v6294 = vmul.f32 %v6073, %v6283
        %v6295 = vmul.f32 %v6074, %v6283
        %v6296 = vmul.f32 %v6075, %v6283
        %v6297 = vmul.f32 %v6076, %v6283
        %v6298 = vmul.f32 %v6077, %v6283
        %v6299 = vmul.f32 %v6078, %v6283
        %v6300 = vmul.f32 %v6079, %v6283
        %v6301 = vmul.f32 %v6080, %v6283
        %v6302 = vmul.f32 %v6081, %v6283
        %v6303 = vmul.f32 %v6082, %v6283
        %v6304 = vmul.f32 %v6083, %v6283
        %v6305 = vmul.f32 %v6084, %v6283
        %v6306 = vmul.f32 %v6085, %v6283
        %v6307 = vmul.f32 %v6086, %v6283
        %v6308 = vmul.f32 %v6087, %v6283
        %v6309 = vmul.f32 %v6088, %v6283
        %v6310 = vmul.f32 %v6089, %v6283
        %v6311 = vmul.f32 %v6090, %v6283
        %v6312 = vmul.f32 %v6091, %v6283
        %v6313 = vmul.f32 %v6092, %v6283
        %v6314 = vmul.f32 %v6093, %v6283
        %v6315 = vmul.f32 %v6094, %v6283
        %v6316 = vmul.f32 %v6095, %v6283
        %v6318 = vlaneseq
        %v6319 = vshrl.u32 %v6318, 7
        %v6320 = vsub.s32 0, %v6319
        %v6321 = vrot.slane %v6278, %v6320
        %v6323 = vadd.f32 %v6285, %v6321
        %v6324 = vadd.f32 %v6286, %v6321
        %v6325 = vadd.f32 %v6287, %v6321
        %v6326 = vadd.f32 %v6288, %v6321
        %v6327 = vadd.f32 %v6289, %v6321
        %v6328 = vadd.f32 %v6290, %v6321
        %v6329 = vadd.f32 %v6291, %v6321
        %v6330 = vadd.f32 %v6292, %v6321
        %v6331 = vadd.f32 %v6293, %v6321
        %v6332 = vadd.f32 %v6294, %v6321
        %v6333 = vadd.f32 %v6295, %v6321
        %v6334 = vadd.f32 %v6296, %v6321
        %v6335 = vadd.f32 %v6297, %v6321
        %v6336 = vadd.f32 %v6298, %v6321
        %v6337 = vadd.f32 %v6299, %v6321
        %v6338 = vadd.f32 %v6300, %v6321
        %v6339 = vadd.f32 %v6301, %v6321
        %v6340 = vadd.f32 %v6302, %v6321
        %v6341 = vadd.f32 %v6303, %v6321
        %v6342 = vadd.f32 %v6304, %v6321
        %v6343 = vadd.f32 %v6305, %v6321
        %v6344 = vadd.f32 %v6306, %v6321
        %v6345 = vadd.f32 %v6307, %v6321
        %v6346 = vadd.f32 %v6308, %v6321
        %v6347 = vadd.f32 %v6309, %v6321
        %v6348 = vadd.f32 %v6310, %v6321
        %v6349 = vadd.f32 %v6311, %v6321
        %v6350 = vadd.f32 %v6312, %v6321
        %v6351 = vadd.f32 %v6313, %v6321
        %v6352 = vadd.f32 %v6314, %v6321
        %v6353 = vadd.f32 %v6315, %v6321
        %v6354 = vadd.f32 %v6316, %v6321
        %v6355 = vmax.f32 %v6323, 0.0
        %v6356 = vmax.f32 %v6324, 0.0
        %v6357 = vmax.f32 %v6325, 0.0
        %v6358 = vmax.f32 %v6326, 0.0
        %v6359 = vmax.f32 %v6327, 0.0
        %v6360 = vmax.f32 %v6328, 0.0
        %v6361 = vmax.f32 %v6329, 0.0
        %v6362 = vmax.f32 %v6330, 0.0
        %v6363 = vmax.f32 %v6331, 0.0
        %v6364 = vmax.f32 %v6332, 0.0
        %v6365 = vmax.f32 %v6333, 0.0
        %v6366 = vmax.f32 %v6334, 0.0
        %v6367 = vmax.f32 %v6335, 0.0
        %v6368 = vmax.f32 %v6336, 0.0
        %v6369 = vmax.f32 %v6337, 0.0
        %v6370 = vmax.f32 %v6338, 0.0
        %v6371 = vmax.f32 %v6339, 0.0
        %v6372 = vmax.f32 %v6340, 0.0
        %v6373 = vmax.f32 %v6341, 0.0
        %v6374 = vmax.f32 %v6342, 0.0
        %v6375 = vmax.f32 %v6343, 0.0
        %v6376 = vmax.f32 %v6344, 0.0
        %v6377 = vmax.f32 %v6345, 0.0
        %v6378 = vmax.f32 %v6346, 0.0
        %v6379 = vmax.f32 %v6347, 0.0
        %v6380 = vmax.f32 %v6348, 0.0
        %v6381 = vmax.f32 %v6349, 0.0
        %v6382 = vmax.f32 %v6350, 0.0
        %v6383 = vmax.f32 %v6351, 0.0
        %v6384 = vmax.f32 %v6352, 0.0
        %v6385 = vmax.f32 %v6353, 0.0
        %v6386 = vmax.f32 %v6354, 0.0
        %v6387 = vpack.c.bf16 %v6356, %v6355
        %v6388 = vpack.c.bf16 %v6358, %v6357
        %v6389 = vpack.c.bf16 %v6360, %v6359
        %v6390 = vpack.c.bf16 %v6362, %v6361
        %v6391 = vpack.c.bf16 %v6364, %v6363
        %v6392 = vpack.c.bf16 %v6366, %v6365
        %v6393 = vpack.c.bf16 %v6368, %v6367
        %v6394 = vpack.c.bf16 %v6370, %v6369
        %v6395 = vpack.c.bf16 %v6372, %v6371
        %v6396 = vpack.c.bf16 %v6374, %v6373
        %v6397 = vpack.c.bf16 %v6376, %v6375
        %v6398 = vpack.c.bf16 %v6378, %v6377
        %v6399 = vpack.c.bf16 %v6380, %v6379
        %v6400 = vpack.c.bf16 %v6382, %v6381
        %v6401 = vpack.c.bf16 %v6384, %v6383
        %v6402 = vpack.c.bf16 %v6386, %v6385
        %v6419 = vunpack.c.l.b16 %v6387
        %v6420 = vunpack.c.h.b16 %v6387
        %v6421 = vunpack.c.l.b16 %v6388
        %v6422 = vunpack.c.h.b16 %v6388
        %v6423 = vunpack.c.l.b16 %v6389
        %v6424 = vunpack.c.h.b16 %v6389
        %v6425 = vunpack.c.l.b16 %v6390
        %v6426 = vunpack.c.h.b16 %v6390
        %v6427 = vunpack.c.l.b16 %v6391
        %v6428 = vunpack.c.h.b16 %v6391
        %v6429 = vunpack.c.l.b16 %v6392
        %v6430 = vunpack.c.h.b16 %v6392
        %v6431 = vunpack.c.l.b16 %v6393
        %v6432 = vunpack.c.h.b16 %v6393
        %v6433 = vunpack.c.l.b16 %v6394
        %v6434 = vunpack.c.h.b16 %v6394
        %v6435 = vunpack.c.l.b16 %v6395
        %v6436 = vunpack.c.h.b16 %v6395
        %v6437 = vunpack.c.l.b16 %v6396
        %v6438 = vunpack.c.h.b16 %v6396
        %v6439 = vunpack.c.l.b16 %v6397
        %v6440 = vunpack.c.h.b16 %v6397
        %v6441 = vunpack.c.l.b16 %v6398
        %v6442 = vunpack.c.h.b16 %v6398
        %v6443 = vunpack.c.l.b16 %v6399
        %v6444 = vunpack.c.h.b16 %v6399
        %v6445 = vunpack.c.l.b16 %v6400
        %v6446 = vunpack.c.h.b16 %v6400
        %v6447 = vunpack.c.l.b16 %v6401
        %v6448 = vunpack.c.h.b16 %v6401
        %v6449 = vunpack.c.l.b16 %v6402
        %v6450 = vunpack.c.h.b16 %v6402
        %v6451 = vpack.c.b16 %v6419, %v6419
        %v6452 = vpack.c.b16 %v6420, %v6420
        %v6453 = vpack.c.b16 %v6421, %v6421
        %v6454 = vpack.c.b16 %v6422, %v6422
        %v6455 = vpack.c.b16 %v6423, %v6423
        %v6456 = vpack.c.b16 %v6424, %v6424
        %v6457 = vpack.c.b16 %v6425, %v6425
        %v6458 = vpack.c.b16 %v6426, %v6426
        %v6459 = vpack.c.b16 %v6427, %v6427
        %v6460 = vpack.c.b16 %v6428, %v6428
        %v6461 = vpack.c.b16 %v6429, %v6429
        %v6462 = vpack.c.b16 %v6430, %v6430
        %v6463 = vpack.c.b16 %v6431, %v6431
        %v6464 = vpack.c.b16 %v6432, %v6432
        %v6465 = vpack.c.b16 %v6433, %v6433
        %v6466 = vpack.c.b16 %v6434, %v6434
        %v6467 = vpack.c.b16 %v6435, %v6435
        %v6468 = vpack.c.b16 %v6436, %v6436
        %v6469 = vpack.c.b16 %v6437, %v6437
        %v6470 = vpack.c.b16 %v6438, %v6438
        %v6471 = vpack.c.b16 %v6439, %v6439
        %v6472 = vpack.c.b16 %v6440, %v6440
        %v6473 = vpack.c.b16 %v6441, %v6441
        %v6474 = vpack.c.b16 %v6442, %v6442
        %v6475 = vpack.c.b16 %v6443, %v6443
        %v6476 = vpack.c.b16 %v6444, %v6444
        %v6477 = vpack.c.b16 %v6445, %v6445
        %v6478 = vpack.c.b16 %v6446, %v6446
        %v6479 = vpack.c.b16 %v6447, %v6447
        %v6480 = vpack.c.b16 %v6448, %v6448
        %v6481 = vpack.c.b16 %v6449, %v6449
        %v6482 = vpack.c.b16 %v6450, %v6450
        %v6484 = vshrl.u32 %v6451, 16
        %v6486 = vrot.slane %v6484, 7
        %v6487 = vshll.u32 %v6451, 16
        %v6489 = vor.u32 %v6486, %v6487
        %v6490 = vrot.slane %v6486, 4
        %v6492 = vshrl.u32 %v6452, 16
        %v6494 = vrot.slane %v6492, 7
        %v6495 = vshll.u32 %v6452, 16
        %v6497 = vor.u32 %v6494, %v6495
        %v6498 = vsel %vm657, %v6490, %v6497
        %v6499 = vrot.slane %v6494, 4
        %v6501 = vshrl.u32 %v6453, 16
        %v6503 = vrot.slane %v6501, 7
        %v6504 = vshll.u32 %v6453, 16
        %v6506 = vor.u32 %v6503, %v6504
        %v6507 = vrot.slane %v6503, 4
        %v6509 = vshrl.u32 %v6454, 16
        %v6511 = vrot.slane %v6509, 7
        %v6512 = vshll.u32 %v6454, 16
        %v6514 = vor.u32 %v6511, %v6512
        %v6515 = vsel %vm657, %v6507, %v6514
        %v6516 = vrot.slane %v6511, 4
        %v6518 = vshrl.u32 %v6455, 16
        %v6520 = vrot.slane %v6518, 7
        %v6521 = vshll.u32 %v6455, 16
        %v6523 = vor.u32 %v6520, %v6521
        %v6524 = vrot.slane %v6520, 4
        %v6526 = vshrl.u32 %v6456, 16
        %v6528 = vrot.slane %v6526, 7
        %v6529 = vshll.u32 %v6456, 16
        %v6531 = vor.u32 %v6528, %v6529
        %v6532 = vsel %vm657, %v6524, %v6531
        %v6533 = vrot.slane %v6528, 4
        %v6535 = vshrl.u32 %v6457, 16
        %v6537 = vrot.slane %v6535, 7
        %v6538 = vshll.u32 %v6457, 16
        %v6540 = vor.u32 %v6537, %v6538
        %v6541 = vrot.slane %v6537, 4
        %v6543 = vshrl.u32 %v6458, 16
        %v6545 = vrot.slane %v6543, 7
        %v6546 = vshll.u32 %v6458, 16
        %v6548 = vor.u32 %v6545, %v6546
        %v6549 = vsel %vm657, %v6541, %v6548
        %v6550 = vrot.slane %v6545, 4
        %v6552 = vshrl.u32 %v6459, 16
        %v6554 = vrot.slane %v6552, 7
        %v6555 = vshll.u32 %v6459, 16
        %v6557 = vor.u32 %v6554, %v6555
        %v6558 = vrot.slane %v6554, 4
        %v6560 = vshrl.u32 %v6460, 16
        %v6562 = vrot.slane %v6560, 7
        %v6563 = vshll.u32 %v6460, 16
        %v6565 = vor.u32 %v6562, %v6563
        %v6566 = vsel %vm657, %v6558, %v6565
        %v6567 = vrot.slane %v6562, 4
        %v6569 = vshrl.u32 %v6461, 16
        %v6571 = vrot.slane %v6569, 7
        %v6572 = vshll.u32 %v6461, 16
        %v6574 = vor.u32 %v6571, %v6572
        %v6575 = vrot.slane %v6571, 4
        %v6577 = vshrl.u32 %v6462, 16
        %v6579 = vrot.slane %v6577, 7
        %v6580 = vshll.u32 %v6462, 16
        %v6582 = vor.u32 %v6579, %v6580
        %v6583 = vsel %vm657, %v6575, %v6582
        %v6584 = vrot.slane %v6579, 4
        %v6586 = vshrl.u32 %v6463, 16
        %v6588 = vrot.slane %v6586, 7
        %v6589 = vshll.u32 %v6463, 16
        %v6591 = vor.u32 %v6588, %v6589
        %v6592 = vrot.slane %v6588, 4
        %v6594 = vshrl.u32 %v6464, 16
        %v6596 = vrot.slane %v6594, 7
        %v6597 = vshll.u32 %v6464, 16
        %v6599 = vor.u32 %v6596, %v6597
        %v6600 = vsel %vm657, %v6592, %v6599
        %v6601 = vrot.slane %v6596, 4
        %v6603 = vshrl.u32 %v6465, 16
        %v6605 = vrot.slane %v6603, 7
        %v6606 = vshll.u32 %v6465, 16
        %v6608 = vor.u32 %v6605, %v6606
        %v6609 = vrot.slane %v6605, 4
        %v6611 = vshrl.u32 %v6466, 16
        %v6613 = vrot.slane %v6611, 7
        %v6614 = vshll.u32 %v6466, 16
        %v6616 = vor.u32 %v6613, %v6614
        %v6617 = vsel %vm657, %v6609, %v6616
        %v6618 = vrot.slane %v6613, 4
        %v6620 = vshrl.u32 %v6467, 16
        %v6622 = vrot.slane %v6620, 7
        %v6623 = vshll.u32 %v6467, 16
        %v6625 = vor.u32 %v6622, %v6623
        %v6626 = vrot.slane %v6622, 4
        %v6628 = vshrl.u32 %v6468, 16
        %v6630 = vrot.slane %v6628, 7
        %v6631 = vshll.u32 %v6468, 16
        %v6633 = vor.u32 %v6630, %v6631
        %v6634 = vsel %vm657, %v6626, %v6633
        %v6635 = vrot.slane %v6630, 4
        %v6637 = vshrl.u32 %v6469, 16
        %v6639 = vrot.slane %v6637, 7
        %v6640 = vshll.u32 %v6469, 16
        %v6642 = vor.u32 %v6639, %v6640
        %v6643 = vrot.slane %v6639, 4
        %v6645 = vshrl.u32 %v6470, 16
        %v6647 = vrot.slane %v6645, 7
        %v6648 = vshll.u32 %v6470, 16
        %v6650 = vor.u32 %v6647, %v6648
        %v6651 = vsel %vm657, %v6643, %v6650
        %v6652 = vrot.slane %v6647, 4
        %v6654 = vshrl.u32 %v6471, 16
        %v6656 = vrot.slane %v6654, 7
        %v6657 = vshll.u32 %v6471, 16
        %v6659 = vor.u32 %v6656, %v6657
        %v6660 = vrot.slane %v6656, 4
        %v6662 = vshrl.u32 %v6472, 16
        %v6664 = vrot.slane %v6662, 7
        %v6665 = vshll.u32 %v6472, 16
        %v6667 = vor.u32 %v6664, %v6665
        %v6668 = vsel %vm657, %v6660, %v6667
        %v6669 = vrot.slane %v6664, 4
        %v6671 = vshrl.u32 %v6473, 16
        %v6673 = vrot.slane %v6671, 7
        %v6674 = vshll.u32 %v6473, 16
        %v6676 = vor.u32 %v6673, %v6674
        %v6677 = vrot.slane %v6673, 4
        %v6679 = vshrl.u32 %v6474, 16
        %v6681 = vrot.slane %v6679, 7
        %v6682 = vshll.u32 %v6474, 16
        %v6684 = vor.u32 %v6681, %v6682
        %v6685 = vsel %vm657, %v6677, %v6684
        %v6686 = vrot.slane %v6681, 4
        %v6688 = vshrl.u32 %v6475, 16
        %v6690 = vrot.slane %v6688, 7
        %v6691 = vshll.u32 %v6475, 16
        %v6693 = vor.u32 %v6690, %v6691
        %v6694 = vrot.slane %v6690, 4
        %v6696 = vshrl.u32 %v6476, 16
        %v6698 = vrot.slane %v6696, 7
        %v6699 = vshll.u32 %v6476, 16
        %v6701 = vor.u32 %v6698, %v6699
        %v6702 = vsel %vm657, %v6694, %v6701
        %v6703 = vrot.slane %v6698, 4
        %v6705 = vshrl.u32 %v6477, 16
        %v6707 = vrot.slane %v6705, 7
        %v6708 = vshll.u32 %v6477, 16
        %v6710 = vor.u32 %v6707, %v6708
        %v6711 = vrot.slane %v6707, 4
        %v6713 = vshrl.u32 %v6478, 16
        %v6715 = vrot.slane %v6713, 7
        %v6716 = vshll.u32 %v6478, 16
        %v6718 = vor.u32 %v6715, %v6716
        %v6719 = vsel %vm657, %v6711, %v6718
        %v6720 = vrot.slane %v6715, 4
        %v6722 = vshrl.u32 %v6479, 16
        %v6724 = vrot.slane %v6722, 7
        %v6725 = vshll.u32 %v6479, 16
        %v6727 = vor.u32 %v6724, %v6725
        %v6728 = vrot.slane %v6724, 4
        %v6730 = vshrl.u32 %v6480, 16
        %v6732 = vrot.slane %v6730, 7
        %v6733 = vshll.u32 %v6480, 16
        %v6735 = vor.u32 %v6732, %v6733
        %v6736 = vsel %vm657, %v6728, %v6735
        %v6737 = vrot.slane %v6732, 4
        %v6739 = vshrl.u32 %v6481, 16
        %v6741 = vrot.slane %v6739, 7
        %v6742 = vshll.u32 %v6481, 16
        %v6744 = vor.u32 %v6741, %v6742
        %v6745 = vrot.slane %v6741, 4
        %v6747 = vshrl.u32 %v6482, 16
        %v6749 = vrot.slane %v6747, 7
        %v6750 = vshll.u32 %v6482, 16
        %v6752 = vor.u32 %v6749, %v6750
        %v6753 = vsel %vm657, %v6745, %v6752
        %v6754 = vrot.slane %v6749, 4
        %v6803 = vld [vmem:[%s509] sm:$0xf]
        %v6804 = vsel %vm511, %v6489, %v6803
        %6805 = vst [vmem:[%s509] sm:$0xf] %v6804
        %6806 = vst [vmem:[%s509 + $0x4] sm:$0xf] %v6498
        %v6807 = vld [vmem:[%s509 + $0x8] sm:$0x1]
        %v6808 = vsel %vm398, %v6499, %v6807
        %6809 = vst [vmem:[%s509 + $0x8] sm:$0x1] %v6808
        %v6810 = vld [vmem:[%s509 + $0xc] sm:$0xf]
        %v6811 = vsel %vm511, %v6506, %v6810
        %6812 = vst [vmem:[%s509 + $0xc] sm:$0xf] %v6811
        %6813 = vst [vmem:[%s509 + $0x10] sm:$0xf] %v6515
        %v6814 = vld [vmem:[%s509 + $0x14] sm:$0x1]
        %v6815 = vsel %vm398, %v6516, %v6814
        %6816 = vst [vmem:[%s509 + $0x14] sm:$0x1] %v6815
        %v6817 = vld [vmem:[%s509 + $0x18] sm:$0xf]
        %v6818 = vsel %vm511, %v6523, %v6817
        %6819 = vst [vmem:[%s509 + $0x18] sm:$0xf] %v6818
        %6820 = vst [vmem:[%s509 + $0x1c] sm:$0xf] %v6532
        %v6821 = vld [vmem:[%s509 + $0x20] sm:$0x1]
        %v6822 = vsel %vm398, %v6533, %v6821
        %6823 = vst [vmem:[%s509 + $0x20] sm:$0x1] %v6822
        %v6824 = vld [vmem:[%s509 + $0x24] sm:$0xf]
        %v6825 = vsel %vm511, %v6540, %v6824
        %6826 = vst [vmem:[%s509 + $0x24] sm:$0xf] %v6825
        %6827 = vst [vmem:[%s509 + $0x28] sm:$0xf] %v6549
        %v6828 = vld [vmem:[%s509 + $0x2c] sm:$0x1]
        %v6829 = vsel %vm398, %v6550, %v6828
        %6830 = vst [vmem:[%s509 + $0x2c] sm:$0x1] %v6829
        %v6831 = vld [vmem:[%s509 + $0x30] sm:$0xf]
        %v6832 = vsel %vm511, %v6557, %v6831
        %6833 = vst [vmem:[%s509 + $0x30] sm:$0xf] %v6832
        %6834 = vst [vmem:[%s509 + $0x34] sm:$0xf] %v6566
        %v6835 = vld [vmem:[%s509 + $0x38] sm:$0x1]
        %v6836 = vsel %vm398, %v6567, %v6835
        %6837 = vst [vmem:[%s509 + $0x38] sm:$0x1] %v6836
        %v6838 = vld [vmem:[%s509 + $0x3c] sm:$0xf]
        %v6839 = vsel %vm511, %v6574, %v6838
        %6840 = vst [vmem:[%s509 + $0x3c] sm:$0xf] %v6839
        %6841 = vst [vmem:[%s509 + $0x40] sm:$0xf] %v6583
        %v6842 = vld [vmem:[%s509 + $0x44] sm:$0x1]
        %v6843 = vsel %vm398, %v6584, %v6842
        %6844 = vst [vmem:[%s509 + $0x44] sm:$0x1] %v6843
        %v6845 = vld [vmem:[%s509 + $0x48] sm:$0xf]
        %v6846 = vsel %vm511, %v6591, %v6845
        %6847 = vst [vmem:[%s509 + $0x48] sm:$0xf] %v6846
        %6848 = vst [vmem:[%s509 + $0x4c] sm:$0xf] %v6600
        %v6849 = vld [vmem:[%s509 + $0x50] sm:$0x1]
        %v6850 = vsel %vm398, %v6601, %v6849
        %6851 = vst [vmem:[%s509 + $0x50] sm:$0x1] %v6850
        %v6852 = vld [vmem:[%s509 + $0x54] sm:$0xf]
        %v6853 = vsel %vm511, %v6608, %v6852
        %6854 = vst [vmem:[%s509 + $0x54] sm:$0xf] %v6853
        %6855 = vst [vmem:[%s509 + $0x58] sm:$0xf] %v6617
        %v6856 = vld [vmem:[%s509 + $0x5c] sm:$0x1]
        %v6857 = vsel %vm398, %v6618, %v6856
        %6858 = vst [vmem:[%s509 + $0x5c] sm:$0x1] %v6857
        %v6859 = vld [vmem:[%s509 + $0x60] sm:$0xf]
        %v6860 = vsel %vm511, %v6625, %v6859
        %6861 = vst [vmem:[%s509 + $0x60] sm:$0xf] %v6860
        %6862 = vst [vmem:[%s509 + $0x64] sm:$0xf] %v6634
        %v6863 = vld [vmem:[%s509 + $0x68] sm:$0x1]
        %v6864 = vsel %vm398, %v6635, %v6863
        %6865 = vst [vmem:[%s509 + $0x68] sm:$0x1] %v6864
        %v6866 = vld [vmem:[%s509 + $0x6c] sm:$0xf]
        %v6867 = vsel %vm511, %v6642, %v6866
        %6868 = vst [vmem:[%s509 + $0x6c] sm:$0xf] %v6867
        %6869 = vst [vmem:[%s509 + $0x70] sm:$0xf] %v6651
        %v6870 = vld [vmem:[%s509 + $0x74] sm:$0x1]
        %v6871 = vsel %vm398, %v6652, %v6870
        %6872 = vst [vmem:[%s509 + $0x74] sm:$0x1] %v6871
        %v6873 = vld [vmem:[%s509 + $0x78] sm:$0xf]
        %v6874 = vsel %vm511, %v6659, %v6873
        %6875 = vst [vmem:[%s509 + $0x78] sm:$0xf] %v6874
        %6876 = vst [vmem:[%s509 + $0x7c] sm:$0xf] %v6668
        %v6877 = vld [vmem:[%s509 + $0x80] sm:$0x1]
        %v6878 = vsel %vm398, %v6669, %v6877
        %6879 = vst [vmem:[%s509 + $0x80] sm:$0x1] %v6878
        %v6880 = vld [vmem:[%s509 + $0x84] sm:$0xf]
        %v6881 = vsel %vm511, %v6676, %v6880
        %6882 = vst [vmem:[%s509 + $0x84] sm:$0xf] %v6881
        %6883 = vst [vmem:[%s509 + $0x88] sm:$0xf] %v6685
        %v6884 = vld [vmem:[%s509 + $0x8c] sm:$0x1]
        %v6885 = vsel %vm398, %v6686, %v6884
        %6886 = vst [vmem:[%s509 + $0x8c] sm:$0x1] %v6885
        %v6887 = vld [vmem:[%s509 + $0x90] sm:$0xf]
        %v6888 = vsel %vm511, %v6693, %v6887
        %6889 = vst [vmem:[%s509 + $0x90] sm:$0xf] %v6888
        %6890 = vst [vmem:[%s509 + $0x94] sm:$0xf] %v6702
        %v6891 = vld [vmem:[%s509 + $0x98] sm:$0x1]
        %v6892 = vsel %vm398, %v6703, %v6891
        %6893 = vst [vmem:[%s509 + $0x98] sm:$0x1] %v6892
        %v6894 = vld [vmem:[%s509 + $0x9c] sm:$0xf]
        %v6895 = vsel %vm511, %v6710, %v6894
        %6896 = vst [vmem:[%s509 + $0x9c] sm:$0xf] %v6895
        %6897 = vst [vmem:[%s509 + $0xa0] sm:$0xf] %v6719
        %v6898 = vld [vmem:[%s509 + $0xa4] sm:$0x1]
        %v6899 = vsel %vm398, %v6720, %v6898
        %6900 = vst [vmem:[%s509 + $0xa4] sm:$0x1] %v6899
        %v6901 = vld [vmem:[%s509 + $0xa8] sm:$0xf]
        %v6902 = vsel %vm511, %v6727, %v6901
        %6903 = vst [vmem:[%s509 + $0xa8] sm:$0xf] %v6902
        %6904 = vst [vmem:[%s509 + $0xac] sm:$0xf] %v6736
        %v6905 = vld [vmem:[%s509 + $0xb0] sm:$0x1]
        %v6906 = vsel %vm398, %v6737, %v6905
        %6907 = vst [vmem:[%s509 + $0xb0] sm:$0x1] %v6906
        %v6908 = vld [vmem:[%s509 + $0xb4] sm:$0xf]
        %v6909 = vsel %vm511, %v6744, %v6908
        %6910 = vst [vmem:[%s509 + $0xb4] sm:$0xf] %v6909
        %6911 = vst [vmem:[%s509 + $0xb8] sm:$0xf] %v6753
        %v6912 = vld [vmem:[%s509 + $0xbc] sm:$0x1]
        %v6913 = vsel %vm398, %v6754, %v6912
        %6914 = vst [vmem:[%s509 + $0xbc] sm:$0x1] %v6913
        %v6915 = vld [vmem:[#allocation2] sm:$0xf]
        %v6916 = vld [vmem:[#allocation2 + $0x4] sm:$0xf]
        %v6917 = vld [vmem:[#allocation2 + $0xc] sm:$0xf]
        %v6918 = vld [vmem:[#allocation2 + $0x10] sm:$0xf]
        %v6919 = vld [vmem:[#allocation2 + $0x18] sm:$0xf]
        %v6920 = vld [vmem:[#allocation2 + $0x1c] sm:$0xf]
        %v6921 = vld [vmem:[#allocation2 + $0x24] sm:$0xf]
        %v6922 = vld [vmem:[#allocation2 + $0x28] sm:$0xf]
        %v6923 = vld [vmem:[#allocation2 + $0x30] sm:$0xf]
        %v6924 = vld [vmem:[#allocation2 + $0x34] sm:$0xf]
        %v6925 = vld [vmem:[#allocation2 + $0x3c] sm:$0xf]
        %v6926 = vld [vmem:[#allocation2 + $0x40] sm:$0xf]
        %v6927 = vld [vmem:[#allocation2 + $0x48] sm:$0xf]
        %v6928 = vld [vmem:[#allocation2 + $0x4c] sm:$0xf]
        %v6929 = vld [vmem:[#allocation2 + $0x54] sm:$0xf]
        %v6930 = vld [vmem:[#allocation2 + $0x58] sm:$0xf]
        %v6931 = vld [vmem:[#allocation2 + $0x60] sm:$0xf]
        %v6932 = vld [vmem:[#allocation2 + $0x64] sm:$0xf]
        %v6933 = vld [vmem:[#allocation2 + $0x6c] sm:$0xf]
        %v6934 = vld [vmem:[#allocation2 + $0x70] sm:$0xf]
        %v6935 = vld [vmem:[#allocation2 + $0x78] sm:$0xf]
        %v6936 = vld [vmem:[#allocation2 + $0x7c] sm:$0xf]
        %v6937 = vld [vmem:[#allocation2 + $0x84] sm:$0xf]
        %v6938 = vld [vmem:[#allocation2 + $0x88] sm:$0xf]
        %v6939 = vld [vmem:[#allocation2 + $0x90] sm:$0xf]
        %v6940 = vld [vmem:[#allocation2 + $0x94] sm:$0xf]
        %v6941 = vld [vmem:[#allocation2 + $0x9c] sm:$0xf]
        %v6942 = vld [vmem:[#allocation2 + $0xa0] sm:$0xf]
        %v6943 = vld [vmem:[#allocation2 + $0xa8] sm:$0xf]
        %v6944 = vld [vmem:[#allocation2 + $0xac] sm:$0xf]
        %v6945 = vld [vmem:[#allocation2 + $0xb4] sm:$0xf]
        %v6946 = vld [vmem:[#allocation2 + $0xb8] sm:$0xf]
        %v6947 = vld [vmem:[#allocation7] sm:$0xf]
        %v6948 = vld [vmem:[#allocation7 + $0x4] sm:$0xf]
        %v6949 = vld [vmem:[#allocation7 + $0x8] sm:$0xf]
        %v6950 = vld [vmem:[#allocation7 + $0xc] sm:$0xf]
        %v6951 = vld [vmem:[#allocation7 + $0x10] sm:$0xf]
        %v6952 = vld [vmem:[#allocation7 + $0x14] sm:$0xf]
        %v6953 = vld [vmem:[#allocation7 + $0x18] sm:$0xf]
        %v6954 = vld [vmem:[#allocation7 + $0x1c] sm:$0xf]
        %v6955 = vld [vmem:[#allocation7 + $0x20] sm:$0xf]
        %v6956 = vld [vmem:[#allocation7 + $0x24] sm:$0xf]
        %v6957 = vld [vmem:[#allocation7 + $0x28] sm:$0xf]
        %v6958 = vld [vmem:[#allocation7 + $0x2c] sm:$0xf]
        %v6959 = vld [vmem:[#allocation7 + $0x30] sm:$0xf]
        %v6960 = vld [vmem:[#allocation7 + $0x34] sm:$0xf]
        %v6961 = vld [vmem:[#allocation7 + $0x38] sm:$0xf]
        %v6962 = vld [vmem:[#allocation7 + $0x3c] sm:$0xf]
        %v6963 = vld [vmem:[#allocation2 + $0x8] sm:$0x1]
        %v6964 = vld [vmem:[#allocation2 + $0x14] sm:$0x1]
        %v6965 = vld [vmem:[#allocation2 + $0x20] sm:$0x1]
        %v6966 = vld [vmem:[#allocation2 + $0x2c] sm:$0x1]
        %v6967 = vld [vmem:[#allocation2 + $0x38] sm:$0x1]
        %v6968 = vld [vmem:[#allocation2 + $0x44] sm:$0x1]
        %v6969 = vld [vmem:[#allocation2 + $0x50] sm:$0x1]
        %v6970 = vld [vmem:[#allocation2 + $0x5c] sm:$0x1]
        %v6971 = vld [vmem:[#allocation2 + $0x68] sm:$0x1]
        %v6972 = vld [vmem:[#allocation2 + $0x74] sm:$0x1]
        %v6973 = vld [vmem:[#allocation2 + $0x80] sm:$0x1]
        %v6974 = vld [vmem:[#allocation2 + $0x8c] sm:$0x1]
        %v6975 = vld [vmem:[#allocation2 + $0x98] sm:$0x1]
        %v6976 = vld [vmem:[#allocation2 + $0xa4] sm:$0x1]
        %v6977 = vld [vmem:[#allocation2 + $0xb0] sm:$0x1]
        %v6978 = vld [vmem:[#allocation2 + $0xbc] sm:$0x1]
        %v6980 = vshrl.u32 %v6915, 16
        %v6982 = vrot.slane %v6980, 4
        %v6983 = vshll.u32 %v6915, 16
        %v6985 = vrot.slane %v6983, 5
        %v6986 = vor.u32 %v6982, %v6985
        %v6987 = vrot.slane %v6986, 4
        %v6989 = vshll.u32 %v6916, 16
        %v6991 = vrot.slane %v6989, 5
        %v6992 = vsel %vm1165, %v6987, %v6991
        %v6993 = vshrl.u32 %v6916, 16
        %v6995 = vrot.slane %v6993, 4
        %v6996 = vor.u32 %v6995, %v6991
        %v6997 = vrot.slane %v6996, 4
        %v6999 = vshll.u32 %v6963, 16
        %v7001 = vrot.slane %v6999, 5
        %v7002 = vsel %vm1165, %v6997, %v7001
        %v7004 = vshrl.u32 %v6917, 16
        %v7006 = vrot.slane %v7004, 4
        %v7007 = vshll.u32 %v6917, 16
        %v7009 = vrot.slane %v7007, 5
        %v7010 = vor.u32 %v7006, %v7009
        %v7011 = vrot.slane %v7010, 4
        %v7013 = vshll.u32 %v6918, 16
        %v7015 = vrot.slane %v7013, 5
        %v7016 = vsel %vm1165, %v7011, %v7015
        %v7017 = vshrl.u32 %v6918, 16
        %v7019 = vrot.slane %v7017, 4
        %v7020 = vor.u32 %v7019, %v7015
        %v7021 = vrot.slane %v7020, 4
        %v7023 = vshll.u32 %v6964, 16
        %v7025 = vrot.slane %v7023, 5
        %v7026 = vsel %vm1165, %v7021, %v7025
        %v7028 = vshrl.u32 %v6919, 16
        %v7030 = vrot.slane %v7028, 4
        %v7031 = vshll.u32 %v6919, 16
        %v7033 = vrot.slane %v7031, 5
        %v7034 = vor.u32 %v7030, %v7033
        %v7035 = vrot.slane %v7034, 4
        %v7037 = vshll.u32 %v6920, 16
        %v7039 = vrot.slane %v7037, 5
        %v7040 = vsel %vm1165, %v7035, %v7039
        %v7041 = vshrl.u32 %v6920, 16
        %v7043 = vrot.slane %v7041, 4
        %v7044 = vor.u32 %v7043, %v7039
        %v7045 = vrot.slane %v7044, 4
        %v7047 = vshll.u32 %v6965, 16
        %v7049 = vrot.slane %v7047, 5
        %v7050 = vsel %vm1165, %v7045, %v7049
        %v7052 = vshrl.u32 %v6921, 16
        %v7054 = vrot.slane %v7052, 4
        %v7055 = vshll.u32 %v6921, 16
        %v7057 = vrot.slane %v7055, 5
        %v7058 = vor.u32 %v7054, %v7057
        %v7059 = vrot.slane %v7058, 4
        %v7061 = vshll.u32 %v6922, 16
        %v7063 = vrot.slane %v7061, 5
        %v7064 = vsel %vm1165, %v7059, %v7063
        %v7065 = vshrl.u32 %v6922, 16
        %v7067 = vrot.slane %v7065, 4
        %v7068 = vor.u32 %v7067, %v7063
        %v7069 = vrot.slane %v7068, 4
        %v7071 = vshll.u32 %v6966, 16
        %v7073 = vrot.slane %v7071, 5
        %v7074 = vsel %vm1165, %v7069, %v7073
        %v7076 = vshrl.u32 %v6923, 16
        %v7078 = vrot.slane %v7076, 4
        %v7079 = vshll.u32 %v6923, 16
        %v7081 = vrot.slane %v7079, 5
        %v7082 = vor.u32 %v7078, %v7081
        %v7083 = vrot.slane %v7082, 4
        %v7085 = vshll.u32 %v6924, 16
        %v7087 = vrot.slane %v7085, 5
        %v7088 = vsel %vm1165, %v7083, %v7087
        %v7089 = vshrl.u32 %v6924, 16
        %v7091 = vrot.slane %v7089, 4
        %v7092 = vor.u32 %v7091, %v7087
        %v7093 = vrot.slane %v7092, 4
        %v7095 = vshll.u32 %v6967, 16
        %v7097 = vrot.slane %v7095, 5
        %v7098 = vsel %vm1165, %v7093, %v7097
        %v7100 = vshrl.u32 %v6925, 16
        %v7102 = vrot.slane %v7100, 4
        %v7103 = vshll.u32 %v6925, 16
        %v7105 = vrot.slane %v7103, 5
        %v7106 = vor.u32 %v7102, %v7105
        %v7107 = vrot.slane %v7106, 4
        %v7109 = vshll.u32 %v6926, 16
        %v7111 = vrot.slane %v7109, 5
        %v7112 = vsel %vm1165, %v7107, %v7111
        %v7113 = vshrl.u32 %v6926, 16
        %v7115 = vrot.slane %v7113, 4
        %v7116 = vor.u32 %v7115, %v7111
        %v7117 = vrot.slane %v7116, 4
        %v7119 = vshll.u32 %v6968, 16
        %v7121 = vrot.slane %v7119, 5
        %v7122 = vsel %vm1165, %v7117, %v7121
        %v7124 = vshrl.u32 %v6927, 16
        %v7126 = vrot.slane %v7124, 4
        %v7127 = vshll.u32 %v6927, 16
        %v7129 = vrot.slane %v7127, 5
        %v7130 = vor.u32 %v7126, %v7129
        %v7131 = vrot.slane %v7130, 4
        %v7133 = vshll.u32 %v6928, 16
        %v7135 = vrot.slane %v7133, 5
        %v7136 = vsel %vm1165, %v7131, %v7135
        %v7137 = vshrl.u32 %v6928, 16
        %v7139 = vrot.slane %v7137, 4
        %v7140 = vor.u32 %v7139, %v7135
        %v7141 = vrot.slane %v7140, 4
        %v7143 = vshll.u32 %v6969, 16
        %v7145 = vrot.slane %v7143, 5
        %v7146 = vsel %vm1165, %v7141, %v7145
        %v7148 = vshrl.u32 %v6929, 16
        %v7150 = vrot.slane %v7148, 4
        %v7151 = vshll.u32 %v6929, 16
        %v7153 = vrot.slane %v7151, 5
        %v7154 = vor.u32 %v7150, %v7153
        %v7155 = vrot.slane %v7154, 4
        %v7157 = vshll.u32 %v6930, 16
        %v7159 = vrot.slane %v7157, 5
        %v7160 = vsel %vm1165, %v7155, %v7159
        %v7161 = vshrl.u32 %v6930, 16
        %v7163 = vrot.slane %v7161, 4
        %v7164 = vor.u32 %v7163, %v7159
        %v7165 = vrot.slane %v7164, 4
        %v7167 = vshll.u32 %v6970, 16
        %v7169 = vrot.slane %v7167, 5
        %v7170 = vsel %vm1165, %v7165, %v7169
        %v7172 = vshrl.u32 %v6931, 16
        %v7174 = vrot.slane %v7172, 4
        %v7175 = vshll.u32 %v6931, 16
        %v7177 = vrot.slane %v7175, 5
        %v7178 = vor.u32 %v7174, %v7177
        %v7179 = vrot.slane %v7178, 4
        %v7181 = vshll.u32 %v6932, 16
        %v7183 = vrot.slane %v7181, 5
        %v7184 = vsel %vm1165, %v7179, %v7183
        %v7185 = vshrl.u32 %v6932, 16
        %v7187 = vrot.slane %v7185, 4
        %v7188 = vor.u32 %v7187, %v7183
        %v7189 = vrot.slane %v7188, 4
        %v7191 = vshll.u32 %v6971, 16
        %v7193 = vrot.slane %v7191, 5
        %v7194 = vsel %vm1165, %v7189, %v7193
        %v7196 = vshrl.u32 %v6933, 16
        %v7198 = vrot.slane %v7196, 4
        %v7199 = vshll.u32 %v6933, 16
        %v7201 = vrot.slane %v7199, 5
        %v7202 = vor.u32 %v7198, %v7201
        %v7203 = vrot.slane %v7202, 4
        %v7205 = vshll.u32 %v6934, 16
        %v7207 = vrot.slane %v7205, 5
        %v7208 = vsel %vm1165, %v7203, %v7207
        %v7209 = vshrl.u32 %v6934, 16
        %v7211 = vrot.slane %v7209, 4
        %v7212 = vor.u32 %v7211, %v7207
        %v7213 = vrot.slane %v7212, 4
        %v7215 = vshll.u32 %v6972, 16
        %v7217 = vrot.slane %v7215, 5
        %v7218 = vsel %vm1165, %v7213, %v7217
        %v7220 = vshrl.u32 %v6935, 16
        %v7222 = vrot.slane %v7220, 4
        %v7223 = vshll.u32 %v6935, 16
        %v7225 = vrot.slane %v7223, 5
        %v7226 = vor.u32 %v7222, %v7225
        %v7227 = vrot.slane %v7226, 4
        %v7229 = vshll.u32 %v6936, 16
        %v7231 = vrot.slane %v7229, 5
        %v7232 = vsel %vm1165, %v7227, %v7231
        %v7233 = vshrl.u32 %v6936, 16
        %v7235 = vrot.slane %v7233, 4
        %v7236 = vor.u32 %v7235, %v7231
        %v7237 = vrot.slane %v7236, 4
        %v7239 = vshll.u32 %v6973, 16
        %v7241 = vrot.slane %v7239, 5
        %v7242 = vsel %vm1165, %v7237, %v7241
        %v7244 = vshrl.u32 %v6937, 16
        %v7246 = vrot.slane %v7244, 4
        %v7247 = vshll.u32 %v6937, 16
        %v7249 = vrot.slane %v7247, 5
        %v7250 = vor.u32 %v7246, %v7249
        %v7251 = vrot.slane %v7250, 4
        %v7253 = vshll.u32 %v6938, 16
        %v7255 = vrot.slane %v7253, 5
        %v7256 = vsel %vm1165, %v7251, %v7255
        %v7257 = vshrl.u32 %v6938, 16
        %v7259 = vrot.slane %v7257, 4
        %v7260 = vor.u32 %v7259, %v7255
        %v7261 = vrot.slane %v7260, 4
        %v7263 = vshll.u32 %v6974, 16
        %v7265 = vrot.slane %v7263, 5
        %v7266 = vsel %vm1165, %v7261, %v7265
        %v7268 = vshrl.u32 %v6939, 16
        %v7270 = vrot.slane %v7268, 4
        %v7271 = vshll.u32 %v6939, 16
        %v7273 = vrot.slane %v7271, 5
        %v7274 = vor.u32 %v7270, %v7273
        %v7275 = vrot.slane %v7274, 4
        %v7277 = vshll.u32 %v6940, 16
        %v7279 = vrot.slane %v7277, 5
        %v7280 = vsel %vm1165, %v7275, %v7279
        %v7281 = vshrl.u32 %v6940, 16
        %v7283 = vrot.slane %v7281, 4
        %v7284 = vor.u32 %v7283, %v7279
        %v7285 = vrot.slane %v7284, 4
        %v7287 = vshll.u32 %v6975, 16
        %v7289 = vrot.slane %v7287, 5
        %v7290 = vsel %vm1165, %v7285, %v7289
        %v7292 = vshrl.u32 %v6941, 16
        %v7294 = vrot.slane %v7292, 4
        %v7295 = vshll.u32 %v6941, 16
        %v7297 = vrot.slane %v7295, 5
        %v7298 = vor.u32 %v7294, %v7297
        %v7299 = vrot.slane %v7298, 4
        %v7301 = vshll.u32 %v6942, 16
        %v7303 = vrot.slane %v7301, 5
        %v7304 = vsel %vm1165, %v7299, %v7303
        %v7305 = vshrl.u32 %v6942, 16
        %v7307 = vrot.slane %v7305, 4
        %v7308 = vor.u32 %v7307, %v7303
        %v7309 = vrot.slane %v7308, 4
        %v7311 = vshll.u32 %v6976, 16
        %v7313 = vrot.slane %v7311, 5
        %v7314 = vsel %vm1165, %v7309, %v7313
        %v7316 = vshrl.u32 %v6943, 16
        %v7318 = vrot.slane %v7316, 4
        %v7319 = vshll.u32 %v6943, 16
        %v7321 = vrot.slane %v7319, 5
        %v7322 = vor.u32 %v7318, %v7321
        %v7323 = vrot.slane %v7322, 4
        %v7325 = vshll.u32 %v6944, 16
        %v7327 = vrot.slane %v7325, 5
        %v7328 = vsel %vm1165, %v7323, %v7327
        %v7329 = vshrl.u32 %v6944, 16
        %v7331 = vrot.slane %v7329, 4
        %v7332 = vor.u32 %v7331, %v7327
        %v7333 = vrot.slane %v7332, 4
        %v7335 = vshll.u32 %v6977, 16
        %v7337 = vrot.slane %v7335, 5
        %v7338 = vsel %vm1165, %v7333, %v7337
        %v7340 = vshrl.u32 %v6945, 16
        %v7342 = vrot.slane %v7340, 4
        %v7343 = vshll.u32 %v6945, 16
        %v7345 = vrot.slane %v7343, 5
        %v7346 = vor.u32 %v7342, %v7345
        %v7347 = vrot.slane %v7346, 4
        %v7349 = vshll.u32 %v6946, 16
        %v7351 = vrot.slane %v7349, 5
        %v7352 = vsel %vm1165, %v7347, %v7351
        %v7353 = vshrl.u32 %v6946, 16
        %v7355 = vrot.slane %v7353, 4
        %v7356 = vor.u32 %v7355, %v7351
        %v7357 = vrot.slane %v7356, 4
        %v7359 = vshll.u32 %v6978, 16
        %v7361 = vrot.slane %v7359, 5
        %v7362 = vsel %vm1165, %v7357, %v7361
        %s7363 = scalar_lea.vmem [#allocation7], 64
        %v7364 = vld [vmem:[%s7363] sm:$0xf]
        %v7365 = vld [vmem:[%s7363 + $0x4] sm:$0xf]
        %v7366 = vld [vmem:[%s7363 + $0x8] sm:$0xf]
        %v7367 = vld [vmem:[%s7363 + $0xc] sm:$0xf]
        %v7368 = vld [vmem:[%s7363 + $0x10] sm:$0xf]
        %v7369 = vld [vmem:[%s7363 + $0x14] sm:$0xf]
        %v7370 = vld [vmem:[%s7363 + $0x18] sm:$0xf]
        %v7371 = vld [vmem:[%s7363 + $0x1c] sm:$0xf]
        %v7372 = vld [vmem:[%s7363 + $0x20] sm:$0xf]
        %v7373 = vld [vmem:[%s7363 + $0x24] sm:$0xf]
        %v7374 = vld [vmem:[%s7363 + $0x28] sm:$0xf]
        %v7375 = vld [vmem:[%s7363 + $0x2c] sm:$0xf]
        %v7376 = vld [vmem:[%s7363 + $0x30] sm:$0xf]
        %v7377 = vld [vmem:[%s7363 + $0x34] sm:$0xf]
        %v7378 = vld [vmem:[%s7363 + $0x38] sm:$0xf]
        %v7379 = vld [vmem:[%s7363 + $0x3c] sm:$0xf]
        %v7380 = vunpack.c.l.b16 %v6992
        %v7381 = vunpack.c.l.b16 %v7002
        %v7382 = vunpack.c.l.b16 %v7016
        %v7383 = vunpack.c.l.b16 %v7026
        %v7384 = vunpack.c.l.b16 %v7040
        %v7385 = vunpack.c.l.b16 %v7050
        %v7386 = vunpack.c.l.b16 %v7064
        %v7387 = vunpack.c.l.b16 %v7074
        %v7388 = vunpack.c.l.b16 %v7088
        %v7389 = vunpack.c.l.b16 %v7098
        %v7390 = vunpack.c.l.b16 %v7112
        %v7391 = vunpack.c.l.b16 %v7122
        %v7392 = vunpack.c.l.b16 %v7136
        %v7393 = vunpack.c.l.b16 %v7146
        %v7394 = vunpack.c.l.b16 %v7160
        %v7395 = vunpack.c.l.b16 %v7170
        %v7396 = vunpack.c.l.b16 %v7184
        %v7397 = vunpack.c.l.b16 %v7194
        %v7398 = vunpack.c.l.b16 %v7208
        %v7399 = vunpack.c.l.b16 %v7218
        %v7400 = vunpack.c.l.b16 %v7232
        %v7401 = vunpack.c.l.b16 %v7242
        %v7402 = vunpack.c.l.b16 %v7256
        %v7403 = vunpack.c.l.b16 %v7266
        %v7404 = vunpack.c.l.b16 %v7280
        %v7405 = vunpack.c.l.b16 %v7290
        %v7406 = vunpack.c.l.b16 %v7304
        %v7407 = vunpack.c.l.b16 %v7314
        %v7408 = vunpack.c.l.b16 %v7328
        %v7409 = vunpack.c.l.b16 %v7338
        %v7410 = vunpack.c.l.b16 %v7352
        %v7411 = vunpack.c.l.b16 %v7362
        %v7412 = vpack.c.b16 %v7381, %v7380
        %v7413 = vpack.c.b16 %v7383, %v7382
        %v7414 = vpack.c.b16 %v7385, %v7384
        %v7415 = vpack.c.b16 %v7387, %v7386
        %v7416 = vpack.c.b16 %v7389, %v7388
        %v7417 = vpack.c.b16 %v7391, %v7390
        %v7418 = vpack.c.b16 %v7393, %v7392
        %v7419 = vpack.c.b16 %v7395, %v7394
        %v7420 = vpack.c.b16 %v7397, %v7396
        %v7421 = vpack.c.b16 %v7399, %v7398
        %v7422 = vpack.c.b16 %v7401, %v7400
        %v7423 = vpack.c.b16 %v7403, %v7402
        %v7424 = vpack.c.b16 %v7405, %v7404
        %v7425 = vpack.c.b16 %v7407, %v7406
        %v7426 = vpack.c.b16 %v7409, %v7408
        %v7427 = vpack.c.b16 %v7411, %v7410
        %v7460 = vunpack.c.l.b16 %v7364
        %v7461 = vunpack.c.l.b16 %v7365
        %v7462 = vunpack.c.l.b16 %v7366
        %v7463 = vunpack.c.l.b16 %v7367
        %v7464 = vunpack.c.l.b16 %v7368
        %v7465 = vunpack.c.l.b16 %v7369
        %v7466 = vunpack.c.l.b16 %v7370
        %v7467 = vunpack.c.l.b16 %v7371
        %v7468 = vunpack.c.l.b16 %v7372
        %v7469 = vunpack.c.l.b16 %v7373
        %v7470 = vunpack.c.l.b16 %v7374
        %v7471 = vunpack.c.l.b16 %v7375
        %v7472 = vunpack.c.l.b16 %v7376
        %v7473 = vunpack.c.l.b16 %v7377
        %v7474 = vunpack.c.l.b16 %v7378
        %v7475 = vunpack.c.l.b16 %v7379
        %v7476 = vpack.c.b16 %v7461, %v7460
        %v7477 = vpack.c.b16 %v7463, %v7462
        %v7478 = vpack.c.b16 %v7465, %v7464
        %v7479 = vpack.c.b16 %v7467, %v7466
        %v7480 = vpack.c.b16 %v7469, %v7468
        %v7481 = vpack.c.b16 %v7471, %v7470
        %v7482 = vpack.c.b16 %v7473, %v7472
        %v7483 = vpack.c.b16 %v7475, %v7474
        %7492 = vmatprep.subr.bf16.mxu0 0
        %7493 = vmatpush1.bf16.msra.mxu0 %v7476
        %7494 = vmatprep.subr.bf16.mxu0 0
        %7495 = vmatpush1.bf16.msra.mxu0 %v7477
        %7496 = vmatprep.subr.bf16.mxu0 0
        %7497 = vmatpush1.bf16.msra.mxu0 %v7478
        %7498 = vmatprep.subr.bf16.mxu0 0
        %7499 = vmatpush1.bf16.msra.mxu0 %v7479
        %7500 = vmatprep.subr.bf16.mxu0 0
        %7501 = vmatpush1.bf16.msra.mxu0 %v7480
        %7502 = vmatprep.subr.bf16.mxu0 0
        %7503 = vmatpush1.bf16.msra.mxu0 %v7481
        %7504 = vmatprep.subr.bf16.mxu0 0
        %7505 = vmatpush1.bf16.msra.mxu0 %v7482
        %7506 = vmatprep.subr.bf16.mxu0 0
        %7507 = vmatpush1.bf16.msra.mxu0 %v7483
        %7508 = vmatprep.subr.bf16.mxu0 0
        %7509 = vmatpush1.bf16.msra.mxu0 0
        %7510 = vmatprep.subr.bf16.mxu0 0
        %7511 = vmatpush1.bf16.msra.mxu0 0
        %7512 = vmatprep.subr.bf16.mxu0 0
        %7513 = vmatpush1.bf16.msra.mxu0 0
        %7514 = vmatprep.subr.bf16.mxu0 0
        %7515 = vmatpush1.bf16.msra.mxu0 0
        %7516 = vmatprep.subr.bf16.mxu0 0
        %7517 = vmatpush1.bf16.msra.mxu0 0
        %7518 = vmatprep.subr.bf16.mxu0 0
        %7519 = vmatpush1.bf16.msra.mxu0 0
        %7520 = vmatprep.subr.bf16.mxu0 0
        %7521 = vmatpush1.bf16.msra.mxu0 0
        %7522 = vmatprep.subr.bf16.mxu0 0
        %7523 = vmatpush1.bf16.msra.mxu0 0
        %7524 = vmatprep.mubr.bf16.mxu0 0
        %7525 = vmatmul.mubr.bf16.gmra.mrb[0].mxu0 %v7412
        %v7526 = vpop.f32.mrb[0].mxu0
        %v7527 = vadd.f32 0.0, %v7526
        %v7528 = vpop.f32.mrb[0].mxu0
        %v7529 = vpop.f32.mrb[0].mxu0
        %v7530 = vadd.f32 0.0, %v7529
        %v7531 = vpop.f32.mrb[0].mxu0
        %7532 = vmatprep.mubr.bf16.mxu0 0
        %7533 = vmatmul.mubr.bf16.gmra.mrb[0].mxu0 %v7413
        %v7534 = vpop.f32.mrb[0].mxu0
        %v7535 = vadd.f32 0.0, %v7534
        %v7536 = vpop.f32.mrb[0].mxu0
        %v7537 = vpop.f32.mrb[0].mxu0
        %v7538 = vadd.f32 0.0, %v7537
        %v7539 = vpop.f32.mrb[0].mxu0
        %7540 = vmatprep.mubr.bf16.mxu0 0
        %7541 = vmatmul.mubr.bf16.gmra.mrb[0].mxu0 %v7414
        %v7542 = vpop.f32.mrb[0].mxu0
        %v7543 = vadd.f32 0.0, %v7542
        %v7544 = vpop.f32.mrb[0].mxu0
        %v7545 = vpop.f32.mrb[0].mxu0
        %v7546 = vadd.f32 0.0, %v7545
        %v7547 = vpop.f32.mrb[0].mxu0
        %7548 = vmatprep.mubr.bf16.mxu0 0
        %7549 = vmatmul.mubr.bf16.gmra.mrb[0].mxu0 %v7415
        %v7550 = vpop.f32.mrb[0].mxu0
        %v7551 = vadd.f32 0.0, %v7550
        %v7552 = vpop.f32.mrb[0].mxu0
        %v7553 = vpop.f32.mrb[0].mxu0
        %v7554 = vadd.f32 0.0, %v7553
        %v7555 = vpop.f32.mrb[0].mxu0
        %7556 = vmatprep.mubr.bf16.mxu0 0
        %7557 = vmatmul.mubr.bf16.gmra.mrb[0].mxu0 %v7416
        %v7558 = vpop.f32.mrb[0].mxu0
        %v7559 = vadd.f32 0.0, %v7558
        %v7560 = vpop.f32.mrb[0].mxu0
        %v7561 = vpop.f32.mrb[0].mxu0
        %v7562 = vadd.f32 0.0, %v7561
        %v7563 = vpop.f32.mrb[0].mxu0
        %7564 = vmatprep.mubr.bf16.mxu0 0
        %7565 = vmatmul.mubr.bf16.gmra.mrb[0].mxu0 %v7417
        %v7566 = vpop.f32.mrb[0].mxu0
        %v7567 = vadd.f32 0.0, %v7566
        %v7568 = vpop.f32.mrb[0].mxu0
        %v7569 = vpop.f32.mrb[0].mxu0
        %v7570 = vadd.f32 0.0, %v7569
        %v7571 = vpop.f32.mrb[0].mxu0
        %7572 = vmatprep.mubr.bf16.mxu0 0
        %7573 = vmatmul.mubr.bf16.gmra.mrb[0].mxu0 %v7418
        %v7574 = vpop.f32.mrb[0].mxu0
        %v7575 = vadd.f32 0.0, %v7574
        %v7576 = vpop.f32.mrb[0].mxu0
        %v7577 = vpop.f32.mrb[0].mxu0
        %v7578 = vadd.f32 0.0, %v7577
        %v7579 = vpop.f32.mrb[0].mxu0
        %7580 = vmatprep.mubr.bf16.mxu0 0
        %7581 = vmatmul.mubr.bf16.gmra.mrb[0].mxu0 %v7419
        %v7582 = vpop.f32.mrb[0].mxu0
        %v7583 = vadd.f32 0.0, %v7582
        %v7584 = vpop.f32.mrb[0].mxu0
        %v7585 = vpop.f32.mrb[0].mxu0
        %v7586 = vadd.f32 0.0, %v7585
        %v7587 = vpop.f32.mrb[0].mxu0
        %7588 = vmatprep.mubr.bf16.mxu0 0
        %7589 = vmatmul.mubr.bf16.gmra.mrb[0].mxu0 %v7420
        %v7590 = vpop.f32.mrb[0].mxu0
        %v7591 = vadd.f32 0.0, %v7590
        %v7592 = vpop.f32.mrb[0].mxu0
        %v7593 = vpop.f32.mrb[0].mxu0
        %v7594 = vadd.f32 0.0, %v7593
        %v7595 = vpop.f32.mrb[0].mxu0
        %7596 = vmatprep.mubr.bf16.mxu0 0
        %7597 = vmatmul.mubr.bf16.gmra.mrb[0].mxu0 %v7421
        %v7598 = vpop.f32.mrb[0].mxu0
        %v7599 = vadd.f32 0.0, %v7598
        %v7600 = vpop.f32.mrb[0].mxu0
        %v7601 = vpop.f32.mrb[0].mxu0
        %v7602 = vadd.f32 0.0, %v7601
        %v7603 = vpop.f32.mrb[0].mxu0
        %7604 = vmatprep.mubr.bf16.mxu0 0
        %7605 = vmatmul.mubr.bf16.gmra.mrb[0].mxu0 %v7422
        %v7606 = vpop.f32.mrb[0].mxu0
        %v7607 = vadd.f32 0.0, %v7606
        %v7608 = vpop.f32.mrb[0].mxu0
        %v7609 = vpop.f32.mrb[0].mxu0
        %v7610 = vadd.f32 0.0, %v7609
        %v7611 = vpop.f32.mrb[0].mxu0
        %7612 = vmatprep.mubr.bf16.mxu0 0
        %7613 = vmatmul.mubr.bf16.gmra.mrb[0].mxu0 %v7423
        %v7614 = vpop.f32.mrb[0].mxu0
        %v7615 = vadd.f32 0.0, %v7614
        %v7616 = vpop.f32.mrb[0].mxu0
        %v7617 = vpop.f32.mrb[0].mxu0
        %v7618 = vadd.f32 0.0, %v7617
        %v7619 = vpop.f32.mrb[0].mxu0
        %7620 = vmatprep.mubr.bf16.mxu0 0
        %7621 = vmatmul.mubr.bf16.gmra.mrb[0].mxu0 %v7424
        %v7622 = vpop.f32.mrb[0].mxu0
        %v7623 = vadd.f32 0.0, %v7622
        %v7624 = vpop.f32.mrb[0].mxu0
        %v7625 = vpop.f32.mrb[0].mxu0
        %v7626 = vadd.f32 0.0, %v7625
        %v7627 = vpop.f32.mrb[0].mxu0
        %7628 = vmatprep.mubr.bf16.mxu0 0
        %7629 = vmatmul.mubr.bf16.gmra.mrb[0].mxu0 %v7425
        %v7630 = vpop.f32.mrb[0].mxu0
        %v7631 = vadd.f32 0.0, %v7630
        %v7632 = vpop.f32.mrb[0].mxu0
        %v7633 = vpop.f32.mrb[0].mxu0
        %v7634 = vadd.f32 0.0, %v7633
        %v7635 = vpop.f32.mrb[0].mxu0
        %7636 = vmatprep.mubr.bf16.mxu0 0
        %7637 = vmatmul.mubr.bf16.gmra.mrb[0].mxu0 %v7426
        %v7638 = vpop.f32.mrb[0].mxu0
        %v7639 = vadd.f32 0.0, %v7638
        %v7640 = vpop.f32.mrb[0].mxu0
        %v7641 = vpop.f32.mrb[0].mxu0
        %v7642 = vadd.f32 0.0, %v7641
        %v7643 = vpop.f32.mrb[0].mxu0
        %7644 = vmatprep.mubr.bf16.mxu0 0
        %7645 = vmatmul.mubr.bf16.gmra.mrb[0].mxu0 %v7427
        %v7646 = vpop.f32.mrb[0].mxu0
        %v7647 = vadd.f32 0.0, %v7646
        %v7648 = vpop.f32.mrb[0].mxu0
        %v7649 = vpop.f32.mrb[0].mxu0
        %v7650 = vadd.f32 0.0, %v7649
        %v7651 = vpop.f32.mrb[0].mxu0
        %7652 = vdwg.mxu0
        %v7685 = vunpack.c.l.b16 %v6915
        %v7686 = vunpack.c.l.b16 %v6916
        %v7687 = vunpack.c.l.b16 %v6917
        %v7688 = vunpack.c.l.b16 %v6918
        %v7689 = vunpack.c.l.b16 %v6919
        %v7690 = vunpack.c.l.b16 %v6920
        %v7691 = vunpack.c.l.b16 %v6921
        %v7692 = vunpack.c.l.b16 %v6922
        %v7693 = vunpack.c.l.b16 %v6923
        %v7694 = vunpack.c.l.b16 %v6924
        %v7695 = vunpack.c.l.b16 %v6925
        %v7696 = vunpack.c.l.b16 %v6926
        %v7697 = vunpack.c.l.b16 %v6927
        %v7698 = vunpack.c.l.b16 %v6928
        %v7699 = vunpack.c.l.b16 %v6929
        %v7700 = vunpack.c.l.b16 %v6930
        %v7701 = vunpack.c.l.b16 %v6931
        %v7702 = vunpack.c.l.b16 %v6932
        %v7703 = vunpack.c.l.b16 %v6933
        %v7704 = vunpack.c.l.b16 %v6934
        %v7705 = vunpack.c.l.b16 %v6935
        %v7706 = vunpack.c.l.b16 %v6936
        %v7707 = vunpack.c.l.b16 %v6937
        %v7708 = vunpack.c.l.b16 %v6938
        %v7709 = vunpack.c.l.b16 %v6939
        %v7710 = vunpack.c.l.b16 %v6940
        %v7711 = vunpack.c.l.b16 %v6941
        %v7712 = vunpack.c.l.b16 %v6942
        %v7713 = vunpack.c.l.b16 %v6943
        %v7714 = vunpack.c.l.b16 %v6944
        %v7715 = vunpack.c.l.b16 %v6945
        %v7716 = vunpack.c.l.b16 %v6946
        %v7717 = vpack.c.b16 %v7686, %v7685
        %v7718 = vpack.c.b16 %v7688, %v7687
        %v7719 = vpack.c.b16 %v7690, %v7689
        %v7720 = vpack.c.b16 %v7692, %v7691
        %v7721 = vpack.c.b16 %v7694, %v7693
        %v7722 = vpack.c.b16 %v7696, %v7695
        %v7723 = vpack.c.b16 %v7698, %v7697
        %v7724 = vpack.c.b16 %v7700, %v7699
        %v7725 = vpack.c.b16 %v7702, %v7701
        %v7726 = vpack.c.b16 %v7704, %v7703
        %v7727 = vpack.c.b16 %v7706, %v7705
        %v7728 = vpack.c.b16 %v7708, %v7707
        %v7729 = vpack.c.b16 %v7710, %v7709
        %v7730 = vpack.c.b16 %v7712, %v7711
        %v7731 = vpack.c.b16 %v7714, %v7713
        %v7732 = vpack.c.b16 %v7716, %v7715
        %v7765 = vunpack.c.l.b16 %v6947
        %v7766 = vunpack.c.l.b16 %v6948
        %v7767 = vunpack.c.l.b16 %v6949
        %v7768 = vunpack.c.l.b16 %v6950
        %v7769 = vunpack.c.l.b16 %v6951
        %v7770 = vunpack.c.l.b16 %v6952
        %v7771 = vunpack.c.l.b16 %v6953
        %v7772 = vunpack.c.l.b16 %v6954
        %v7773 = vunpack.c.l.b16 %v6955
        %v7774 = vunpack.c.l.b16 %v6956
        %v7775 = vunpack.c.l.b16 %v6957
        %v7776 = vunpack.c.l.b16 %v6958
        %v7777 = vunpack.c.l.b16 %v6959
        %v7778 = vunpack.c.l.b16 %v6960
        %v7779 = vunpack.c.l.b16 %v6961
        %v7780 = vunpack.c.l.b16 %v6962
        %v7781 = vpack.c.b16 %v7766, %v7765
        %v7782 = vpack.c.b16 %v7768, %v7767
        %v7783 = vpack.c.b16 %v7770, %v7769
        %v7784 = vpack.c.b16 %v7772, %v7771
        %v7785 = vpack.c.b16 %v7774, %v7773
        %v7786 = vpack.c.b16 %v7776, %v7775
        %v7787 = vpack.c.b16 %v7778, %v7777
        %v7788 = vpack.c.b16 %v7780, %v7779
        %7797 = vmatprep.subr.bf16.mxu0 0
        %7798 = vmatpush1.bf16.msra.mxu0 %v7781
        %7799 = vmatprep.subr.bf16.mxu0 0
        %7800 = vmatpush1.bf16.msra.mxu0 %v7782
        %7801 = vmatprep.subr.bf16.mxu0 0
        %7802 = vmatpush1.bf16.msra.mxu0 %v7783
        %7803 = vmatprep.subr.bf16.mxu0 0
        %7804 = vmatpush1.bf16.msra.mxu0 %v7784
        %7805 = vmatprep.subr.bf16.mxu0 0
        %7806 = vmatpush1.bf16.msra.mxu0 %v7785
        %7807 = vmatprep.subr.bf16.mxu0 0
        %7808 = vmatpush1.bf16.msra.mxu0 %v7786
        %7809 = vmatprep.subr.bf16.mxu0 0
        %7810 = vmatpush1.bf16.msra.mxu0 %v7787
        %7811 = vmatprep.subr.bf16.mxu0 0
        %7812 = vmatpush1.bf16.msra.mxu0 %v7788
        %7813 = vmatprep.subr.bf16.mxu0 0
        %7814 = vmatpush1.bf16.msra.mxu0 0
        %7815 = vmatprep.subr.bf16.mxu0 0
        %7816 = vmatpush1.bf16.msra.mxu0 0
        %7817 = vmatprep.subr.bf16.mxu0 0
        %7818 = vmatpush1.bf16.msra.mxu0 0
        %7819 = vmatprep.subr.bf16.mxu0 0
        %7820 = vmatpush1.bf16.msra.mxu0 0
        %7821 = vmatprep.subr.bf16.mxu0 0
        %7822 = vmatpush1.bf16.msra.mxu0 0
        %7823 = vmatprep.subr.bf16.mxu0 0
        %7824 = vmatpush1.bf16.msra.mxu0 0
        %7825 = vmatprep.subr.bf16.mxu0 0
        %7826 = vmatpush1.bf16.msra.mxu0 0
        %7827 = vmatprep.subr.bf16.mxu0 0
        %7828 = vmatpush1.bf16.msra.mxu0 0
        %7829 = vmatprep.mubr.bf16.mxu0 0
        %7830 = vmatmul.mubr.bf16.gmra.mrb[0].mxu0 %v7717
        %v7831 = vpop.f32.mrb[0].mxu0
        %v7832 = vadd.f32 %v7527, %v7831
        %v7833 = vpop.f32.mrb[0].mxu0
        %v7834 = vpop.f32.mrb[0].mxu0
        %v7835 = vadd.f32 %v7530, %v7834
        %v7836 = vpop.f32.mrb[0].mxu0
        %7837 = vmatprep.mubr.bf16.mxu0 0
        %7838 = vmatmul.mubr.bf16.gmra.mrb[0].mxu0 %v7718
        %v7839 = vpop.f32.mrb[0].mxu0
        %v7840 = vadd.f32 %v7535, %v7839
        %v7841 = vpop.f32.mrb[0].mxu0
        %v7842 = vpop.f32.mrb[0].mxu0
        %v7843 = vadd.f32 %v7538, %v7842
        %v7844 = vpop.f32.mrb[0].mxu0
        %7845 = vmatprep.mubr.bf16.mxu0 0
        %7846 = vmatmul.mubr.bf16.gmra.mrb[0].mxu0 %v7719
        %v7847 = vpop.f32.mrb[0].mxu0
        %v7848 = vadd.f32 %v7543, %v7847
        %v7849 = vpop.f32.mrb[0].mxu0
        %v7850 = vpop.f32.mrb[0].mxu0
        %v7851 = vadd.f32 %v7546, %v7850
        %v7852 = vpop.f32.mrb[0].mxu0
        %7853 = vmatprep.mubr.bf16.mxu0 0
        %7854 = vmatmul.mubr.bf16.gmra.mrb[0].mxu0 %v7720
        %v7855 = vpop.f32.mrb[0].mxu0
        %v7856 = vadd.f32 %v7551, %v7855
        %v7857 = vpop.f32.mrb[0].mxu0
        %v7858 = vpop.f32.mrb[0].mxu0
        %v7859 = vadd.f32 %v7554, %v7858
        %v7860 = vpop.f32.mrb[0].mxu0
        %7861 = vmatprep.mubr.bf16.mxu0 0
        %7862 = vmatmul.mubr.bf16.gmra.mrb[0].mxu0 %v7721
        %v7863 = vpop.f32.mrb[0].mxu0
        %v7864 = vadd.f32 %v7559, %v7863
        %v7865 = vpop.f32.mrb[0].mxu0
        %v7866 = vpop.f32.mrb[0].mxu0
        %v7867 = vadd.f32 %v7562, %v7866
        %v7868 = vpop.f32.mrb[0].mxu0
        %7869 = vmatprep.mubr.bf16.mxu0 0
        %7870 = vmatmul.mubr.bf16.gmra.mrb[0].mxu0 %v7722
        %v7871 = vpop.f32.mrb[0].mxu0
        %v7872 = vadd.f32 %v7567, %v7871
        %v7873 = vpop.f32.mrb[0].mxu0
        %v7874 = vpop.f32.mrb[0].mxu0
        %v7875 = vadd.f32 %v7570, %v7874
        %v7876 = vpop.f32.mrb[0].mxu0
        %7877 = vmatprep.mubr.bf16.mxu0 0
        %7878 = vmatmul.mubr.bf16.gmra.mrb[0].mxu0 %v7723
        %v7879 = vpop.f32.mrb[0].mxu0
        %v7880 = vadd.f32 %v7575, %v7879
        %v7881 = vpop.f32.mrb[0].mxu0
        %v7882 = vpop.f32.mrb[0].mxu0
        %v7883 = vadd.f32 %v7578, %v7882
        %v7884 = vpop.f32.mrb[0].mxu0
        %7885 = vmatprep.mubr.bf16.mxu0 0
        %7886 = vmatmul.mubr.bf16.gmra.mrb[0].mxu0 %v7724
        %v7887 = vpop.f32.mrb[0].mxu0
        %v7888 = vadd.f32 %v7583, %v7887
        %v7889 = vpop.f32.mrb[0].mxu0
        %v7890 = vpop.f32.mrb[0].mxu0
        %v7891 = vadd.f32 %v7586, %v7890
        %v7892 = vpop.f32.mrb[0].mxu0
        %7893 = vmatprep.mubr.bf16.mxu0 0
        %7894 = vmatmul.mubr.bf16.gmra.mrb[0].mxu0 %v7725
        %v7895 = vpop.f32.mrb[0].mxu0
        %v7896 = vadd.f32 %v7591, %v7895
        %v7897 = vpop.f32.mrb[0].mxu0
        %v7898 = vpop.f32.mrb[0].mxu0
        %v7899 = vadd.f32 %v7594, %v7898
        %v7900 = vpop.f32.mrb[0].mxu0
        %7901 = vmatprep.mubr.bf16.mxu0 0
        %7902 = vmatmul.mubr.bf16.gmra.mrb[0].mxu0 %v7726
        %v7903 = vpop.f32.mrb[0].mxu0
        %v7904 = vadd.f32 %v7599, %v7903
        %v7905 = vpop.f32.mrb[0].mxu0
        %v7906 = vpop.f32.mrb[0].mxu0
        %v7907 = vadd.f32 %v7602, %v7906
        %v7908 = vpop.f32.mrb[0].mxu0
        %7909 = vmatprep.mubr.bf16.mxu0 0
        %7910 = vmatmul.mubr.bf16.gmra.mrb[0].mxu0 %v7727
        %v7911 = vpop.f32.mrb[0].mxu0
        %v7912 = vadd.f32 %v7607, %v7911
        %v7913 = vpop.f32.mrb[0].mxu0
        %v7914 = vpop.f32.mrb[0].mxu0
        %v7915 = vadd.f32 %v7610, %v7914
        %v7916 = vpop.f32.mrb[0].mxu0
        %7917 = vmatprep.mubr.bf16.mxu0 0
        %7918 = vmatmul.mubr.bf16.gmra.mrb[0].mxu0 %v7728
        %v7919 = vpop.f32.mrb[0].mxu0
        %v7920 = vadd.f32 %v7615, %v7919
        %v7921 = vpop.f32.mrb[0].mxu0
        %v7922 = vpop.f32.mrb[0].mxu0
        %v7923 = vadd.f32 %v7618, %v7922
        %v7924 = vpop.f32.mrb[0].mxu0
        %7925 = vmatprep.mubr.bf16.mxu0 0
        %7926 = vmatmul.mubr.bf16.gmra.mrb[0].mxu0 %v7729
        %v7927 = vpop.f32.mrb[0].mxu0
        %v7928 = vadd.f32 %v7623, %v7927
        %v7929 = vpop.f32.mrb[0].mxu0
        %v7930 = vpop.f32.mrb[0].mxu0
        %v7931 = vadd.f32 %v7626, %v7930
        %v7932 = vpop.f32.mrb[0].mxu0
        %7933 = vmatprep.mubr.bf16.mxu0 0
        %7934 = vmatmul.mubr.bf16.gmra.mrb[0].mxu0 %v7730
        %v7935 = vpop.f32.mrb[0].mxu0
        %v7936 = vadd.f32 %v7631, %v7935
        %v7937 = vpop.f32.mrb[0].mxu0
        %v7938 = vpop.f32.mrb[0].mxu0
        %v7939 = vadd.f32 %v7634, %v7938
        %v7940 = vpop.f32.mrb[0].mxu0
        %7941 = vmatprep.mubr.bf16.mxu0 0
        %7942 = vmatmul.mubr.bf16.gmra.mrb[0].mxu0 %v7731
        %v7943 = vpop.f32.mrb[0].mxu0
        %v7944 = vadd.f32 %v7639, %v7943
        %v7945 = vpop.f32.mrb[0].mxu0
        %v7946 = vpop.f32.mrb[0].mxu0
        %v7947 = vadd.f32 %v7642, %v7946
        %v7948 = vpop.f32.mrb[0].mxu0
        %7949 = vmatprep.mubr.bf16.mxu0 0
        %7950 = vmatmul.mubr.bf16.gmra.mrb[0].mxu0 %v7732
        %v7951 = vpop.f32.mrb[0].mxu0
        %v7952 = vadd.f32 %v7647, %v7951
        %v7953 = vpop.f32.mrb[0].mxu0
        %v7954 = vpop.f32.mrb[0].mxu0
        %v7955 = vadd.f32 %v7650, %v7954
        %v7956 = vpop.f32.mrb[0].mxu0
        %7957 = vdwg.mxu0
        %v7958 = vld [vmem:[#allocation2] sm:$0xe]
        %v7959 = vld [vmem:[#allocation2 + $0xc] sm:$0xe]
        %v7960 = vld [vmem:[#allocation2 + $0x18] sm:$0xe]
        %v7961 = vld [vmem:[#allocation2 + $0x24] sm:$0xe]
        %v7962 = vld [vmem:[#allocation2 + $0x30] sm:$0xe]
        %v7963 = vld [vmem:[#allocation2 + $0x3c] sm:$0xe]
        %v7964 = vld [vmem:[#allocation2 + $0x48] sm:$0xe]
        %v7965 = vld [vmem:[#allocation2 + $0x54] sm:$0xe]
        %v7966 = vld [vmem:[#allocation2 + $0x60] sm:$0xe]
        %v7967 = vld [vmem:[#allocation2 + $0x6c] sm:$0xe]
        %v7968 = vld [vmem:[#allocation2 + $0x78] sm:$0xe]
        %v7969 = vld [vmem:[#allocation2 + $0x84] sm:$0xe]
        %v7970 = vld [vmem:[#allocation2 + $0x90] sm:$0xe]
        %v7971 = vld [vmem:[#allocation2 + $0x9c] sm:$0xe]
        %v7972 = vld [vmem:[#allocation2 + $0xa8] sm:$0xe]
        %v7973 = vld [vmem:[#allocation2 + $0xb4] sm:$0xe]
        %v8006 = vrot.slane %v7958, 5
        %v8007 = vrot.slane %v8006, 4
        %v8008 = vrot.slane %v6916, 5
        %v8009 = vsel %vm2195, %v8007, %v8008
        %v8010 = vrot.slane %v8008, 4
        %v8011 = vrot.slane %v6963, 5
        %v8012 = vsel %vm2195, %v8010, %v8011
        %v8013 = vrot.slane %v7959, 5
        %v8014 = vrot.slane %v8013, 4
        %v8015 = vrot.slane %v6918, 5
        %v8016 = vsel %vm2195, %v8014, %v8015
        %v8017 = vrot.slane %v8015, 4
        %v8018 = vrot.slane %v6964, 5
        %v8019 = vsel %vm2195, %v8017, %v8018
        %v8020 = vrot.slane %v7960, 5
        %v8021 = vrot.slane %v8020, 4
        %v8022 = vrot.slane %v6920, 5
        %v8023 = vsel %vm2195, %v8021, %v8022
        %v8024 = vrot.slane %v8022, 4
        %v8025 = vrot.slane %v6965, 5
        %v8026 = vsel %vm2195, %v8024, %v8025
        %v8027 = vrot.slane %v7961, 5
        %v8028 = vrot.slane %v8027, 4
        %v8029 = vrot.slane %v6922, 5
        %v8030 = vsel %vm2195, %v8028, %v8029
        %v8031 = vrot.slane %v8029, 4
        %v8032 = vrot.slane %v6966, 5
        %v8033 = vsel %vm2195, %v8031, %v8032
        %v8034 = vrot.slane %v7962, 5
        %v8035 = vrot.slane %v8034, 4
        %v8036 = vrot.slane %v6924, 5
        %v8037 = vsel %vm2195, %v8035, %v8036
        %v8038 = vrot.slane %v8036, 4
        %v8039 = vrot.slane %v6967, 5
        %v8040 = vsel %vm2195, %v8038, %v8039
        %v8041 = vrot.slane %v7963, 5
        %v8042 = vrot.slane %v8041, 4
        %v8043 = vrot.slane %v6926, 5
        %v8044 = vsel %vm2195, %v8042, %v8043
        %v8045 = vrot.slane %v8043, 4
        %v8046 = vrot.slane %v6968, 5
        %v8047 = vsel %vm2195, %v8045, %v8046
        %v8048 = vrot.slane %v7964, 5
        %v8049 = vrot.slane %v8048, 4
        %v8050 = vrot.slane %v6928, 5
        %v8051 = vsel %vm2195, %v8049, %v8050
        %v8052 = vrot.slane %v8050, 4
        %v8053 = vrot.slane %v6969, 5
        %v8054 = vsel %vm2195, %v8052, %v8053
        %v8055 = vrot.slane %v7965, 5
        %v8056 = vrot.slane %v8055, 4
        %v8057 = vrot.slane %v6930, 5
        %v8058 = vsel %vm2195, %v8056, %v8057
        %v8059 = vrot.slane %v8057, 4
        %v8060 = vrot.slane %v6970, 5
        %v8061 = vsel %vm2195, %v8059, %v8060
        %v8062 = vrot.slane %v7966, 5
        %v8063 = vrot.slane %v8062, 4
        %v8064 = vrot.slane %v6932, 5
        %v8065 = vsel %vm2195, %v8063, %v8064
        %v8066 = vrot.slane %v8064, 4
        %v8067 = vrot.slane %v6971, 5
        %v8068 = vsel %vm2195, %v8066, %v8067
        %v8069 = vrot.slane %v7967, 5
        %v8070 = vrot.slane %v8069, 4
        %v8071 = vrot.slane %v6934, 5
        %v8072 = vsel %vm2195, %v8070, %v8071
        %v8073 = vrot.slane %v8071, 4
        %v8074 = vrot.slane %v6972, 5
        %v8075 = vsel %vm2195, %v8073, %v8074
        %v8076 = vrot.slane %v7968, 5
        %v8077 = vrot.slane %v8076, 4
        %v8078 = vrot.slane %v6936, 5
        %v8079 = vsel %vm2195, %v8077, %v8078
        %v8080 = vrot.slane %v8078, 4
        %v8081 = vrot.slane %v6973, 5
        %v8082 = vsel %vm2195, %v8080, %v8081
        %v8083 = vrot.slane %v7969, 5
        %v8084 = vrot.slane %v8083, 4
        %v8085 = vrot.slane %v6938, 5
        %v8086 = vsel %vm2195, %v8084, %v8085
        %v8087 = vrot.slane %v8085, 4
        %v8088 = vrot.slane %v6974, 5
        %v8089 = vsel %vm2195, %v8087, %v8088
        %v8090 = vrot.slane %v7970, 5
        %v8091 = vrot.slane %v8090, 4
        %v8092 = vrot.slane %v6940, 5
        %v8093 = vsel %vm2195, %v8091, %v8092
        %v8094 = vrot.slane %v8092, 4
        %v8095 = vrot.slane %v6975, 5
        %v8096 = vsel %vm2195, %v8094, %v8095
        %v8097 = vrot.slane %v7971, 5
        %v8098 = vrot.slane %v8097, 4
        %v8099 = vrot.slane %v6942, 5
        %v8100 = vsel %vm2195, %v8098, %v8099
        %v8101 = vrot.slane %v8099, 4
        %v8102 = vrot.slane %v6976, 5
        %v8103 = vsel %vm2195, %v8101, %v8102
        %v8104 = vrot.slane %v7972, 5
        %v8105 = vrot.slane %v8104, 4
        %v8106 = vrot.slane %v6944, 5
        %v8107 = vsel %vm2195, %v8105, %v8106
        %v8108 = vrot.slane %v8106, 4
        %v8109 = vrot.slane %v6977, 5
        %v8110 = vsel %vm2195, %v8108, %v8109
        %v8111 = vrot.slane %v7973, 5
        %v8112 = vrot.slane %v8111, 4
        %v8113 = vrot.slane %v6946, 5
        %v8114 = vsel %vm2195, %v8112, %v8113
        %v8115 = vrot.slane %v8113, 4
        %v8116 = vrot.slane %v6978, 5
        %v8117 = vsel %vm2195, %v8115, %v8116
        %s8118 = scalar_lea.vmem [#allocation7], 128
        %v8119 = vld [vmem:[%s8118] sm:$0xf]
        %v8120 = vld [vmem:[%s8118 + $0x4] sm:$0xf]
        %v8121 = vld [vmem:[%s8118 + $0x8] sm:$0xf]
        %v8122 = vld [vmem:[%s8118 + $0xc] sm:$0xf]
        %v8123 = vld [vmem:[%s8118 + $0x10] sm:$0xf]
        %v8124 = vld [vmem:[%s8118 + $0x14] sm:$0xf]
        %v8125 = vld [vmem:[%s8118 + $0x18] sm:$0xf]
        %v8126 = vld [vmem:[%s8118 + $0x1c] sm:$0xf]
        %v8127 = vld [vmem:[%s8118 + $0x20] sm:$0xf]
        %v8128 = vld [vmem:[%s8118 + $0x24] sm:$0xf]
        %v8129 = vld [vmem:[%s8118 + $0x28] sm:$0xf]
        %v8130 = vld [vmem:[%s8118 + $0x2c] sm:$0xf]
        %v8131 = vld [vmem:[%s8118 + $0x30] sm:$0xf]
        %v8132 = vld [vmem:[%s8118 + $0x34] sm:$0xf]
        %v8133 = vld [vmem:[%s8118 + $0x38] sm:$0xf]
        %v8134 = vld [vmem:[%s8118 + $0x3c] sm:$0xf]
        %v8135 = vunpack.c.l.b16 %v8009
        %v8136 = vunpack.c.l.b16 %v8012
        %v8137 = vunpack.c.l.b16 %v8016
        %v8138 = vunpack.c.l.b16 %v8019
        %v8139 = vunpack.c.l.b16 %v8023
        %v8140 = vunpack.c.l.b16 %v8026
        %v8141 = vunpack.c.l.b16 %v8030
        %v8142 = vunpack.c.l.b16 %v8033
        %v8143 = vunpack.c.l.b16 %v8037
        %v8144 = vunpack.c.l.b16 %v8040
        %v8145 = vunpack.c.l.b16 %v8044
        %v8146 = vunpack.c.l.b16 %v8047
        %v8147 = vunpack.c.l.b16 %v8051
        %v8148 = vunpack.c.l.b16 %v8054
        %v8149 = vunpack.c.l.b16 %v8058
        %v8150 = vunpack.c.l.b16 %v8061
        %v8151 = vunpack.c.l.b16 %v8065
        %v8152 = vunpack.c.l.b16 %v8068
        %v8153 = vunpack.c.l.b16 %v8072
        %v8154 = vunpack.c.l.b16 %v8075
        %v8155 = vunpack.c.l.b16 %v8079
        %v8156 = vunpack.c.l.b16 %v8082
        %v8157 = vunpack.c.l.b16 %v8086
        %v8158 = vunpack.c.l.b16 %v8089
        %v8159 = vunpack.c.l.b16 %v8093
        %v8160 = vunpack.c.l.b16 %v8096
        %v8161 = vunpack.c.l.b16 %v8100
        %v8162 = vunpack.c.l.b16 %v8103
        %v8163 = vunpack.c.l.b16 %v8107
        %v8164 = vunpack.c.l.b16 %v8110
        %v8165 = vunpack.c.l.b16 %v8114
        %v8166 = vunpack.c.l.b16 %v8117
        %v8167 = vpack.c.b16 %v8136, %v8135
        %v8168 = vpack.c.b16 %v8138, %v8137
        %v8169 = vpack.c.b16 %v8140, %v8139
        %v8170 = vpack.c.b16 %v8142, %v8141
        %v8171 = vpack.c.b16 %v8144, %v8143
        %v8172 = vpack.c.b16 %v8146, %v8145
        %v8173 = vpack.c.b16 %v8148, %v8147
        %v8174 = vpack.c.b16 %v8150, %v8149
        %v8175 = vpack.c.b16 %v8152, %v8151
        %v8176 = vpack.c.b16 %v8154, %v8153
        %v8177 = vpack.c.b16 %v8156, %v8155
        %v8178 = vpack.c.b16 %v8158, %v8157
        %v8179 = vpack.c.b16 %v8160, %v8159
        %v8180 = vpack.c.b16 %v8162, %v8161
        %v8181 = vpack.c.b16 %v8164, %v8163
        %v8182 = vpack.c.b16 %v8166, %v8165
        %v8215 = vunpack.c.l.b16 %v8119
        %v8216 = vunpack.c.l.b16 %v8120
        %v8217 = vunpack.c.l.b16 %v8121
        %v8218 = vunpack.c.l.b16 %v8122
        %v8219 = vunpack.c.l.b16 %v8123
        %v8220 = vunpack.c.l.b16 %v8124
        %v8221 = vunpack.c.l.b16 %v8125
        %v8222 = vunpack.c.l.b16 %v8126
        %v8223 = vunpack.c.l.b16 %v8127
        %v8224 = vunpack.c.l.b16 %v8128
        %v8225 = vunpack.c.l.b16 %v8129
        %v8226 = vunpack.c.l.b16 %v8130
        %v8227 = vunpack.c.l.b16 %v8131
        %v8228 = vunpack.c.l.b16 %v8132
        %v8229 = vunpack.c.l.b16 %v8133
        %v8230 = vunpack.c.l.b16 %v8134
        %v8231 = vpack.c.b16 %v8216, %v8215
        %v8232 = vpack.c.b16 %v8218, %v8217
        %v8233 = vpack.c.b16 %v8220, %v8219
        %v8234 = vpack.c.b16 %v8222, %v8221
        %v8235 = vpack.c.b16 %v8224, %v8223
        %v8236 = vpack.c.b16 %v8226, %v8225
        %v8237 = vpack.c.b16 %v8228, %v8227
        %v8238 = vpack.c.b16 %v8230, %v8229
        %8247 = vmatprep.subr.bf16.mxu0 0
        %8248 = vmatpush1.bf16.msra.mxu0 %v8231
        %8249 = vmatprep.subr.bf16.mxu0 0
        %8250 = vmatpush1.bf16.msra.mxu0 %v8232
        %8251 = vmatprep.subr.bf16.mxu0 0
        %8252 = vmatpush1.bf16.msra.mxu0 %v8233
        %8253 = vmatprep.subr.bf16.mxu0 0
        %8254 = vmatpush1.bf16.msra.mxu0 %v8234
        %8255 = vmatprep.subr.bf16.mxu0 0
        %8256 = vmatpush1.bf16.msra.mxu0 %v8235
        %8257 = vmatprep.subr.bf16.mxu0 0
        %8258 = vmatpush1.bf16.msra.mxu0 %v8236
        %8259 = vmatprep.subr.bf16.mxu0 0
        %8260 = vmatpush1.bf16.msra.mxu0 %v8237
        %8261 = vmatprep.subr.bf16.mxu0 0
        %8262 = vmatpush1.bf16.msra.mxu0 %v8238
        %8263 = vmatprep.subr.bf16.mxu0 0
        %8264 = vmatpush1.bf16.msra.mxu0 0
        %8265 = vmatprep.subr.bf16.mxu0 0
        %8266 = vmatpush1.bf16.msra.mxu0 0
        %8267 = vmatprep.subr.bf16.mxu0 0
        %8268 = vmatpush1.bf16.msra.mxu0 0
        %8269 = vmatprep.subr.bf16.mxu0 0
        %8270 = vmatpush1.bf16.msra.mxu0 0
        %8271 = vmatprep.subr.bf16.mxu0 0
        %8272 = vmatpush1.bf16.msra.mxu0 0
        %8273 = vmatprep.subr.bf16.mxu0 0
        %8274 = vmatpush1.bf16.msra.mxu0 0
        %8275 = vmatprep.subr.bf16.mxu0 0
        %8276 = vmatpush1.bf16.msra.mxu0 0
        %8277 = vmatprep.subr.bf16.mxu0 0
        %8278 = vmatpush1.bf16.msra.mxu0 0
        %8279 = vmatprep.mubr.bf16.mxu0 0
        %8280 = vmatmul.mubr.bf16.gmra.mrb[0].mxu0 %v8167
        %v8281 = vpop.f32.mrb[0].mxu0
        %v8282 = vadd.f32 0.0, %v8281
        %v8283 = vpop.f32.mrb[0].mxu0
        %v8284 = vpop.f32.mrb[0].mxu0
        %v8285 = vadd.f32 0.0, %v8284
        %v8286 = vpop.f32.mrb[0].mxu0
        %8287 = vmatprep.mubr.bf16.mxu0 0
        %8288 = vmatmul.mubr.bf16.gmra.mrb[0].mxu0 %v8168
        %v8289 = vpop.f32.mrb[0].mxu0
        %v8290 = vadd.f32 0.0, %v8289
        %v8291 = vpop.f32.mrb[0].mxu0
        %v8292 = vpop.f32.mrb[0].mxu0
        %v8293 = vadd.f32 0.0, %v8292
        %v8294 = vpop.f32.mrb[0].mxu0
        %8295 = vmatprep.mubr.bf16.mxu0 0
        %8296 = vmatmul.mubr.bf16.gmra.mrb[0].mxu0 %v8169
        %v8297 = vpop.f32.mrb[0].mxu0
        %v8298 = vadd.f32 0.0, %v8297
        %v8299 = vpop.f32.mrb[0].mxu0
        %v8300 = vpop.f32.mrb[0].mxu0
        %v8301 = vadd.f32 0.0, %v8300
        %v8302 = vpop.f32.mrb[0].mxu0
        %8303 = vmatprep.mubr.bf16.mxu0 0
        %8304 = vmatmul.mubr.bf16.gmra.mrb[0].mxu0 %v8170
        %v8305 = vpop.f32.mrb[0].mxu0
        %v8306 = vadd.f32 0.0, %v8305
        %v8307 = vpop.f32.mrb[0].mxu0
        %v8308 = vpop.f32.mrb[0].mxu0
        %v8309 = vadd.f32 0.0, %v8308
        %v8310 = vpop.f32.mrb[0].mxu0
        %8311 = vmatprep.mubr.bf16.mxu0 0
        %8312 = vmatmul.mubr.bf16.gmra.mrb[0].mxu0 %v8171
        %v8313 = vpop.f32.mrb[0].mxu0
        %v8314 = vadd.f32 0.0, %v8313
        %v8315 = vpop.f32.mrb[0].mxu0
        %v8316 = vpop.f32.mrb[0].mxu0
        %v8317 = vadd.f32 0.0, %v8316
        %v8318 = vpop.f32.mrb[0].mxu0
        %8319 = vmatprep.mubr.bf16.mxu0 0
        %8320 = vmatmul.mubr.bf16.gmra.mrb[0].mxu0 %v8172
        %v8321 = vpop.f32.mrb[0].mxu0
        %v8322 = vadd.f32 0.0, %v8321
        %v8323 = vpop.f32.mrb[0].mxu0
        %v8324 = vpop.f32.mrb[0].mxu0
        %v8325 = vadd.f32 0.0, %v8324
        %v8326 = vpop.f32.mrb[0].mxu0
        %8327 = vmatprep.mubr.bf16.mxu0 0
        %8328 = vmatmul.mubr.bf16.gmra.mrb[0].mxu0 %v8173
        %v8329 = vpop.f32.mrb[0].mxu0
        %v8330 = vadd.f32 0.0, %v8329
        %v8331 = vpop.f32.mrb[0].mxu0
        %v8332 = vpop.f32.mrb[0].mxu0
        %v8333 = vadd.f32 0.0, %v8332
        %v8334 = vpop.f32.mrb[0].mxu0
        %8335 = vmatprep.mubr.bf16.mxu0 0
        %8336 = vmatmul.mubr.bf16.gmra.mrb[0].mxu0 %v8174
        %v8337 = vpop.f32.mrb[0].mxu0
        %v8338 = vadd.f32 0.0, %v8337
        %v8339 = vpop.f32.mrb[0].mxu0
        %v8340 = vpop.f32.mrb[0].mxu0
        %v8341 = vadd.f32 0.0, %v8340
        %v8342 = vpop.f32.mrb[0].mxu0
        %8343 = vmatprep.mubr.bf16.mxu0 0
        %8344 = vmatmul.mubr.bf16.gmra.mrb[0].mxu0 %v8175
        %v8345 = vpop.f32.mrb[0].mxu0
        %v8346 = vadd.f32 0.0, %v8345
        %v8347 = vpop.f32.mrb[0].mxu0
        %v8348 = vpop.f32.mrb[0].mxu0
        %v8349 = vadd.f32 0.0, %v8348
        %v8350 = vpop.f32.mrb[0].mxu0
        %8351 = vmatprep.mubr.bf16.mxu0 0
        %8352 = vmatmul.mubr.bf16.gmra.mrb[0].mxu0 %v8176
        %v8353 = vpop.f32.mrb[0].mxu0
        %v8354 = vadd.f32 0.0, %v8353
        %v8355 = vpop.f32.mrb[0].mxu0
        %v8356 = vpop.f32.mrb[0].mxu0
        %v8357 = vadd.f32 0.0, %v8356
        %v8358 = vpop.f32.mrb[0].mxu0
        %8359 = vmatprep.mubr.bf16.mxu0 0
        %8360 = vmatmul.mubr.bf16.gmra.mrb[0].mxu0 %v8177
        %v8361 = vpop.f32.mrb[0].mxu0
        %v8362 = vadd.f32 0.0, %v8361
        %v8363 = vpop.f32.mrb[0].mxu0
        %v8364 = vpop.f32.mrb[0].mxu0
        %v8365 = vadd.f32 0.0, %v8364
        %v8366 = vpop.f32.mrb[0].mxu0
        %8367 = vmatprep.mubr.bf16.mxu0 0
        %8368 = vmatmul.mubr.bf16.gmra.mrb[0].mxu0 %v8178
        %v8369 = vpop.f32.mrb[0].mxu0
        %v8370 = vadd.f32 0.0, %v8369
        %v8371 = vpop.f32.mrb[0].mxu0
        %v8372 = vpop.f32.mrb[0].mxu0
        %v8373 = vadd.f32 0.0, %v8372
        %v8374 = vpop.f32.mrb[0].mxu0
        %8375 = vmatprep.mubr.bf16.mxu0 0
        %8376 = vmatmul.mubr.bf16.gmra.mrb[0].mxu0 %v8179
        %v8377 = vpop.f32.mrb[0].mxu0
        %v8378 = vadd.f32 0.0, %v8377
        %v8379 = vpop.f32.mrb[0].mxu0
        %v8380 = vpop.f32.mrb[0].mxu0
        %v8381 = vadd.f32 0.0, %v8380
        %v8382 = vpop.f32.mrb[0].mxu0
        %8383 = vmatprep.mubr.bf16.mxu0 0
        %8384 = vmatmul.mubr.bf16.gmra.mrb[0].mxu0 %v8180
        %v8385 = vpop.f32.mrb[0].mxu0
        %v8386 = vadd.f32 0.0, %v8385
        %v8387 = vpop.f32.mrb[0].mxu0
        %v8388 = vpop.f32.mrb[0].mxu0
        %v8389 = vadd.f32 0.0, %v8388
        %v8390 = vpop.f32.mrb[0].mxu0
        %8391 = vmatprep.mubr.bf16.mxu0 0
        %8392 = vmatmul.mubr.bf16.gmra.mrb[0].mxu0 %v8181
        %v8393 = vpop.f32.mrb[0].mxu0
        %v8394 = vadd.f32 0.0, %v8393
        %v8395 = vpop.f32.mrb[0].mxu0
        %v8396 = vpop.f32.mrb[0].mxu0
        %v8397 = vadd.f32 0.0, %v8396
        %v8398 = vpop.f32.mrb[0].mxu0
        %8399 = vmatprep.mubr.bf16.mxu0 0
        %8400 = vmatmul.mubr.bf16.gmra.mrb[0].mxu0 %v8182
        %v8401 = vpop.f32.mrb[0].mxu0
        %v8402 = vadd.f32 0.0, %v8401
        %v8403 = vpop.f32.mrb[0].mxu0
        %v8404 = vpop.f32.mrb[0].mxu0
        %v8405 = vadd.f32 0.0, %v8404
        %v8406 = vpop.f32.mrb[0].mxu0
        %8407 = vdwg.mxu0
        %v8408 = vadd.f32 %v7832, %v8282
        %v8409 = vadd.f32 %v7835, %v8285
        %v8410 = vadd.f32 %v7840, %v8290
        %v8411 = vadd.f32 %v7843, %v8293
        %v8412 = vadd.f32 %v7848, %v8298
        %v8413 = vadd.f32 %v7851, %v8301
        %v8414 = vadd.f32 %v7856, %v8306
        %v8415 = vadd.f32 %v7859, %v8309
        %v8416 = vadd.f32 %v7864, %v8314
        %v8417 = vadd.f32 %v7867, %v8317
        %v8418 = vadd.f32 %v7872, %v8322
        %v8419 = vadd.f32 %v7875, %v8325
        %v8420 = vadd.f32 %v7880, %v8330
        %v8421 = vadd.f32 %v7883, %v8333
        %v8422 = vadd.f32 %v7888, %v8338
        %v8423 = vadd.f32 %v7891, %v8341
        %v8424 = vadd.f32 %v7896, %v8346
        %v8425 = vadd.f32 %v7899, %v8349
        %v8426 = vadd.f32 %v7904, %v8354
        %v8427 = vadd.f32 %v7907, %v8357
        %v8428 = vadd.f32 %v7912, %v8362
        %v8429 = vadd.f32 %v7915, %v8365
        %v8430 = vadd.f32 %v7920, %v8370
        %v8431 = vadd.f32 %v7923, %v8373
        %v8432 = vadd.f32 %v7928, %v8378
        %v8433 = vadd.f32 %v7931, %v8381
        %v8434 = vadd.f32 %v7936, %v8386
        %v8435 = vadd.f32 %v7939, %v8389
        %v8436 = vadd.f32 %v7944, %v8394
        %v8437 = vadd.f32 %v7947, %v8397
        %v8438 = vadd.f32 %v7952, %v8402
        %v8439 = vadd.f32 %v7955, %v8405
        %v8440 = vld [vmem:[%s509] sm:$0xf]
        %v8441 = vld [vmem:[%s509 + $0x4] sm:$0xf]
        %v8442 = vld [vmem:[%s509 + $0xc] sm:$0xf]
        %v8443 = vld [vmem:[%s509 + $0x10] sm:$0xf]
        %v8444 = vld [vmem:[%s509 + $0x18] sm:$0xf]
        %v8445 = vld [vmem:[%s509 + $0x1c] sm:$0xf]
        %v8446 = vld [vmem:[%s509 + $0x24] sm:$0xf]
        %v8447 = vld [vmem:[%s509 + $0x28] sm:$0xf]
        %v8448 = vld [vmem:[%s509 + $0x30] sm:$0xf]
        %v8449 = vld [vmem:[%s509 + $0x34] sm:$0xf]
        %v8450 = vld [vmem:[%s509 + $0x3c] sm:$0xf]
        %v8451 = vld [vmem:[%s509 + $0x40] sm:$0xf]
        %v8452 = vld [vmem:[%s509 + $0x48] sm:$0xf]
        %v8453 = vld [vmem:[%s509 + $0x4c] sm:$0xf]
        %v8454 = vld [vmem:[%s509 + $0x54] sm:$0xf]
        %v8455 = vld [vmem:[%s509 + $0x58] sm:$0xf]
        %v8456 = vld [vmem:[%s509 + $0x60] sm:$0xf]
        %v8457 = vld [vmem:[%s509 + $0x64] sm:$0xf]
        %v8458 = vld [vmem:[%s509 + $0x6c] sm:$0xf]
        %v8459 = vld [vmem:[%s509 + $0x70] sm:$0xf]
        %v8460 = vld [vmem:[%s509 + $0x78] sm:$0xf]
        %v8461 = vld [vmem:[%s509 + $0x7c] sm:$0xf]
        %v8462 = vld [vmem:[%s509 + $0x84] sm:$0xf]
        %v8463 = vld [vmem:[%s509 + $0x88] sm:$0xf]
        %v8464 = vld [vmem:[%s509 + $0x90] sm:$0xf]
        %v8465 = vld [vmem:[%s509 + $0x94] sm:$0xf]
        %v8466 = vld [vmem:[%s509 + $0x9c] sm:$0xf]
        %v8467 = vld [vmem:[%s509 + $0xa0] sm:$0xf]
        %v8468 = vld [vmem:[%s509 + $0xa8] sm:$0xf]
        %v8469 = vld [vmem:[%s509 + $0xac] sm:$0xf]
        %v8470 = vld [vmem:[%s509 + $0xb4] sm:$0xf]
        %v8471 = vld [vmem:[%s509 + $0xb8] sm:$0xf]
        %s8472 = scalar_lea.vmem [#allocation7], 192
        %v8473 = vld [vmem:[%s8472] sm:$0xf]
        %v8474 = vld [vmem:[%s8472 + $0x4] sm:$0xf]
        %v8475 = vld [vmem:[%s8472 + $0x8] sm:$0xf]
        %v8476 = vld [vmem:[%s8472 + $0xc] sm:$0xf]
        %v8477 = vld [vmem:[%s8472 + $0x10] sm:$0xf]
        %v8478 = vld [vmem:[%s8472 + $0x14] sm:$0xf]
        %v8479 = vld [vmem:[%s8472 + $0x18] sm:$0xf]
        %v8480 = vld [vmem:[%s8472 + $0x1c] sm:$0xf]
        %v8481 = vld [vmem:[%s8472 + $0x20] sm:$0xf]
        %v8482 = vld [vmem:[%s8472 + $0x24] sm:$0xf]
        %v8483 = vld [vmem:[%s8472 + $0x28] sm:$0xf]
        %v8484 = vld [vmem:[%s8472 + $0x2c] sm:$0xf]
        %v8485 = vld [vmem:[%s8472 + $0x30] sm:$0xf]
        %v8486 = vld [vmem:[%s8472 + $0x34] sm:$0xf]
        %v8487 = vld [vmem:[%s8472 + $0x38] sm:$0xf]
        %v8488 = vld [vmem:[%s8472 + $0x3c] sm:$0xf]
        %v8521 = vunpack.c.l.b16 %v8440
        %v8522 = vunpack.c.l.b16 %v8441
        %v8523 = vunpack.c.l.b16 %v8442
        %v8524 = vunpack.c.l.b16 %v8443
        %v8525 = vunpack.c.l.b16 %v8444
        %v8526 = vunpack.c.l.b16 %v8445
        %v8527 = vunpack.c.l.b16 %v8446
        %v8528 = vunpack.c.l.b16 %v8447
        %v8529 = vunpack.c.l.b16 %v8448
        %v8530 = vunpack.c.l.b16 %v8449
        %v8531 = vunpack.c.l.b16 %v8450
        %v8532 = vunpack.c.l.b16 %v8451
        %v8533 = vunpack.c.l.b16 %v8452
        %v8534 = vunpack.c.l.b16 %v8453
        %v8535 = vunpack.c.l.b16 %v8454
        %v8536 = vunpack.c.l.b16 %v8455
        %v8537 = vunpack.c.l.b16 %v8456
        %v8538 = vunpack.c.l.b16 %v8457
        %v8539 = vunpack.c.l.b16 %v8458
        %v8540 = vunpack.c.l.b16 %v8459
        %v8541 = vunpack.c.l.b16 %v8460
        %v8542 = vunpack.c.l.b16 %v8461
        %v8543 = vunpack.c.l.b16 %v8462
        %v8544 = vunpack.c.l.b16 %v8463
        %v8545 = vunpack.c.l.b16 %v8464
        %v8546 = vunpack.c.l.b16 %v8465
        %v8547 = vunpack.c.l.b16 %v8466
        %v8548 = vunpack.c.l.b16 %v8467
        %v8549 = vunpack.c.l.b16 %v8468
        %v8550 = vunpack.c.l.b16 %v8469
        %v8551 = vunpack.c.l.b16 %v8470
        %v8552 = vunpack.c.l.b16 %v8471
        %v8553 = vpack.c.b16 %v8522, %v8521
        %v8554 = vpack.c.b16 %v8524, %v8523
        %v8555 = vpack.c.b16 %v8526, %v8525
        %v8556 = vpack.c.b16 %v8528, %v8527
        %v8557 = vpack.c.b16 %v8530, %v8529
        %v8558 = vpack.c.b16 %v8532, %v8531
        %v8559 = vpack.c.b16 %v8534, %v8533
        %v8560 = vpack.c.b16 %v8536, %v8535
        %v8561 = vpack.c.b16 %v8538, %v8537
        %v8562 = vpack.c.b16 %v8540, %v8539
        %v8563 = vpack.c.b16 %v8542, %v8541
        %v8564 = vpack.c.b16 %v8544, %v8543
        %v8565 = vpack.c.b16 %v8546, %v8545
        %v8566 = vpack.c.b16 %v8548, %v8547
        %v8567 = vpack.c.b16 %v8550, %v8549
        %v8568 = vpack.c.b16 %v8552, %v8551
        %v8601 = vunpack.c.l.b16 %v8473
        %v8602 = vunpack.c.l.b16 %v8474
        %v8603 = vunpack.c.l.b16 %v8475
        %v8604 = vunpack.c.l.b16 %v8476
        %v8605 = vunpack.c.l.b16 %v8477
        %v8606 = vunpack.c.l.b16 %v8478
        %v8607 = vunpack.c.l.b16 %v8479
        %v8608 = vunpack.c.l.b16 %v8480
        %v8609 = vunpack.c.l.b16 %v8481
        %v8610 = vunpack.c.l.b16 %v8482
        %v8611 = vunpack.c.l.b16 %v8483
        %v8612 = vunpack.c.l.b16 %v8484
        %v8613 = vunpack.c.l.b16 %v8485
        %v8614 = vunpack.c.l.b16 %v8486
        %v8615 = vunpack.c.l.b16 %v8487
        %v8616 = vunpack.c.l.b16 %v8488
        %v8617 = vpack.c.b16 %v8602, %v8601
        %v8618 = vpack.c.b16 %v8604, %v8603
        %v8619 = vpack.c.b16 %v8606, %v8605
        %v8620 = vpack.c.b16 %v8608, %v8607
        %v8621 = vpack.c.b16 %v8610, %v8609
        %v8622 = vpack.c.b16 %v8612, %v8611
        %v8623 = vpack.c.b16 %v8614, %v8613
        %v8624 = vpack.c.b16 %v8616, %v8615
        %8633 = vmatprep.subr.bf16.mxu0 0
        %8634 = vmatpush1.bf16.msra.mxu0 %v8617
        %8635 = vmatprep.subr.bf16.mxu0 0
        %8636 = vmatpush1.bf16.msra.mxu0 %v8618
        %8637 = vmatprep.subr.bf16.mxu0 0
        %8638 = vmatpush1.bf16.msra.mxu0 %v8619
        %8639 = vmatprep.subr.bf16.mxu0 0
        %8640 = vmatpush1.bf16.msra.mxu0 %v8620
        %8641 = vmatprep.subr.bf16.mxu0 0
        %8642 = vmatpush1.bf16.msra.mxu0 %v8621
        %8643 = vmatprep.subr.bf16.mxu0 0
        %8644 = vmatpush1.bf16.msra.mxu0 %v8622
        %8645 = vmatprep.subr.bf16.mxu0 0
        %8646 = vmatpush1.bf16.msra.mxu0 %v8623
        %8647 = vmatprep.subr.bf16.mxu0 0
        %8648 = vmatpush1.bf16.msra.mxu0 %v8624
        %8649 = vmatprep.subr.bf16.mxu0 0
        %8650 = vmatpush1.bf16.msra.mxu0 0
        %8651 = vmatprep.subr.bf16.mxu0 0
        %8652 = vmatpush1.bf16.msra.mxu0 0
        %8653 = vmatprep.subr.bf16.mxu0 0
        %8654 = vmatpush1.bf16.msra.mxu0 0
        %8655 = vmatprep.subr.bf16.mxu0 0
        %8656 = vmatpush1.bf16.msra.mxu0 0
        %8657 = vmatprep.subr.bf16.mxu0 0
        %8658 = vmatpush1.bf16.msra.mxu0 0
        %8659 = vmatprep.subr.bf16.mxu0 0
        %8660 = vmatpush1.bf16.msra.mxu0 0
        %8661 = vmatprep.subr.bf16.mxu0 0
        %8662 = vmatpush1.bf16.msra.mxu0 0
        %8663 = vmatprep.subr.bf16.mxu0 0
        %8664 = vmatpush1.bf16.msra.mxu0 0
        %8665 = vmatprep.mubr.bf16.mxu0 0
        %8666 = vmatmul.mubr.bf16.gmra.mrb[0].mxu0 %v8553
        %v8667 = vpop.f32.mrb[0].mxu0
        %v8668 = vadd.f32 0.0, %v8667
        %v8669 = vpop.f32.mrb[0].mxu0
        %v8670 = vpop.f32.mrb[0].mxu0
        %v8671 = vadd.f32 0.0, %v8670
        %v8672 = vpop.f32.mrb[0].mxu0
        %8673 = vmatprep.mubr.bf16.mxu0 0
        %8674 = vmatmul.mubr.bf16.gmra.mrb[0].mxu0 %v8554
        %v8675 = vpop.f32.mrb[0].mxu0
        %v8676 = vadd.f32 0.0, %v8675
        %v8677 = vpop.f32.mrb[0].mxu0
        %v8678 = vpop.f32.mrb[0].mxu0
        %v8679 = vadd.f32 0.0, %v8678
        %v8680 = vpop.f32.mrb[0].mxu0
        %8681 = vmatprep.mubr.bf16.mxu0 0
        %8682 = vmatmul.mubr.bf16.gmra.mrb[0].mxu0 %v8555
        %v8683 = vpop.f32.mrb[0].mxu0
        %v8684 = vadd.f32 0.0, %v8683
        %v8685 = vpop.f32.mrb[0].mxu0
        %v8686 = vpop.f32.mrb[0].mxu0
        %v8687 = vadd.f32 0.0, %v8686
        %v8688 = vpop.f32.mrb[0].mxu0
        %8689 = vmatprep.mubr.bf16.mxu0 0
        %8690 = vmatmul.mubr.bf16.gmra.mrb[0].mxu0 %v8556
        %v8691 = vpop.f32.mrb[0].mxu0
        %v8692 = vadd.f32 0.0, %v8691
        %v8693 = vpop.f32.mrb[0].mxu0
        %v8694 = vpop.f32.mrb[0].mxu0
        %v8695 = vadd.f32 0.0, %v8694
        %v8696 = vpop.f32.mrb[0].mxu0
        %8697 = vmatprep.mubr.bf16.mxu0 0
        %8698 = vmatmul.mubr.bf16.gmra.mrb[0].mxu0 %v8557
        %v8699 = vpop.f32.mrb[0].mxu0
        %v8700 = vadd.f32 0.0, %v8699
        %v8701 = vpop.f32.mrb[0].mxu0
        %v8702 = vpop.f32.mrb[0].mxu0
        %v8703 = vadd.f32 0.0, %v8702
        %v8704 = vpop.f32.mrb[0].mxu0
        %8705 = vmatprep.mubr.bf16.mxu0 0
        %8706 = vmatmul.mubr.bf16.gmra.mrb[0].mxu0 %v8558
        %v8707 = vpop.f32.mrb[0].mxu0
        %v8708 = vadd.f32 0.0, %v8707
        %v8709 = vpop.f32.mrb[0].mxu0
        %v8710 = vpop.f32.mrb[0].mxu0
        %v8711 = vadd.f32 0.0, %v8710
        %v8712 = vpop.f32.mrb[0].mxu0
        %8713 = vmatprep.mubr.bf16.mxu0 0
        %8714 = vmatmul.mubr.bf16.gmra.mrb[0].mxu0 %v8559
        %v8715 = vpop.f32.mrb[0].mxu0
        %v8716 = vadd.f32 0.0, %v8715
        %v8717 = vpop.f32.mrb[0].mxu0
        %v8718 = vpop.f32.mrb[0].mxu0
        %v8719 = vadd.f32 0.0, %v8718
        %v8720 = vpop.f32.mrb[0].mxu0
        %8721 = vmatprep.mubr.bf16.mxu0 0
        %8722 = vmatmul.mubr.bf16.gmra.mrb[0].mxu0 %v8560
        %v8723 = vpop.f32.mrb[0].mxu0
        %v8724 = vadd.f32 0.0, %v8723
        %v8725 = vpop.f32.mrb[0].mxu0
        %v8726 = vpop.f32.mrb[0].mxu0
        %v8727 = vadd.f32 0.0, %v8726
        %v8728 = vpop.f32.mrb[0].mxu0
        %8729 = vmatprep.mubr.bf16.mxu0 0
        %8730 = vmatmul.mubr.bf16.gmra.mrb[0].mxu0 %v8561
        %v8731 = vpop.f32.mrb[0].mxu0
        %v8732 = vadd.f32 0.0, %v8731
        %v8733 = vpop.f32.mrb[0].mxu0
        %v8734 = vpop.f32.mrb[0].mxu0
        %v8735 = vadd.f32 0.0, %v8734
        %v8736 = vpop.f32.mrb[0].mxu0
        %8737 = vmatprep.mubr.bf16.mxu0 0
        %8738 = vmatmul.mubr.bf16.gmra.mrb[0].mxu0 %v8562
        %v8739 = vpop.f32.mrb[0].mxu0
        %v8740 = vadd.f32 0.0, %v8739
        %v8741 = vpop.f32.mrb[0].mxu0
        %v8742 = vpop.f32.mrb[0].mxu0
        %v8743 = vadd.f32 0.0, %v8742
        %v8744 = vpop.f32.mrb[0].mxu0
        %8745 = vmatprep.mubr.bf16.mxu0 0
        %8746 = vmatmul.mubr.bf16.gmra.mrb[0].mxu0 %v8563
        %v8747 = vpop.f32.mrb[0].mxu0
        %v8748 = vadd.f32 0.0, %v8747
        %v8749 = vpop.f32.mrb[0].mxu0
        %v8750 = vpop.f32.mrb[0].mxu0
        %v8751 = vadd.f32 0.0, %v8750
        %v8752 = vpop.f32.mrb[0].mxu0
        %8753 = vmatprep.mubr.bf16.mxu0 0
        %8754 = vmatmul.mubr.bf16.gmra.mrb[0].mxu0 %v8564
        %v8755 = vpop.f32.mrb[0].mxu0
        %v8756 = vadd.f32 0.0, %v8755
        %v8757 = vpop.f32.mrb[0].mxu0
        %v8758 = vpop.f32.mrb[0].mxu0
        %v8759 = vadd.f32 0.0, %v8758
        %v8760 = vpop.f32.mrb[0].mxu0
        %8761 = vmatprep.mubr.bf16.mxu0 0
        %8762 = vmatmul.mubr.bf16.gmra.mrb[0].mxu0 %v8565
        %v8763 = vpop.f32.mrb[0].mxu0
        %v8764 = vadd.f32 0.0, %v8763
        %v8765 = vpop.f32.mrb[0].mxu0
        %v8766 = vpop.f32.mrb[0].mxu0
        %v8767 = vadd.f32 0.0, %v8766
        %v8768 = vpop.f32.mrb[0].mxu0
        %8769 = vmatprep.mubr.bf16.mxu0 0
        %8770 = vmatmul.mubr.bf16.gmra.mrb[0].mxu0 %v8566
        %v8771 = vpop.f32.mrb[0].mxu0
        %v8772 = vadd.f32 0.0, %v8771
        %v8773 = vpop.f32.mrb[0].mxu0
        %v8774 = vpop.f32.mrb[0].mxu0
        %v8775 = vadd.f32 0.0, %v8774
        %v8776 = vpop.f32.mrb[0].mxu0
        %8777 = vmatprep.mubr.bf16.mxu0 0
        %8778 = vmatmul.mubr.bf16.gmra.mrb[0].mxu0 %v8567
        %v8779 = vpop.f32.mrb[0].mxu0
        %v8780 = vadd.f32 0.0, %v8779
        %v8781 = vpop.f32.mrb[0].mxu0
        %v8782 = vpop.f32.mrb[0].mxu0
        %v8783 = vadd.f32 0.0, %v8782
        %v8784 = vpop.f32.mrb[0].mxu0
        %8785 = vmatprep.mubr.bf16.mxu0 0
        %8786 = vmatmul.mubr.bf16.gmra.mrb[0].mxu0 %v8568
        %v8787 = vpop.f32.mrb[0].mxu0
        %v8788 = vadd.f32 0.0, %v8787
        %v8789 = vpop.f32.mrb[0].mxu0
        %v8790 = vpop.f32.mrb[0].mxu0
        %v8791 = vadd.f32 0.0, %v8790
        %v8792 = vpop.f32.mrb[0].mxu0
        %8793 = vdwg.mxu0
        %v8794 = vadd.f32 %v8408, %v8668
        %v8795 = vadd.f32 %v8409, %v8671
        %v8796 = vadd.f32 %v8410, %v8676
        %v8797 = vadd.f32 %v8411, %v8679
        %v8798 = vadd.f32 %v8412, %v8684
        %v8799 = vadd.f32 %v8413, %v8687
        %v8800 = vadd.f32 %v8414, %v8692
        %v8801 = vadd.f32 %v8415, %v8695
        %v8802 = vadd.f32 %v8416, %v8700
        %v8803 = vadd.f32 %v8417, %v8703
        %v8804 = vadd.f32 %v8418, %v8708
        %v8805 = vadd.f32 %v8419, %v8711
        %v8806 = vadd.f32 %v8420, %v8716
        %v8807 = vadd.f32 %v8421, %v8719
        %v8808 = vadd.f32 %v8422, %v8724
        %v8809 = vadd.f32 %v8423, %v8727
        %v8810 = vadd.f32 %v8424, %v8732
        %v8811 = vadd.f32 %v8425, %v8735
        %v8812 = vadd.f32 %v8426, %v8740
        %v8813 = vadd.f32 %v8427, %v8743
        %v8814 = vadd.f32 %v8428, %v8748
        %v8815 = vadd.f32 %v8429, %v8751
        %v8816 = vadd.f32 %v8430, %v8756
        %v8817 = vadd.f32 %v8431, %v8759
        %v8818 = vadd.f32 %v8432, %v8764
        %v8819 = vadd.f32 %v8433, %v8767
        %v8820 = vadd.f32 %v8434, %v8772
        %v8821 = vadd.f32 %v8435, %v8775
        %v8822 = vadd.f32 %v8436, %v8780
        %v8823 = vadd.f32 %v8437, %v8783
        %v8824 = vadd.f32 %v8438, %v8788
        %v8825 = vadd.f32 %v8439, %v8791
        %v8826 = vld [vmem:[%s509] sm:$0xf]
        %v8827 = vld [vmem:[%s509 + $0x4] sm:$0xf]
        %v8828 = vld [vmem:[%s509 + $0x8] sm:$0x1]
        %v8829 = vld [vmem:[%s509 + $0xc] sm:$0xf]
        %v8830 = vld [vmem:[%s509 + $0x10] sm:$0xf]
        %v8831 = vld [vmem:[%s509 + $0x14] sm:$0x1]
        %v8832 = vld [vmem:[%s509 + $0x18] sm:$0xf]
        %v8833 = vld [vmem:[%s509 + $0x1c] sm:$0xf]
        %v8834 = vld [vmem:[%s509 + $0x20] sm:$0x1]
        %v8835 = vld [vmem:[%s509 + $0x24] sm:$0xf]
        %v8836 = vld [vmem:[%s509 + $0x28] sm:$0xf]
        %v8837 = vld [vmem:[%s509 + $0x2c] sm:$0x1]
        %v8838 = vld [vmem:[%s509 + $0x30] sm:$0xf]
        %v8839 = vld [vmem:[%s509 + $0x34] sm:$0xf]
        %v8840 = vld [vmem:[%s509 + $0x38] sm:$0x1]
        %v8841 = vld [vmem:[%s509 + $0x3c] sm:$0xf]
        %v8842 = vld [vmem:[%s509 + $0x40] sm:$0xf]
        %v8843 = vld [vmem:[%s509 + $0x44] sm:$0x1]
        %v8844 = vld [vmem:[%s509 + $0x48] sm:$0xf]
        %v8845 = vld [vmem:[%s509 + $0x4c] sm:$0xf]
        %v8846 = vld [vmem:[%s509 + $0x50] sm:$0x1]
        %v8847 = vld [vmem:[%s509 + $0x54] sm:$0xf]
        %v8848 = vld [vmem:[%s509 + $0x58] sm:$0xf]
        %v8849 = vld [vmem:[%s509 + $0x5c] sm:$0x1]
        %v8850 = vld [vmem:[%s509 + $0x60] sm:$0xf]
        %v8851 = vld [vmem:[%s509 + $0x64] sm:$0xf]
        %v8852 = vld [vmem:[%s509 + $0x68] sm:$0x1]
        %v8853 = vld [vmem:[%s509 + $0x6c] sm:$0xf]
        %v8854 = vld [vmem:[%s509 + $0x70] sm:$0xf]
        %v8855 = vld [vmem:[%s509 + $0x74] sm:$0x1]
        %v8856 = vld [vmem:[%s509 + $0x78] sm:$0xf]
        %v8857 = vld [vmem:[%s509 + $0x7c] sm:$0xf]
        %v8858 = vld [vmem:[%s509 + $0x80] sm:$0x1]
        %v8859 = vld [vmem:[%s509 + $0x84] sm:$0xf]
        %v8860 = vld [vmem:[%s509 + $0x88] sm:$0xf]
        %v8861 = vld [vmem:[%s509 + $0x8c] sm:$0x1]
        %v8862 = vld [vmem:[%s509 + $0x90] sm:$0xf]
        %v8863 = vld [vmem:[%s509 + $0x94] sm:$0xf]
        %v8864 = vld [vmem:[%s509 + $0x98] sm:$0x1]
        %v8865 = vld [vmem:[%s509 + $0x9c] sm:$0xf]
        %v8866 = vld [vmem:[%s509 + $0xa0] sm:$0xf]
        %v8867 = vld [vmem:[%s509 + $0xa4] sm:$0x1]
        %v8868 = vld [vmem:[%s509 + $0xa8] sm:$0xf]
        %v8869 = vld [vmem:[%s509 + $0xac] sm:$0xf]
        %v8870 = vld [vmem:[%s509 + $0xb0] sm:$0x1]
        %v8871 = vld [vmem:[%s509 + $0xb4] sm:$0xf]
        %v8872 = vld [vmem:[%s509 + $0xb8] sm:$0xf]
        %v8873 = vld [vmem:[%s509 + $0xbc] sm:$0x1]
        %v8875 = vshrl.u32 %v8826, 16
        %v8877 = vrot.slane %v8875, 4
        %v8878 = vshll.u32 %v8826, 16
        %v8880 = vrot.slane %v8878, 5
        %v8881 = vor.u32 %v8877, %v8880
        %v8882 = vrot.slane %v8881, 4
        %v8884 = vshll.u32 %v8827, 16
        %v8886 = vrot.slane %v8884, 5
        %v8887 = vsel %vm1165, %v8882, %v8886
        %v8888 = vshrl.u32 %v8827, 16
        %v8890 = vrot.slane %v8888, 4
        %v8891 = vor.u32 %v8890, %v8886
        %v8892 = vrot.slane %v8891, 4
        %v8894 = vshll.u32 %v8828, 16
        %v8896 = vrot.slane %v8894, 5
        %v8897 = vsel %vm1165, %v8892, %v8896
        %v8899 = vshrl.u32 %v8829, 16
        %v8901 = vrot.slane %v8899, 4
        %v8902 = vshll.u32 %v8829, 16
        %v8904 = vrot.slane %v8902, 5
        %v8905 = vor.u32 %v8901, %v8904
        %v8906 = vrot.slane %v8905, 4
        %v8908 = vshll.u32 %v8830, 16
        %v8910 = vrot.slane %v8908, 5
        %v8911 = vsel %vm1165, %v8906, %v8910
        %v8912 = vshrl.u32 %v8830, 16
        %v8914 = vrot.slane %v8912, 4
        %v8915 = vor.u32 %v8914, %v8910
        %v8916 = vrot.slane %v8915, 4
        %v8918 = vshll.u32 %v8831, 16
        %v8920 = vrot.slane %v8918, 5
        %v8921 = vsel %vm1165, %v8916, %v8920
        %v8923 = vshrl.u32 %v8832, 16
        %v8925 = vrot.slane %v8923, 4
        %v8926 = vshll.u32 %v8832, 16
        %v8928 = vrot.slane %v8926, 5
        %v8929 = vor.u32 %v8925, %v8928
        %v8930 = vrot.slane %v8929, 4
        %v8932 = vshll.u32 %v8833, 16
        %v8934 = vrot.slane %v8932, 5
        %v8935 = vsel %vm1165, %v8930, %v8934
        %v8936 = vshrl.u32 %v8833, 16
        %v8938 = vrot.slane %v8936, 4
        %v8939 = vor.u32 %v8938, %v8934
        %v8940 = vrot.slane %v8939, 4
        %v8942 = vshll.u32 %v8834, 16
        %v8944 = vrot.slane %v8942, 5
        %v8945 = vsel %vm1165, %v8940, %v8944
        %v8947 = vshrl.u32 %v8835, 16
        %v8949 = vrot.slane %v8947, 4
        %v8950 = vshll.u32 %v8835, 16
        %v8952 = vrot.slane %v8950, 5
        %v8953 = vor.u32 %v8949, %v8952
        %v8954 = vrot.slane %v8953, 4
        %v8956 = vshll.u32 %v8836, 16
        %v8958 = vrot.slane %v8956, 5
        %v8959 = vsel %vm1165, %v8954, %v8958
        %v8960 = vshrl.u32 %v8836, 16
        %v8962 = vrot.slane %v8960, 4
        %v8963 = vor.u32 %v8962, %v8958
        %v8964 = vrot.slane %v8963, 4
        %v8966 = vshll.u32 %v8837, 16
        %v8968 = vrot.slane %v8966, 5
        %v8969 = vsel %vm1165, %v8964, %v8968
        %v8971 = vshrl.u32 %v8838, 16
        %v8973 = vrot.slane %v8971, 4
        %v8974 = vshll.u32 %v8838, 16
        %v8976 = vrot.slane %v8974, 5
        %v8977 = vor.u32 %v8973, %v8976
        %v8978 = vrot.slane %v8977, 4
        %v8980 = vshll.u32 %v8839, 16
        %v8982 = vrot.slane %v8980, 5
        %v8983 = vsel %vm1165, %v8978, %v8982
        %v8984 = vshrl.u32 %v8839, 16
        %v8986 = vrot.slane %v8984, 4
        %v8987 = vor.u32 %v8986, %v8982
        %v8988 = vrot.slane %v8987, 4
        %v8990 = vshll.u32 %v8840, 16
        %v8992 = vrot.slane %v8990, 5
        %v8993 = vsel %vm1165, %v8988, %v8992
        %v8995 = vshrl.u32 %v8841, 16
        %v8997 = vrot.slane %v8995, 4
        %v8998 = vshll.u32 %v8841, 16
        %v9000 = vrot.slane %v8998, 5
        %v9001 = vor.u32 %v8997, %v9000
        %v9002 = vrot.slane %v9001, 4
        %v9004 = vshll.u32 %v8842, 16
        %v9006 = vrot.slane %v9004, 5
        %v9007 = vsel %vm1165, %v9002, %v9006
        %v9008 = vshrl.u32 %v8842, 16
        %v9010 = vrot.slane %v9008, 4
        %v9011 = vor.u32 %v9010, %v9006
        %v9012 = vrot.slane %v9011, 4
        %v9014 = vshll.u32 %v8843, 16
        %v9016 = vrot.slane %v9014, 5
        %v9017 = vsel %vm1165, %v9012, %v9016
        %v9019 = vshrl.u32 %v8844, 16
        %v9021 = vrot.slane %v9019, 4
        %v9022 = vshll.u32 %v8844, 16
        %v9024 = vrot.slane %v9022, 5
        %v9025 = vor.u32 %v9021, %v9024
        %v9026 = vrot.slane %v9025, 4
        %v9028 = vshll.u32 %v8845, 16
        %v9030 = vrot.slane %v9028, 5
        %v9031 = vsel %vm1165, %v9026, %v9030
        %v9032 = vshrl.u32 %v8845, 16
        %v9034 = vrot.slane %v9032, 4
        %v9035 = vor.u32 %v9034, %v9030
        %v9036 = vrot.slane %v9035, 4
        %v9038 = vshll.u32 %v8846, 16
        %v9040 = vrot.slane %v9038, 5
        %v9041 = vsel %vm1165, %v9036, %v9040
        %v9043 = vshrl.u32 %v8847, 16
        %v9045 = vrot.slane %v9043, 4
        %v9046 = vshll.u32 %v8847, 16
        %v9048 = vrot.slane %v9046, 5
        %v9049 = vor.u32 %v9045, %v9048
        %v9050 = vrot.slane %v9049, 4
        %v9052 = vshll.u32 %v8848, 16
        %v9054 = vrot.slane %v9052, 5
        %v9055 = vsel %vm1165, %v9050, %v9054
        %v9056 = vshrl.u32 %v8848, 16
        %v9058 = vrot.slane %v9056, 4
        %v9059 = vor.u32 %v9058, %v9054
        %v9060 = vrot.slane %v9059, 4
        %v9062 = vshll.u32 %v8849, 16
        %v9064 = vrot.slane %v9062, 5
        %v9065 = vsel %vm1165, %v9060, %v9064
        %v9067 = vshrl.u32 %v8850, 16
        %v9069 = vrot.slane %v9067, 4
        %v9070 = vshll.u32 %v8850, 16
        %v9072 = vrot.slane %v9070, 5
        %v9073 = vor.u32 %v9069, %v9072
        %v9074 = vrot.slane %v9073, 4
        %v9076 = vshll.u32 %v8851, 16
        %v9078 = vrot.slane %v9076, 5
        %v9079 = vsel %vm1165, %v9074, %v9078
        %v9080 = vshrl.u32 %v8851, 16
        %v9082 = vrot.slane %v9080, 4
        %v9083 = vor.u32 %v9082, %v9078
        %v9084 = vrot.slane %v9083, 4
        %v9086 = vshll.u32 %v8852, 16
        %v9088 = vrot.slane %v9086, 5
        %v9089 = vsel %vm1165, %v9084, %v9088
        %v9091 = vshrl.u32 %v8853, 16
        %v9093 = vrot.slane %v9091, 4
        %v9094 = vshll.u32 %v8853, 16
        %v9096 = vrot.slane %v9094, 5
        %v9097 = vor.u32 %v9093, %v9096
        %v9098 = vrot.slane %v9097, 4
        %v9100 = vshll.u32 %v8854, 16
        %v9102 = vrot.slane %v9100, 5
        %v9103 = vsel %vm1165, %v9098, %v9102
        %v9104 = vshrl.u32 %v8854, 16
        %v9106 = vrot.slane %v9104, 4
        %v9107 = vor.u32 %v9106, %v9102
        %v9108 = vrot.slane %v9107, 4
        %v9110 = vshll.u32 %v8855, 16
        %v9112 = vrot.slane %v9110, 5
        %v9113 = vsel %vm1165, %v9108, %v9112
        %v9115 = vshrl.u32 %v8856, 16
        %v9117 = vrot.slane %v9115, 4
        %v9118 = vshll.u32 %v8856, 16
        %v9120 = vrot.slane %v9118, 5
        %v9121 = vor.u32 %v9117, %v9120
        %v9122 = vrot.slane %v9121, 4
        %v9124 = vshll.u32 %v8857, 16
        %v9126 = vrot.slane %v9124, 5
        %v9127 = vsel %vm1165, %v9122, %v9126
        %v9128 = vshrl.u32 %v8857, 16
        %v9130 = vrot.slane %v9128, 4
        %v9131 = vor.u32 %v9130, %v9126
        %v9132 = vrot.slane %v9131, 4
        %v9134 = vshll.u32 %v8858, 16
        %v9136 = vrot.slane %v9134, 5
        %v9137 = vsel %vm1165, %v9132, %v9136
        %v9139 = vshrl.u32 %v8859, 16
        %v9141 = vrot.slane %v9139, 4
        %v9142 = vshll.u32 %v8859, 16
        %v9144 = vrot.slane %v9142, 5
        %v9145 = vor.u32 %v9141, %v9144
        %v9146 = vrot.slane %v9145, 4
        %v9148 = vshll.u32 %v8860, 16
        %v9150 = vrot.slane %v9148, 5
        %v9151 = vsel %vm1165, %v9146, %v9150
        %v9152 = vshrl.u32 %v8860, 16
        %v9154 = vrot.slane %v9152, 4
        %v9155 = vor.u32 %v9154, %v9150
        %v9156 = vrot.slane %v9155, 4
        %v9158 = vshll.u32 %v8861, 16
        %v9160 = vrot.slane %v9158, 5
        %v9161 = vsel %vm1165, %v9156, %v9160
        %v9163 = vshrl.u32 %v8862, 16
        %v9165 = vrot.slane %v9163, 4
        %v9166 = vshll.u32 %v8862, 16
        %v9168 = vrot.slane %v9166, 5
        %v9169 = vor.u32 %v9165, %v9168
        %v9170 = vrot.slane %v9169, 4
        %v9172 = vshll.u32 %v8863, 16
        %v9174 = vrot.slane %v9172, 5
        %v9175 = vsel %vm1165, %v9170, %v9174
        %v9176 = vshrl.u32 %v8863, 16
        %v9178 = vrot.slane %v9176, 4
        %v9179 = vor.u32 %v9178, %v9174
        %v9180 = vrot.slane %v9179, 4
        %v9182 = vshll.u32 %v8864, 16
        %v9184 = vrot.slane %v9182, 5
        %v9185 = vsel %vm1165, %v9180, %v9184
        %v9187 = vshrl.u32 %v8865, 16
        %v9189 = vrot.slane %v9187, 4
        %v9190 = vshll.u32 %v8865, 16
        %v9192 = vrot.slane %v9190, 5
        %v9193 = vor.u32 %v9189, %v9192
        %v9194 = vrot.slane %v9193, 4
        %v9196 = vshll.u32 %v8866, 16
        %v9198 = vrot.slane %v9196, 5
        %v9199 = vsel %vm1165, %v9194, %v9198
        %v9200 = vshrl.u32 %v8866, 16
        %v9202 = vrot.slane %v9200, 4
        %v9203 = vor.u32 %v9202, %v9198
        %v9204 = vrot.slane %v9203, 4
        %v9206 = vshll.u32 %v8867, 16
        %v9208 = vrot.slane %v9206, 5
        %v9209 = vsel %vm1165, %v9204, %v9208
        %v9211 = vshrl.u32 %v8868, 16
        %v9213 = vrot.slane %v9211, 4
        %v9214 = vshll.u32 %v8868, 16
        %v9216 = vrot.slane %v9214, 5
        %v9217 = vor.u32 %v9213, %v9216
        %v9218 = vrot.slane %v9217, 4
        %v9220 = vshll.u32 %v8869, 16
        %v9222 = vrot.slane %v9220, 5
        %v9223 = vsel %vm1165, %v9218, %v9222
        %v9224 = vshrl.u32 %v8869, 16
        %v9226 = vrot.slane %v9224, 4
        %v9227 = vor.u32 %v9226, %v9222
        %v9228 = vrot.slane %v9227, 4
        %v9230 = vshll.u32 %v8870, 16
        %v9232 = vrot.slane %v9230, 5
        %v9233 = vsel %vm1165, %v9228, %v9232
        %v9235 = vshrl.u32 %v8871, 16
        %v9237 = vrot.slane %v9235, 4
        %v9238 = vshll.u32 %v8871, 16
        %v9240 = vrot.slane %v9238, 5
        %v9241 = vor.u32 %v9237, %v9240
        %v9242 = vrot.slane %v9241, 4
        %v9244 = vshll.u32 %v8872, 16
        %v9246 = vrot.slane %v9244, 5
        %v9247 = vsel %vm1165, %v9242, %v9246
        %v9248 = vshrl.u32 %v8872, 16
        %v9250 = vrot.slane %v9248, 4
        %v9251 = vor.u32 %v9250, %v9246
        %v9252 = vrot.slane %v9251, 4
        %v9254 = vshll.u32 %v8873, 16
        %v9256 = vrot.slane %v9254, 5
        %v9257 = vsel %vm1165, %v9252, %v9256
        %s9258 = scalar_lea.vmem [#allocation7], 256
        %v9259 = vld [vmem:[%s9258] sm:$0xf]
        %v9260 = vld [vmem:[%s9258 + $0x4] sm:$0xf]
        %v9261 = vld [vmem:[%s9258 + $0x8] sm:$0xf]
        %v9262 = vld [vmem:[%s9258 + $0xc] sm:$0xf]
        %v9263 = vld [vmem:[%s9258 + $0x10] sm:$0xf]
        %v9264 = vld [vmem:[%s9258 + $0x14] sm:$0xf]
        %v9265 = vld [vmem:[%s9258 + $0x18] sm:$0xf]
        %v9266 = vld [vmem:[%s9258 + $0x1c] sm:$0xf]
        %v9267 = vld [vmem:[%s9258 + $0x20] sm:$0xf]
        %v9268 = vld [vmem:[%s9258 + $0x24] sm:$0xf]
        %v9269 = vld [vmem:[%s9258 + $0x28] sm:$0xf]
        %v9270 = vld [vmem:[%s9258 + $0x2c] sm:$0xf]
        %v9271 = vld [vmem:[%s9258 + $0x30] sm:$0xf]
        %v9272 = vld [vmem:[%s9258 + $0x34] sm:$0xf]
        %v9273 = vld [vmem:[%s9258 + $0x38] sm:$0xf]
        %v9274 = vld [vmem:[%s9258 + $0x3c] sm:$0xf]
        %v9275 = vunpack.c.l.b16 %v8887
        %v9276 = vunpack.c.l.b16 %v8897
        %v9277 = vunpack.c.l.b16 %v8911
        %v9278 = vunpack.c.l.b16 %v8921
        %v9279 = vunpack.c.l.b16 %v8935
        %v9280 = vunpack.c.l.b16 %v8945
        %v9281 = vunpack.c.l.b16 %v8959
        %v9282 = vunpack.c.l.b16 %v8969
        %v9283 = vunpack.c.l.b16 %v8983
        %v9284 = vunpack.c.l.b16 %v8993
        %v9285 = vunpack.c.l.b16 %v9007
        %v9286 = vunpack.c.l.b16 %v9017
        %v9287 = vunpack.c.l.b16 %v9031
        %v9288 = vunpack.c.l.b16 %v9041
        %v9289 = vunpack.c.l.b16 %v9055
        %v9290 = vunpack.c.l.b16 %v9065
        %v9291 = vunpack.c.l.b16 %v9079
        %v9292 = vunpack.c.l.b16 %v9089
        %v9293 = vunpack.c.l.b16 %v9103
        %v9294 = vunpack.c.l.b16 %v9113
        %v9295 = vunpack.c.l.b16 %v9127
        %v9296 = vunpack.c.l.b16 %v9137
        %v9297 = vunpack.c.l.b16 %v9151
        %v9298 = vunpack.c.l.b16 %v9161
        %v9299 = vunpack.c.l.b16 %v9175
        %v9300 = vunpack.c.l.b16 %v9185
        %v9301 = vunpack.c.l.b16 %v9199
        %v9302 = vunpack.c.l.b16 %v9209
        %v9303 = vunpack.c.l.b16 %v9223
        %v9304 = vunpack.c.l.b16 %v9233
        %v9305 = vunpack.c.l.b16 %v9247
        %v9306 = vunpack.c.l.b16 %v9257
        %v9307 = vpack.c.b16 %v9276, %v9275
        %v9308 = vpack.c.b16 %v9278, %v9277
        %v9309 = vpack.c.b16 %v9280, %v9279
        %v9310 = vpack.c.b16 %v9282, %v9281
        %v9311 = vpack.c.b16 %v9284, %v9283
        %v9312 = vpack.c.b16 %v9286, %v9285
        %v9313 = vpack.c.b16 %v9288, %v9287
        %v9314 = vpack.c.b16 %v9290, %v9289
        %v9315 = vpack.c.b16 %v9292, %v9291
        %v9316 = vpack.c.b16 %v9294, %v9293
        %v9317 = vpack.c.b16 %v9296, %v9295
        %v9318 = vpack.c.b16 %v9298, %v9297
        %v9319 = vpack.c.b16 %v9300, %v9299
        %v9320 = vpack.c.b16 %v9302, %v9301
        %v9321 = vpack.c.b16 %v9304, %v9303
        %v9322 = vpack.c.b16 %v9306, %v9305
        %v9355 = vunpack.c.l.b16 %v9259
        %v9356 = vunpack.c.l.b16 %v9260
        %v9357 = vunpack.c.l.b16 %v9261
        %v9358 = vunpack.c.l.b16 %v9262
        %v9359 = vunpack.c.l.b16 %v9263
        %v9360 = vunpack.c.l.b16 %v9264
        %v9361 = vunpack.c.l.b16 %v9265
        %v9362 = vunpack.c.l.b16 %v9266
        %v9363 = vunpack.c.l.b16 %v9267
        %v9364 = vunpack.c.l.b16 %v9268
        %v9365 = vunpack.c.l.b16 %v9269
        %v9366 = vunpack.c.l.b16 %v9270
        %v9367 = vunpack.c.l.b16 %v9271
        %v9368 = vunpack.c.l.b16 %v9272
        %v9369 = vunpack.c.l.b16 %v9273
        %v9370 = vunpack.c.l.b16 %v9274
        %v9371 = vpack.c.b16 %v9356, %v9355
        %v9372 = vpack.c.b16 %v9358, %v9357
        %v9373 = vpack.c.b16 %v9360, %v9359
        %v9374 = vpack.c.b16 %v9362, %v9361
        %v9375 = vpack.c.b16 %v9364, %v9363
        %v9376 = vpack.c.b16 %v9366, %v9365
        %v9377 = vpack.c.b16 %v9368, %v9367
        %v9378 = vpack.c.b16 %v9370, %v9369
        %9387 = vmatprep.subr.bf16.mxu0 0
        %9388 = vmatpush1.bf16.msra.mxu0 %v9371
        %9389 = vmatprep.subr.bf16.mxu0 0
        %9390 = vmatpush1.bf16.msra.mxu0 %v9372
        %9391 = vmatprep.subr.bf16.mxu0 0
        %9392 = vmatpush1.bf16.msra.mxu0 %v9373
        %9393 = vmatprep.subr.bf16.mxu0 0
        %9394 = vmatpush1.bf16.msra.mxu0 %v9374
        %9395 = vmatprep.subr.bf16.mxu0 0
        %9396 = vmatpush1.bf16.msra.mxu0 %v9375
        %9397 = vmatprep.subr.bf16.mxu0 0
        %9398 = vmatpush1.bf16.msra.mxu0 %v9376
        %9399 = vmatprep.subr.bf16.mxu0 0
        %9400 = vmatpush1.bf16.msra.mxu0 %v9377
        %9401 = vmatprep.subr.bf16.mxu0 0
        %9402 = vmatpush1.bf16.msra.mxu0 %v9378
        %9403 = vmatprep.subr.bf16.mxu0 0
        %9404 = vmatpush1.bf16.msra.mxu0 0
        %9405 = vmatprep.subr.bf16.mxu0 0
        %9406 = vmatpush1.bf16.msra.mxu0 0
        %9407 = vmatprep.subr.bf16.mxu0 0
        %9408 = vmatpush1.bf16.msra.mxu0 0
        %9409 = vmatprep.subr.bf16.mxu0 0
        %9410 = vmatpush1.bf16.msra.mxu0 0
        %9411 = vmatprep.subr.bf16.mxu0 0
        %9412 = vmatpush1.bf16.msra.mxu0 0
        %9413 = vmatprep.subr.bf16.mxu0 0
        %9414 = vmatpush1.bf16.msra.mxu0 0
        %9415 = vmatprep.subr.bf16.mxu0 0
        %9416 = vmatpush1.bf16.msra.mxu0 0
        %9417 = vmatprep.subr.bf16.mxu0 0
        %9418 = vmatpush1.bf16.msra.mxu0 0
        %9419 = vmatprep.mubr.bf16.mxu0 0
        %9420 = vmatmul.mubr.bf16.gmra.mrb[0].mxu0 %v9307
        %v9421 = vpop.f32.mrb[0].mxu0
        %v9422 = vadd.f32 0.0, %v9421
        %v9423 = vpop.f32.mrb[0].mxu0
        %v9424 = vpop.f32.mrb[0].mxu0
        %v9425 = vadd.f32 0.0, %v9424
        %v9426 = vpop.f32.mrb[0].mxu0
        %9427 = vmatprep.mubr.bf16.mxu0 0
        %9428 = vmatmul.mubr.bf16.gmra.mrb[0].mxu0 %v9308
        %v9429 = vpop.f32.mrb[0].mxu0
        %v9430 = vadd.f32 0.0, %v9429
        %v9431 = vpop.f32.mrb[0].mxu0
        %v9432 = vpop.f32.mrb[0].mxu0
        %v9433 = vadd.f32 0.0, %v9432
        %v9434 = vpop.f32.mrb[0].mxu0
        %9435 = vmatprep.mubr.bf16.mxu0 0
        %9436 = vmatmul.mubr.bf16.gmra.mrb[0].mxu0 %v9309
        %v9437 = vpop.f32.mrb[0].mxu0
        %v9438 = vadd.f32 0.0, %v9437
        %v9439 = vpop.f32.mrb[0].mxu0
        %v9440 = vpop.f32.mrb[0].mxu0
        %v9441 = vadd.f32 0.0, %v9440
        %v9442 = vpop.f32.mrb[0].mxu0
        %9443 = vmatprep.mubr.bf16.mxu0 0
        %9444 = vmatmul.mubr.bf16.gmra.mrb[0].mxu0 %v9310
        %v9445 = vpop.f32.mrb[0].mxu0
        %v9446 = vadd.f32 0.0, %v9445
        %v9447 = vpop.f32.mrb[0].mxu0
        %v9448 = vpop.f32.mrb[0].mxu0
        %v9449 = vadd.f32 0.0, %v9448
        %v9450 = vpop.f32.mrb[0].mxu0
        %9451 = vmatprep.mubr.bf16.mxu0 0
        %9452 = vmatmul.mubr.bf16.gmra.mrb[0].mxu0 %v9311
        %v9453 = vpop.f32.mrb[0].mxu0
        %v9454 = vadd.f32 0.0, %v9453
        %v9455 = vpop.f32.mrb[0].mxu0
        %v9456 = vpop.f32.mrb[0].mxu0
        %v9457 = vadd.f32 0.0, %v9456
        %v9458 = vpop.f32.mrb[0].mxu0
        %9459 = vmatprep.mubr.bf16.mxu0 0
        %9460 = vmatmul.mubr.bf16.gmra.mrb[0].mxu0 %v9312
        %v9461 = vpop.f32.mrb[0].mxu0
        %v9462 = vadd.f32 0.0, %v9461
        %v9463 = vpop.f32.mrb[0].mxu0
        %v9464 = vpop.f32.mrb[0].mxu0
        %v9465 = vadd.f32 0.0, %v9464
        %v9466 = vpop.f32.mrb[0].mxu0
        %9467 = vmatprep.mubr.bf16.mxu0 0
        %9468 = vmatmul.mubr.bf16.gmra.mrb[0].mxu0 %v9313
        %v9469 = vpop.f32.mrb[0].mxu0
        %v9470 = vadd.f32 0.0, %v9469
        %v9471 = vpop.f32.mrb[0].mxu0
        %v9472 = vpop.f32.mrb[0].mxu0
        %v9473 = vadd.f32 0.0, %v9472
        %v9474 = vpop.f32.mrb[0].mxu0
        %9475 = vmatprep.mubr.bf16.mxu0 0
        %9476 = vmatmul.mubr.bf16.gmra.mrb[0].mxu0 %v9314
        %v9477 = vpop.f32.mrb[0].mxu0
        %v9478 = vadd.f32 0.0, %v9477
        %v9479 = vpop.f32.mrb[0].mxu0
        %v9480 = vpop.f32.mrb[0].mxu0
        %v9481 = vadd.f32 0.0, %v9480
        %v9482 = vpop.f32.mrb[0].mxu0
        %9483 = vmatprep.mubr.bf16.mxu0 0
        %9484 = vmatmul.mubr.bf16.gmra.mrb[0].mxu0 %v9315
        %v9485 = vpop.f32.mrb[0].mxu0
        %v9486 = vadd.f32 0.0, %v9485
        %v9487 = vpop.f32.mrb[0].mxu0
        %v9488 = vpop.f32.mrb[0].mxu0
        %v9489 = vadd.f32 0.0, %v9488
        %v9490 = vpop.f32.mrb[0].mxu0
        %9491 = vmatprep.mubr.bf16.mxu0 0
        %9492 = vmatmul.mubr.bf16.gmra.mrb[0].mxu0 %v9316
        %v9493 = vpop.f32.mrb[0].mxu0
        %v9494 = vadd.f32 0.0, %v9493
        %v9495 = vpop.f32.mrb[0].mxu0
        %v9496 = vpop.f32.mrb[0].mxu0
        %v9497 = vadd.f32 0.0, %v9496
        %v9498 = vpop.f32.mrb[0].mxu0
        %9499 = vmatprep.mubr.bf16.mxu0 0
        %9500 = vmatmul.mubr.bf16.gmra.mrb[0].mxu0 %v9317
        %v9501 = vpop.f32.mrb[0].mxu0
        %v9502 = vadd.f32 0.0, %v9501
        %v9503 = vpop.f32.mrb[0].mxu0
        %v9504 = vpop.f32.mrb[0].mxu0
        %v9505 = vadd.f32 0.0, %v9504
        %v9506 = vpop.f32.mrb[0].mxu0
        %9507 = vmatprep.mubr.bf16.mxu0 0
        %9508 = vmatmul.mubr.bf16.gmra.mrb[0].mxu0 %v9318
        %v9509 = vpop.f32.mrb[0].mxu0
        %v9510 = vadd.f32 0.0, %v9509
        %v9511 = vpop.f32.mrb[0].mxu0
        %v9512 = vpop.f32.mrb[0].mxu0
        %v9513 = vadd.f32 0.0, %v9512
        %v9514 = vpop.f32.mrb[0].mxu0
        %9515 = vmatprep.mubr.bf16.mxu0 0
        %9516 = vmatmul.mubr.bf16.gmra.mrb[0].mxu0 %v9319
        %v9517 = vpop.f32.mrb[0].mxu0
        %v9518 = vadd.f32 0.0, %v9517
        %v9519 = vpop.f32.mrb[0].mxu0
        %v9520 = vpop.f32.mrb[0].mxu0
        %v9521 = vadd.f32 0.0, %v9520
        %v9522 = vpop.f32.mrb[0].mxu0
        %9523 = vmatprep.mubr.bf16.mxu0 0
        %9524 = vmatmul.mubr.bf16.gmra.mrb[0].mxu0 %v9320
        %v9525 = vpop.f32.mrb[0].mxu0
        %v9526 = vadd.f32 0.0, %v9525
        %v9527 = vpop.f32.mrb[0].mxu0
        %v9528 = vpop.f32.mrb[0].mxu0
        %v9529 = vadd.f32 0.0, %v9528
        %v9530 = vpop.f32.mrb[0].mxu0
        %9531 = vmatprep.mubr.bf16.mxu0 0
        %9532 = vmatmul.mubr.bf16.gmra.mrb[0].mxu0 %v9321
        %v9533 = vpop.f32.mrb[0].mxu0
        %v9534 = vadd.f32 0.0, %v9533
        %v9535 = vpop.f32.mrb[0].mxu0
        %v9536 = vpop.f32.mrb[0].mxu0
        %v9537 = vadd.f32 0.0, %v9536
        %v9538 = vpop.f32.mrb[0].mxu0
        %9539 = vmatprep.mubr.bf16.mxu0 0
        %9540 = vmatmul.mubr.bf16.gmra.mrb[0].mxu0 %v9322
        %v9541 = vpop.f32.mrb[0].mxu0
        %v9542 = vadd.f32 0.0, %v9541
        %v9543 = vpop.f32.mrb[0].mxu0
        %v9544 = vpop.f32.mrb[0].mxu0
        %v9545 = vadd.f32 0.0, %v9544
        %v9546 = vpop.f32.mrb[0].mxu0
        %9547 = vdwg.mxu0
        %v9548 = vadd.f32 %v8794, %v9422
        %v9549 = vadd.f32 %v8795, %v9425
        %v9550 = vadd.f32 %v8796, %v9430
        %v9551 = vadd.f32 %v8797, %v9433
        %v9552 = vadd.f32 %v8798, %v9438
        %v9553 = vadd.f32 %v8799, %v9441
        %v9554 = vadd.f32 %v8800, %v9446
        %v9555 = vadd.f32 %v8801, %v9449
        %v9556 = vadd.f32 %v8802, %v9454
        %v9557 = vadd.f32 %v8803, %v9457
        %v9558 = vadd.f32 %v8804, %v9462
        %v9559 = vadd.f32 %v8805, %v9465
        %v9560 = vadd.f32 %v8806, %v9470
        %v9561 = vadd.f32 %v8807, %v9473
        %v9562 = vadd.f32 %v8808, %v9478
        %v9563 = vadd.f32 %v8809, %v9481
        %v9564 = vadd.f32 %v8810, %v9486
        %v9565 = vadd.f32 %v8811, %v9489
        %v9566 = vadd.f32 %v8812, %v9494
        %v9567 = vadd.f32 %v8813, %v9497
        %v9568 = vadd.f32 %v8814, %v9502
        %v9569 = vadd.f32 %v8815, %v9505
        %v9570 = vadd.f32 %v8816, %v9510
        %v9571 = vadd.f32 %v8817, %v9513
        %v9572 = vadd.f32 %v8818, %v9518
        %v9573 = vadd.f32 %v8819, %v9521
        %v9574 = vadd.f32 %v8820, %v9526
        %v9575 = vadd.f32 %v8821, %v9529
        %v9576 = vadd.f32 %v8822, %v9534
        %v9577 = vadd.f32 %v8823, %v9537
        %v9578 = vadd.f32 %v8824, %v9542
        %v9579 = vadd.f32 %v8825, %v9545
        %v9580 = vld [vmem:[%s509] sm:$0xe]
        %v9581 = vld [vmem:[%s509 + $0xc] sm:$0xe]
        %v9582 = vld [vmem:[%s509 + $0x18] sm:$0xe]
        %v9583 = vld [vmem:[%s509 + $0x24] sm:$0xe]
        %v9584 = vld [vmem:[%s509 + $0x30] sm:$0xe]
        %v9585 = vld [vmem:[%s509 + $0x3c] sm:$0xe]
        %v9586 = vld [vmem:[%s509 + $0x48] sm:$0xe]
        %v9587 = vld [vmem:[%s509 + $0x54] sm:$0xe]
        %v9588 = vld [vmem:[%s509 + $0x60] sm:$0xe]
        %v9589 = vld [vmem:[%s509 + $0x6c] sm:$0xe]
        %v9590 = vld [vmem:[%s509 + $0x78] sm:$0xe]
        %v9591 = vld [vmem:[%s509 + $0x84] sm:$0xe]
        %v9592 = vld [vmem:[%s509 + $0x90] sm:$0xe]
        %v9593 = vld [vmem:[%s509 + $0x9c] sm:$0xe]
        %v9594 = vld [vmem:[%s509 + $0xa8] sm:$0xe]
        %v9595 = vld [vmem:[%s509 + $0xb4] sm:$0xe]
        %v9644 = vrot.slane %v9580, 5
        %v9645 = vrot.slane %v9644, 4
        %v9646 = vrot.slane %v8827, 5
        %v9647 = vsel %vm2195, %v9645, %v9646
        %v9648 = vrot.slane %v9646, 4
        %v9649 = vrot.slane %v8828, 5
        %v9650 = vsel %vm2195, %v9648, %v9649
        %v9651 = vrot.slane %v9581, 5
        %v9652 = vrot.slane %v9651, 4
        %v9653 = vrot.slane %v8830, 5
        %v9654 = vsel %vm2195, %v9652, %v9653
        %v9655 = vrot.slane %v9653, 4
        %v9656 = vrot.slane %v8831, 5
        %v9657 = vsel %vm2195, %v9655, %v9656
        %v9658 = vrot.slane %v9582, 5
        %v9659 = vrot.slane %v9658, 4
        %v9660 = vrot.slane %v8833, 5
        %v9661 = vsel %vm2195, %v9659, %v9660
        %v9662 = vrot.slane %v9660, 4
        %v9663 = vrot.slane %v8834, 5
        %v9664 = vsel %vm2195, %v9662, %v9663
        %v9665 = vrot.slane %v9583, 5
        %v9666 = vrot.slane %v9665, 4
        %v9667 = vrot.slane %v8836, 5
        %v9668 = vsel %vm2195, %v9666, %v9667
        %v9669 = vrot.slane %v9667, 4
        %v9670 = vrot.slane %v8837, 5
        %v9671 = vsel %vm2195, %v9669, %v9670
        %v9672 = vrot.slane %v9584, 5
        %v9673 = vrot.slane %v9672, 4
        %v9674 = vrot.slane %v8839, 5
        %v9675 = vsel %vm2195, %v9673, %v9674
        %v9676 = vrot.slane %v9674, 4
        %v9677 = vrot.slane %v8840, 5
        %v9678 = vsel %vm2195, %v9676, %v9677
        %v9679 = vrot.slane %v9585, 5
        %v9680 = vrot.slane %v9679, 4
        %v9681 = vrot.slane %v8842, 5
        %v9682 = vsel %vm2195, %v9680, %v9681
        %v9683 = vrot.slane %v9681, 4
        %v9684 = vrot.slane %v8843, 5
        %v9685 = vsel %vm2195, %v9683, %v9684
        %v9686 = vrot.slane %v9586, 5
        %v9687 = vrot.slane %v9686, 4
        %v9688 = vrot.slane %v8845, 5
        %v9689 = vsel %vm2195, %v9687, %v9688
        %v9690 = vrot.slane %v9688, 4
        %v9691 = vrot.slane %v8846, 5
        %v9692 = vsel %vm2195, %v9690, %v9691
        %v9693 = vrot.slane %v9587, 5
        %v9694 = vrot.slane %v9693, 4
        %v9695 = vrot.slane %v8848, 5
        %v9696 = vsel %vm2195, %v9694, %v9695
        %v9697 = vrot.slane %v9695, 4
        %v9698 = vrot.slane %v8849, 5
        %v9699 = vsel %vm2195, %v9697, %v9698
        %v9700 = vrot.slane %v9588, 5
        %v9701 = vrot.slane %v9700, 4
        %v9702 = vrot.slane %v8851, 5
        %v9703 = vsel %vm2195, %v9701, %v9702
        %v9704 = vrot.slane %v9702, 4
        %v9705 = vrot.slane %v8852, 5
        %v9706 = vsel %vm2195, %v9704, %v9705
        %v9707 = vrot.slane %v9589, 5
        %v9708 = vrot.slane %v9707, 4
        %v9709 = vrot.slane %v8854, 5
        %v9710 = vsel %vm2195, %v9708, %v9709
        %v9711 = vrot.slane %v9709, 4
        %v9712 = vrot.slane %v8855, 5
        %v9713 = vsel %vm2195, %v9711, %v9712
        %v9714 = vrot.slane %v9590, 5
        %v9715 = vrot.slane %v9714, 4
        %v9716 = vrot.slane %v8857, 5
        %v9717 = vsel %vm2195, %v9715, %v9716
        %v9718 = vrot.slane %v9716, 4
        %v9719 = vrot.slane %v8858, 5
        %v9720 = vsel %vm2195, %v9718, %v9719
        %v9721 = vrot.slane %v9591, 5
        %v9722 = vrot.slane %v9721, 4
        %v9723 = vrot.slane %v8860, 5
        %v9724 = vsel %vm2195, %v9722, %v9723
        %v9725 = vrot.slane %v9723, 4
        %v9726 = vrot.slane %v8861, 5
        %v9727 = vsel %vm2195, %v9725, %v9726
        %v9728 = vrot.slane %v9592, 5
        %v9729 = vrot.slane %v9728, 4
        %v9730 = vrot.slane %v8863, 5
        %v9731 = vsel %vm2195, %v9729, %v9730
        %v9732 = vrot.slane %v9730, 4
        %v9733 = vrot.slane %v8864, 5
        %v9734 = vsel %vm2195, %v9732, %v9733
        %v9735 = vrot.slane %v9593, 5
        %v9736 = vrot.slane %v9735, 4
        %v9737 = vrot.slane %v8866, 5
        %v9738 = vsel %vm2195, %v9736, %v9737
        %v9739 = vrot.slane %v9737, 4
        %v9740 = vrot.slane %v8867, 5
        %v9741 = vsel %vm2195, %v9739, %v9740
        %v9742 = vrot.slane %v9594, 5
        %v9743 = vrot.slane %v9742, 4
        %v9744 = vrot.slane %v8869, 5
        %v9745 = vsel %vm2195, %v9743, %v9744
        %v9746 = vrot.slane %v9744, 4
        %v9747 = vrot.slane %v8870, 5
        %v9748 = vsel %vm2195, %v9746, %v9747
        %v9749 = vrot.slane %v9595, 5
        %v9750 = vrot.slane %v9749, 4
        %v9751 = vrot.slane %v8872, 5
        %v9752 = vsel %vm2195, %v9750, %v9751
        %v9753 = vrot.slane %v9751, 4
        %v9754 = vrot.slane %v8873, 5
        %v9755 = vsel %vm2195, %v9753, %v9754
        %s9756 = scalar_lea.vmem [#allocation7], 320
        %v9757 = vld [vmem:[%s9756] sm:$0xf]
        %v9758 = vld [vmem:[%s9756 + $0x4] sm:$0xf]
        %v9759 = vld [vmem:[%s9756 + $0x8] sm:$0xf]
        %v9760 = vld [vmem:[%s9756 + $0xc] sm:$0xf]
        %v9761 = vld [vmem:[%s9756 + $0x10] sm:$0xf]
        %v9762 = vld [vmem:[%s9756 + $0x14] sm:$0xf]
        %v9763 = vld [vmem:[%s9756 + $0x18] sm:$0xf]
        %v9764 = vld [vmem:[%s9756 + $0x1c] sm:$0xf]
        %v9765 = vld [vmem:[%s9756 + $0x20] sm:$0xf]
        %v9766 = vld [vmem:[%s9756 + $0x24] sm:$0xf]
        %v9767 = vld [vmem:[%s9756 + $0x28] sm:$0xf]
        %v9768 = vld [vmem:[%s9756 + $0x2c] sm:$0xf]
        %v9769 = vld [vmem:[%s9756 + $0x30] sm:$0xf]
        %v9770 = vld [vmem:[%s9756 + $0x34] sm:$0xf]
        %v9771 = vld [vmem:[%s9756 + $0x38] sm:$0xf]
        %v9772 = vld [vmem:[%s9756 + $0x3c] sm:$0xf]
        %v9773 = vunpack.c.l.b16 %v9647
        %v9774 = vunpack.c.l.b16 %v9650
        %v9775 = vunpack.c.l.b16 %v9654
        %v9776 = vunpack.c.l.b16 %v9657
        %v9777 = vunpack.c.l.b16 %v9661
        %v9778 = vunpack.c.l.b16 %v9664
        %v9779 = vunpack.c.l.b16 %v9668
        %v9780 = vunpack.c.l.b16 %v9671
        %v9781 = vunpack.c.l.b16 %v9675
        %v9782 = vunpack.c.l.b16 %v9678
        %v9783 = vunpack.c.l.b16 %v9682
        %v9784 = vunpack.c.l.b16 %v9685
        %v9785 = vunpack.c.l.b16 %v9689
        %v9786 = vunpack.c.l.b16 %v9692
        %v9787 = vunpack.c.l.b16 %v9696
        %v9788 = vunpack.c.l.b16 %v9699
        %v9789 = vunpack.c.l.b16 %v9703
        %v9790 = vunpack.c.l.b16 %v9706
        %v9791 = vunpack.c.l.b16 %v9710
        %v9792 = vunpack.c.l.b16 %v9713
        %v9793 = vunpack.c.l.b16 %v9717
        %v9794 = vunpack.c.l.b16 %v9720
        %v9795 = vunpack.c.l.b16 %v9724
        %v9796 = vunpack.c.l.b16 %v9727
        %v9797 = vunpack.c.l.b16 %v9731
        %v9798 = vunpack.c.l.b16 %v9734
        %v9799 = vunpack.c.l.b16 %v9738
        %v9800 = vunpack.c.l.b16 %v9741
        %v9801 = vunpack.c.l.b16 %v9745
        %v9802 = vunpack.c.l.b16 %v9748
        %v9803 = vunpack.c.l.b16 %v9752
        %v9804 = vunpack.c.l.b16 %v9755
        %v9805 = vpack.c.b16 %v9774, %v9773
        %v9806 = vpack.c.b16 %v9776, %v9775
        %v9807 = vpack.c.b16 %v9778, %v9777
        %v9808 = vpack.c.b16 %v9780, %v9779
        %v9809 = vpack.c.b16 %v9782, %v9781
        %v9810 = vpack.c.b16 %v9784, %v9783
        %v9811 = vpack.c.b16 %v9786, %v9785
        %v9812 = vpack.c.b16 %v9788, %v9787
        %v9813 = vpack.c.b16 %v9790, %v9789
        %v9814 = vpack.c.b16 %v9792, %v9791
        %v9815 = vpack.c.b16 %v9794, %v9793
        %v9816 = vpack.c.b16 %v9796, %v9795
        %v9817 = vpack.c.b16 %v9798, %v9797
        %v9818 = vpack.c.b16 %v9800, %v9799
        %v9819 = vpack.c.b16 %v9802, %v9801
        %v9820 = vpack.c.b16 %v9804, %v9803
        %v9853 = vunpack.c.l.b16 %v9757
        %v9854 = vunpack.c.l.b16 %v9758
        %v9855 = vunpack.c.l.b16 %v9759
        %v9856 = vunpack.c.l.b16 %v9760
        %v9857 = vunpack.c.l.b16 %v9761
        %v9858 = vunpack.c.l.b16 %v9762
        %v9859 = vunpack.c.l.b16 %v9763
        %v9860 = vunpack.c.l.b16 %v9764
        %v9861 = vunpack.c.l.b16 %v9765
        %v9862 = vunpack.c.l.b16 %v9766
        %v9863 = vunpack.c.l.b16 %v9767
        %v9864 = vunpack.c.l.b16 %v9768
        %v9865 = vunpack.c.l.b16 %v9769
        %v9866 = vunpack.c.l.b16 %v9770
        %v9867 = vunpack.c.l.b16 %v9771
        %v9868 = vunpack.c.l.b16 %v9772
        %v9869 = vpack.c.b16 %v9854, %v9853
        %v9870 = vpack.c.b16 %v9856, %v9855
        %v9871 = vpack.c.b16 %v9858, %v9857
        %v9872 = vpack.c.b16 %v9860, %v9859
        %v9873 = vpack.c.b16 %v9862, %v9861
        %v9874 = vpack.c.b16 %v9864, %v9863
        %v9875 = vpack.c.b16 %v9866, %v9865
        %v9876 = vpack.c.b16 %v9868, %v9867
        %9885 = vmatprep.subr.bf16.mxu0 0
        %9886 = vmatpush1.bf16.msra.mxu0 %v9869
        %9887 = vmatprep.subr.bf16.mxu0 0
        %9888 = vmatpush1.bf16.msra.mxu0 %v9870
        %9889 = vmatprep.subr.bf16.mxu0 0
        %9890 = vmatpush1.bf16.msra.mxu0 %v9871
        %9891 = vmatprep.subr.bf16.mxu0 0
        %9892 = vmatpush1.bf16.msra.mxu0 %v9872
        %9893 = vmatprep.subr.bf16.mxu0 0
        %9894 = vmatpush1.bf16.msra.mxu0 %v9873
        %9895 = vmatprep.subr.bf16.mxu0 0
        %9896 = vmatpush1.bf16.msra.mxu0 %v9874
        %9897 = vmatprep.subr.bf16.mxu0 0
        %9898 = vmatpush1.bf16.msra.mxu0 %v9875
        %9899 = vmatprep.subr.bf16.mxu0 0
        %9900 = vmatpush1.bf16.msra.mxu0 %v9876
        %9901 = vmatprep.subr.bf16.mxu0 0
        %9902 = vmatpush1.bf16.msra.mxu0 0
        %9903 = vmatprep.subr.bf16.mxu0 0
        %9904 = vmatpush1.bf16.msra.mxu0 0
        %9905 = vmatprep.subr.bf16.mxu0 0
        %9906 = vmatpush1.bf16.msra.mxu0 0
        %9907 = vmatprep.subr.bf16.mxu0 0
        %9908 = vmatpush1.bf16.msra.mxu0 0
        %9909 = vmatprep.subr.bf16.mxu0 0
        %9910 = vmatpush1.bf16.msra.mxu0 0
        %9911 = vmatprep.subr.bf16.mxu0 0
        %9912 = vmatpush1.bf16.msra.mxu0 0
        %9913 = vmatprep.subr.bf16.mxu0 0
        %9914 = vmatpush1.bf16.msra.mxu0 0
        %9915 = vmatprep.subr.bf16.mxu0 0
        %9916 = vmatpush1.bf16.msra.mxu0 0
        %9917 = vmatprep.mubr.bf16.mxu0 0
        %9918 = vmatmul.mubr.bf16.gmra.mrb[0].mxu0 %v9805
        %v9919 = vpop.f32.mrb[0].mxu0
        %v9920 = vadd.f32 0.0, %v9919
        %v9921 = vpop.f32.mrb[0].mxu0
        %v9922 = vpop.f32.mrb[0].mxu0
        %v9923 = vadd.f32 0.0, %v9922
        %v9924 = vpop.f32.mrb[0].mxu0
        %9925 = vmatprep.mubr.bf16.mxu0 0
        %9926 = vmatmul.mubr.bf16.gmra.mrb[0].mxu0 %v9806
        %v9927 = vpop.f32.mrb[0].mxu0
        %v9928 = vadd.f32 0.0, %v9927
        %v9929 = vpop.f32.mrb[0].mxu0
        %v9930 = vpop.f32.mrb[0].mxu0
        %v9931 = vadd.f32 0.0, %v9930
        %v9932 = vpop.f32.mrb[0].mxu0
        %9933 = vmatprep.mubr.bf16.mxu0 0
        %9934 = vmatmul.mubr.bf16.gmra.mrb[0].mxu0 %v9807
        %v9935 = vpop.f32.mrb[0].mxu0
        %v9936 = vadd.f32 0.0, %v9935
        %v9937 = vpop.f32.mrb[0].mxu0
        %v9938 = vpop.f32.mrb[0].mxu0
        %v9939 = vadd.f32 0.0, %v9938
        %v9940 = vpop.f32.mrb[0].mxu0
        %9941 = vmatprep.mubr.bf16.mxu0 0
        %9942 = vmatmul.mubr.bf16.gmra.mrb[0].mxu0 %v9808
        %v9943 = vpop.f32.mrb[0].mxu0
        %v9944 = vadd.f32 0.0, %v9943
        %v9945 = vpop.f32.mrb[0].mxu0
        %v9946 = vpop.f32.mrb[0].mxu0
        %v9947 = vadd.f32 0.0, %v9946
        %v9948 = vpop.f32.mrb[0].mxu0
        %9949 = vmatprep.mubr.bf16.mxu0 0
        %9950 = vmatmul.mubr.bf16.gmra.mrb[0].mxu0 %v9809
        %v9951 = vpop.f32.mrb[0].mxu0
        %v9952 = vadd.f32 0.0, %v9951
        %v9953 = vpop.f32.mrb[0].mxu0
        %v9954 = vpop.f32.mrb[0].mxu0
        %v9955 = vadd.f32 0.0, %v9954
        %v9956 = vpop.f32.mrb[0].mxu0
        %9957 = vmatprep.mubr.bf16.mxu0 0
        %9958 = vmatmul.mubr.bf16.gmra.mrb[0].mxu0 %v9810
        %v9959 = vpop.f32.mrb[0].mxu0
        %v9960 = vadd.f32 0.0, %v9959
        %v9961 = vpop.f32.mrb[0].mxu0
        %v9962 = vpop.f32.mrb[0].mxu0
        %v9963 = vadd.f32 0.0, %v9962
        %v9964 = vpop.f32.mrb[0].mxu0
        %9965 = vmatprep.mubr.bf16.mxu0 0
        %9966 = vmatmul.mubr.bf16.gmra.mrb[0].mxu0 %v9811
        %v9967 = vpop.f32.mrb[0].mxu0
        %v9968 = vadd.f32 0.0, %v9967
        %v9969 = vpop.f32.mrb[0].mxu0
        %v9970 = vpop.f32.mrb[0].mxu0
        %v9971 = vadd.f32 0.0, %v9970
        %v9972 = vpop.f32.mrb[0].mxu0
        %9973 = vmatprep.mubr.bf16.mxu0 0
        %9974 = vmatmul.mubr.bf16.gmra.mrb[0].mxu0 %v9812
        %v9975 = vpop.f32.mrb[0].mxu0
        %v9976 = vadd.f32 0.0, %v9975
        %v9977 = vpop.f32.mrb[0].mxu0
        %v9978 = vpop.f32.mrb[0].mxu0
        %v9979 = vadd.f32 0.0, %v9978
        %v9980 = vpop.f32.mrb[0].mxu0
        %9981 = vmatprep.mubr.bf16.mxu0 0
        %9982 = vmatmul.mubr.bf16.gmra.mrb[0].mxu0 %v9813
        %v9983 = vpop.f32.mrb[0].mxu0
        %v9984 = vadd.f32 0.0, %v9983
        %v9985 = vpop.f32.mrb[0].mxu0
        %v9986 = vpop.f32.mrb[0].mxu0
        %v9987 = vadd.f32 0.0, %v9986
        %v9988 = vpop.f32.mrb[0].mxu0
        %9989 = vmatprep.mubr.bf16.mxu0 0
        %9990 = vmatmul.mubr.bf16.gmra.mrb[0].mxu0 %v9814
        %v9991 = vpop.f32.mrb[0].mxu0
        %v9992 = vadd.f32 0.0, %v9991
        %v9993 = vpop.f32.mrb[0].mxu0
        %v9994 = vpop.f32.mrb[0].mxu0
        %v9995 = vadd.f32 0.0, %v9994
        %v9996 = vpop.f32.mrb[0].mxu0
        %9997 = vmatprep.mubr.bf16.mxu0 0
        %9998 = vmatmul.mubr.bf16.gmra.mrb[0].mxu0 %v9815
        %v9999 = vpop.f32.mrb[0].mxu0
        %v10000 = vadd.f32 0.0, %v9999
        %v10001 = vpop.f32.mrb[0].mxu0
        %v10002 = vpop.f32.mrb[0].mxu0
        %v10003 = vadd.f32 0.0, %v10002
        %v10004 = vpop.f32.mrb[0].mxu0
        %10005 = vmatprep.mubr.bf16.mxu0 0
        %10006 = vmatmul.mubr.bf16.gmra.mrb[0].mxu0 %v9816
        %v10007 = vpop.f32.mrb[0].mxu0
        %v10008 = vadd.f32 0.0, %v10007
        %v10009 = vpop.f32.mrb[0].mxu0
        %v10010 = vpop.f32.mrb[0].mxu0
        %v10011 = vadd.f32 0.0, %v10010
        %v10012 = vpop.f32.mrb[0].mxu0
        %10013 = vmatprep.mubr.bf16.mxu0 0
        %10014 = vmatmul.mubr.bf16.gmra.mrb[0].mxu0 %v9817
        %v10015 = vpop.f32.mrb[0].mxu0
        %v10016 = vadd.f32 0.0, %v10015
        %v10017 = vpop.f32.mrb[0].mxu0
        %v10018 = vpop.f32.mrb[0].mxu0
        %v10019 = vadd.f32 0.0, %v10018
        %v10020 = vpop.f32.mrb[0].mxu0
        %10021 = vmatprep.mubr.bf16.mxu0 0
        %10022 = vmatmul.mubr.bf16.gmra.mrb[0].mxu0 %v9818
        %v10023 = vpop.f32.mrb[0].mxu0
        %v10024 = vadd.f32 0.0, %v10023
        %v10025 = vpop.f32.mrb[0].mxu0
        %v10026 = vpop.f32.mrb[0].mxu0
        %v10027 = vadd.f32 0.0, %v10026
        %v10028 = vpop.f32.mrb[0].mxu0
        %10029 = vmatprep.mubr.bf16.mxu0 0
        %10030 = vmatmul.mubr.bf16.gmra.mrb[0].mxu0 %v9819
        %v10031 = vpop.f32.mrb[0].mxu0
        %v10032 = vadd.f32 0.0, %v10031
        %v10033 = vpop.f32.mrb[0].mxu0
        %v10034 = vpop.f32.mrb[0].mxu0
        %v10035 = vadd.f32 0.0, %v10034
        %v10036 = vpop.f32.mrb[0].mxu0
        %10037 = vmatprep.mubr.bf16.mxu0 0
        %10038 = vmatmul.mubr.bf16.gmra.mrb[0].mxu0 %v9820
        %v10039 = vpop.f32.mrb[0].mxu0
        %v10040 = vadd.f32 0.0, %v10039
        %v10041 = vpop.f32.mrb[0].mxu0
        %v10042 = vpop.f32.mrb[0].mxu0
        %v10043 = vadd.f32 0.0, %v10042
        %v10044 = vpop.f32.mrb[0].mxu0
        %10045 = vdwg.mxu0
        %v10046 = vadd.f32 %v9548, %v9920
        %v10047 = vadd.f32 %v9549, %v9923
        %v10048 = vadd.f32 %v9550, %v9928
        %v10049 = vadd.f32 %v9551, %v9931
        %v10050 = vadd.f32 %v9552, %v9936
        %v10051 = vadd.f32 %v9553, %v9939
        %v10052 = vadd.f32 %v9554, %v9944
        %v10053 = vadd.f32 %v9555, %v9947
        %v10054 = vadd.f32 %v9556, %v9952
        %v10055 = vadd.f32 %v9557, %v9955
        %v10056 = vadd.f32 %v9558, %v9960
        %v10057 = vadd.f32 %v9559, %v9963
        %v10058 = vadd.f32 %v9560, %v9968
        %v10059 = vadd.f32 %v9561, %v9971
        %v10060 = vadd.f32 %v9562, %v9976
        %v10061 = vadd.f32 %v9563, %v9979
        %v10062 = vadd.f32 %v9564, %v9984
        %v10063 = vadd.f32 %v9565, %v9987
        %v10064 = vadd.f32 %v9566, %v9992
        %v10065 = vadd.f32 %v9567, %v9995
        %v10066 = vadd.f32 %v9568, %v10000
        %v10067 = vadd.f32 %v9569, %v10003
        %v10068 = vadd.f32 %v9570, %v10008
        %v10069 = vadd.f32 %v9571, %v10011
        %v10070 = vadd.f32 %v9572, %v10016
        %v10071 = vadd.f32 %v9573, %v10019
        %v10072 = vadd.f32 %v9574, %v10024
        %v10073 = vadd.f32 %v9575, %v10027
        %v10074 = vadd.f32 %v9576, %v10032
        %v10075 = vadd.f32 %v9577, %v10035
        %v10076 = vadd.f32 %v9578, %v10040
        %v10077 = vadd.f32 %v9579, %v10043
        %v10078 = vld [vmem:[%s4268] sm:$0xf]
        %v10079 = vld [vmem:[%s4268 + $0x4] sm:$0xf]
        %v10080 = vld [vmem:[%s4268 + $0xc] sm:$0xf]
        %v10081 = vld [vmem:[%s4268 + $0x10] sm:$0xf]
        %v10082 = vld [vmem:[%s4268 + $0x18] sm:$0xf]
        %v10083 = vld [vmem:[%s4268 + $0x1c] sm:$0xf]
        %v10084 = vld [vmem:[%s4268 + $0x24] sm:$0xf]
        %v10085 = vld [vmem:[%s4268 + $0x28] sm:$0xf]
        %v10086 = vld [vmem:[%s4268 + $0x30] sm:$0xf]
        %v10087 = vld [vmem:[%s4268 + $0x34] sm:$0xf]
        %v10088 = vld [vmem:[%s4268 + $0x3c] sm:$0xf]
        %v10089 = vld [vmem:[%s4268 + $0x40] sm:$0xf]
        %v10090 = vld [vmem:[%s4268 + $0x48] sm:$0xf]
        %v10091 = vld [vmem:[%s4268 + $0x4c] sm:$0xf]
        %v10092 = vld [vmem:[%s4268 + $0x54] sm:$0xf]
        %v10093 = vld [vmem:[%s4268 + $0x58] sm:$0xf]
        %v10094 = vld [vmem:[%s4268 + $0x60] sm:$0xf]
        %v10095 = vld [vmem:[%s4268 + $0x64] sm:$0xf]
        %v10096 = vld [vmem:[%s4268 + $0x6c] sm:$0xf]
        %v10097 = vld [vmem:[%s4268 + $0x70] sm:$0xf]
        %v10098 = vld [vmem:[%s4268 + $0x78] sm:$0xf]
        %v10099 = vld [vmem:[%s4268 + $0x7c] sm:$0xf]
        %v10100 = vld [vmem:[%s4268 + $0x84] sm:$0xf]
        %v10101 = vld [vmem:[%s4268 + $0x88] sm:$0xf]
        %v10102 = vld [vmem:[%s4268 + $0x90] sm:$0xf]
        %v10103 = vld [vmem:[%s4268 + $0x94] sm:$0xf]
        %v10104 = vld [vmem:[%s4268 + $0x9c] sm:$0xf]
        %v10105 = vld [vmem:[%s4268 + $0xa0] sm:$0xf]
        %v10106 = vld [vmem:[%s4268 + $0xa8] sm:$0xf]
        %v10107 = vld [vmem:[%s4268 + $0xac] sm:$0xf]
        %v10108 = vld [vmem:[%s4268 + $0xb4] sm:$0xf]
        %v10109 = vld [vmem:[%s4268 + $0xb8] sm:$0xf]
        %s10110 = scalar_lea.vmem [#allocation7], 384
        %v10111 = vld [vmem:[%s10110] sm:$0xf]
        %v10112 = vld [vmem:[%s10110 + $0x4] sm:$0xf]
        %v10113 = vld [vmem:[%s10110 + $0x8] sm:$0xf]
        %v10114 = vld [vmem:[%s10110 + $0xc] sm:$0xf]
        %v10115 = vld [vmem:[%s10110 + $0x10] sm:$0xf]
        %v10116 = vld [vmem:[%s10110 + $0x14] sm:$0xf]
        %v10117 = vld [vmem:[%s10110 + $0x18] sm:$0xf]
        %v10118 = vld [vmem:[%s10110 + $0x1c] sm:$0xf]
        %v10119 = vld [vmem:[%s10110 + $0x20] sm:$0xf]
        %v10120 = vld [vmem:[%s10110 + $0x24] sm:$0xf]
        %v10121 = vld [vmem:[%s10110 + $0x28] sm:$0xf]
        %v10122 = vld [vmem:[%s10110 + $0x2c] sm:$0xf]
        %v10123 = vld [vmem:[%s10110 + $0x30] sm:$0xf]
        %v10124 = vld [vmem:[%s10110 + $0x34] sm:$0xf]
        %v10125 = vld [vmem:[%s10110 + $0x38] sm:$0xf]
        %v10126 = vld [vmem:[%s10110 + $0x3c] sm:$0xf]
        %v10159 = vunpack.c.l.b16 %v10078
        %v10160 = vunpack.c.l.b16 %v10079
        %v10161 = vunpack.c.l.b16 %v10080
        %v10162 = vunpack.c.l.b16 %v10081
        %v10163 = vunpack.c.l.b16 %v10082
        %v10164 = vunpack.c.l.b16 %v10083
        %v10165 = vunpack.c.l.b16 %v10084
        %v10166 = vunpack.c.l.b16 %v10085
        %v10167 = vunpack.c.l.b16 %v10086
        %v10168 = vunpack.c.l.b16 %v10087
        %v10169 = vunpack.c.l.b16 %v10088
        %v10170 = vunpack.c.l.b16 %v10089
        %v10171 = vunpack.c.l.b16 %v10090
        %v10172 = vunpack.c.l.b16 %v10091
        %v10173 = vunpack.c.l.b16 %v10092
        %v10174 = vunpack.c.l.b16 %v10093
        %v10175 = vunpack.c.l.b16 %v10094
        %v10176 = vunpack.c.l.b16 %v10095
        %v10177 = vunpack.c.l.b16 %v10096
        %v10178 = vunpack.c.l.b16 %v10097
        %v10179 = vunpack.c.l.b16 %v10098
        %v10180 = vunpack.c.l.b16 %v10099
        %v10181 = vunpack.c.l.b16 %v10100
        %v10182 = vunpack.c.l.b16 %v10101
        %v10183 = vunpack.c.l.b16 %v10102
        %v10184 = vunpack.c.l.b16 %v10103
        %v10185 = vunpack.c.l.b16 %v10104
        %v10186 = vunpack.c.l.b16 %v10105
        %v10187 = vunpack.c.l.b16 %v10106
        %v10188 = vunpack.c.l.b16 %v10107
        %v10189 = vunpack.c.l.b16 %v10108
        %v10190 = vunpack.c.l.b16 %v10109
        %v10191 = vpack.c.b16 %v10160, %v10159
        %v10192 = vpack.c.b16 %v10162, %v10161
        %v10193 = vpack.c.b16 %v10164, %v10163
        %v10194 = vpack.c.b16 %v10166, %v10165
        %v10195 = vpack.c.b16 %v10168, %v10167
        %v10196 = vpack.c.b16 %v10170, %v10169
        %v10197 = vpack.c.b16 %v10172, %v10171
        %v10198 = vpack.c.b16 %v10174, %v10173
        %v10199 = vpack.c.b16 %v10176, %v10175
        %v10200 = vpack.c.b16 %v10178, %v10177
        %v10201 = vpack.c.b16 %v10180, %v10179
        %v10202 = vpack.c.b16 %v10182, %v10181
        %v10203 = vpack.c.b16 %v10184, %v10183
        %v10204 = vpack.c.b16 %v10186, %v10185
        %v10205 = vpack.c.b16 %v10188, %v10187
        %v10206 = vpack.c.b16 %v10190, %v10189
        %v10239 = vunpack.c.l.b16 %v10111
        %v10240 = vunpack.c.l.b16 %v10112
        %v10241 = vunpack.c.l.b16 %v10113
        %v10242 = vunpack.c.l.b16 %v10114
        %v10243 = vunpack.c.l.b16 %v10115
        %v10244 = vunpack.c.l.b16 %v10116
        %v10245 = vunpack.c.l.b16 %v10117
        %v10246 = vunpack.c.l.b16 %v10118
        %v10247 = vunpack.c.l.b16 %v10119
        %v10248 = vunpack.c.l.b16 %v10120
        %v10249 = vunpack.c.l.b16 %v10121
        %v10250 = vunpack.c.l.b16 %v10122
        %v10251 = vunpack.c.l.b16 %v10123
        %v10252 = vunpack.c.l.b16 %v10124
        %v10253 = vunpack.c.l.b16 %v10125
        %v10254 = vunpack.c.l.b16 %v10126
        %v10255 = vpack.c.b16 %v10240, %v10239
        %v10256 = vpack.c.b16 %v10242, %v10241
        %v10257 = vpack.c.b16 %v10244, %v10243
        %v10258 = vpack.c.b16 %v10246, %v10245
        %v10259 = vpack.c.b16 %v10248, %v10247
        %v10260 = vpack.c.b16 %v10250, %v10249
        %v10261 = vpack.c.b16 %v10252, %v10251
        %v10262 = vpack.c.b16 %v10254, %v10253
        %10271 = vmatprep.subr.bf16.mxu0 0
        %10272 = vmatpush1.bf16.msra.mxu0 %v10255
        %10273 = vmatprep.subr.bf16.mxu0 0
        %10274 = vmatpush1.bf16.msra.mxu0 %v10256
        %10275 = vmatprep.subr.bf16.mxu0 0
        %10276 = vmatpush1.bf16.msra.mxu0 %v10257
        %10277 = vmatprep.subr.bf16.mxu0 0
        %10278 = vmatpush1.bf16.msra.mxu0 %v10258
        %10279 = vmatprep.subr.bf16.mxu0 0
        %10280 = vmatpush1.bf16.msra.mxu0 %v10259
        %10281 = vmatprep.subr.bf16.mxu0 0
        %10282 = vmatpush1.bf16.msra.mxu0 %v10260
        %10283 = vmatprep.subr.bf16.mxu0 0
        %10284 = vmatpush1.bf16.msra.mxu0 %v10261
        %10285 = vmatprep.subr.bf16.mxu0 0
        %10286 = vmatpush1.bf16.msra.mxu0 %v10262
        %10287 = vmatprep.subr.bf16.mxu0 0
        %10288 = vmatpush1.bf16.msra.mxu0 0
        %10289 = vmatprep.subr.bf16.mxu0 0
        %10290 = vmatpush1.bf16.msra.mxu0 0
        %10291 = vmatprep.subr.bf16.mxu0 0
        %10292 = vmatpush1.bf16.msra.mxu0 0
        %10293 = vmatprep.subr.bf16.mxu0 0
        %10294 = vmatpush1.bf16.msra.mxu0 0
        %10295 = vmatprep.subr.bf16.mxu0 0
        %10296 = vmatpush1.bf16.msra.mxu0 0
        %10297 = vmatprep.subr.bf16.mxu0 0
        %10298 = vmatpush1.bf16.msra.mxu0 0
        %10299 = vmatprep.subr.bf16.mxu0 0
        %10300 = vmatpush1.bf16.msra.mxu0 0
        %10301 = vmatprep.subr.bf16.mxu0 0
        %10302 = vmatpush1.bf16.msra.mxu0 0
        %10303 = vmatprep.mubr.bf16.mxu0 0
        %10304 = vmatmul.mubr.bf16.gmra.mrb[0].mxu0 %v10191
        %v10305 = vpop.f32.mrb[0].mxu0
        %v10306 = vadd.f32 0.0, %v10305
        %v10307 = vpop.f32.mrb[0].mxu0
        %v10308 = vpop.f32.mrb[0].mxu0
        %v10309 = vadd.f32 0.0, %v10308
        %v10310 = vpop.f32.mrb[0].mxu0
        %10311 = vmatprep.mubr.bf16.mxu0 0
        %10312 = vmatmul.mubr.bf16.gmra.mrb[0].mxu0 %v10192
        %v10313 = vpop.f32.mrb[0].mxu0
        %v10314 = vadd.f32 0.0, %v10313
        %v10315 = vpop.f32.mrb[0].mxu0
        %v10316 = vpop.f32.mrb[0].mxu0
        %v10317 = vadd.f32 0.0, %v10316
        %v10318 = vpop.f32.mrb[0].mxu0
        %10319 = vmatprep.mubr.bf16.mxu0 0
        %10320 = vmatmul.mubr.bf16.gmra.mrb[0].mxu0 %v10193
        %v10321 = vpop.f32.mrb[0].mxu0
        %v10322 = vadd.f32 0.0, %v10321
        %v10323 = vpop.f32.mrb[0].mxu0
        %v10324 = vpop.f32.mrb[0].mxu0
        %v10325 = vadd.f32 0.0, %v10324
        %v10326 = vpop.f32.mrb[0].mxu0
        %10327 = vmatprep.mubr.bf16.mxu0 0
        %10328 = vmatmul.mubr.bf16.gmra.mrb[0].mxu0 %v10194
        %v10329 = vpop.f32.mrb[0].mxu0
        %v10330 = vadd.f32 0.0, %v10329
        %v10331 = vpop.f32.mrb[0].mxu0
        %v10332 = vpop.f32.mrb[0].mxu0
        %v10333 = vadd.f32 0.0, %v10332
        %v10334 = vpop.f32.mrb[0].mxu0
        %10335 = vmatprep.mubr.bf16.mxu0 0
        %10336 = vmatmul.mubr.bf16.gmra.mrb[0].mxu0 %v10195
        %v10337 = vpop.f32.mrb[0].mxu0
        %v10338 = vadd.f32 0.0, %v10337
        %v10339 = vpop.f32.mrb[0].mxu0
        %v10340 = vpop.f32.mrb[0].mxu0
        %v10341 = vadd.f32 0.0, %v10340
        %v10342 = vpop.f32.mrb[0].mxu0
        %10343 = vmatprep.mubr.bf16.mxu0 0
        %10344 = vmatmul.mubr.bf16.gmra.mrb[0].mxu0 %v10196
        %v10345 = vpop.f32.mrb[0].mxu0
        %v10346 = vadd.f32 0.0, %v10345
        %v10347 = vpop.f32.mrb[0].mxu0
        %v10348 = vpop.f32.mrb[0].mxu0
        %v10349 = vadd.f32 0.0, %v10348
        %v10350 = vpop.f32.mrb[0].mxu0
        %10351 = vmatprep.mubr.bf16.mxu0 0
        %10352 = vmatmul.mubr.bf16.gmra.mrb[0].mxu0 %v10197
        %v10353 = vpop.f32.mrb[0].mxu0
        %v10354 = vadd.f32 0.0, %v10353
        %v10355 = vpop.f32.mrb[0].mxu0
        %v10356 = vpop.f32.mrb[0].mxu0
        %v10357 = vadd.f32 0.0, %v10356
        %v10358 = vpop.f32.mrb[0].mxu0
        %10359 = vmatprep.mubr.bf16.mxu0 0
        %10360 = vmatmul.mubr.bf16.gmra.mrb[0].mxu0 %v10198
        %v10361 = vpop.f32.mrb[0].mxu0
        %v10362 = vadd.f32 0.0, %v10361
        %v10363 = vpop.f32.mrb[0].mxu0
        %v10364 = vpop.f32.mrb[0].mxu0
        %v10365 = vadd.f32 0.0, %v10364
        %v10366 = vpop.f32.mrb[0].mxu0
        %10367 = vmatprep.mubr.bf16.mxu0 0
        %10368 = vmatmul.mubr.bf16.gmra.mrb[0].mxu0 %v10199
        %v10369 = vpop.f32.mrb[0].mxu0
        %v10370 = vadd.f32 0.0, %v10369
        %v10371 = vpop.f32.mrb[0].mxu0
        %v10372 = vpop.f32.mrb[0].mxu0
        %v10373 = vadd.f32 0.0, %v10372
        %v10374 = vpop.f32.mrb[0].mxu0
        %10375 = vmatprep.mubr.bf16.mxu0 0
        %10376 = vmatmul.mubr.bf16.gmra.mrb[0].mxu0 %v10200
        %v10377 = vpop.f32.mrb[0].mxu0
        %v10378 = vadd.f32 0.0, %v10377
        %v10379 = vpop.f32.mrb[0].mxu0
        %v10380 = vpop.f32.mrb[0].mxu0
        %v10381 = vadd.f32 0.0, %v10380
        %v10382 = vpop.f32.mrb[0].mxu0
        %10383 = vmatprep.mubr.bf16.mxu0 0
        %10384 = vmatmul.mubr.bf16.gmra.mrb[0].mxu0 %v10201
        %v10385 = vpop.f32.mrb[0].mxu0
        %v10386 = vadd.f32 0.0, %v10385
        %v10387 = vpop.f32.mrb[0].mxu0
        %v10388 = vpop.f32.mrb[0].mxu0
        %v10389 = vadd.f32 0.0, %v10388
        %v10390 = vpop.f32.mrb[0].mxu0
        %10391 = vmatprep.mubr.bf16.mxu0 0
        %10392 = vmatmul.mubr.bf16.gmra.mrb[0].mxu0 %v10202
        %v10393 = vpop.f32.mrb[0].mxu0
        %v10394 = vadd.f32 0.0, %v10393
        %v10395 = vpop.f32.mrb[0].mxu0
        %v10396 = vpop.f32.mrb[0].mxu0
        %v10397 = vadd.f32 0.0, %v10396
        %v10398 = vpop.f32.mrb[0].mxu0
        %10399 = vmatprep.mubr.bf16.mxu0 0
        %10400 = vmatmul.mubr.bf16.gmra.mrb[0].mxu0 %v10203
        %v10401 = vpop.f32.mrb[0].mxu0
        %v10402 = vadd.f32 0.0, %v10401
        %v10403 = vpop.f32.mrb[0].mxu0
        %v10404 = vpop.f32.mrb[0].mxu0
        %v10405 = vadd.f32 0.0, %v10404
        %v10406 = vpop.f32.mrb[0].mxu0
        %10407 = vmatprep.mubr.bf16.mxu0 0
        %10408 = vmatmul.mubr.bf16.gmra.mrb[0].mxu0 %v10204
        %v10409 = vpop.f32.mrb[0].mxu0
        %v10410 = vadd.f32 0.0, %v10409
        %v10411 = vpop.f32.mrb[0].mxu0
        %v10412 = vpop.f32.mrb[0].mxu0
        %v10413 = vadd.f32 0.0, %v10412
        %v10414 = vpop.f32.mrb[0].mxu0
        %10415 = vmatprep.mubr.bf16.mxu0 0
        %10416 = vmatmul.mubr.bf16.gmra.mrb[0].mxu0 %v10205
        %v10417 = vpop.f32.mrb[0].mxu0
        %v10418 = vadd.f32 0.0, %v10417
        %v10419 = vpop.f32.mrb[0].mxu0
        %v10420 = vpop.f32.mrb[0].mxu0
        %v10421 = vadd.f32 0.0, %v10420
        %v10422 = vpop.f32.mrb[0].mxu0
        %10423 = vmatprep.mubr.bf16.mxu0 0
        %10424 = vmatmul.mubr.bf16.gmra.mrb[0].mxu0 %v10206
        %v10425 = vpop.f32.mrb[0].mxu0
        %v10426 = vadd.f32 0.0, %v10425
        %v10427 = vpop.f32.mrb[0].mxu0
        %v10428 = vpop.f32.mrb[0].mxu0
        %v10429 = vadd.f32 0.0, %v10428
        %v10430 = vpop.f32.mrb[0].mxu0
        %10431 = vdwg.mxu0
        %v10432 = vadd.f32 %v10046, %v10306
        %v10433 = vadd.f32 %v10047, %v10309
        %v10434 = vadd.f32 %v10048, %v10314
        %v10435 = vadd.f32 %v10049, %v10317
        %v10436 = vadd.f32 %v10050, %v10322
        %v10437 = vadd.f32 %v10051, %v10325
        %v10438 = vadd.f32 %v10052, %v10330
        %v10439 = vadd.f32 %v10053, %v10333
        %v10440 = vadd.f32 %v10054, %v10338
        %v10441 = vadd.f32 %v10055, %v10341
        %v10442 = vadd.f32 %v10056, %v10346
        %v10443 = vadd.f32 %v10057, %v10349
        %v10444 = vadd.f32 %v10058, %v10354
        %v10445 = vadd.f32 %v10059, %v10357
        %v10446 = vadd.f32 %v10060, %v10362
        %v10447 = vadd.f32 %v10061, %v10365
        %v10448 = vadd.f32 %v10062, %v10370
        %v10449 = vadd.f32 %v10063, %v10373
        %v10450 = vadd.f32 %v10064, %v10378
        %v10451 = vadd.f32 %v10065, %v10381
        %v10452 = vadd.f32 %v10066, %v10386
        %v10453 = vadd.f32 %v10067, %v10389
        %v10454 = vadd.f32 %v10068, %v10394
        %v10455 = vadd.f32 %v10069, %v10397
        %v10456 = vadd.f32 %v10070, %v10402
        %v10457 = vadd.f32 %v10071, %v10405
        %v10458 = vadd.f32 %v10072, %v10410
        %v10459 = vadd.f32 %v10073, %v10413
        %v10460 = vadd.f32 %v10074, %v10418
        %v10461 = vadd.f32 %v10075, %v10421
        %v10462 = vadd.f32 %v10076, %v10426
        %v10463 = vadd.f32 %v10077, %v10429
        %v10464 = vld [vmem:[%s4268] sm:$0xf]
        %v10465 = vld [vmem:[%s4268 + $0x4] sm:$0xf]
        %v10466 = vld [vmem:[%s4268 + $0x8] sm:$0x1]
        %v10467 = vld [vmem:[%s4268 + $0xc] sm:$0xf]
        %v10468 = vld [vmem:[%s4268 + $0x10] sm:$0xf]
        %v10469 = vld [vmem:[%s4268 + $0x14] sm:$0x1]
        %v10470 = vld [vmem:[%s4268 + $0x18] sm:$0xf]
        %v10471 = vld [vmem:[%s4268 + $0x1c] sm:$0xf]
        %v10472 = vld [vmem:[%s4268 + $0x20] sm:$0x1]
        %v10473 = vld [vmem:[%s4268 + $0x24] sm:$0xf]
        %v10474 = vld [vmem:[%s4268 + $0x28] sm:$0xf]
        %v10475 = vld [vmem:[%s4268 + $0x2c] sm:$0x1]
        %v10476 = vld [vmem:[%s4268 + $0x30] sm:$0xf]
        %v10477 = vld [vmem:[%s4268 + $0x34] sm:$0xf]
        %v10478 = vld [vmem:[%s4268 + $0x38] sm:$0x1]
        %v10479 = vld [vmem:[%s4268 + $0x3c] sm:$0xf]
        %v10480 = vld [vmem:[%s4268 + $0x40] sm:$0xf]
        %v10481 = vld [vmem:[%s4268 + $0x44] sm:$0x1]
        %v10482 = vld [vmem:[%s4268 + $0x48] sm:$0xf]
        %v10483 = vld [vmem:[%s4268 + $0x4c] sm:$0xf]
        %v10484 = vld [vmem:[%s4268 + $0x50] sm:$0x1]
        %v10485 = vld [vmem:[%s4268 + $0x54] sm:$0xf]
        %v10486 = vld [vmem:[%s4268 + $0x58] sm:$0xf]
        %v10487 = vld [vmem:[%s4268 + $0x5c] sm:$0x1]
        %v10488 = vld [vmem:[%s4268 + $0x60] sm:$0xf]
        %v10489 = vld [vmem:[%s4268 + $0x64] sm:$0xf]
        %v10490 = vld [vmem:[%s4268 + $0x68] sm:$0x1]
        %v10491 = vld [vmem:[%s4268 + $0x6c] sm:$0xf]
        %v10492 = vld [vmem:[%s4268 + $0x70] sm:$0xf]
        %v10493 = vld [vmem:[%s4268 + $0x74] sm:$0x1]
        %v10494 = vld [vmem:[%s4268 + $0x78] sm:$0xf]
        %v10495 = vld [vmem:[%s4268 + $0x7c] sm:$0xf]
        %v10496 = vld [vmem:[%s4268 + $0x80] sm:$0x1]
        %v10497 = vld [vmem:[%s4268 + $0x84] sm:$0xf]
        %v10498 = vld [vmem:[%s4268 + $0x88] sm:$0xf]
        %v10499 = vld [vmem:[%s4268 + $0x8c] sm:$0x1]
        %v10500 = vld [vmem:[%s4268 + $0x90] sm:$0xf]
        %v10501 = vld [vmem:[%s4268 + $0x94] sm:$0xf]
        %v10502 = vld [vmem:[%s4268 + $0x98] sm:$0x1]
        %v10503 = vld [vmem:[%s4268 + $0x9c] sm:$0xf]
        %v10504 = vld [vmem:[%s4268 + $0xa0] sm:$0xf]
        %v10505 = vld [vmem:[%s4268 + $0xa4] sm:$0x1]
        %v10506 = vld [vmem:[%s4268 + $0xa8] sm:$0xf]
        %v10507 = vld [vmem:[%s4268 + $0xac] sm:$0xf]
        %v10508 = vld [vmem:[%s4268 + $0xb0] sm:$0x1]
        %v10509 = vld [vmem:[%s4268 + $0xb4] sm:$0xf]
        %v10510 = vld [vmem:[%s4268 + $0xb8] sm:$0xf]
        %v10511 = vld [vmem:[%s4268 + $0xbc] sm:$0x1]
        %v10513 = vshrl.u32 %v10464, 16
        %v10515 = vrot.slane %v10513, 4
        %v10516 = vshll.u32 %v10464, 16
        %v10518 = vrot.slane %v10516, 5
        %v10519 = vor.u32 %v10515, %v10518
        %v10520 = vrot.slane %v10519, 4
        %v10522 = vshll.u32 %v10465, 16
        %v10524 = vrot.slane %v10522, 5
        %v10525 = vsel %vm1165, %v10520, %v10524
        %v10526 = vshrl.u32 %v10465, 16
        %v10528 = vrot.slane %v10526, 4
        %v10529 = vor.u32 %v10528, %v10524
        %v10530 = vrot.slane %v10529, 4
        %v10532 = vshll.u32 %v10466, 16
        %v10534 = vrot.slane %v10532, 5
        %v10535 = vsel %vm1165, %v10530, %v10534
        %v10537 = vshrl.u32 %v10467, 16
        %v10539 = vrot.slane %v10537, 4
        %v10540 = vshll.u32 %v10467, 16
        %v10542 = vrot.slane %v10540, 5
        %v10543 = vor.u32 %v10539, %v10542
        %v10544 = vrot.slane %v10543, 4
        %v10546 = vshll.u32 %v10468, 16
        %v10548 = vrot.slane %v10546, 5
        %v10549 = vsel %vm1165, %v10544, %v10548
        %v10550 = vshrl.u32 %v10468, 16
        %v10552 = vrot.slane %v10550, 4
        %v10553 = vor.u32 %v10552, %v10548
        %v10554 = vrot.slane %v10553, 4
        %v10556 = vshll.u32 %v10469, 16
        %v10558 = vrot.slane %v10556, 5
        %v10559 = vsel %vm1165, %v10554, %v10558
        %v10561 = vshrl.u32 %v10470, 16
        %v10563 = vrot.slane %v10561, 4
        %v10564 = vshll.u32 %v10470, 16
        %v10566 = vrot.slane %v10564, 5
        %v10567 = vor.u32 %v10563, %v10566
        %v10568 = vrot.slane %v10567, 4
        %v10570 = vshll.u32 %v10471, 16
        %v10572 = vrot.slane %v10570, 5
        %v10573 = vsel %vm1165, %v10568, %v10572
        %v10574 = vshrl.u32 %v10471, 16
        %v10576 = vrot.slane %v10574, 4
        %v10577 = vor.u32 %v10576, %v10572
        %v10578 = vrot.slane %v10577, 4
        %v10580 = vshll.u32 %v10472, 16
        %v10582 = vrot.slane %v10580, 5
        %v10583 = vsel %vm1165, %v10578, %v10582
        %v10585 = vshrl.u32 %v10473, 16
        %v10587 = vrot.slane %v10585, 4
        %v10588 = vshll.u32 %v10473, 16
        %v10590 = vrot.slane %v10588, 5
        %v10591 = vor.u32 %v10587, %v10590
        %v10592 = vrot.slane %v10591, 4
        %v10594 = vshll.u32 %v10474, 16
        %v10596 = vrot.slane %v10594, 5
        %v10597 = vsel %vm1165, %v10592, %v10596
        %v10598 = vshrl.u32 %v10474, 16
        %v10600 = vrot.slane %v10598, 4
        %v10601 = vor.u32 %v10600, %v10596
        %v10602 = vrot.slane %v10601, 4
        %v10604 = vshll.u32 %v10475, 16
        %v10606 = vrot.slane %v10604, 5
        %v10607 = vsel %vm1165, %v10602, %v10606
        %v10609 = vshrl.u32 %v10476, 16
        %v10611 = vrot.slane %v10609, 4
        %v10612 = vshll.u32 %v10476, 16
        %v10614 = vrot.slane %v10612, 5
        %v10615 = vor.u32 %v10611, %v10614
        %v10616 = vrot.slane %v10615, 4
        %v10618 = vshll.u32 %v10477, 16
        %v10620 = vrot.slane %v10618, 5
        %v10621 = vsel %vm1165, %v10616, %v10620
        %v10622 = vshrl.u32 %v10477, 16
        %v10624 = vrot.slane %v10622, 4
        %v10625 = vor.u32 %v10624, %v10620
        %v10626 = vrot.slane %v10625, 4
        %v10628 = vshll.u32 %v10478, 16
        %v10630 = vrot.slane %v10628, 5
        %v10631 = vsel %vm1165, %v10626, %v10630
        %v10633 = vshrl.u32 %v10479, 16
        %v10635 = vrot.slane %v10633, 4
        %v10636 = vshll.u32 %v10479, 16
        %v10638 = vrot.slane %v10636, 5
        %v10639 = vor.u32 %v10635, %v10638
        %v10640 = vrot.slane %v10639, 4
        %v10642 = vshll.u32 %v10480, 16
        %v10644 = vrot.slane %v10642, 5
        %v10645 = vsel %vm1165, %v10640, %v10644
        %v10646 = vshrl.u32 %v10480, 16
        %v10648 = vrot.slane %v10646, 4
        %v10649 = vor.u32 %v10648, %v10644
        %v10650 = vrot.slane %v10649, 4
        %v10652 = vshll.u32 %v10481, 16
        %v10654 = vrot.slane %v10652, 5
        %v10655 = vsel %vm1165, %v10650, %v10654
        %v10657 = vshrl.u32 %v10482, 16
        %v10659 = vrot.slane %v10657, 4
        %v10660 = vshll.u32 %v10482, 16
        %v10662 = vrot.slane %v10660, 5
        %v10663 = vor.u32 %v10659, %v10662
        %v10664 = vrot.slane %v10663, 4
        %v10666 = vshll.u32 %v10483, 16
        %v10668 = vrot.slane %v10666, 5
        %v10669 = vsel %vm1165, %v10664, %v10668
        %v10670 = vshrl.u32 %v10483, 16
        %v10672 = vrot.slane %v10670, 4
        %v10673 = vor.u32 %v10672, %v10668
        %v10674 = vrot.slane %v10673, 4
        %v10676 = vshll.u32 %v10484, 16
        %v10678 = vrot.slane %v10676, 5
        %v10679 = vsel %vm1165, %v10674, %v10678
        %v10681 = vshrl.u32 %v10485, 16
        %v10683 = vrot.slane %v10681, 4
        %v10684 = vshll.u32 %v10485, 16
        %v10686 = vrot.slane %v10684, 5
        %v10687 = vor.u32 %v10683, %v10686
        %v10688 = vrot.slane %v10687, 4
        %v10690 = vshll.u32 %v10486, 16
        %v10692 = vrot.slane %v10690, 5
        %v10693 = vsel %vm1165, %v10688, %v10692
        %v10694 = vshrl.u32 %v10486, 16
        %v10696 = vrot.slane %v10694, 4
        %v10697 = vor.u32 %v10696, %v10692
        %v10698 = vrot.slane %v10697, 4
        %v10700 = vshll.u32 %v10487, 16
        %v10702 = vrot.slane %v10700, 5
        %v10703 = vsel %vm1165, %v10698, %v10702
        %v10705 = vshrl.u32 %v10488, 16
        %v10707 = vrot.slane %v10705, 4
        %v10708 = vshll.u32 %v10488, 16
        %v10710 = vrot.slane %v10708, 5
        %v10711 = vor.u32 %v10707, %v10710
        %v10712 = vrot.slane %v10711, 4
        %v10714 = vshll.u32 %v10489, 16
        %v10716 = vrot.slane %v10714, 5
        %v10717 = vsel %vm1165, %v10712, %v10716
        %v10718 = vshrl.u32 %v10489, 16
        %v10720 = vrot.slane %v10718, 4
        %v10721 = vor.u32 %v10720, %v10716
        %v10722 = vrot.slane %v10721, 4
        %v10724 = vshll.u32 %v10490, 16
        %v10726 = vrot.slane %v10724, 5
        %v10727 = vsel %vm1165, %v10722, %v10726
        %v10729 = vshrl.u32 %v10491, 16
        %v10731 = vrot.slane %v10729, 4
        %v10732 = vshll.u32 %v10491, 16
        %v10734 = vrot.slane %v10732, 5
        %v10735 = vor.u32 %v10731, %v10734
        %v10736 = vrot.slane %v10735, 4
        %v10738 = vshll.u32 %v10492, 16
        %v10740 = vrot.slane %v10738, 5
        %v10741 = vsel %vm1165, %v10736, %v10740
        %v10742 = vshrl.u32 %v10492, 16
        %v10744 = vrot.slane %v10742, 4
        %v10745 = vor.u32 %v10744, %v10740
        %v10746 = vrot.slane %v10745, 4
        %v10748 = vshll.u32 %v10493, 16
        %v10750 = vrot.slane %v10748, 5
        %v10751 = vsel %vm1165, %v10746, %v10750
        %v10753 = vshrl.u32 %v10494, 16
        %v10755 = vrot.slane %v10753, 4
        %v10756 = vshll.u32 %v10494, 16
        %v10758 = vrot.slane %v10756, 5
        %v10759 = vor.u32 %v10755, %v10758
        %v10760 = vrot.slane %v10759, 4
        %v10762 = vshll.u32 %v10495, 16
        %v10764 = vrot.slane %v10762, 5
        %v10765 = vsel %vm1165, %v10760, %v10764
        %v10766 = vshrl.u32 %v10495, 16
        %v10768 = vrot.slane %v10766, 4
        %v10769 = vor.u32 %v10768, %v10764
        %v10770 = vrot.slane %v10769, 4
        %v10772 = vshll.u32 %v10496, 16
        %v10774 = vrot.slane %v10772, 5
        %v10775 = vsel %vm1165, %v10770, %v10774
        %v10777 = vshrl.u32 %v10497, 16
        %v10779 = vrot.slane %v10777, 4
        %v10780 = vshll.u32 %v10497, 16
        %v10782 = vrot.slane %v10780, 5
        %v10783 = vor.u32 %v10779, %v10782
        %v10784 = vrot.slane %v10783, 4
        %v10786 = vshll.u32 %v10498, 16
        %v10788 = vrot.slane %v10786, 5
        %v10789 = vsel %vm1165, %v10784, %v10788
        %v10790 = vshrl.u32 %v10498, 16
        %v10792 = vrot.slane %v10790, 4
        %v10793 = vor.u32 %v10792, %v10788
        %v10794 = vrot.slane %v10793, 4
        %v10796 = vshll.u32 %v10499, 16
        %v10798 = vrot.slane %v10796, 5
        %v10799 = vsel %vm1165, %v10794, %v10798
        %v10801 = vshrl.u32 %v10500, 16
        %v10803 = vrot.slane %v10801, 4
        %v10804 = vshll.u32 %v10500, 16
        %v10806 = vrot.slane %v10804, 5
        %v10807 = vor.u32 %v10803, %v10806
        %v10808 = vrot.slane %v10807, 4
        %v10810 = vshll.u32 %v10501, 16
        %v10812 = vrot.slane %v10810, 5
        %v10813 = vsel %vm1165, %v10808, %v10812
        %v10814 = vshrl.u32 %v10501, 16
        %v10816 = vrot.slane %v10814, 4
        %v10817 = vor.u32 %v10816, %v10812
        %v10818 = vrot.slane %v10817, 4
        %v10820 = vshll.u32 %v10502, 16
        %v10822 = vrot.slane %v10820, 5
        %v10823 = vsel %vm1165, %v10818, %v10822
        %v10825 = vshrl.u32 %v10503, 16
        %v10827 = vrot.slane %v10825, 4
        %v10828 = vshll.u32 %v10503, 16
        %v10830 = vrot.slane %v10828, 5
        %v10831 = vor.u32 %v10827, %v10830
        %v10832 = vrot.slane %v10831, 4
        %v10834 = vshll.u32 %v10504, 16
        %v10836 = vrot.slane %v10834, 5
        %v10837 = vsel %vm1165, %v10832, %v10836
        %v10838 = vshrl.u32 %v10504, 16
        %v10840 = vrot.slane %v10838, 4
        %v10841 = vor.u32 %v10840, %v10836
        %v10842 = vrot.slane %v10841, 4
        %v10844 = vshll.u32 %v10505, 16
        %v10846 = vrot.slane %v10844, 5
        %v10847 = vsel %vm1165, %v10842, %v10846
        %v10849 = vshrl.u32 %v10506, 16
        %v10851 = vrot.slane %v10849, 4
        %v10852 = vshll.u32 %v10506, 16
        %v10854 = vrot.slane %v10852, 5
        %v10855 = vor.u32 %v10851, %v10854
        %v10856 = vrot.slane %v10855, 4
        %v10858 = vshll.u32 %v10507, 16
        %v10860 = vrot.slane %v10858, 5
        %v10861 = vsel %vm1165, %v10856, %v10860
        %v10862 = vshrl.u32 %v10507, 16
        %v10864 = vrot.slane %v10862, 4
        %v10865 = vor.u32 %v10864, %v10860
        %v10866 = vrot.slane %v10865, 4
        %v10868 = vshll.u32 %v10508, 16
        %v10870 = vrot.slane %v10868, 5
        %v10871 = vsel %vm1165, %v10866, %v10870
        %v10873 = vshrl.u32 %v10509, 16
        %v10875 = vrot.slane %v10873, 4
        %v10876 = vshll.u32 %v10509, 16
        %v10878 = vrot.slane %v10876, 5
        %v10879 = vor.u32 %v10875, %v10878
        %v10880 = vrot.slane %v10879, 4
        %v10882 = vshll.u32 %v10510, 16
        %v10884 = vrot.slane %v10882, 5
        %v10885 = vsel %vm1165, %v10880, %v10884
        %v10886 = vshrl.u32 %v10510, 16
        %v10888 = vrot.slane %v10886, 4
        %v10889 = vor.u32 %v10888, %v10884
        %v10890 = vrot.slane %v10889, 4
        %v10892 = vshll.u32 %v10511, 16
        %v10894 = vrot.slane %v10892, 5
        %v10895 = vsel %vm1165, %v10890, %v10894
        %s10896 = scalar_lea.vmem [#allocation7], 448
        %v10897 = vld [vmem:[%s10896] sm:$0xf]
        %v10898 = vld [vmem:[%s10896 + $0x4] sm:$0xf]
        %v10899 = vld [vmem:[%s10896 + $0x8] sm:$0xf]
        %v10900 = vld [vmem:[%s10896 + $0xc] sm:$0xf]
        %v10901 = vld [vmem:[%s10896 + $0x10] sm:$0xf]
        %v10902 = vld [vmem:[%s10896 + $0x14] sm:$0xf]
        %v10903 = vld [vmem:[%s10896 + $0x18] sm:$0xf]
        %v10904 = vld [vmem:[%s10896 + $0x1c] sm:$0xf]
        %v10905 = vld [vmem:[%s10896 + $0x20] sm:$0xf]
        %v10906 = vld [vmem:[%s10896 + $0x24] sm:$0xf]
        %v10907 = vld [vmem:[%s10896 + $0x28] sm:$0xf]
        %v10908 = vld [vmem:[%s10896 + $0x2c] sm:$0xf]
        %v10909 = vld [vmem:[%s10896 + $0x30] sm:$0xf]
        %v10910 = vld [vmem:[%s10896 + $0x34] sm:$0xf]
        %v10911 = vld [vmem:[%s10896 + $0x38] sm:$0xf]
        %v10912 = vld [vmem:[%s10896 + $0x3c] sm:$0xf]
        %v10913 = vunpack.c.l.b16 %v10525
        %v10914 = vunpack.c.l.b16 %v10535
        %v10915 = vunpack.c.l.b16 %v10549
        %v10916 = vunpack.c.l.b16 %v10559
        %v10917 = vunpack.c.l.b16 %v10573
        %v10918 = vunpack.c.l.b16 %v10583
        %v10919 = vunpack.c.l.b16 %v10597
        %v10920 = vunpack.c.l.b16 %v10607
        %v10921 = vunpack.c.l.b16 %v10621
        %v10922 = vunpack.c.l.b16 %v10631
        %v10923 = vunpack.c.l.b16 %v10645
        %v10924 = vunpack.c.l.b16 %v10655
        %v10925 = vunpack.c.l.b16 %v10669
        %v10926 = vunpack.c.l.b16 %v10679
        %v10927 = vunpack.c.l.b16 %v10693
        %v10928 = vunpack.c.l.b16 %v10703
        %v10929 = vunpack.c.l.b16 %v10717
        %v10930 = vunpack.c.l.b16 %v10727
        %v10931 = vunpack.c.l.b16 %v10741
        %v10932 = vunpack.c.l.b16 %v10751
        %v10933 = vunpack.c.l.b16 %v10765
        %v10934 = vunpack.c.l.b16 %v10775
        %v10935 = vunpack.c.l.b16 %v10789
        %v10936 = vunpack.c.l.b16 %v10799
        %v10937 = vunpack.c.l.b16 %v10813
        %v10938 = vunpack.c.l.b16 %v10823
        %v10939 = vunpack.c.l.b16 %v10837
        %v10940 = vunpack.c.l.b16 %v10847
        %v10941 = vunpack.c.l.b16 %v10861
        %v10942 = vunpack.c.l.b16 %v10871
        %v10943 = vunpack.c.l.b16 %v10885
        %v10944 = vunpack.c.l.b16 %v10895
        %v10945 = vpack.c.b16 %v10914, %v10913
        %v10946 = vpack.c.b16 %v10916, %v10915
        %v10947 = vpack.c.b16 %v10918, %v10917
        %v10948 = vpack.c.b16 %v10920, %v10919
        %v10949 = vpack.c.b16 %v10922, %v10921
        %v10950 = vpack.c.b16 %v10924, %v10923
        %v10951 = vpack.c.b16 %v10926, %v10925
        %v10952 = vpack.c.b16 %v10928, %v10927
        %v10953 = vpack.c.b16 %v10930, %v10929
        %v10954 = vpack.c.b16 %v10932, %v10931
        %v10955 = vpack.c.b16 %v10934, %v10933
        %v10956 = vpack.c.b16 %v10936, %v10935
        %v10957 = vpack.c.b16 %v10938, %v10937
        %v10958 = vpack.c.b16 %v10940, %v10939
        %v10959 = vpack.c.b16 %v10942, %v10941
        %v10960 = vpack.c.b16 %v10944, %v10943
        %v10993 = vunpack.c.l.b16 %v10897
        %v10994 = vunpack.c.l.b16 %v10898
        %v10995 = vunpack.c.l.b16 %v10899
        %v10996 = vunpack.c.l.b16 %v10900
        %v10997 = vunpack.c.l.b16 %v10901
        %v10998 = vunpack.c.l.b16 %v10902
        %v10999 = vunpack.c.l.b16 %v10903
        %v11000 = vunpack.c.l.b16 %v10904
        %v11001 = vunpack.c.l.b16 %v10905
        %v11002 = vunpack.c.l.b16 %v10906
        %v11003 = vunpack.c.l.b16 %v10907
        %v11004 = vunpack.c.l.b16 %v10908
        %v11005 = vunpack.c.l.b16 %v10909
        %v11006 = vunpack.c.l.b16 %v10910
        %v11007 = vunpack.c.l.b16 %v10911
        %v11008 = vunpack.c.l.b16 %v10912
        %v11009 = vpack.c.b16 %v10994, %v10993
        %v11010 = vpack.c.b16 %v10996, %v10995
        %v11011 = vpack.c.b16 %v10998, %v10997
        %v11012 = vpack.c.b16 %v11000, %v10999
        %v11013 = vpack.c.b16 %v11002, %v11001
        %v11014 = vpack.c.b16 %v11004, %v11003
        %v11015 = vpack.c.b16 %v11006, %v11005
        %v11016 = vpack.c.b16 %v11008, %v11007
        %11025 = vmatprep.subr.bf16.mxu0 0
        %11026 = vmatpush1.bf16.msra.mxu0 %v11009
        %11027 = vmatprep.subr.bf16.mxu0 0
        %11028 = vmatpush1.bf16.msra.mxu0 %v11010
        %11029 = vmatprep.subr.bf16.mxu0 0
        %11030 = vmatpush1.bf16.msra.mxu0 %v11011
        %11031 = vmatprep.subr.bf16.mxu0 0
        %11032 = vmatpush1.bf16.msra.mxu0 %v11012
        %11033 = vmatprep.subr.bf16.mxu0 0
        %11034 = vmatpush1.bf16.msra.mxu0 %v11013
        %11035 = vmatprep.subr.bf16.mxu0 0
        %11036 = vmatpush1.bf16.msra.mxu0 %v11014
        %11037 = vmatprep.subr.bf16.mxu0 0
        %11038 = vmatpush1.bf16.msra.mxu0 %v11015
        %11039 = vmatprep.subr.bf16.mxu0 0
        %11040 = vmatpush1.bf16.msra.mxu0 %v11016
        %11041 = vmatprep.subr.bf16.mxu0 0
        %11042 = vmatpush1.bf16.msra.mxu0 0
        %11043 = vmatprep.subr.bf16.mxu0 0
        %11044 = vmatpush1.bf16.msra.mxu0 0
        %11045 = vmatprep.subr.bf16.mxu0 0
        %11046 = vmatpush1.bf16.msra.mxu0 0
        %11047 = vmatprep.subr.bf16.mxu0 0
        %11048 = vmatpush1.bf16.msra.mxu0 0
        %11049 = vmatprep.subr.bf16.mxu0 0
        %11050 = vmatpush1.bf16.msra.mxu0 0
        %11051 = vmatprep.subr.bf16.mxu0 0
        %11052 = vmatpush1.bf16.msra.mxu0 0
        %11053 = vmatprep.subr.bf16.mxu0 0
        %11054 = vmatpush1.bf16.msra.mxu0 0
        %11055 = vmatprep.subr.bf16.mxu0 0
        %11056 = vmatpush1.bf16.msra.mxu0 0
        %11057 = vmatprep.mubr.bf16.mxu0 0
        %11058 = vmatmul.mubr.bf16.gmra.mrb[0].mxu0 %v10945
        %v11059 = vpop.f32.mrb[0].mxu0
        %v11060 = vadd.f32 0.0, %v11059
        %v11061 = vpop.f32.mrb[0].mxu0
        %v11062 = vpop.f32.mrb[0].mxu0
        %v11063 = vadd.f32 0.0, %v11062
        %v11064 = vpop.f32.mrb[0].mxu0
        %11065 = vmatprep.mubr.bf16.mxu0 0
        %11066 = vmatmul.mubr.bf16.gmra.mrb[0].mxu0 %v10946
        %v11067 = vpop.f32.mrb[0].mxu0
        %v11068 = vadd.f32 0.0, %v11067
        %v11069 = vpop.f32.mrb[0].mxu0
        %v11070 = vpop.f32.mrb[0].mxu0
        %v11071 = vadd.f32 0.0, %v11070
        %v11072 = vpop.f32.mrb[0].mxu0
        %11073 = vmatprep.mubr.bf16.mxu0 0
        %11074 = vmatmul.mubr.bf16.gmra.mrb[0].mxu0 %v10947
        %v11075 = vpop.f32.mrb[0].mxu0
        %v11076 = vadd.f32 0.0, %v11075
        %v11077 = vpop.f32.mrb[0].mxu0
        %v11078 = vpop.f32.mrb[0].mxu0
        %v11079 = vadd.f32 0.0, %v11078
        %v11080 = vpop.f32.mrb[0].mxu0
        %11081 = vmatprep.mubr.bf16.mxu0 0
        %11082 = vmatmul.mubr.bf16.gmra.mrb[0].mxu0 %v10948
        %v11083 = vpop.f32.mrb[0].mxu0
        %v11084 = vadd.f32 0.0, %v11083
        %v11085 = vpop.f32.mrb[0].mxu0
        %v11086 = vpop.f32.mrb[0].mxu0
        %v11087 = vadd.f32 0.0, %v11086
        %v11088 = vpop.f32.mrb[0].mxu0
        %11089 = vmatprep.mubr.bf16.mxu0 0
        %11090 = vmatmul.mubr.bf16.gmra.mrb[0].mxu0 %v10949
        %v11091 = vpop.f32.mrb[0].mxu0
        %v11092 = vadd.f32 0.0, %v11091
        %v11093 = vpop.f32.mrb[0].mxu0
        %v11094 = vpop.f32.mrb[0].mxu0
        %v11095 = vadd.f32 0.0, %v11094
        %v11096 = vpop.f32.mrb[0].mxu0
        %11097 = vmatprep.mubr.bf16.mxu0 0
        %11098 = vmatmul.mubr.bf16.gmra.mrb[0].mxu0 %v10950
        %v11099 = vpop.f32.mrb[0].mxu0
        %v11100 = vadd.f32 0.0, %v11099
        %v11101 = vpop.f32.mrb[0].mxu0
        %v11102 = vpop.f32.mrb[0].mxu0
        %v11103 = vadd.f32 0.0, %v11102
        %v11104 = vpop.f32.mrb[0].mxu0
        %11105 = vmatprep.mubr.bf16.mxu0 0
        %11106 = vmatmul.mubr.bf16.gmra.mrb[0].mxu0 %v10951
        %v11107 = vpop.f32.mrb[0].mxu0
        %v11108 = vadd.f32 0.0, %v11107
        %v11109 = vpop.f32.mrb[0].mxu0
        %v11110 = vpop.f32.mrb[0].mxu0
        %v11111 = vadd.f32 0.0, %v11110
        %v11112 = vpop.f32.mrb[0].mxu0
        %11113 = vmatprep.mubr.bf16.mxu0 0
        %11114 = vmatmul.mubr.bf16.gmra.mrb[0].mxu0 %v10952
        %v11115 = vpop.f32.mrb[0].mxu0
        %v11116 = vadd.f32 0.0, %v11115
        %v11117 = vpop.f32.mrb[0].mxu0
        %v11118 = vpop.f32.mrb[0].mxu0
        %v11119 = vadd.f32 0.0, %v11118
        %v11120 = vpop.f32.mrb[0].mxu0
        %11121 = vmatprep.mubr.bf16.mxu0 0
        %11122 = vmatmul.mubr.bf16.gmra.mrb[0].mxu0 %v10953
        %v11123 = vpop.f32.mrb[0].mxu0
        %v11124 = vadd.f32 0.0, %v11123
        %v11125 = vpop.f32.mrb[0].mxu0
        %v11126 = vpop.f32.mrb[0].mxu0
        %v11127 = vadd.f32 0.0, %v11126
        %v11128 = vpop.f32.mrb[0].mxu0
        %11129 = vmatprep.mubr.bf16.mxu0 0
        %11130 = vmatmul.mubr.bf16.gmra.mrb[0].mxu0 %v10954
        %v11131 = vpop.f32.mrb[0].mxu0
        %v11132 = vadd.f32 0.0, %v11131
        %v11133 = vpop.f32.mrb[0].mxu0
        %v11134 = vpop.f32.mrb[0].mxu0
        %v11135 = vadd.f32 0.0, %v11134
        %v11136 = vpop.f32.mrb[0].mxu0
        %11137 = vmatprep.mubr.bf16.mxu0 0
        %11138 = vmatmul.mubr.bf16.gmra.mrb[0].mxu0 %v10955
        %v11139 = vpop.f32.mrb[0].mxu0
        %v11140 = vadd.f32 0.0, %v11139
        %v11141 = vpop.f32.mrb[0].mxu0
        %v11142 = vpop.f32.mrb[0].mxu0
        %v11143 = vadd.f32 0.0, %v11142
        %v11144 = vpop.f32.mrb[0].mxu0
        %11145 = vmatprep.mubr.bf16.mxu0 0
        %11146 = vmatmul.mubr.bf16.gmra.mrb[0].mxu0 %v10956
        %v11147 = vpop.f32.mrb[0].mxu0
        %v11148 = vadd.f32 0.0, %v11147
        %v11149 = vpop.f32.mrb[0].mxu0
        %v11150 = vpop.f32.mrb[0].mxu0
        %v11151 = vadd.f32 0.0, %v11150
        %v11152 = vpop.f32.mrb[0].mxu0
        %11153 = vmatprep.mubr.bf16.mxu0 0
        %11154 = vmatmul.mubr.bf16.gmra.mrb[0].mxu0 %v10957
        %v11155 = vpop.f32.mrb[0].mxu0
        %v11156 = vadd.f32 0.0, %v11155
        %v11157 = vpop.f32.mrb[0].mxu0
        %v11158 = vpop.f32.mrb[0].mxu0
        %v11159 = vadd.f32 0.0, %v11158
        %v11160 = vpop.f32.mrb[0].mxu0
        %11161 = vmatprep.mubr.bf16.mxu0 0
        %11162 = vmatmul.mubr.bf16.gmra.mrb[0].mxu0 %v10958
        %v11163 = vpop.f32.mrb[0].mxu0
        %v11164 = vadd.f32 0.0, %v11163
        %v11165 = vpop.f32.mrb[0].mxu0
        %v11166 = vpop.f32.mrb[0].mxu0
        %v11167 = vadd.f32 0.0, %v11166
        %v11168 = vpop.f32.mrb[0].mxu0
        %11169 = vmatprep.mubr.bf16.mxu0 0
        %11170 = vmatmul.mubr.bf16.gmra.mrb[0].mxu0 %v10959
        %v11171 = vpop.f32.mrb[0].mxu0
        %v11172 = vadd.f32 0.0, %v11171
        %v11173 = vpop.f32.mrb[0].mxu0
        %v11174 = vpop.f32.mrb[0].mxu0
        %v11175 = vadd.f32 0.0, %v11174
        %v11176 = vpop.f32.mrb[0].mxu0
        %11177 = vmatprep.mubr.bf16.mxu0 0
        %11178 = vmatmul.mubr.bf16.gmra.mrb[0].mxu0 %v10960
        %v11179 = vpop.f32.mrb[0].mxu0
        %v11180 = vadd.f32 0.0, %v11179
        %v11181 = vpop.f32.mrb[0].mxu0
        %v11182 = vpop.f32.mrb[0].mxu0
        %v11183 = vadd.f32 0.0, %v11182
        %v11184 = vpop.f32.mrb[0].mxu0
        %11185 = vdwg.mxu0
        %v11186 = vadd.f32 %v10432, %v11060
        %v11187 = vadd.f32 %v10433, %v11063
        %v11188 = vadd.f32 %v10434, %v11068
        %v11189 = vadd.f32 %v10435, %v11071
        %v11190 = vadd.f32 %v10436, %v11076
        %v11191 = vadd.f32 %v10437, %v11079
        %v11192 = vadd.f32 %v10438, %v11084
        %v11193 = vadd.f32 %v10439, %v11087
        %v11194 = vadd.f32 %v10440, %v11092
        %v11195 = vadd.f32 %v10441, %v11095
        %v11196 = vadd.f32 %v10442, %v11100
        %v11197 = vadd.f32 %v10443, %v11103
        %v11198 = vadd.f32 %v10444, %v11108
        %v11199 = vadd.f32 %v10445, %v11111
        %v11200 = vadd.f32 %v10446, %v11116
        %v11201 = vadd.f32 %v10447, %v11119
        %v11202 = vadd.f32 %v10448, %v11124
        %v11203 = vadd.f32 %v10449, %v11127
        %v11204 = vadd.f32 %v10450, %v11132
        %v11205 = vadd.f32 %v10451, %v11135
        %v11206 = vadd.f32 %v10452, %v11140
        %v11207 = vadd.f32 %v10453, %v11143
        %v11208 = vadd.f32 %v10454, %v11148
        %v11209 = vadd.f32 %v10455, %v11151
        %v11210 = vadd.f32 %v10456, %v11156
        %v11211 = vadd.f32 %v10457, %v11159
        %v11212 = vadd.f32 %v10458, %v11164
        %v11213 = vadd.f32 %v10459, %v11167
        %v11214 = vadd.f32 %v10460, %v11172
        %v11215 = vadd.f32 %v10461, %v11175
        %v11216 = vadd.f32 %v10462, %v11180
        %v11217 = vadd.f32 %v10463, %v11183
        %v11218 = vld [vmem:[%s4268] sm:$0xe]
        %v11219 = vld [vmem:[%s4268 + $0xc] sm:$0xe]
        %v11220 = vld [vmem:[%s4268 + $0x18] sm:$0xe]
        %v11221 = vld [vmem:[%s4268 + $0x24] sm:$0xe]
        %v11222 = vld [vmem:[%s4268 + $0x30] sm:$0xe]
        %v11223 = vld [vmem:[%s4268 + $0x3c] sm:$0xe]
        %v11224 = vld [vmem:[%s4268 + $0x48] sm:$0xe]
        %v11225 = vld [vmem:[%s4268 + $0x54] sm:$0xe]
        %v11226 = vld [vmem:[%s4268 + $0x60] sm:$0xe]
        %v11227 = vld [vmem:[%s4268 + $0x6c] sm:$0xe]
        %v11228 = vld [vmem:[%s4268 + $0x78] sm:$0xe]
        %v11229 = vld [vmem:[%s4268 + $0x84] sm:$0xe]
        %v11230 = vld [vmem:[%s4268 + $0x90] sm:$0xe]
        %v11231 = vld [vmem:[%s4268 + $0x9c] sm:$0xe]
        %v11232 = vld [vmem:[%s4268 + $0xa8] sm:$0xe]
        %v11233 = vld [vmem:[%s4268 + $0xb4] sm:$0xe]
        %v11282 = vrot.slane %v11218, 5
        %v11283 = vrot.slane %v11282, 4
        %v11284 = vrot.slane %v10465, 5
        %v11285 = vsel %vm2195, %v11283, %v11284
        %v11286 = vrot.slane %v11284, 4
        %v11287 = vrot.slane %v10466, 5
        %v11288 = vsel %vm2195, %v11286, %v11287
        %v11289 = vrot.slane %v11219, 5
        %v11290 = vrot.slane %v11289, 4
        %v11291 = vrot.slane %v10468, 5
        %v11292 = vsel %vm2195, %v11290, %v11291
        %v11293 = vrot.slane %v11291, 4
        %v11294 = vrot.slane %v10469, 5
        %v11295 = vsel %vm2195, %v11293, %v11294
        %v11296 = vrot.slane %v11220, 5
        %v11297 = vrot.slane %v11296, 4
        %v11298 = vrot.slane %v10471, 5
        %v11299 = vsel %vm2195, %v11297, %v11298
        %v11300 = vrot.slane %v11298, 4
        %v11301 = vrot.slane %v10472, 5
        %v11302 = vsel %vm2195, %v11300, %v11301
        %v11303 = vrot.slane %v11221, 5
        %v11304 = vrot.slane %v11303, 4
        %v11305 = vrot.slane %v10474, 5
        %v11306 = vsel %vm2195, %v11304, %v11305
        %v11307 = vrot.slane %v11305, 4
        %v11308 = vrot.slane %v10475, 5
        %v11309 = vsel %vm2195, %v11307, %v11308
        %v11310 = vrot.slane %v11222, 5
        %v11311 = vrot.slane %v11310, 4
        %v11312 = vrot.slane %v10477, 5
        %v11313 = vsel %vm2195, %v11311, %v11312
        %v11314 = vrot.slane %v11312, 4
        %v11315 = vrot.slane %v10478, 5
        %v11316 = vsel %vm2195, %v11314, %v11315
        %v11317 = vrot.slane %v11223, 5
        %v11318 = vrot.slane %v11317, 4
        %v11319 = vrot.slane %v10480, 5
        %v11320 = vsel %vm2195, %v11318, %v11319
        %v11321 = vrot.slane %v11319, 4
        %v11322 = vrot.slane %v10481, 5
        %v11323 = vsel %vm2195, %v11321, %v11322
        %v11324 = vrot.slane %v11224, 5
        %v11325 = vrot.slane %v11324, 4
        %v11326 = vrot.slane %v10483, 5
        %v11327 = vsel %vm2195, %v11325, %v11326
        %v11328 = vrot.slane %v11326, 4
        %v11329 = vrot.slane %v10484, 5
        %v11330 = vsel %vm2195, %v11328, %v11329
        %v11331 = vrot.slane %v11225, 5
        %v11332 = vrot.slane %v11331, 4
        %v11333 = vrot.slane %v10486, 5
        %v11334 = vsel %vm2195, %v11332, %v11333
        %v11335 = vrot.slane %v11333, 4
        %v11336 = vrot.slane %v10487, 5
        %v11337 = vsel %vm2195, %v11335, %v11336
        %v11338 = vrot.slane %v11226, 5
        %v11339 = vrot.slane %v11338, 4
        %v11340 = vrot.slane %v10489, 5
        %v11341 = vsel %vm2195, %v11339, %v11340
        %v11342 = vrot.slane %v11340, 4
        %v11343 = vrot.slane %v10490, 5
        %v11344 = vsel %vm2195, %v11342, %v11343
        %v11345 = vrot.slane %v11227, 5
        %v11346 = vrot.slane %v11345, 4
        %v11347 = vrot.slane %v10492, 5
        %v11348 = vsel %vm2195, %v11346, %v11347
        %v11349 = vrot.slane %v11347, 4
        %v11350 = vrot.slane %v10493, 5
        %v11351 = vsel %vm2195, %v11349, %v11350
        %v11352 = vrot.slane %v11228, 5
        %v11353 = vrot.slane %v11352, 4
        %v11354 = vrot.slane %v10495, 5
        %v11355 = vsel %vm2195, %v11353, %v11354
        %v11356 = vrot.slane %v11354, 4
        %v11357 = vrot.slane %v10496, 5
        %v11358 = vsel %vm2195, %v11356, %v11357
        %v11359 = vrot.slane %v11229, 5
        %v11360 = vrot.slane %v11359, 4
        %v11361 = vrot.slane %v10498, 5
        %v11362 = vsel %vm2195, %v11360, %v11361
        %v11363 = vrot.slane %v11361, 4
        %v11364 = vrot.slane %v10499, 5
        %v11365 = vsel %vm2195, %v11363, %v11364
        %v11366 = vrot.slane %v11230, 5
        %v11367 = vrot.slane %v11366, 4
        %v11368 = vrot.slane %v10501, 5
        %v11369 = vsel %vm2195, %v11367, %v11368
        %v11370 = vrot.slane %v11368, 4
        %v11371 = vrot.slane %v10502, 5
        %v11372 = vsel %vm2195, %v11370, %v11371
        %v11373 = vrot.slane %v11231, 5
        %v11374 = vrot.slane %v11373, 4
        %v11375 = vrot.slane %v10504, 5
        %v11376 = vsel %vm2195, %v11374, %v11375
        %v11377 = vrot.slane %v11375, 4
        %v11378 = vrot.slane %v10505, 5
        %v11379 = vsel %vm2195, %v11377, %v11378
        %v11380 = vrot.slane %v11232, 5
        %v11381 = vrot.slane %v11380, 4
        %v11382 = vrot.slane %v10507, 5
        %v11383 = vsel %vm2195, %v11381, %v11382
        %v11384 = vrot.slane %v11382, 4
        %v11385 = vrot.slane %v10508, 5
        %v11386 = vsel %vm2195, %v11384, %v11385
        %v11387 = vrot.slane %v11233, 5
        %v11388 = vrot.slane %v11387, 4
        %v11389 = vrot.slane %v10510, 5
        %v11390 = vsel %vm2195, %v11388, %v11389
        %v11391 = vrot.slane %v11389, 4
        %v11392 = vrot.slane %v10511, 5
        %v11393 = vsel %vm2195, %v11391, %v11392
        %s11394 = scalar_lea.vmem [#allocation7], 512
        %v11395 = vld [vmem:[%s11394] sm:$0xf]
        %v11396 = vld [vmem:[%s11394 + $0x4] sm:$0xf]
        %v11397 = vld [vmem:[%s11394 + $0x8] sm:$0xf]
        %v11398 = vld [vmem:[%s11394 + $0xc] sm:$0xf]
        %v11399 = vld [vmem:[%s11394 + $0x10] sm:$0xf]
        %v11400 = vld [vmem:[%s11394 + $0x14] sm:$0xf]
        %v11401 = vld [vmem:[%s11394 + $0x18] sm:$0xf]
        %v11402 = vld [vmem:[%s11394 + $0x1c] sm:$0xf]
        %v11403 = vld [vmem:[%s11394 + $0x20] sm:$0xf]
        %v11404 = vld [vmem:[%s11394 + $0x24] sm:$0xf]
        %v11405 = vld [vmem:[%s11394 + $0x28] sm:$0xf]
        %v11406 = vld [vmem:[%s11394 + $0x2c] sm:$0xf]
        %v11407 = vld [vmem:[%s11394 + $0x30] sm:$0xf]
        %v11408 = vld [vmem:[%s11394 + $0x34] sm:$0xf]
        %v11409 = vld [vmem:[%s11394 + $0x38] sm:$0xf]
        %v11410 = vld [vmem:[%s11394 + $0x3c] sm:$0xf]
        %v11411 = vunpack.c.l.b16 %v11285
        %v11412 = vunpack.c.l.b16 %v11288
        %v11413 = vunpack.c.l.b16 %v11292
        %v11414 = vunpack.c.l.b16 %v11295
        %v11415 = vunpack.c.l.b16 %v11299
        %v11416 = vunpack.c.l.b16 %v11302
        %v11417 = vunpack.c.l.b16 %v11306
        %v11418 = vunpack.c.l.b16 %v11309
        %v11419 = vunpack.c.l.b16 %v11313
        %v11420 = vunpack.c.l.b16 %v11316
        %v11421 = vunpack.c.l.b16 %v11320
        %v11422 = vunpack.c.l.b16 %v11323
        %v11423 = vunpack.c.l.b16 %v11327
        %v11424 = vunpack.c.l.b16 %v11330
        %v11425 = vunpack.c.l.b16 %v11334
        %v11426 = vunpack.c.l.b16 %v11337
        %v11427 = vunpack.c.l.b16 %v11341
        %v11428 = vunpack.c.l.b16 %v11344
        %v11429 = vunpack.c.l.b16 %v11348
        %v11430 = vunpack.c.l.b16 %v11351
        %v11431 = vunpack.c.l.b16 %v11355
        %v11432 = vunpack.c.l.b16 %v11358
        %v11433 = vunpack.c.l.b16 %v11362
        %v11434 = vunpack.c.l.b16 %v11365
        %v11435 = vunpack.c.l.b16 %v11369
        %v11436 = vunpack.c.l.b16 %v11372
        %v11437 = vunpack.c.l.b16 %v11376
        %v11438 = vunpack.c.l.b16 %v11379
        %v11439 = vunpack.c.l.b16 %v11383
        %v11440 = vunpack.c.l.b16 %v11386
        %v11441 = vunpack.c.l.b16 %v11390
        %v11442 = vunpack.c.l.b16 %v11393
        %v11443 = vpack.c.b16 %v11412, %v11411
        %v11444 = vpack.c.b16 %v11414, %v11413
        %v11445 = vpack.c.b16 %v11416, %v11415
        %v11446 = vpack.c.b16 %v11418, %v11417
        %v11447 = vpack.c.b16 %v11420, %v11419
        %v11448 = vpack.c.b16 %v11422, %v11421
        %v11449 = vpack.c.b16 %v11424, %v11423
        %v11450 = vpack.c.b16 %v11426, %v11425
        %v11451 = vpack.c.b16 %v11428, %v11427
        %v11452 = vpack.c.b16 %v11430, %v11429
        %v11453 = vpack.c.b16 %v11432, %v11431
        %v11454 = vpack.c.b16 %v11434, %v11433
        %v11455 = vpack.c.b16 %v11436, %v11435
        %v11456 = vpack.c.b16 %v11438, %v11437
        %v11457 = vpack.c.b16 %v11440, %v11439
        %v11458 = vpack.c.b16 %v11442, %v11441
        %v11491 = vunpack.c.l.b16 %v11395
        %v11492 = vunpack.c.l.b16 %v11396
        %v11493 = vunpack.c.l.b16 %v11397
        %v11494 = vunpack.c.l.b16 %v11398
        %v11495 = vunpack.c.l.b16 %v11399
        %v11496 = vunpack.c.l.b16 %v11400
        %v11497 = vunpack.c.l.b16 %v11401
        %v11498 = vunpack.c.l.b16 %v11402
        %v11499 = vunpack.c.l.b16 %v11403
        %v11500 = vunpack.c.l.b16 %v11404
        %v11501 = vunpack.c.l.b16 %v11405
        %v11502 = vunpack.c.l.b16 %v11406
        %v11503 = vunpack.c.l.b16 %v11407
        %v11504 = vunpack.c.l.b16 %v11408
        %v11505 = vunpack.c.l.b16 %v11409
        %v11506 = vunpack.c.l.b16 %v11410
        %v11507 = vpack.c.b16 %v11492, %v11491
        %v11508 = vpack.c.b16 %v11494, %v11493
        %v11509 = vpack.c.b16 %v11496, %v11495
        %v11510 = vpack.c.b16 %v11498, %v11497
        %v11511 = vpack.c.b16 %v11500, %v11499
        %v11512 = vpack.c.b16 %v11502, %v11501
        %v11513 = vpack.c.b16 %v11504, %v11503
        %v11514 = vpack.c.b16 %v11506, %v11505
        %11523 = vmatprep.subr.bf16.mxu0 0
        %11524 = vmatpush1.bf16.msra.mxu0 %v11507
        %11525 = vmatprep.subr.bf16.mxu0 0
        %11526 = vmatpush1.bf16.msra.mxu0 %v11508
        %11527 = vmatprep.subr.bf16.mxu0 0
        %11528 = vmatpush1.bf16.msra.mxu0 %v11509
        %11529 = vmatprep.subr.bf16.mxu0 0
        %11530 = vmatpush1.bf16.msra.mxu0 %v11510
        %11531 = vmatprep.subr.bf16.mxu0 0
        %11532 = vmatpush1.bf16.msra.mxu0 %v11511
        %11533 = vmatprep.subr.bf16.mxu0 0
        %11534 = vmatpush1.bf16.msra.mxu0 %v11512
        %11535 = vmatprep.subr.bf16.mxu0 0
        %11536 = vmatpush1.bf16.msra.mxu0 %v11513
        %11537 = vmatprep.subr.bf16.mxu0 0
        %11538 = vmatpush1.bf16.msra.mxu0 %v11514
        %11539 = vmatprep.subr.bf16.mxu0 0
        %11540 = vmatpush1.bf16.msra.mxu0 0
        %11541 = vmatprep.subr.bf16.mxu0 0
        %11542 = vmatpush1.bf16.msra.mxu0 0
        %11543 = vmatprep.subr.bf16.mxu0 0
        %11544 = vmatpush1.bf16.msra.mxu0 0
        %11545 = vmatprep.subr.bf16.mxu0 0
        %11546 = vmatpush1.bf16.msra.mxu0 0
        %11547 = vmatprep.subr.bf16.mxu0 0
        %11548 = vmatpush1.bf16.msra.mxu0 0
        %11549 = vmatprep.subr.bf16.mxu0 0
        %11550 = vmatpush1.bf16.msra.mxu0 0
        %11551 = vmatprep.subr.bf16.mxu0 0
        %11552 = vmatpush1.bf16.msra.mxu0 0
        %11553 = vmatprep.subr.bf16.mxu0 0
        %11554 = vmatpush1.bf16.msra.mxu0 0
        %11555 = vmatprep.mubr.bf16.mxu0 0
        %11556 = vmatmul.mubr.bf16.gmra.mrb[0].mxu0 %v11443
        %v11557 = vpop.f32.mrb[0].mxu0
        %v11558 = vadd.f32 0.0, %v11557
        %v11559 = vpop.f32.mrb[0].mxu0
        %v11560 = vpop.f32.mrb[0].mxu0
        %v11561 = vadd.f32 0.0, %v11560
        %v11562 = vpop.f32.mrb[0].mxu0
        %11563 = vmatprep.mubr.bf16.mxu0 0
        %11564 = vmatmul.mubr.bf16.gmra.mrb[0].mxu0 %v11444
        %v11565 = vpop.f32.mrb[0].mxu0
        %v11566 = vadd.f32 0.0, %v11565
        %v11567 = vpop.f32.mrb[0].mxu0
        %v11568 = vpop.f32.mrb[0].mxu0
        %v11569 = vadd.f32 0.0, %v11568
        %v11570 = vpop.f32.mrb[0].mxu0
        %11571 = vmatprep.mubr.bf16.mxu0 0
        %11572 = vmatmul.mubr.bf16.gmra.mrb[0].mxu0 %v11445
        %v11573 = vpop.f32.mrb[0].mxu0
        %v11574 = vadd.f32 0.0, %v11573
        %v11575 = vpop.f32.mrb[0].mxu0
        %v11576 = vpop.f32.mrb[0].mxu0
        %v11577 = vadd.f32 0.0, %v11576
        %v11578 = vpop.f32.mrb[0].mxu0
        %11579 = vmatprep.mubr.bf16.mxu0 0
        %11580 = vmatmul.mubr.bf16.gmra.mrb[0].mxu0 %v11446
        %v11581 = vpop.f32.mrb[0].mxu0
        %v11582 = vadd.f32 0.0, %v11581
        %v11583 = vpop.f32.mrb[0].mxu0
        %v11584 = vpop.f32.mrb[0].mxu0
        %v11585 = vadd.f32 0.0, %v11584
        %v11586 = vpop.f32.mrb[0].mxu0
        %11587 = vmatprep.mubr.bf16.mxu0 0
        %11588 = vmatmul.mubr.bf16.gmra.mrb[0].mxu0 %v11447
        %v11589 = vpop.f32.mrb[0].mxu0
        %v11590 = vadd.f32 0.0, %v11589
        %v11591 = vpop.f32.mrb[0].mxu0
        %v11592 = vpop.f32.mrb[0].mxu0
        %v11593 = vadd.f32 0.0, %v11592
        %v11594 = vpop.f32.mrb[0].mxu0
        %11595 = vmatprep.mubr.bf16.mxu0 0
        %11596 = vmatmul.mubr.bf16.gmra.mrb[0].mxu0 %v11448
        %v11597 = vpop.f32.mrb[0].mxu0
        %v11598 = vadd.f32 0.0, %v11597
        %v11599 = vpop.f32.mrb[0].mxu0
        %v11600 = vpop.f32.mrb[0].mxu0
        %v11601 = vadd.f32 0.0, %v11600
        %v11602 = vpop.f32.mrb[0].mxu0
        %11603 = vmatprep.mubr.bf16.mxu0 0
        %11604 = vmatmul.mubr.bf16.gmra.mrb[0].mxu0 %v11449
        %v11605 = vpop.f32.mrb[0].mxu0
        %v11606 = vadd.f32 0.0, %v11605
        %v11607 = vpop.f32.mrb[0].mxu0
        %v11608 = vpop.f32.mrb[0].mxu0
        %v11609 = vadd.f32 0.0, %v11608
        %v11610 = vpop.f32.mrb[0].mxu0
        %11611 = vmatprep.mubr.bf16.mxu0 0
        %11612 = vmatmul.mubr.bf16.gmra.mrb[0].mxu0 %v11450
        %v11613 = vpop.f32.mrb[0].mxu0
        %v11614 = vadd.f32 0.0, %v11613
        %v11615 = vpop.f32.mrb[0].mxu0
        %v11616 = vpop.f32.mrb[0].mxu0
        %v11617 = vadd.f32 0.0, %v11616
        %v11618 = vpop.f32.mrb[0].mxu0
        %11619 = vmatprep.mubr.bf16.mxu0 0
        %11620 = vmatmul.mubr.bf16.gmra.mrb[0].mxu0 %v11451
        %v11621 = vpop.f32.mrb[0].mxu0
        %v11622 = vadd.f32 0.0, %v11621
        %v11623 = vpop.f32.mrb[0].mxu0
        %v11624 = vpop.f32.mrb[0].mxu0
        %v11625 = vadd.f32 0.0, %v11624
        %v11626 = vpop.f32.mrb[0].mxu0
        %11627 = vmatprep.mubr.bf16.mxu0 0
        %11628 = vmatmul.mubr.bf16.gmra.mrb[0].mxu0 %v11452
        %v11629 = vpop.f32.mrb[0].mxu0
        %v11630 = vadd.f32 0.0, %v11629
        %v11631 = vpop.f32.mrb[0].mxu0
        %v11632 = vpop.f32.mrb[0].mxu0
        %v11633 = vadd.f32 0.0, %v11632
        %v11634 = vpop.f32.mrb[0].mxu0
        %11635 = vmatprep.mubr.bf16.mxu0 0
        %11636 = vmatmul.mubr.bf16.gmra.mrb[0].mxu0 %v11453
        %v11637 = vpop.f32.mrb[0].mxu0
        %v11638 = vadd.f32 0.0, %v11637
        %v11639 = vpop.f32.mrb[0].mxu0
        %v11640 = vpop.f32.mrb[0].mxu0
        %v11641 = vadd.f32 0.0, %v11640
        %v11642 = vpop.f32.mrb[0].mxu0
        %11643 = vmatprep.mubr.bf16.mxu0 0
        %11644 = vmatmul.mubr.bf16.gmra.mrb[0].mxu0 %v11454
        %v11645 = vpop.f32.mrb[0].mxu0
        %v11646 = vadd.f32 0.0, %v11645
        %v11647 = vpop.f32.mrb[0].mxu0
        %v11648 = vpop.f32.mrb[0].mxu0
        %v11649 = vadd.f32 0.0, %v11648
        %v11650 = vpop.f32.mrb[0].mxu0
        %11651 = vmatprep.mubr.bf16.mxu0 0
        %11652 = vmatmul.mubr.bf16.gmra.mrb[0].mxu0 %v11455
        %v11653 = vpop.f32.mrb[0].mxu0
        %v11654 = vadd.f32 0.0, %v11653
        %v11655 = vpop.f32.mrb[0].mxu0
        %v11656 = vpop.f32.mrb[0].mxu0
        %v11657 = vadd.f32 0.0, %v11656
        %v11658 = vpop.f32.mrb[0].mxu0
        %11659 = vmatprep.mubr.bf16.mxu0 0
        %11660 = vmatmul.mubr.bf16.gmra.mrb[0].mxu0 %v11456
        %v11661 = vpop.f32.mrb[0].mxu0
        %v11662 = vadd.f32 0.0, %v11661
        %v11663 = vpop.f32.mrb[0].mxu0
        %v11664 = vpop.f32.mrb[0].mxu0
        %v11665 = vadd.f32 0.0, %v11664
        %v11666 = vpop.f32.mrb[0].mxu0
        %11667 = vmatprep.mubr.bf16.mxu0 0
        %11668 = vmatmul.mubr.bf16.gmra.mrb[0].mxu0 %v11457
        %v11669 = vpop.f32.mrb[0].mxu0
        %v11670 = vadd.f32 0.0, %v11669
        %v11671 = vpop.f32.mrb[0].mxu0
        %v11672 = vpop.f32.mrb[0].mxu0
        %v11673 = vadd.f32 0.0, %v11672
        %v11674 = vpop.f32.mrb[0].mxu0
        %11675 = vmatprep.mubr.bf16.mxu0 0
        %11676 = vmatmul.mubr.bf16.gmra.mrb[0].mxu0 %v11458
        %v11677 = vpop.f32.mrb[0].mxu0
        %v11678 = vadd.f32 0.0, %v11677
        %v11679 = vpop.f32.mrb[0].mxu0
        %v11680 = vpop.f32.mrb[0].mxu0
        %v11681 = vadd.f32 0.0, %v11680
        %v11682 = vpop.f32.mrb[0].mxu0
        %11683 = vdwg.mxu0
        %v11684 = vadd.f32 %v11186, %v11558
        %v11685 = vadd.f32 %v11187, %v11561
        %v11686 = vadd.f32 %v11188, %v11566
        %v11687 = vadd.f32 %v11189, %v11569
        %v11688 = vadd.f32 %v11190, %v11574
        %v11689 = vadd.f32 %v11191, %v11577
        %v11690 = vadd.f32 %v11192, %v11582
        %v11691 = vadd.f32 %v11193, %v11585
        %v11692 = vadd.f32 %v11194, %v11590
        %v11693 = vadd.f32 %v11195, %v11593
        %v11694 = vadd.f32 %v11196, %v11598
        %v11695 = vadd.f32 %v11197, %v11601
        %v11696 = vadd.f32 %v11198, %v11606
        %v11697 = vadd.f32 %v11199, %v11609
        %v11698 = vadd.f32 %v11200, %v11614
        %v11699 = vadd.f32 %v11201, %v11617
        %v11700 = vadd.f32 %v11202, %v11622
        %v11701 = vadd.f32 %v11203, %v11625
        %v11702 = vadd.f32 %v11204, %v11630
        %v11703 = vadd.f32 %v11205, %v11633
        %v11704 = vadd.f32 %v11206, %v11638
        %v11705 = vadd.f32 %v11207, %v11641
        %v11706 = vadd.f32 %v11208, %v11646
        %v11707 = vadd.f32 %v11209, %v11649
        %v11708 = vadd.f32 %v11210, %v11654
        %v11709 = vadd.f32 %v11211, %v11657
        %v11710 = vadd.f32 %v11212, %v11662
        %v11711 = vadd.f32 %v11213, %v11665
        %v11712 = vadd.f32 %v11214, %v11670
        %v11713 = vadd.f32 %v11215, %v11673
        %v11714 = vadd.f32 %v11216, %v11678
        %v11715 = vadd.f32 %v11217, %v11681
        %11716 = vst [vmem:[#allocation3] sm:$0xff] %v11684
        %11717 = vst [vmem:[#allocation3 + $0x8] sm:$0xff] %v11685
        %11718 = vst [vmem:[#allocation3 + $0x10] sm:$0xff] %v11686
        %11719 = vst [vmem:[#allocation3 + $0x18] sm:$0xff] %v11687
        %11720 = vst [vmem:[#allocation3 + $0x20] sm:$0xff] %v11688
        %11721 = vst [vmem:[#allocation3 + $0x28] sm:$0xff] %v11689
        %11722 = vst [vmem:[#allocation3 + $0x30] sm:$0xff] %v11690
        %11723 = vst [vmem:[#allocation3 + $0x38] sm:$0xff] %v11691
        %11724 = vst [vmem:[#allocation3 + $0x40] sm:$0xff] %v11692
        %11725 = vst [vmem:[#allocation3 + $0x48] sm:$0xff] %v11693
        %11726 = vst [vmem:[#allocation3 + $0x50] sm:$0xff] %v11694
        %11727 = vst [vmem:[#allocation3 + $0x58] sm:$0xff] %v11695
        %11728 = vst [vmem:[#allocation3 + $0x60] sm:$0xff] %v11696
        %11729 = vst [vmem:[#allocation3 + $0x68] sm:$0xff] %v11697
        %11730 = vst [vmem:[#allocation3 + $0x70] sm:$0xff] %v11698
        %11731 = vst [vmem:[#allocation3 + $0x78] sm:$0xff] %v11699
        %11732 = vst [vmem:[#allocation3 + $0x80] sm:$0xff] %v11700
        %11733 = vst [vmem:[#allocation3 + $0x88] sm:$0xff] %v11701
        %11734 = vst [vmem:[#allocation3 + $0x90] sm:$0xff] %v11702
        %11735 = vst [vmem:[#allocation3 + $0x98] sm:$0xff] %v11703
        %11736 = vst [vmem:[#allocation3 + $0xa0] sm:$0xff] %v11704
        %11737 = vst [vmem:[#allocation3 + $0xa8] sm:$0xff] %v11705
        %11738 = vst [vmem:[#allocation3 + $0xb0] sm:$0xff] %v11706
        %11739 = vst [vmem:[#allocation3 + $0xb8] sm:$0xff] %v11707
        %11740 = vst [vmem:[#allocation3 + $0xc0] sm:$0xff] %v11708
        %11741 = vst [vmem:[#allocation3 + $0xc8] sm:$0xff] %v11709
        %11742 = vst [vmem:[#allocation3 + $0xd0] sm:$0xff] %v11710
        %11743 = vst [vmem:[#allocation3 + $0xd8] sm:$0xff] %v11711
        %11744 = vst [vmem:[#allocation3 + $0xe0] sm:$0xff] %v11712
        %11745 = vst [vmem:[#allocation3 + $0xe8] sm:$0xff] %v11713
        %11746 = vst [vmem:[#allocation3 + $0xf0] sm:$0xff] %v11714
        %11747 = vst [vmem:[#allocation3 + $0xf8] sm:$0xff] %v11715
        %v11748 = vadd.f32 %v11684, %v11685
        %v11749 = vadd.f32 %v11748, %v11686
        %v11750 = vadd.f32 %v11749, %v11687
        %v11751 = vadd.f32 %v11750, %v11688
        %v11752 = vadd.f32 %v11751, %v11689
        %v11753 = vadd.f32 %v11752, %v11690
        %v11754 = vadd.f32 %v11753, %v11691
        %v11755 = vadd.f32 %v11754, %v11692
        %v11756 = vadd.f32 %v11755, %v11693
        %v11757 = vadd.f32 %v11756, %v11694
        %v11758 = vadd.f32 %v11757, %v11695
        %v11759 = vadd.f32 %v11758, %v11696
        %v11760 = vadd.f32 %v11759, %v11697
        %v11761 = vadd.f32 %v11760, %v11698
        %v11762 = vadd.f32 %v11761, %v11699
        %v11763 = vadd.f32 %v11762, %v11700
        %v11764 = vadd.f32 %v11763, %v11701
        %v11765 = vadd.f32 %v11764, %v11702
        %v11766 = vadd.f32 %v11765, %v11703
        %v11767 = vadd.f32 %v11766, %v11704
        %v11768 = vadd.f32 %v11767, %v11705
        %v11769 = vadd.f32 %v11768, %v11706
        %v11770 = vadd.f32 %v11769, %v11707
        %v11771 = vadd.f32 %v11770, %v11708
        %v11772 = vadd.f32 %v11771, %v11709
        %v11773 = vadd.f32 %v11772, %v11710
        %v11774 = vadd.f32 %v11773, %v11711
        %v11775 = vadd.f32 %v11774, %v11712
        %v11776 = vadd.f32 %v11775, %v11713
        %v11777 = vadd.f32 %v11776, %v11714
        %v11778 = vadd.f32 %v11777, %v11715
        %v11779 = vrot.slane %v11778, 4
        %v11780 = vadd.f32 %v11778, %v11779
        %v11781 = vrot.slane %v11780, 2
        %v11782 = vadd.f32 %v11780, %v11781
        %v11783 = vrot.slane %v11782, 1
        %v11784 = vadd.f32 %v11782, %v11783
        %v11785 = vadd.f32 %v11784, 0.0
        %v11786 = vmul.f32 %v11785, 0.00390625
        %v11787 = vld [vmem:[%s1] sm:$0xff]
        %v11788 = vld [vmem:[%s1 + $0x8] sm:$0xff]
        %v11789 = vld [vmem:[%s1 + $0x10] sm:$0xff]
        %v11790 = vld [vmem:[%s1 + $0x18] sm:$0xff]
        %v11791 = vld [vmem:[%s1 + $0x20] sm:$0xff]
        %v11792 = vld [vmem:[%s1 + $0x28] sm:$0xff]
        %v11793 = vld [vmem:[%s1 + $0x30] sm:$0xff]
        %v11794 = vld [vmem:[%s1 + $0x38] sm:$0xff]
        %v11795 = vld [vmem:[%s1 + $0x40] sm:$0xff]
        %v11796 = vld [vmem:[%s1 + $0x48] sm:$0xff]
        %v11797 = vld [vmem:[%s1 + $0x50] sm:$0xff]
        %v11798 = vld [vmem:[%s1 + $0x58] sm:$0xff]
        %v11799 = vld [vmem:[%s1 + $0x60] sm:$0xff]
        %v11800 = vld [vmem:[%s1 + $0x68] sm:$0xff]
        %v11801 = vld [vmem:[%s1 + $0x70] sm:$0xff]
        %v11802 = vld [vmem:[%s1 + $0x78] sm:$0xff]
        %11803 = vmatprep.subr.mxu0 0.0
        %11804 = vmatpush1.msra.mxu0 %v11787
        %11805 = vmatprep.subr.mxu0 0.0
        %11806 = vmatpush1.msra.mxu0 %v11788
        %11807 = vmatprep.subr.mxu0 0.0
        %11808 = vmatpush1.msra.mxu0 %v11789
        %11809 = vmatprep.subr.mxu0 0.0
        %11810 = vmatpush1.msra.mxu0 %v11790
        %11811 = vmatprep.subr.mxu0 0.0
        %11812 = vmatpush1.msra.mxu0 %v11791
        %11813 = vmatprep.subr.mxu0 0.0
        %11814 = vmatpush1.msra.mxu0 %v11792
        %11815 = vmatprep.subr.mxu0 0.0
        %11816 = vmatpush1.msra.mxu0 %v11793
        %11817 = vmatprep.subr.mxu0 0.0
        %11818 = vmatpush1.msra.mxu0 %v11794
        %11819 = vmatprep.subr.mxu0 0.0
        %11820 = vmatpush1.msra.mxu0 %v11795
        %11821 = vmatprep.subr.mxu0 0.0
        %11822 = vmatpush1.msra.mxu0 %v11796
        %11823 = vmatprep.subr.mxu0 0.0
        %11824 = vmatpush1.msra.mxu0 %v11797
        %11825 = vmatprep.subr.mxu0 0.0
        %11826 = vmatpush1.msra.mxu0 %v11798
        %11827 = vmatprep.subr.mxu0 0.0
        %11828 = vmatpush1.msra.mxu0 %v11799
        %11829 = vmatprep.subr.mxu0 0.0
        %11830 = vmatpush1.msra.mxu0 %v11800
        %11831 = vmatprep.subr.mxu0 0.0
        %11832 = vmatpush1.msra.mxu0 %v11801
        %11833 = vmatprep.subr.mxu0 0.0
        %11834 = vmatpush1.msra.mxu0 %v11802
        %11835 = vmatprep.subr.mxu0 0.0
        %11836 = vmatpush1.msra.mxu0 0.0
        %11837 = vmatprep.subr.mxu0 0.0
        %11838 = vmatpush1.msra.mxu0 0.0
        %11839 = vmatprep.subr.mxu0 0.0
        %11840 = vmatpush1.msra.mxu0 0.0
        %11841 = vmatprep.subr.mxu0 0.0
        %11842 = vmatpush1.msra.mxu0 0.0
        %11843 = vmatprep.subr.mxu0 0.0
        %11844 = vmatpush1.msra.mxu0 0.0
        %11845 = vmatprep.subr.mxu0 0.0
        %11846 = vmatpush1.msra.mxu0 0.0
        %11847 = vmatprep.subr.mxu0 0.0
        %11848 = vmatpush1.msra.mxu0 0.0
        %11849 = vmatprep.subr.mxu0 0.0
        %11850 = vmatpush1.msra.mxu0 0.0
        %11851 = vmatprep.subr.mxu0 0.0
        %11852 = vmatpush1.msra.mxu0 0.0
        %11853 = vmatprep.subr.mxu0 0.0
        %11854 = vmatpush1.msra.mxu0 0.0
        %11855 = vmatprep.subr.mxu0 0.0
        %11856 = vmatpush1.msra.mxu0 0.0
        %11857 = vmatprep.subr.mxu0 0.0
        %11858 = vmatpush1.msra.mxu0 0.0
        %11859 = vmatprep.subr.mxu0 0.0
        %11860 = vmatpush1.msra.mxu0 0.0
        %11861 = vmatprep.subr.mxu0 0.0
        %11862 = vmatpush1.msra.mxu0 0.0
        %11863 = vmatprep.subr.mxu0 0.0
        %11864 = vmatpush1.msra.mxu0 0.0
        %11865 = vmatprep.subr.mxu0 0.0
        %11866 = vmatpush1.msra.mxu0 0.0
        %11867 = vmatprep.mubr.f32.mxu0 0.0
        %11868 = vmatmul.mubr.f32.gmra.mrb[0].mxu0 %v11786
        %v11869 = vpop.f32.mrb[0].mxu0
        %v11870 = vadd.f32 0.0, %v11869
        %v11871 = vpop.f32.mrb[0].mxu0
        %11872 = vdwg.mxu0
        %v11873 = vld [vmem:[#allocation3] sm:$0xff]
        %v11874 = vld [vmem:[#allocation3 + $0x8] sm:$0xff]
        %v11875 = vld [vmem:[#allocation3 + $0x10] sm:$0xff]
        %v11876 = vld [vmem:[#allocation3 + $0x18] sm:$0xff]
        %v11877 = vld [vmem:[#allocation3 + $0x20] sm:$0xff]
        %v11878 = vld [vmem:[#allocation3 + $0x28] sm:$0xff]
        %v11879 = vld [vmem:[#allocation3 + $0x30] sm:$0xff]
        %v11880 = vld [vmem:[#allocation3 + $0x38] sm:$0xff]
        %v11881 = vld [vmem:[#allocation3 + $0x40] sm:$0xff]
        %v11882 = vld [vmem:[#allocation3 + $0x48] sm:$0xff]
        %v11883 = vld [vmem:[#allocation3 + $0x50] sm:$0xff]
        %v11884 = vld [vmem:[#allocation3 + $0x58] sm:$0xff]
        %v11885 = vld [vmem:[#allocation3 + $0x60] sm:$0xff]
        %v11886 = vld [vmem:[#allocation3 + $0x68] sm:$0xff]
        %v11887 = vld [vmem:[#allocation3 + $0x70] sm:$0xff]
        %v11888 = vld [vmem:[#allocation3 + $0x78] sm:$0xff]
        %v11889 = vld [vmem:[#allocation3 + $0x80] sm:$0xff]
        %v11890 = vld [vmem:[#allocation3 + $0x88] sm:$0xff]
        %v11891 = vld [vmem:[#allocation3 + $0x90] sm:$0xff]
        %v11892 = vld [vmem:[#allocation3 + $0x98] sm:$0xff]
        %v11893 = vld [vmem:[#allocation3 + $0xa0] sm:$0xff]
        %v11894 = vld [vmem:[#allocation3 + $0xa8] sm:$0xff]
        %v11895 = vld [vmem:[#allocation3 + $0xb0] sm:$0xff]
        %v11896 = vld [vmem:[#allocation3 + $0xb8] sm:$0xff]
        %v11897 = vld [vmem:[#allocation3 + $0xc0] sm:$0xff]
        %v11898 = vld [vmem:[#allocation3 + $0xc8] sm:$0xff]
        %v11899 = vld [vmem:[#allocation3 + $0xd0] sm:$0xff]
        %v11900 = vld [vmem:[#allocation3 + $0xd8] sm:$0xff]
        %v11901 = vld [vmem:[#allocation3 + $0xe0] sm:$0xff]
        %v11902 = vld [vmem:[#allocation3 + $0xe8] sm:$0xff]
        %v11903 = vld [vmem:[#allocation3 + $0xf0] sm:$0xff]
        %v11904 = vld [vmem:[#allocation3 + $0xf8] sm:$0xff]
        %v11905 = vlaneseq
        %v11906 = vshrl.u32 %v11905, 7
        %v11907 = vsub.s32 0, %v11906
        %v11908 = vrot.slane %v11870, %v11907
        %v11909 = vsub.f32 %v11873, %v11908
        %v11910 = vsub.f32 %v11874, %v11908
        %v11911 = vsub.f32 %v11875, %v11908
        %v11912 = vsub.f32 %v11876, %v11908
        %v11913 = vsub.f32 %v11877, %v11908
        %v11914 = vsub.f32 %v11878, %v11908
        %v11915 = vsub.f32 %v11879, %v11908
        %v11916 = vsub.f32 %v11880, %v11908
        %v11917 = vsub.f32 %v11881, %v11908
        %v11918 = vsub.f32 %v11882, %v11908
        %v11919 = vsub.f32 %v11883, %v11908
        %v11920 = vsub.f32 %v11884, %v11908
        %v11921 = vsub.f32 %v11885, %v11908
        %v11922 = vsub.f32 %v11886, %v11908
        %v11923 = vsub.f32 %v11887, %v11908
        %v11924 = vsub.f32 %v11888, %v11908
        %v11925 = vsub.f32 %v11889, %v11908
        %v11926 = vsub.f32 %v11890, %v11908
        %v11927 = vsub.f32 %v11891, %v11908
        %v11928 = vsub.f32 %v11892, %v11908
        %v11929 = vsub.f32 %v11893, %v11908
        %v11930 = vsub.f32 %v11894, %v11908
        %v11931 = vsub.f32 %v11895, %v11908
        %v11932 = vsub.f32 %v11896, %v11908
        %v11933 = vsub.f32 %v11897, %v11908
        %v11934 = vsub.f32 %v11898, %v11908
        %v11935 = vsub.f32 %v11899, %v11908
        %v11936 = vsub.f32 %v11900, %v11908
        %v11937 = vsub.f32 %v11901, %v11908
        %v11938 = vsub.f32 %v11902, %v11908
        %v11939 = vsub.f32 %v11903, %v11908
        %v11940 = vsub.f32 %v11904, %v11908
        %v11941 = vmul.f32 %v11909, %v11909
        %v11942 = vmul.f32 %v11910, %v11910
        %v11943 = vmul.f32 %v11911, %v11911
        %v11944 = vmul.f32 %v11912, %v11912
        %v11945 = vmul.f32 %v11913, %v11913
        %v11946 = vmul.f32 %v11914, %v11914
        %v11947 = vmul.f32 %v11915, %v11915
        %v11948 = vmul.f32 %v11916, %v11916
        %v11949 = vmul.f32 %v11917, %v11917
        %v11950 = vmul.f32 %v11918, %v11918
        %v11951 = vmul.f32 %v11919, %v11919
        %v11952 = vmul.f32 %v11920, %v11920
        %v11953 = vmul.f32 %v11921, %v11921
        %v11954 = vmul.f32 %v11922, %v11922
        %v11955 = vmul.f32 %v11923, %v11923
        %v11956 = vmul.f32 %v11924, %v11924
        %v11957 = vmul.f32 %v11925, %v11925
        %v11958 = vmul.f32 %v11926, %v11926
        %v11959 = vmul.f32 %v11927, %v11927
        %v11960 = vmul.f32 %v11928, %v11928
        %v11961 = vmul.f32 %v11929, %v11929
        %v11962 = vmul.f32 %v11930, %v11930
        %v11963 = vmul.f32 %v11931, %v11931
        %v11964 = vmul.f32 %v11932, %v11932
        %v11965 = vmul.f32 %v11933, %v11933
        %v11966 = vmul.f32 %v11934, %v11934
        %v11967 = vmul.f32 %v11935, %v11935
        %v11968 = vmul.f32 %v11936, %v11936
        %v11969 = vmul.f32 %v11937, %v11937
        %v11970 = vmul.f32 %v11938, %v11938
        %v11971 = vmul.f32 %v11939, %v11939
        %v11972 = vmul.f32 %v11940, %v11940
        %v11973 = vadd.f32 %v11941, %v11942
        %v11974 = vadd.f32 %v11973, %v11943
        %v11975 = vadd.f32 %v11974, %v11944
        %v11976 = vadd.f32 %v11975, %v11945
        %v11977 = vadd.f32 %v11976, %v11946
        %v11978 = vadd.f32 %v11977, %v11947
        %v11979 = vadd.f32 %v11978, %v11948
        %v11980 = vadd.f32 %v11979, %v11949
        %v11981 = vadd.f32 %v11980, %v11950
        %v11982 = vadd.f32 %v11981, %v11951
        %v11983 = vadd.f32 %v11982, %v11952
        %v11984 = vadd.f32 %v11983, %v11953
        %v11985 = vadd.f32 %v11984, %v11954
        %v11986 = vadd.f32 %v11985, %v11955
        %v11987 = vadd.f32 %v11986, %v11956
        %v11988 = vadd.f32 %v11987, %v11957
        %v11989 = vadd.f32 %v11988, %v11958
        %v11990 = vadd.f32 %v11989, %v11959
        %v11991 = vadd.f32 %v11990, %v11960
        %v11992 = vadd.f32 %v11991, %v11961
        %v11993 = vadd.f32 %v11992, %v11962
        %v11994 = vadd.f32 %v11993, %v11963
        %v11995 = vadd.f32 %v11994, %v11964
        %v11996 = vadd.f32 %v11995, %v11965
        %v11997 = vadd.f32 %v11996, %v11966
        %v11998 = vadd.f32 %v11997, %v11967
        %v11999 = vadd.f32 %v11998, %v11968
        %v12000 = vadd.f32 %v11999, %v11969
        %v12001 = vadd.f32 %v12000, %v11970
        %v12002 = vadd.f32 %v12001, %v11971
        %v12003 = vadd.f32 %v12002, %v11972
        %v12004 = vrot.slane %v12003, 4
        %v12005 = vadd.f32 %v12003, %v12004
        %v12006 = vrot.slane %v12005, 2
        %v12007 = vadd.f32 %v12005, %v12006
        %v12008 = vrot.slane %v12007, 1
        %v12009 = vadd.f32 %v12007, %v12008
        %v12010 = vadd.f32 %v12009, 0.0
        %v12011 = vmul.f32 %v12010, 0.00390625
        %v12012 = vld [vmem:[%s8] sm:$0x1]
        %12013 = vmatprep.subr.mxu0 0.0
        %12014 = vmatpush1.msra.mxu0 %v11787
        %12015 = vmatprep.subr.mxu0 0.0
        %12016 = vmatpush1.msra.mxu0 %v11788
        %12017 = vmatprep.subr.mxu0 0.0
        %12018 = vmatpush1.msra.mxu0 %v11789
        %12019 = vmatprep.subr.mxu0 0.0
        %12020 = vmatpush1.msra.mxu0 %v11790
        %12021 = vmatprep.subr.mxu0 0.0
        %12022 = vmatpush1.msra.mxu0 %v11791
        %12023 = vmatprep.subr.mxu0 0.0
        %12024 = vmatpush1.msra.mxu0 %v11792
        %12025 = vmatprep.subr.mxu0 0.0
        %12026 = vmatpush1.msra.mxu0 %v11793
        %12027 = vmatprep.subr.mxu0 0.0
        %12028 = vmatpush1.msra.mxu0 %v11794
        %12029 = vmatprep.subr.mxu0 0.0
        %12030 = vmatpush1.msra.mxu0 %v11795
        %12031 = vmatprep.subr.mxu0 0.0
        %12032 = vmatpush1.msra.mxu0 %v11796
        %12033 = vmatprep.subr.mxu0 0.0
        %12034 = vmatpush1.msra.mxu0 %v11797
        %12035 = vmatprep.subr.mxu0 0.0
        %12036 = vmatpush1.msra.mxu0 %v11798
        %12037 = vmatprep.subr.mxu0 0.0
        %12038 = vmatpush1.msra.mxu0 %v11799
        %12039 = vmatprep.subr.mxu0 0.0
        %12040 = vmatpush1.msra.mxu0 %v11800
        %12041 = vmatprep.subr.mxu0 0.0
        %12042 = vmatpush1.msra.mxu0 %v11801
        %12043 = vmatprep.subr.mxu0 0.0
        %12044 = vmatpush1.msra.mxu0 %v11802
        %12045 = vmatprep.subr.mxu0 0.0
        %12046 = vmatpush1.msra.mxu0 0.0
        %12047 = vmatprep.subr.mxu0 0.0
        %12048 = vmatpush1.msra.mxu0 0.0
        %12049 = vmatprep.subr.mxu0 0.0
        %12050 = vmatpush1.msra.mxu0 0.0
        %12051 = vmatprep.subr.mxu0 0.0
        %12052 = vmatpush1.msra.mxu0 0.0
        %12053 = vmatprep.subr.mxu0 0.0
        %12054 = vmatpush1.msra.mxu0 0.0
        %12055 = vmatprep.subr.mxu0 0.0
        %12056 = vmatpush1.msra.mxu0 0.0
        %12057 = vmatprep.subr.mxu0 0.0
        %12058 = vmatpush1.msra.mxu0 0.0
        %12059 = vmatprep.subr.mxu0 0.0
        %12060 = vmatpush1.msra.mxu0 0.0
        %12061 = vmatprep.subr.mxu0 0.0
        %12062 = vmatpush1.msra.mxu0 0.0
        %12063 = vmatprep.subr.mxu0 0.0
        %12064 = vmatpush1.msra.mxu0 0.0
        %12065 = vmatprep.subr.mxu0 0.0
        %12066 = vmatpush1.msra.mxu0 0.0
        %12067 = vmatprep.subr.mxu0 0.0
        %12068 = vmatpush1.msra.mxu0 0.0
        %12069 = vmatprep.subr.mxu0 0.0
        %12070 = vmatpush1.msra.mxu0 0.0
        %12071 = vmatprep.subr.mxu0 0.0
        %12072 = vmatpush1.msra.mxu0 0.0
        %12073 = vmatprep.subr.mxu0 0.0
        %12074 = vmatpush1.msra.mxu0 0.0
        %12075 = vmatprep.subr.mxu0 0.0
        %12076 = vmatpush1.msra.mxu0 0.0
        %12077 = vmatprep.mubr.f32.mxu0 0.0
        %12078 = vmatmul.mubr.f32.gmra.mrb[0].mxu0 %v12011
        %v12079 = vpop.f32.mrb[0].mxu0
        %v12080 = vadd.f32 1e-05, %v12079
        %v12081 = vpop.f32.mrb[0].mxu0
        %12082 = vdwg.mxu0
        %v12083 = vrsqrt.pop %v12080
        %v12084 = vmul.f32 %v12012, %v12083
        %v12085 = vld [vmem:[%s9] sm:$0x1]
        %v12086 = vmul.f32 %v11870, %v12084
        %v12087 = vsub.f32 %v12085, %v12086
        %v12089 = vlaneseq
        %v12090 = vshrl.u32 %v12089, 7
        %v12091 = vsub.s32 0, %v12090
        %v12092 = vrot.slane %v12084, %v12091
        %v12094 = vmul.f32 %v11873, %v12092
        %v12095 = vmul.f32 %v11874, %v12092
        %v12096 = vmul.f32 %v11875, %v12092
        %v12097 = vmul.f32 %v11876, %v12092
        %v12098 = vmul.f32 %v11877, %v12092
        %v12099 = vmul.f32 %v11878, %v12092
        %v12100 = vmul.f32 %v11879, %v12092
        %v12101 = vmul.f32 %v11880, %v12092
        %v12102 = vmul.f32 %v11881, %v12092
        %v12103 = vmul.f32 %v11882, %v12092
        %v12104 = vmul.f32 %v11883, %v12092
        %v12105 = vmul.f32 %v11884, %v12092
        %v12106 = vmul.f32 %v11885, %v12092
        %v12107 = vmul.f32 %v11886, %v12092
        %v12108 = vmul.f32 %v11887, %v12092
        %v12109 = vmul.f32 %v11888, %v12092
        %v12110 = vmul.f32 %v11889, %v12092
        %v12111 = vmul.f32 %v11890, %v12092
        %v12112 = vmul.f32 %v11891, %v12092
        %v12113 = vmul.f32 %v11892, %v12092
        %v12114 = vmul.f32 %v11893, %v12092
        %v12115 = vmul.f32 %v11894, %v12092
        %v12116 = vmul.f32 %v11895, %v12092
        %v12117 = vmul.f32 %v11896, %v12092
        %v12118 = vmul.f32 %v11897, %v12092
        %v12119 = vmul.f32 %v11898, %v12092
        %v12120 = vmul.f32 %v11899, %v12092
        %v12121 = vmul.f32 %v11900, %v12092
        %v12122 = vmul.f32 %v11901, %v12092
        %v12123 = vmul.f32 %v11902, %v12092
        %v12124 = vmul.f32 %v11903, %v12092
        %v12125 = vmul.f32 %v11904, %v12092
        %v12127 = vlaneseq
        %v12128 = vshrl.u32 %v12127, 7
        %v12129 = vsub.s32 0, %v12128
        %v12130 = vrot.slane %v12087, %v12129
        %v12132 = vadd.f32 %v12094, %v12130
        %v12133 = vadd.f32 %v12095, %v12130
        %v12134 = vadd.f32 %v12096, %v12130
        %v12135 = vadd.f32 %v12097, %v12130
        %v12136 = vadd.f32 %v12098, %v12130
        %v12137 = vadd.f32 %v12099, %v12130
        %v12138 = vadd.f32 %v12100, %v12130
        %v12139 = vadd.f32 %v12101, %v12130
        %v12140 = vadd.f32 %v12102, %v12130
        %v12141 = vadd.f32 %v12103, %v12130
        %v12142 = vadd.f32 %v12104, %v12130
        %v12143 = vadd.f32 %v12105, %v12130
        %v12144 = vadd.f32 %v12106, %v12130
        %v12145 = vadd.f32 %v12107, %v12130
        %v12146 = vadd.f32 %v12108, %v12130
        %v12147 = vadd.f32 %v12109, %v12130
        %v12148 = vadd.f32 %v12110, %v12130
        %v12149 = vadd.f32 %v12111, %v12130
        %v12150 = vadd.f32 %v12112, %v12130
        %v12151 = vadd.f32 %v12113, %v12130
        %v12152 = vadd.f32 %v12114, %v12130
        %v12153 = vadd.f32 %v12115, %v12130
        %v12154 = vadd.f32 %v12116, %v12130
        %v12155 = vadd.f32 %v12117, %v12130
        %v12156 = vadd.f32 %v12118, %v12130
        %v12157 = vadd.f32 %v12119, %v12130
        %v12158 = vadd.f32 %v12120, %v12130
        %v12159 = vadd.f32 %v12121, %v12130
        %v12160 = vadd.f32 %v12122, %v12130
        %v12161 = vadd.f32 %v12123, %v12130
        %v12162 = vadd.f32 %v12124, %v12130
        %v12163 = vadd.f32 %v12125, %v12130
        %v12164 = vmax.f32 %v12132, 0.0
        %v12165 = vmax.f32 %v12133, 0.0
        %v12166 = vmax.f32 %v12134, 0.0
        %v12167 = vmax.f32 %v12135, 0.0
        %v12168 = vmax.f32 %v12136, 0.0
        %v12169 = vmax.f32 %v12137, 0.0
        %v12170 = vmax.f32 %v12138, 0.0
        %v12171 = vmax.f32 %v12139, 0.0
        %v12172 = vmax.f32 %v12140, 0.0
        %v12173 = vmax.f32 %v12141, 0.0
        %v12174 = vmax.f32 %v12142, 0.0
        %v12175 = vmax.f32 %v12143, 0.0
        %v12176 = vmax.f32 %v12144, 0.0
        %v12177 = vmax.f32 %v12145, 0.0
        %v12178 = vmax.f32 %v12146, 0.0
        %v12179 = vmax.f32 %v12147, 0.0
        %v12180 = vmax.f32 %v12148, 0.0
        %v12181 = vmax.f32 %v12149, 0.0
        %v12182 = vmax.f32 %v12150, 0.0
        %v12183 = vmax.f32 %v12151, 0.0
        %v12184 = vmax.f32 %v12152, 0.0
        %v12185 = vmax.f32 %v12153, 0.0
        %v12186 = vmax.f32 %v12154, 0.0
        %v12187 = vmax.f32 %v12155, 0.0
        %v12188 = vmax.f32 %v12156, 0.0
        %v12189 = vmax.f32 %v12157, 0.0
        %v12190 = vmax.f32 %v12158, 0.0
        %v12191 = vmax.f32 %v12159, 0.0
        %v12192 = vmax.f32 %v12160, 0.0
        %v12193 = vmax.f32 %v12161, 0.0
        %v12194 = vmax.f32 %v12162, 0.0
        %v12195 = vmax.f32 %v12163, 0.0
        %v12196 = vpack.c.bf16 %v12165, %v12164
        %v12197 = vpack.c.bf16 %v12167, %v12166
        %v12198 = vpack.c.bf16 %v12169, %v12168
        %v12199 = vpack.c.bf16 %v12171, %v12170
        %v12200 = vpack.c.bf16 %v12173, %v12172
        %v12201 = vpack.c.bf16 %v12175, %v12174
        %v12202 = vpack.c.bf16 %v12177, %v12176
        %v12203 = vpack.c.bf16 %v12179, %v12178
        %v12204 = vpack.c.bf16 %v12181, %v12180
        %v12205 = vpack.c.bf16 %v12183, %v12182
        %v12206 = vpack.c.bf16 %v12185, %v12184
        %v12207 = vpack.c.bf16 %v12187, %v12186
        %v12208 = vpack.c.bf16 %v12189, %v12188
        %v12209 = vpack.c.bf16 %v12191, %v12190
        %v12210 = vpack.c.bf16 %v12193, %v12192
        %v12211 = vpack.c.bf16 %v12195, %v12194
        %12213 = vset.pattern.permute.xlu0 0
        %12214 = vperm.xlu0 %12213, %v1097
        %v12215 = vpop.permute.xlu0 %12214
        %12218 = vset.pattern.permute.xlu0 0
        %12219 = vperm.xlu0 %12218, %v1098
        %v12220 = vpop.permute.xlu0 %12219
        %v12224 = vunpack.c.l.b16 %v1095
        %v12225 = vunpack.c.l.b16 %v1096
        %v12226 = vpack.c.b16 %v12225, %v12224
        %12228 = vmatprep.subr.bf16.mxu0 0
        %12229 = vmatpush1.bf16.xpose.msra.mxu0 %v12196
        %12230 = vmatprep.subr.bf16.mxu0 0
        %12231 = vmatpush1.bf16.xpose.msra.mxu0 %v12197
        %12232 = vmatprep.subr.bf16.mxu0 0
        %12233 = vmatpush1.bf16.xpose.msra.mxu0 %v12198
        %12234 = vmatprep.subr.bf16.mxu0 0
        %12235 = vmatpush1.bf16.xpose.msra.mxu0 %v12199
        %12236 = vmatprep.subr.bf16.mxu0 0
        %12237 = vmatpush1.bf16.xpose.msra.mxu0 %v12200
        %12238 = vmatprep.subr.bf16.mxu0 0
        %12239 = vmatpush1.bf16.xpose.msra.mxu0 %v12201
        %12240 = vmatprep.subr.bf16.mxu0 0
        %12241 = vmatpush1.bf16.xpose.msra.mxu0 %v12202
        %12242 = vmatprep.subr.bf16.mxu0 0
        %12243 = vmatpush1.bf16.xpose.msra.mxu0 %v12203
        %12244 = vmatprep.subr.bf16.mxu0 0
        %12245 = vmatpush1.bf16.xpose.msra.mxu0 %v12204
        %12246 = vmatprep.subr.bf16.mxu0 0
        %12247 = vmatpush1.bf16.xpose.msra.mxu0 %v12205
        %12248 = vmatprep.subr.bf16.mxu0 0
        %12249 = vmatpush1.bf16.xpose.msra.mxu0 %v12206
        %12250 = vmatprep.subr.bf16.mxu0 0
        %12251 = vmatpush1.bf16.xpose.msra.mxu0 %v12207
        %12252 = vmatprep.subr.bf16.mxu0 0
        %12253 = vmatpush1.bf16.xpose.msra.mxu0 %v12208
        %12254 = vmatprep.subr.bf16.mxu0 0
        %12255 = vmatpush1.bf16.xpose.msra.mxu0 %v12209
        %12256 = vmatprep.subr.bf16.mxu0 0
        %12257 = vmatpush1.bf16.xpose.msra.mxu0 %v12210
        %12258 = vmatprep.subr.bf16.mxu0 0
        %12259 = vmatpush1.bf16.xpose.msra.mxu0 %v12211
        %12260 = vmatprep.mubr.bf16.mxu0 0
        %12261 = vmatmul.mubr.bf16.gmra.mrb[0].mxu0 %v12226
        %v12262 = vpop.f32.mrb[0].mxu0
        %v12263 = vadd.f32 %v12215, %v12262
        %v12264 = vpop.f32.mrb[0].mxu0
        %v12265 = vadd.f32 %v12215, %v12264
        %v12266 = vpop.f32.mrb[0].mxu0
        %v12267 = vadd.f32 %v12220, %v12266
        %v12268 = vpop.f32.mrb[0].mxu0
        %v12269 = vadd.f32 %v12220, %v12268
        %12270 = vdwg.mxu0
        %12271 = vst [vmem:[%s382] sm:$0xff] %v12263
        %12272 = vst [vmem:[%s382 + $0x8] sm:$0xff] %v12265
        %12273 = vst [vmem:[%s382 + $0x10] sm:$0xff] %v12267
        %12274 = vst [vmem:[%s382 + $0x18] sm:$0xff] %v12269
        %s12275 = sand.u32 %s249, 1
        %s12276 = scalar_lea.sflag [#allocation6], %s12275
        %s12277 = sand.u32 %s249, 1
        %s12278 = smul.addr %s12277, 32
        %s12279 = scalar_lea.vmem [#allocation9], %s12278
        // Predicated region
        $region69: #{tpu_custom_call.1} parent=59 // pred_check
          %p12280 = pneg %p259
        $region70: #{tpu_custom_call.1} parent=59 // pred_check_branch
          %12282 = sbr.rel (%p12280) target = $region72
        $region71: #{tpu_custom_call.1} parent=59 // pred_region
          %s12284 = ssub.s32 512, 512
          %12285 = vsyncadd %s12276, %s12284
          %s12286 = smul.addr %s26, 4
          %s12287 = smul.addr %s12286, 128
          %s12288 = scalar_lea.hbm %s10, %s12287
          %s12289 = sshll.u32 %s12279, 4
          %s12290 = int_to_ptr.vmem [resolvable:$true] %s12289
          %12295 = dma.vmem_to_hbm [thread:$0]  %s12290, 512, %s12288, %s12276, 256, 256, 16
        $region72: #{tpu_custom_call.1} parent=59 // pred_fallthru
          _
      $region60: #{tpu_custom_call.1} parent=5 // pred_fallthru
        _
      %p12296 = scmp.le.s32.totalorder 2, %s21
      // Predicated region
      $region73: #{tpu_custom_call.1} parent=5 // pred_check
        %p12297 = pneg %p12296
      $region74: #{tpu_custom_call.1} parent=5 // pred_check_branch
        %12299 = sbr.rel (%p12297) target = $region76
      $region75: #{tpu_custom_call.1} parent=5 // pred_region
        %s12300 = ssub.s32 %s21, 2
        // Predicated region
        $region77: #{tpu_custom_call.1} parent=75 // pred_check
          %p12301 = pneg %p265
        $region78: #{tpu_custom_call.1} parent=75 // pred_check_branch
          %12303 = sbr.rel (%p12301) target = $region80
        $region79: #{tpu_custom_call.1} parent=75 // pred_region
          %s12304 = sand.u32 %s250, 1
          %s12305 = scalar_lea.sflag [#allocation6], %s12304
          %s12306 = sand.u32 %s250, 1
          %s12307 = smul.addr %s12306, 32
          %s12308 = scalar_lea.vmem [#allocation9], %s12307
          %12309 = dma.done %s12305, 512
        $region80: #{tpu_custom_call.1} parent=75 // pred_fallthru
          _
      $region76: #{tpu_custom_call.1} parent=5 // pred_fallthru
        _
    $region6: #{tpu_custom_call.1} parent=1 // loop_footer
      %s25 = sadd.s32 1, %s21
    $region7: #{tpu_custom_call.1} parent=1 // loop_footer_branch
      %20 = sbr.rel target = $region3
    $region8: #{tpu_custom_call.1} parent=1 // loop_exit
      _
    %12310 = vsyncpa [#allocation5], 1
    %s12311 = scalar_lea.sflag [#allocation5], 1
    %12312 = vsyncpa %s12311, 1
    %12313 = vsyncpa [#allocation8], 1
    %12314 = vsyncpa [#allocation6], 1
    %s12315 = scalar_lea.sflag [#allocation6], 1
    %12316 = vsyncpa %s12315, 1

</llo_original>
